<compile_context>
chip_gen: v5e
topology: v5e:2x2
jax: 0.10.0
libtpu: 0.0.40
codegen_flags: <defaults>
</compile_context>

<pallas_src>
import functools
import math

import jax
import jax.numpy as jnp
from jax import lax
from jax.experimental import pallas as pl
from jax.experimental.pallas import tpu as pltpu


# ----------------------------------------------------------------------------
# In-kernel math helpers (traced inside the Pallas kernels, operate on values)
# ----------------------------------------------------------------------------

def _layernorm(x, g, b, eps=1e-5):
    mu = jnp.mean(x, axis=-1, keepdims=True)
    xc = x - mu
    var = jnp.mean(xc * xc, axis=-1, keepdims=True)
    return xc * lax.rsqrt(var + eps) * g + b


def _mha(q_all, k_all, v_all, wo, *, B, Sq, Skv, H, Dh):
    """Multi-head attention.  q_all already carries the 1/sqrt(Dh) scale (folded into
    the Q weights at prep time).  Scores for every (batch, head) are stacked along
    sublanes so the softmax (max/exp/sum/divide, exact) runs as ONE set of vector ops;
    per-head outputs are lane-concatenated and projected by a single @ wo matmul.

    q_all: (B*Sq, H*Dh); k_all, v_all: (B*Skv, H*Dh); wo: (E, E) -> (B*Sq, E).
    B and H are tiny static constants, so the loops fully unroll into static slices.
    """
    E = H * Dh
    scores = []
    for b in range(B):
        for h in range(H):
            q = q_all[b * Sq:(b + 1) * Sq, h * Dh:(h + 1) * Dh]
            k = k_all[b * Skv:(b + 1) * Skv, h * Dh:(h + 1) * Dh]
            # q @ k^T without an explicit transpose: contract the last dims.
            scores.append(lax.dot_general(q, k, (((1,), (1,)), ((), ())),
                                          preferred_element_type=jnp.float32))
    s_all = scores[0] if len(scores) == 1 else jnp.concatenate(scores, axis=0)  # (B*H*Sq, Skv)
    m = jnp.max(s_all, axis=-1, keepdims=True)
    p = jnp.exp(s_all - m)
    p = p / jnp.sum(p, axis=-1, keepdims=True)        # exact divide (Skv is tiny)

    rows = []
    for b in range(B):
        heads = []
        for h in range(H):
            i = (b * H + h) * Sq
            v = v_all[b * Skv:(b + 1) * Skv, h * Dh:(h + 1) * Dh]
            heads.append(jnp.dot(p[i:i + Sq, :], v, preferred_element_type=jnp.float32))
        rows.append(heads[0] if H == 1 else jnp.concatenate(heads, axis=-1))    # (Sq, E)
    o = rows[0] if B == 1 else jnp.concatenate(rows, axis=0)                     # (B*Sq, E)
    return jnp.dot(o, wo, preferred_element_type=jnp.float32)


# ----------------------------------------------------------------------------
# Fused encoder stack: grid = (num_encoder_layers,)
# ----------------------------------------------------------------------------

def _encoder_stack_kernel(src_ref, in_w_ref, gvec_ref,
                          wqkv_ref, wo_ref, w1_ref, w2_ref, vec_ref,
                          h_src_ref, mem_ref, x_scr,
                          *, B, S, H, Dh, n_layers):
    E = H * Dh
    l = pl.program_id(0)

    # Prologue (layer 0 only): input linear projection; also emit it for the decoder.
    @pl.when(l == 0)
    def _():
        h = (jnp.dot(src_ref[...], in_w_ref[...], preferred_element_type=jnp.float32)
             + gvec_ref[0:1, :E])
        x_scr[...] = h
        h_src_ref[...] = h.astype(h_src_ref.dtype)

    x = x_scr[...]                                    # resident activation (B*S, E)
    vec = vec_ref[...]                                # (8, dff) packed bias/norm slab
    wqkv = wqkv_ref[...]                              # (E, 3E), Q part pre-scaled

    # --- self-attention sublayer (packed QKV) ---
    qkv = jnp.dot(x, wqkv, preferred_element_type=jnp.float32) + vec[0:1, :3 * E]
    sa = _mha(qkv[:, :E], qkv[:, E:2 * E], qkv[:, 2 * E:], wo_ref[...],
              B=B, Sq=S, Skv=S, H=H, Dh=Dh) + vec[1:2, :E]
    x = _layernorm(x + sa, vec[2:3, :E], vec[3:4, :E])

    # --- feed-forward sublayer ---
    hmid = jnp.maximum(
        jnp.dot(x, w1_ref[...], preferred_element_type=jnp.float32) + vec[4:5, :], 0.0)
    ff = jnp.dot(hmid, w2_ref[...], preferred_element_type=jnp.float32) + vec[5:6, :E]
    x = _layernorm(x + ff, vec[6:7, :E], vec[7:8, :E])
    x_scr[...] = x

    # Epilogue (last layer): final encoder LayerNorm -> memory.
    @pl.when(l == n_layers - 1)
    def _():
        mem_ref[...] = _layernorm(x, gvec_ref[1:2, :E],
                                  gvec_ref[2:3, :E]).astype(mem_ref.dtype)


def encoder_stack(src2d, prep, *, B, S, H):
    M, Fin = src2d.shape
    E = prep["in_w"].shape[1]
    Dh = E // H
    ep = prep["enc"]
    L = ep["wqkv"].shape[0]
    dff = ep["w1"].shape[2]
    kernel = functools.partial(_encoder_stack_kernel, B=B, S=S, H=H, Dh=Dh, n_layers=L)
    return pl.pallas_call(
        kernel,
        out_shape=(jax.ShapeDtypeStruct((M, E), jnp.float32),
                   jax.ShapeDtypeStruct((M, E), jnp.float32)),
        grid_spec=pltpu.PrefetchScalarGridSpec(
            num_scalar_prefetch=0,
            grid=(L,),
            in_specs=[
                pl.BlockSpec((M, Fin), lambda l: (0, 0)),          # src (resident)
                pl.BlockSpec((Fin, E), lambda l: (0, 0)),          # in_w
                pl.BlockSpec((8, E), lambda l: (0, 0)),            # in_b / enc norm
                pl.BlockSpec((None, E, 3 * E), lambda l: (l, 0, 0)),
                pl.BlockSpec((None, E, E), lambda l: (l, 0, 0)),
                pl.BlockSpec((None, E, dff), lambda l: (l, 0, 0)),
                pl.BlockSpec((None, dff, E), lambda l: (l, 0, 0)),
                pl.BlockSpec((None, 8, dff), lambda l: (l, 0, 0)),
            ],
            out_specs=(pl.BlockSpec((M, E), lambda l: (0, 0)),     # h_src (written @ l==0)
                       pl.BlockSpec((M, E), lambda l: (0, 0))),    # memory (written @ last)
            scratch_shapes=[pltpu.VMEM((M, E), jnp.float32)],
        ),
        compiler_params=pltpu.CompilerParams(dimension_semantics=("arbitrary",)),
    )(src2d, prep["in_w"], prep["enc_gvec"],
      ep["wqkv"], ep["wo"], ep["w1"], ep["w2"], ep["vec"])


# ----------------------------------------------------------------------------
# Fused decoder stack: grid = (num_decoder_layers,), epilogue = final LN + fc
# ----------------------------------------------------------------------------

def _decoder_stack_kernel(h_tgt_ref, mem_ref, gvec_ref, fc_w_ref,
                          wqkv_ref, wo1_ref, wq_ref, wkv_ref, wo2_ref,
                          w1_ref, w2_ref, vec_ref,
                          out_ref, y_scr,
                          *, B, T, S, H, Dh, n_layers):
    E = H * Dh
    Nout = fc_w_ref.shape[1]
    l = pl.program_id(0)

    @pl.when(l == 0)
    def _():
        y_scr[...] = h_tgt_ref[...]

    y = y_scr[...]                                    # (B*T, E)
    mem = mem_ref[...]                                # (B*S, E)
    vec = vec_ref[...]                                # (16, dff) packed bias/norm slab

    # --- self-attention sublayer (packed QKV, Q pre-scaled) ---
    qkv = jnp.dot(y, wqkv_ref[...], preferred_element_type=jnp.float32) + vec[0:1, :3 * E]
    sa = _mha(qkv[:, :E], qkv[:, E:2 * E], qkv[:, 2 * E:], wo1_ref[...],
              B=B, Sq=T, Skv=T, H=H, Dh=Dh) + vec[1:2, :E]
    y = _layernorm(y + sa, vec[2:3, :E], vec[3:4, :E])

    # --- cross-attention sublayer (Q from tgt, packed KV from encoder memory) ---
    q = jnp.dot(y, wq_ref[...], preferred_element_type=jnp.float32) + vec[4:5, :E]
    kv = jnp.dot(mem, wkv_ref[...], preferred_element_type=jnp.float32) + vec[5:6, :2 * E]
    ca = _mha(q, kv[:, :E], kv[:, E:], wo2_ref[...],
              B=B, Sq=T, Skv=S, H=H, Dh=Dh) + vec[6:7, :E]
    y = _layernorm(y + ca, vec[7:8, :E], vec[8:9, :E])

    # --- feed-forward sublayer ---
    hmid = jnp.maximum(
        jnp.dot(y, w1_ref[...], preferred_element_type=jnp.float32) + vec[9:10, :], 0.0)
    ff = jnp.dot(hmid, w2_ref[...], preferred_element_type=jnp.float32) + vec[10:11, :E]
    y = _layernorm(y + ff, vec[11:12, :E], vec[12:13, :E])
    y_scr[...] = y

    # Epilogue: final decoder LayerNorm + output fc projection.
    @pl.when(l == n_layers - 1)
    def _():
        yn = _layernorm(y, gvec_ref[0:1, :E], gvec_ref[1:2, :E])
        out = (jnp.dot(yn, fc_w_ref[...], preferred_element_type=jnp.float32)
               + gvec_ref[2:3, :Nout])
        out_ref[...] = out.astype(out_ref.dtype)


def decoder_stack(h_tgt, memory, prep, *, B, T, S, H):
    Mq, E = h_tgt.shape
    Mk = memory.shape[0]
    Dh = E // H
    dp = prep["dec"]
    L = dp["wqkv"].shape[0]
    dff = dp["w1"].shape[2]
    Nout = prep["fc_w"].shape[1]
    Wg = prep["dec_gvec"].shape[1]
    kernel = functools.partial(_decoder_stack_kernel,
                               B=B, T=T, S=S, H=H, Dh=Dh, n_layers=L)
    return pl.pallas_call(
        kernel,
        out_shape=jax.ShapeDtypeStruct((Mq, Nout), jnp.float32),
        grid_spec=pltpu.PrefetchScalarGridSpec(
            num_scalar_prefetch=0,
            grid=(L,),
            in_specs=[
                pl.BlockSpec((Mq, E), lambda l: (0, 0)),           # h_tgt (resident)
                pl.BlockSpec((Mk, E), lambda l: (0, 0)),           # memory (resident)
                pl.BlockSpec((8, Wg), lambda l: (0, 0)),           # dec norm + fc_b
                pl.BlockSpec((E, Nout), lambda l: (0, 0)),         # fc_w
                pl.BlockSpec((None, E, 3 * E), lambda l: (l, 0, 0)),
                pl.BlockSpec((None, E, E), lambda l: (l, 0, 0)),
                pl.BlockSpec((None, E, E), lambda l: (l, 0, 0)),
                pl.BlockSpec((None, E, 2 * E), lambda l: (l, 0, 0)),
                pl.BlockSpec((None, E, E), lambda l: (l, 0, 0)),
                pl.BlockSpec((None, E, dff), lambda l: (l, 0, 0)),
                pl.BlockSpec((None, dff, E), lambda l: (l, 0, 0)),
                pl.BlockSpec((None, 16, dff), lambda l: (l, 0, 0)),
            ],
            out_specs=pl.BlockSpec((Mq, Nout), lambda l: (0, 0)),  # written @ last step
            scratch_shapes=[pltpu.VMEM((Mq, E), jnp.float32)],
        ),
        compiler_params=pltpu.CompilerParams(dimension_semantics=("arbitrary",)),
    )(h_tgt, memory, prep["dec_gvec"], prep["fc_w"],
      dp["wqkv"], dp["wo1"], dp["wq"], dp["wkv"], dp["wo2"],
      dp["w1"], dp["w2"], dp["vec"])


# ----------------------------------------------------------------------------
# Small standalone linear kernel (only used when an explicit tgt is provided)
# ----------------------------------------------------------------------------

def _linear_kernel(x_ref, w_ref, b_ref, o_ref):
    o_ref[...] = (jnp.dot(x_ref[...], w_ref[...], preferred_element_type=jnp.float32)
                  + b_ref[...]).astype(o_ref.dtype)


def linear(x2d, w, b):
    M, K = x2d.shape
    N = w.shape[1]
    full = lambda s: pl.BlockSpec(s, lambda *_: (0,) * len(s))
    return pl.pallas_call(
        _linear_kernel,
        out_shape=jax.ShapeDtypeStruct((M, N), jnp.float32),
        in_specs=[full((M, K)), full((K, N)), full((1, N))],
        out_specs=full((M, N)),
    )(x2d, w, b.reshape(1, N))


# ----------------------------------------------------------------------------
# Model forward (thin JAX glue around the two fused stack kernels)
# ----------------------------------------------------------------------------

def transformer_forward(prep, src, tgt=None, *, num_heads):
    """src/tgt: (S, B, input_dim), seq-first like PyTorch nn.Transformer."""
    S, B, _ = src.shape
    src2d = jnp.transpose(src, (1, 0, 2)).reshape(B * S, -1)     # batch-contiguous rows
    h_src, memory = encoder_stack(src2d, prep, B=B, S=S, H=num_heads)
    if tgt is None:
        h_tgt, T = h_src, S           # tgt = projected src, as in the PyTorch module
    else:
        T = tgt.shape[0]
        tgt2d = jnp.transpose(tgt, (1, 0, 2)).reshape(B * T, -1)
        h_tgt = linear(tgt2d, prep["in_w"], prep["in_b"])
    out2d = decoder_stack(h_tgt, memory, prep, B=B, T=T, S=S, H=num_heads)
    Nout = prep["fc_w"].shape[1]
    return jnp.transpose(out2d.reshape(B, T, Nout), (1, 0, 2))   # (T, B, input_dim)


# ----------------------------------------------------------------------------
# Parameter init (PyTorch-like structure) and kernel-side packing/prep
# ----------------------------------------------------------------------------

def _dense(key, fan_in, fan_out):
    kw, kb = jax.random.split(key)
    lim = 1.0 / math.sqrt(fan_in)
    w = jax.random.uniform(kw, (fan_in, fan_out), jnp.float32, -lim, lim)
    b = jax.random.uniform(kb, (fan_out,), jnp.float32, -lim, lim)
    return w, b


def _self_attn_params(key, E):
    k1, k2 = jax.random.split(key)
    wqkv, bqkv = _dense(k1, E, 3 * E)          # packed Q|K|V
    wo, bo = _dense(k2, E, E)
    return dict(wqkv=wqkv, bqkv=bqkv, wo=wo, bo=bo)


def _cross_attn_params(key, E):
    k1, k2, k3 = jax.random.split(key, 3)
    wq, bq = _dense(k1, E, E)
    wkv, bkv = _dense(k2, E, 2 * E)            # packed K|V
    wo, bo = _dense(k3, E, E)
    return dict(wq=wq, bq=bq, wkv=wkv, bkv=bkv, wo=wo, bo=bo)


def _enc_layer_params(key, E, dff):
    ks = jax.random.split(key, 3)
    sa = _self_attn_params(ks[0], E)
    w1, b1 = _dense(ks[1], E, dff)
    w2, b2 = _dense(ks[2], dff, E)
    return dict(wqkv=sa["wqkv"], bqkv=sa["bqkv"], wo=sa["wo"], bo=sa["bo"],
                w1=w1, b1=b1, w2=w2, b2=b2,
                norm1_g=jnp.ones((E,), jnp.float32), norm1_b=jnp.zeros((E,), jnp.float32),
                norm2_g=jnp.ones((E,), jnp.float32), norm2_b=jnp.zeros((E,), jnp.float32))


def _dec_layer_params(key, E, dff):
    ks = jax.random.split(key, 4)
    w1, b1 = _dense(ks[2], E, dff)
    w2, b2 = _dense(ks[3], dff, E)
    return dict(self_attn=_self_attn_params(ks[0], E),
                cross_attn=_cross_attn_params(ks[1], E),
                w1=w1, b1=b1, w2=w2, b2=b2,
                norm1_g=jnp.ones((E,), jnp.float32), norm1_b=jnp.zeros((E,), jnp.float32),
                norm2_g=jnp.ones((E,), jnp.float32), norm2_b=jnp.zeros((E,), jnp.float32),
                norm3_g=jnp.ones((E,), jnp.float32), norm3_b=jnp.zeros((E,), jnp.float32))


def init_params(key, input_dim, model_dim, num_enc_layers, num_dec_layers=6, dff=2048):
    ks = jax.random.split(key, 2 + num_enc_layers + num_dec_layers)
    in_w, in_b = _dense(ks[0], input_dim, model_dim)
    fc_w, fc_b = _dense(ks[1], model_dim, input_dim)
    enc_layers = [_enc_layer_params(ks[2 + i], model_dim, dff) for i in range(num_enc_layers)]
    dec_layers = [_dec_layer_params(ks[2 + num_enc_layers + i], model_dim, dff)
                  for i in range(num_dec_layers)]
    return dict(in_w=in_w, in_b=in_b, fc_w=fc_w, fc_b=fc_b,
                enc_layers=enc_layers, dec_layers=dec_layers,
                enc_norm_g=jnp.ones((model_dim,), jnp.float32),
                enc_norm_b=jnp.zeros((model_dim,), jnp.float32),
                dec_norm_g=jnp.ones((model_dim,), jnp.float32),
                dec_norm_b=jnp.zeros((model_dim,), jnp.float32))


def prepare_params(params, num_heads):
    """One-time packing for the fused stack kernels: stack per-layer weights on a
    leading L axis, fold 1/sqrt(Dh) into the Q projections, and pack all bias /
    LayerNorm vectors into one (rows, dff) slab per layer."""
    E = params["in_w"].shape[1]
    Dh = E // num_heads
    scale = 1.0 / math.sqrt(Dh)
    out_dim = params["fc_w"].shape[1]
    dff = params["enc_layers"][0]["w1"].shape[1]

    def pad_row(v, width):
        return jnp.pad(v, (0, width - v.shape[0]))

    def scale_q_w(w):   # scale the first E output columns (the Q projection)
        return jnp.concatenate([w[:, :E] * scale, w[:, E:]], axis=1)

    def scale_q_b(b):
        return jnp.concatenate([b[:E] * scale, b[E:]])

    # ---- encoder ----
    enc = params["enc_layers"]

    def enc_slab(p):
        rows = [pad_row(scale_q_b(p["bqkv"]), dff), pad_row(p["bo"], dff),
                pad_row(p["norm1_g"], dff), pad_row(p["norm1_b"], dff),
                pad_row(p["b1"], dff), pad_row(p["b2"], dff),
                pad_row(p["norm2_g"], dff), pad_row(p["norm2_b"], dff)]
        return jnp.stack(rows)

    enc_pack = dict(
        wqkv=jnp.stack([scale_q_w(p["wqkv"]) for p in enc]),
        wo=jnp.stack([p["wo"] for p in enc]),
        w1=jnp.stack([p["w1"] for p in enc]),
        w2=jnp.stack([p["w2"] for p in enc]),
        vec=jnp.stack([enc_slab(p) for p in enc]),
    )
    enc_gvec = jnp.zeros((8, E), jnp.float32)
    enc_gvec = enc_gvec.at[0].set(params["in_b"])
    enc_gvec = enc_gvec.at[1].set(params["enc_norm_g"])
    enc_gvec = enc_gvec.at[2].set(params["enc_norm_b"])

    # ---- decoder ----
    dec = params["dec_layers"]

    def dec_slab(p):
        sp, cp = p["self_attn"], p["cross_attn"]
        rows = [pad_row(scale_q_b(sp["bqkv"]), dff), pad_row(sp["bo"], dff),
                pad_row(p["norm1_g"], dff), pad_row(p["norm1_b"], dff),
                pad_row(cp["bq"] * scale, dff), pad_row(cp["bkv"], dff),
                pad_row(cp["bo"], dff),
                pad_row(p["norm2_g"], dff), pad_row(p["norm2_b"], dff),
                pad_row(p["b1"], dff), pad_row(p["b2"], dff),
                pad_row(p["norm3_g"], dff), pad_row(p["norm3_b"], dff)]
        rows += [jnp.zeros((dff,), jnp.float32)] * (16 - len(rows))
        return jnp.stack(rows)

    dec_pack = dict(
        wqkv=jnp.stack([scale_q_w(p["self_attn"]["wqkv"]) for p in dec]),
        wo1=jnp.stack([p["self_attn"]["wo"] for p in dec]),
        wq=jnp.stack([p["cross_attn"]["wq"] * scale for p in dec]),
        wkv=jnp.stack([p["cross_attn"]["wkv"] for p in dec]),
        wo2=jnp.stack([p["cross_attn"]["wo"] for p in dec]),
        w1=jnp.stack([p["w1"] for p in dec]),
        w2=jnp.stack([p["w2"] for p in dec]),
        vec=jnp.stack([dec_slab(p) for p in dec]),
    )
    wg = max(E, out_dim)
    dec_gvec = jnp.zeros((8, wg), jnp.float32)
    dec_gvec = dec_gvec.at[0, :E].set(params["dec_norm_g"])
    dec_gvec = dec_gvec.at[1, :E].set(params["dec_norm_b"])
    dec_gvec = dec_gvec.at[2, :out_dim].set(params["fc_b"])

    return dict(in_w=params["in_w"], in_b=params["in_b"], fc_w=params["fc_w"],
                enc=enc_pack, enc_gvec=enc_gvec, dec=dec_pack, dec_gvec=dec_gvec)


# ----------------------------------------------------------------------------
# Pure-jnp reference (original params, exact softmax) for a numeric sanity check
# ----------------------------------------------------------------------------

def reference_forward(params, src, tgt=None, *, num_heads):
    S, B, _ = src.shape
    E = params["in_w"].shape[1]
    H, Dh = num_heads, E // num_heads

    def ln(x, g, b):
        mu = jnp.mean(x, axis=-1, keepdims=True)
        var = jnp.mean((x - mu) ** 2, axis=-1, keepdims=True)
        return (x - mu) / jnp.sqrt(var + 1e-5) * g + b

    def mha(q_in, kv_in, wq, bq, wk, bk, wv, bv, wo, bo):
        Lq, Lk = q_in.shape[1], kv_in.shape[1]
        q = (q_in @ wq + bq).reshape(B, Lq, H, Dh).transpose(0, 2, 1, 3)
        k = (kv_in @ wk + bk).reshape(B, Lk, H, Dh).transpose(0, 2, 1, 3)
        v = (kv_in @ wv + bv).reshape(B, Lk, H, Dh).transpose(0, 2, 1, 3)
        s = jnp.einsum("bhqd,bhkd->bhqk", q, k) / math.sqrt(Dh)
        a = jax.nn.softmax(s, axis=-1)
        o = jnp.einsum("bhqk,bhkd->bhqd", a, v).transpose(0, 2, 1, 3).reshape(B, Lq, E)
        return o @ wo + bo

    x = jnp.transpose(src, (1, 0, 2)) @ params["in_w"] + params["in_b"]      # (B, S, E)
    y = x if tgt is None else jnp.transpose(tgt, (1, 0, 2)) @ params["in_w"] + params["in_b"]

    for p_ in params["enc_layers"]:
        wqkv, bqkv = p_["wqkv"], p_["bqkv"]
        sa = mha(x, x, wqkv[:, :E], bqkv[:E], wqkv[:, E:2 * E], bqkv[E:2 * E],
                 wqkv[:, 2 * E:], bqkv[2 * E:], p_["wo"], p_["bo"])
        x = ln(x + sa, p_["norm1_g"], p_["norm1_b"])
        ff = jnp.maximum(x @ p_["w1"] + p_["b1"], 0.0) @ p_["w2"] + p_["b2"]
        x = ln(x + ff, p_["norm2_g"], p_["norm2_b"])
    memory = ln(x, params["enc_norm_g"], params["enc_norm_b"])

    for p_ in params["dec_layers"]:
        sp, cp = p_["self_attn"], p_["cross_attn"]
        wqkv, bqkv = sp["wqkv"], sp["bqkv"]
        sa = mha(y, y, wqkv[:, :E], bqkv[:E], wqkv[:, E:2 * E], bqkv[E:2 * E],
                 wqkv[:, 2 * E:], bqkv[2 * E:], sp["wo"], sp["bo"])
        y = ln(y + sa, p_["norm1_g"], p_["norm1_b"])
        wkv, bkv = cp["wkv"], cp["bkv"]
        ca = mha(y, memory, cp["wq"], cp["bq"], wkv[:, :E], bkv[:E],
                 wkv[:, E:], bkv[E:], cp["wo"], cp["bo"])
        y = ln(y + ca, p_["norm2_g"], p_["norm2_b"])
        ff = jnp.maximum(y @ p_["w1"] + p_["b1"], 0.0) @ p_["w2"] + p_["b2"]
        y = ln(y + ff, p_["norm3_g"], p_["norm3_b"])
    y = ln(y, params["dec_norm_g"], params["dec_norm_b"])
    out = y @ params["fc_w"] + params["fc_b"]
    return jnp.transpose(out, (1, 0, 2))


if __name__ == "__main__":
    input_dim, model_dim, num_heads, num_layers = 4, 32, 4, 2
    S, B = 8, 2  # seq, batch (seq-first layout)

    key = jax.random.PRNGKey(0)
    k_params, k_src = jax.random.split(key)
    params = init_params(k_params, input_dim, model_dim, num_layers)
    prep = prepare_params(params, num_heads)
    src = jax.random.normal(k_src, (S, B, input_dim), jnp.float32)

    fwd = jax.jit(functools.partial(transformer_forward, num_heads=num_heads))
    out = fwd(prep, src)            # tgt=None -> tgt = projected src, as in PyTorch
    jax.block_until_ready(out)

    assert out.shape == (S, B, input_dim), out.shape
    assert bool(jnp.all(jnp.isfinite(out)))

    # Numeric check against the pure-jnp reference (all-f32, exact softmax in kernel).
    ref = reference_forward(params, src, num_heads=num_heads)
    err = float(jnp.max(jnp.abs(out - ref)))
    assert err < 2e-3, f"max abs error vs reference: {err}"

    print("KERNEL_OK")
</pallas_src>

<mosaic_0001>
module attributes {stable_mosaic.version = 11 : i64} {
  func.func @_encoder_stack_kernel(%arg0: i32, %arg1: memref<16x4xf32, #tpu.memory_space<vmem>>, %arg2: memref<4x32xf32, #tpu.memory_space<vmem>>, %arg3: memref<8x32xf32, #tpu.memory_space<vmem>>, %arg4: memref<1x32x96xf32, #tpu.memory_space<vmem>>, %arg5: memref<1x32x32xf32, #tpu.memory_space<vmem>>, %arg6: memref<1x32x2048xf32, #tpu.memory_space<vmem>>, %arg7: memref<1x2048x32xf32, #tpu.memory_space<vmem>>, %arg8: memref<1x8x2048xf32, #tpu.memory_space<vmem>>, %arg9: memref<16x32xf32, #tpu.memory_space<vmem>>, %arg10: memref<16x32xf32, #tpu.memory_space<vmem>>, %arg11: memref<16x32xf32, #tpu.memory_space<vmem>>) attributes {dimension_semantics = [#tpu.dimension_semantics<arbitrary>], iteration_bounds = array<i64: 2>, scalar_prefetch = 0 : i64, scratch_operands = 1 : i64, tpu.core_type = #tpu.core_type<tc>, window_params = [{pipeline_mode = #tpu.pipeline_mode<synchronous>, transform_indices = @transform_0, window_bounds = array<i64: 16, 4>}, {pipeline_mode = #tpu.pipeline_mode<synchronous>, transform_indices = @transform_1, window_bounds = array<i64: 4, 32>}, {pipeline_mode = #tpu.pipeline_mode<synchronous>, transform_indices = @transform_2, window_bounds = array<i64: 8, 32>}, {transform_indices = @transform_3, window_bounds = array<i64: 1, 32, 96>}, {transform_indices = @transform_4, window_bounds = array<i64: 1, 32, 32>}, {transform_indices = @transform_5, window_bounds = array<i64: 1, 32, 2048>}, {transform_indices = @transform_6, window_bounds = array<i64: 1, 2048, 32>}, {transform_indices = @transform_7, window_bounds = array<i64: 1, 8, 2048>}, {pipeline_mode = #tpu.pipeline_mode<synchronous>, transform_indices = @transform_8, window_bounds = array<i64: 16, 32>}, {pipeline_mode = #tpu.pipeline_mode<synchronous>, transform_indices = @transform_9, window_bounds = array<i64: 16, 32>}]} {
    %c0_i32 = arith.constant 0 : i32
    %0 = arith.cmpi eq, %arg0, %c0_i32 : i32
    %1 = arith.extui %0 : i1 to i32
    %c0_i32_0 = arith.constant 0 : i32
    %2 = arith.cmpi ne, %1, %c0_i32_0 : i32
    scf.if %2 {
      %c0_52 = arith.constant 0 : index
      %c0_53 = arith.constant 0 : index
      %146 = vector.load %arg1[%c0_52, %c0_53] : memref<16x4xf32, #tpu.memory_space<vmem>>, vector<16x4xf32>
      %c0_54 = arith.constant 0 : index
      %c0_55 = arith.constant 0 : index
      %147 = vector.load %arg2[%c0_54, %c0_55] : memref<4x32xf32, #tpu.memory_space<vmem>>, vector<4x32xf32>
      %cst_56 = arith.constant dense<0.000000e+00> : vector<16x32xf32>
      %148 = tpu.matmul %146, %147, %cst_56 {dimension_numbers = #tpu.dot_dimension_numbers<[1], [0], [0], [1], [0, 0, 1, 1], [], []>} : vector<16x4xf32>, vector<4x32xf32>, vector<16x32xf32> -> vector<16x32xf32>
      %c0_57 = arith.constant 0 : index
      %c0_58 = arith.constant 0 : index
      %149 = vector.load %arg3[%c0_57, %c0_58] : memref<8x32xf32, #tpu.memory_space<vmem>>, vector<1x32xf32>
      %150 = vector.broadcast %149 : vector<1x32xf32> to vector<16x32xf32>
      %151 = arith.addf %148, %150 : vector<16x32xf32>
      %c0_59 = arith.constant 0 : index
      %c0_60 = arith.constant 0 : index
      %152 = vector.load %arg11[%c0_59, %c0_60] : memref<16x32xf32, #tpu.memory_space<vmem>>, vector<16x32xf32>
      tpu.vector_store %arg11[%c0_59, %c0_60], %151 {strides = array<i32>} : memref<16x32xf32, #tpu.memory_space<vmem>>, vector<16x32xf32>,
      %c0_61 = arith.constant 0 : index
      %c0_62 = arith.constant 0 : index
      %153 = vector.load %arg9[%c0_61, %c0_62] : memref<16x32xf32, #tpu.memory_space<vmem>>, vector<16x32xf32>
      tpu.vector_store %arg9[%c0_61, %c0_62], %151 {strides = array<i32>} : memref<16x32xf32, #tpu.memory_space<vmem>>, vector<16x32xf32>,
    } else {
    }
    %c0 = arith.constant 0 : index
    %c0_1 = arith.constant 0 : index
    %3 = vector.load %arg11[%c0, %c0_1] : memref<16x32xf32, #tpu.memory_space<vmem>>, vector<16x32xf32>
    %c0_2 = arith.constant 0 : index
    %c0_3 = arith.constant 0 : index
    %c0_4 = arith.constant 0 : index
    %4 = vector.load %arg8[%c0_2, %c0_3, %c0_4] : memref<1x8x2048xf32, #tpu.memory_space<vmem>>, vector<1x8x2048xf32>
    %5 = vector.shape_cast %4 : vector<1x8x2048xf32> to vector<8x2048xf32>
    %c0_5 = arith.constant 0 : index
    %c0_6 = arith.constant 0 : index
    %c0_7 = arith.constant 0 : index
    %6 = vector.load %arg4[%c0_5, %c0_6, %c0_7] : memref<1x32x96xf32, #tpu.memory_space<vmem>>, vector<1x32x96xf32>
    %7 = vector.shape_cast %6 : vector<1x32x96xf32> to vector<32x96xf32>
    %cst = arith.constant dense<0.000000e+00> : vector<16x96xf32>
    %8 = tpu.matmul %3, %7, %cst {dimension_numbers = #tpu.dot_dimension_numbers<[1], [0], [0], [1], [0, 0, 1, 1], [], []>} : vector<16x32xf32>, vector<32x96xf32>, vector<16x96xf32> -> vector<16x96xf32>
    %9 = vector.extract_strided_slice %5 {offsets = [0, 0], sizes = [1, 96], strides = [1, 1]} : vector<8x2048xf32> to vector<1x96xf32>
    %10 = vector.broadcast %9 : vector<1x96xf32> to vector<16x96xf32>
    %11 = arith.addf %8, %10 : vector<16x96xf32>
    %12 = vector.extract_strided_slice %11 {offsets = [0, 0], sizes = [16, 32], strides = [1, 1]} : vector<16x96xf32> to vector<16x32xf32>
    %13 = vector.extract_strided_slice %11 {offsets = [0, 32], sizes = [16, 32], strides = [1, 1]} : vector<16x96xf32> to vector<16x32xf32>
    %14 = vector.extract_strided_slice %11 {offsets = [0, 64], sizes = [16, 32], strides = [1, 1]} : vector<16x96xf32> to vector<16x32xf32>
    %c0_8 = arith.constant 0 : index
    %c0_9 = arith.constant 0 : index
    %c0_10 = arith.constant 0 : index
    %15 = vector.load %arg5[%c0_8, %c0_9, %c0_10] : memref<1x32x32xf32, #tpu.memory_space<vmem>>, vector<1x32x32xf32>
    %16 = vector.shape_cast %15 : vector<1x32x32xf32> to vector<32x32xf32>
    %17 = vector.extract_strided_slice %12 {offsets = [0, 0], sizes = [8, 8], strides = [1, 1]} : vector<16x32xf32> to vector<8x8xf32>
    %18 = vector.extract_strided_slice %13 {offsets = [0, 0], sizes = [8, 8], strides = [1, 1]} : vector<16x32xf32> to vector<8x8xf32>
    %cst_11 = arith.constant dense<0.000000e+00> : vector<8x8xf32>
    %19 = tpu.matmul %17, %18, %cst_11 {dimension_numbers = #tpu.dot_dimension_numbers<[1], [1], [0], [0], [0, 0, 1, 0], [], []>} : vector<8x8xf32>, vector<8x8xf32>, vector<8x8xf32> -> vector<8x8xf32>
    %20 = vector.extract_strided_slice %12 {offsets = [0, 8], sizes = [8, 8], strides = [1, 1]} : vector<16x32xf32> to vector<8x8xf32>
    %21 = vector.extract_strided_slice %13 {offsets = [0, 8], sizes = [8, 8], strides = [1, 1]} : vector<16x32xf32> to vector<8x8xf32>
    %cst_12 = arith.constant dense<0.000000e+00> : vector<8x8xf32>
    %22 = tpu.matmul %20, %21, %cst_12 {dimension_numbers = #tpu.dot_dimension_numbers<[1], [1], [0], [0], [0, 0, 1, 0], [], []>} : vector<8x8xf32>, vector<8x8xf32>, vector<8x8xf32> -> vector<8x8xf32>
    %23 = vector.extract_strided_slice %12 {offsets = [0, 16], sizes = [8, 8], strides = [1, 1]} : vector<16x32xf32> to vector<8x8xf32>
    %24 = vector.extract_strided_slice %13 {offsets = [0, 16], sizes = [8, 8], strides = [1, 1]} : vector<16x32xf32> to vector<8x8xf32>
    %cst_13 = arith.constant dense<0.000000e+00> : vector<8x8xf32>
    %25 = tpu.matmul %23, %24, %cst_13 {dimension_numbers = #tpu.dot_dimension_numbers<[1], [1], [0], [0], [0, 0, 1, 0], [], []>} : vector<8x8xf32>, vector<8x8xf32>, vector<8x8xf32> -> vector<8x8xf32>
    %26 = vector.extract_strided_slice %12 {offsets = [0, 24], sizes = [8, 8], strides = [1, 1]} : vector<16x32xf32> to vector<8x8xf32>
    %27 = vector.extract_strided_slice %13 {offsets = [0, 24], sizes = [8, 8], strides = [1, 1]} : vector<16x32xf32> to vector<8x8xf32>
    %cst_14 = arith.constant dense<0.000000e+00> : vector<8x8xf32>
    %28 = tpu.matmul %26, %27, %cst_14 {dimension_numbers = #tpu.dot_dimension_numbers<[1], [1], [0], [0], [0, 0, 1, 0], [], []>} : vector<8x8xf32>, vector<8x8xf32>, vector<8x8xf32> -> vector<8x8xf32>
    %29 = vector.extract_strided_slice %12 {offsets = [8, 0], sizes = [8, 8], strides = [1, 1]} : vector<16x32xf32> to vector<8x8xf32>
    %30 = vector.extract_strided_slice %13 {offsets = [8, 0], sizes = [8, 8], strides = [1, 1]} : vector<16x32xf32> to vector<8x8xf32>
    %cst_15 = arith.constant dense<0.000000e+00> : vector<8x8xf32>
    %31 = tpu.matmul %29, %30, %cst_15 {dimension_numbers = #tpu.dot_dimension_numbers<[1], [1], [0], [0], [0, 0, 1, 0], [], []>} : vector<8x8xf32>, vector<8x8xf32>, vector<8x8xf32> -> vector<8x8xf32>
    %32 = vector.extract_strided_slice %12 {offsets = [8, 8], sizes = [8, 8], strides = [1, 1]} : vector<16x32xf32> to vector<8x8xf32>
    %33 = vector.extract_strided_slice %13 {offsets = [8, 8], sizes = [8, 8], strides = [1, 1]} : vector<16x32xf32> to vector<8x8xf32>
    %cst_16 = arith.constant dense<0.000000e+00> : vector<8x8xf32>
    %34 = tpu.matmul %32, %33, %cst_16 {dimension_numbers = #tpu.dot_dimension_numbers<[1], [1], [0], [0], [0, 0, 1, 0], [], []>} : vector<8x8xf32>, vector<8x8xf32>, vector<8x8xf32> -> vector<8x8xf32>
    %35 = vector.extract_strided_slice %12 {offsets = [8, 16], sizes = [8, 8], strides = [1, 1]} : vector<16x32xf32> to vector<8x8xf32>
    %36 = vector.extract_strided_slice %13 {offsets = [8, 16], sizes = [8, 8], strides = [1, 1]} : vector<16x32xf32> to vector<8x8xf32>
    %cst_17 = arith.constant dense<0.000000e+00> : vector<8x8xf32>
    %37 = tpu.matmul %35, %36, %cst_17 {dimension_numbers = #tpu.dot_dimension_numbers<[1], [1], [0], [0], [0, 0, 1, 0], [], []>} : vector<8x8xf32>, vector<8x8xf32>, vector<8x8xf32> -> vector<8x8xf32>
    %38 = vector.extract_strided_slice %12 {offsets = [8, 24], sizes = [8, 8], strides = [1, 1]} : vector<16x32xf32> to vector<8x8xf32>
    %39 = vector.extract_strided_slice %13 {offsets = [8, 24], sizes = [8, 8], strides = [1, 1]} : vector<16x32xf32> to vector<8x8xf32>
    %cst_18 = arith.constant dense<0.000000e+00> : vector<8x8xf32>
    %40 = tpu.matmul %38, %39, %cst_18 {dimension_numbers = #tpu.dot_dimension_numbers<[1], [1], [0], [0], [0, 0, 1, 0], [], []>} : vector<8x8xf32>, vector<8x8xf32>, vector<8x8xf32> -> vector<8x8xf32>
    %41 = tpu.concatenate %19, %22, %25, %28, %31, %34, %37, %40 in 0 : vector<8x8xf32>, vector<8x8xf32>, vector<8x8xf32>, vector<8x8xf32>, vector<8x8xf32>, vector<8x8xf32>, vector<8x8xf32>, vector<8x8xf32> -> vector<64x8xf32>
    %cst_19 = arith.constant dense<0xFF800000> : vector<64xf32>
    %42 = vector.multi_reduction <maximumf>, %41, %cst_19 [1] : vector<64x8xf32> to vector<64xf32>
    %43 = vector.shape_cast %42 : vector<64xf32> to vector<64x1xf32>
    %44 = vector.broadcast %43 : vector<64x1xf32> to vector<64x8xf32>
    %45 = arith.subf %41, %44 : vector<64x8xf32>
    %46 = math.exp %45 : vector<64x8xf32>
    %cst_20 = arith.constant dense<0.000000e+00> : vector<64xf32>
    %47 = vector.multi_reduction <add>, %46, %cst_20 [1] : vector<64x8xf32> to vector<64xf32>
    %48 = vector.shape_cast %47 : vector<64xf32> to vector<64x1xf32>
    %49 = vector.broadcast %48 : vector<64x1xf32> to vector<64x8xf32>
    %50 = arith.divf %46, %49 : vector<64x8xf32>
    %51 = vector.extract_strided_slice %14 {offsets = [0, 0], sizes = [8, 8], strides = [1, 1]} : vector<16x32xf32> to vector<8x8xf32>
    %52 = vector.extract_strided_slice %50 {offsets = [0, 0], sizes = [8, 8], strides = [1, 1]} : vector<64x8xf32> to vector<8x8xf32>
    %cst_21 = arith.constant dense<0.000000e+00> : vector<8x8xf32>
    %53 = tpu.matmul %52, %51, %cst_21 {dimension_numbers = #tpu.dot_dimension_numbers<[1], [0], [0], [1], [0, 0, 1, 1], [], []>} : vector<8x8xf32>, vector<8x8xf32>, vector<8x8xf32> -> vector<8x8xf32>
    %54 = vector.extract_strided_slice %14 {offsets = [0, 8], sizes = [8, 8], strides = [1, 1]} : vector<16x32xf32> to vector<8x8xf32>
    %55 = vector.extract_strided_slice %50 {offsets = [8, 0], sizes = [8, 8], strides = [1, 1]} : vector<64x8xf32> to vector<8x8xf32>
    %cst_22 = arith.constant dense<0.000000e+00> : vector<8x8xf32>
    %56 = tpu.matmul %55, %54, %cst_22 {dimension_numbers = #tpu.dot_dimension_numbers<[1], [0], [0], [1], [0, 0, 1, 1], [], []>} : vector<8x8xf32>, vector<8x8xf32>, vector<8x8xf32> -> vector<8x8xf32>
    %57 = vector.extract_strided_slice %14 {offsets = [0, 16], sizes = [8, 8], strides = [1, 1]} : vector<16x32xf32> to vector<8x8xf32>
    %58 = vector.extract_strided_slice %50 {offsets = [16, 0], sizes = [8, 8], strides = [1, 1]} : vector<64x8xf32> to vector<8x8xf32>
    %cst_23 = arith.constant dense<0.000000e+00> : vector<8x8xf32>
    %59 = tpu.matmul %58, %57, %cst_23 {dimension_numbers = #tpu.dot_dimension_numbers<[1], [0], [0], [1], [0, 0, 1, 1], [], []>} : vector<8x8xf32>, vector<8x8xf32>, vector<8x8xf32> -> vector<8x8xf32>
    %60 = vector.extract_strided_slice %14 {offsets = [0, 24], sizes = [8, 8], strides = [1, 1]} : vector<16x32xf32> to vector<8x8xf32>
    %61 = vector.extract_strided_slice %50 {offsets = [24, 0], sizes = [8, 8], strides = [1, 1]} : vector<64x8xf32> to vector<8x8xf32>
    %cst_24 = arith.constant dense<0.000000e+00> : vector<8x8xf32>
    %62 = tpu.matmul %61, %60, %cst_24 {dimension_numbers = #tpu.dot_dimension_numbers<[1], [0], [0], [1], [0, 0, 1, 1], [], []>} : vector<8x8xf32>, vector<8x8xf32>, vector<8x8xf32> -> vector<8x8xf32>
    %63 = tpu.concatenate %53, %56, %59, %62 in 1 : vector<8x8xf32>, vector<8x8xf32>, vector<8x8xf32>, vector<8x8xf32> -> vector<8x32xf32>
    %64 = vector.extract_strided_slice %14 {offsets = [8, 0], sizes = [8, 8], strides = [1, 1]} : vector<16x32xf32> to vector<8x8xf32>
    %65 = vector.extract_strided_slice %50 {offsets = [32, 0], sizes = [8, 8], strides = [1, 1]} : vector<64x8xf32> to vector<8x8xf32>
    %cst_25 = arith.constant dense<0.000000e+00> : vector<8x8xf32>
    %66 = tpu.matmul %65, %64, %cst_25 {dimension_numbers = #tpu.dot_dimension_numbers<[1], [0], [0], [1], [0, 0, 1, 1], [], []>} : vector<8x8xf32>, vector<8x8xf32>, vector<8x8xf32> -> vector<8x8xf32>
    %67 = vector.extract_strided_slice %14 {offsets = [8, 8], sizes = [8, 8], strides = [1, 1]} : vector<16x32xf32> to vector<8x8xf32>
    %68 = vector.extract_strided_slice %50 {offsets = [40, 0], sizes = [8, 8], strides = [1, 1]} : vector<64x8xf32> to vector<8x8xf32>
    %cst_26 = arith.constant dense<0.000000e+00> : vector<8x8xf32>
    %69 = tpu.matmul %68, %67, %cst_26 {dimension_numbers = #tpu.dot_dimension_numbers<[1], [0], [0], [1], [0, 0, 1, 1], [], []>} : vector<8x8xf32>, vector<8x8xf32>, vector<8x8xf32> -> vector<8x8xf32>
    %70 = vector.extract_strided_slice %14 {offsets = [8, 16], sizes = [8, 8], strides = [1, 1]} : vector<16x32xf32> to vector<8x8xf32>
    %71 = vector.extract_strided_slice %50 {offsets = [48, 0], sizes = [8, 8], strides = [1, 1]} : vector<64x8xf32> to vector<8x8xf32>
    %cst_27 = arith.constant dense<0.000000e+00> : vector<8x8xf32>
    %72 = tpu.matmul %71, %70, %cst_27 {dimension_numbers = #tpu.dot_dimension_numbers<[1], [0], [0], [1], [0, 0, 1, 1], [], []>} : vector<8x8xf32>, vector<8x8xf32>, vector<8x8xf32> -> vector<8x8xf32>
    %73 = vector.extract_strided_slice %14 {offsets = [8, 24], sizes = [8, 8], strides = [1, 1]} : vector<16x32xf32> to vector<8x8xf32>
    %74 = vector.extract_strided_slice %50 {offsets = [56, 0], sizes = [8, 8], strides = [1, 1]} : vector<64x8xf32> to vector<8x8xf32>
    %cst_28 = arith.constant dense<0.000000e+00> : vector<8x8xf32>
    %75 = tpu.matmul %74, %73, %cst_28 {dimension_numbers = #tpu.dot_dimension_numbers<[1], [0], [0], [1], [0, 0, 1, 1], [], []>} : vector<8x8xf32>, vector<8x8xf32>, vector<8x8xf32> -> vector<8x8xf32>
    %76 = tpu.concatenate %66, %69, %72, %75 in 1 : vector<8x8xf32>, vector<8x8xf32>, vector<8x8xf32>, vector<8x8xf32> -> vector<8x32xf32>
    %77 = tpu.concatenate %63, %76 in 0 : vector<8x32xf32>, vector<8x32xf32> -> vector<16x32xf32>
    %cst_29 = arith.constant dense<0.000000e+00> : vector<16x32xf32>
    %78 = tpu.matmul %77, %16, %cst_29 {dimension_numbers = #tpu.dot_dimension_numbers<[1], [0], [0], [1], [0, 0, 1, 1], [], []>} : vector<16x32xf32>, vector<32x32xf32>, vector<16x32xf32> -> vector<16x32xf32>
    %79 = vector.extract_strided_slice %5 {offsets = [1, 0], sizes = [1, 32], strides = [1, 1]} : vector<8x2048xf32> to vector<1x32xf32>
    %80 = vector.broadcast %79 : vector<1x32xf32> to vector<16x32xf32>
    %81 = arith.addf %78, %80 : vector<16x32xf32>
    %82 = arith.addf %3, %81 : vector<16x32xf32>
    %83 = vector.extract_strided_slice %5 {offsets = [2, 0], sizes = [1, 32], strides = [1, 1]} : vector<8x2048xf32> to vector<1x32xf32>
    %84 = vector.extract_strided_slice %5 {offsets = [3, 0], sizes = [1, 32], strides = [1, 1]} : vector<8x2048xf32> to vector<1x32xf32>
    %cst_30 = arith.constant dense<0.000000e+00> : vector<16xf32>
    %85 = vector.multi_reduction <add>, %82, %cst_30 [1] : vector<16x32xf32> to vector<16xf32>
    %86 = vector.shape_cast %85 : vector<16xf32> to vector<16x1xf32>
    %cst_31 = arith.constant 3.200000e+01 : f32
    %87 = vector.broadcast %cst_31 : f32 to vector<16x1xf32>
    %88 = arith.divf %86, %87 : vector<16x1xf32>
    %89 = vector.broadcast %88 : vector<16x1xf32> to vector<16x32xf32>
    %90 = arith.subf %82, %89 : vector<16x32xf32>
    %91 = arith.mulf %90, %90 : vector<16x32xf32>
    %cst_32 = arith.constant dense<0.000000e+00> : vector<16xf32>
    %92 = vector.multi_reduction <add>, %91, %cst_32 [1] : vector<16x32xf32> to vector<16xf32>
    %93 = vector.shape_cast %92 : vector<16xf32> to vector<16x1xf32>
    %cst_33 = arith.constant 3.200000e+01 : f32
    %94 = vector.broadcast %cst_33 : f32 to vector<16x1xf32>
    %95 = arith.divf %93, %94 : vector<16x1xf32>
    %cst_34 = arith.constant 9.99999974E-6 : f32
    %96 = vector.broadcast %cst_34 : f32 to vector<16x1xf32>
    %97 = arith.addf %95, %96 : vector<16x1xf32>
    %98 = math.rsqrt %97 : vector<16x1xf32>
    %99 = vector.broadcast %98 : vector<16x1xf32> to vector<16x32xf32>
    %100 = arith.mulf %90, %99 : vector<16x32xf32>
    %101 = vector.broadcast %83 : vector<1x32xf32> to vector<16x32xf32>
    %102 = arith.mulf %100, %101 : vector<16x32xf32>
    %103 = vector.broadcast %84 : vector<1x32xf32> to vector<16x32xf32>
    %104 = arith.addf %102, %103 : vector<16x32xf32>
    %c0_35 = arith.constant 0 : index
    %c0_36 = arith.constant 0 : index
    %c0_37 = arith.constant 0 : index
    %105 = vector.load %arg6[%c0_35, %c0_36, %c0_37] : memref<1x32x2048xf32, #tpu.memory_space<vmem>>, vector<1x32x2048xf32>
    %106 = vector.shape_cast %105 : vector<1x32x2048xf32> to vector<32x2048xf32>
    %cst_38 = arith.constant dense<0.000000e+00> : vector<16x2048xf32>
    %107 = tpu.matmul %104, %106, %cst_38 {dimension_numbers = #tpu.dot_dimension_numbers<[1], [0], [0], [1], [0, 0, 1, 1], [], []>} : vector<16x32xf32>, vector<32x2048xf32>, vector<16x2048xf32> -> vector<16x2048xf32>
    %108 = vector.extract_strided_slice %5 {offsets = [4, 0], sizes = [1, 2048], strides = [1, 1]} : vector<8x2048xf32> to vector<1x2048xf32>
    %109 = vector.broadcast %108 : vector<1x2048xf32> to vector<16x2048xf32>
    %110 = arith.addf %107, %109 : vector<16x2048xf32>
    %cst_39 = arith.constant 0.000000e+00 : f32
    %111 = vector.broadcast %cst_39 : f32 to vector<16x2048xf32>
    %112 = arith.maximumf %110, %111 : vector<16x2048xf32>
    %c0_40 = arith.constant 0 : index
    %c0_41 = arith.constant 0 : index
    %c0_42 = arith.constant 0 : index
    %113 = vector.load %arg7[%c0_40, %c0_41, %c0_42] : memref<1x2048x32xf32, #tpu.memory_space<vmem>>, vector<1x2048x32xf32>
    %114 = vector.shape_cast %113 : vector<1x2048x32xf32> to vector<2048x32xf32>
    %cst_43 = arith.constant dense<0.000000e+00> : vector<16x32xf32>
    %115 = tpu.matmul %112, %114, %cst_43 {dimension_numbers = #tpu.dot_dimension_numbers<[1], [0], [0], [1], [0, 0, 1, 1], [], []>} : vector<16x2048xf32>, vector<2048x32xf32>, vector<16x32xf32> -> vector<16x32xf32>
    %116 = vector.extract_strided_slice %5 {offsets = [5, 0], sizes = [1, 32], strides = [1, 1]} : vector<8x2048xf32> to vector<1x32xf32>
    %117 = vector.broadcast %116 : vector<1x32xf32> to vector<16x32xf32>
    %118 = arith.addf %115, %117 : vector<16x32xf32>
    %119 = arith.addf %104, %118 : vector<16x32xf32>
    %120 = vector.extract_strided_slice %5 {offsets = [6, 0], sizes = [1, 32], strides = [1, 1]} : vector<8x2048xf32> to vector<1x32xf32>
    %121 = vector.extract_strided_slice %5 {offsets = [7, 0], sizes = [1, 32], strides = [1, 1]} : vector<8x2048xf32> to vector<1x32xf32>
    %cst_44 = arith.constant dense<0.000000e+00> : vector<16xf32>
    %122 = vector.multi_reduction <add>, %119, %cst_44 [1] : vector<16x32xf32> to vector<16xf32>
    %123 = vector.shape_cast %122 : vector<16xf32> to vector<16x1xf32>
    %cst_45 = arith.constant 3.200000e+01 : f32
    %124 = vector.broadcast %cst_45 : f32 to vector<16x1xf32>
    %125 = arith.divf %123, %124 : vector<16x1xf32>
    %126 = vector.broadcast %125 : vector<16x1xf32> to vector<16x32xf32>
    %127 = arith.subf %119, %126 : vector<16x32xf32>
    %128 = arith.mulf %127, %127 : vector<16x32xf32>
    %cst_46 = arith.constant dense<0.000000e+00> : vector<16xf32>
    %129 = vector.multi_reduction <add>, %128, %cst_46 [1] : vector<16x32xf32> to vector<16xf32>
    %130 = vector.shape_cast %129 : vector<16xf32> to vector<16x1xf32>
    %cst_47 = arith.constant 3.200000e+01 : f32
    %131 = vector.broadcast %cst_47 : f32 to vector<16x1xf32>
    %132 = arith.divf %130, %131 : vector<16x1xf32>
    %cst_48 = arith.constant 9.99999974E-6 : f32
    %133 = vector.broadcast %cst_48 : f32 to vector<16x1xf32>
    %134 = arith.addf %132, %133 : vector<16x1xf32>
    %135 = math.rsqrt %134 : vector<16x1xf32>
    %136 = vector.broadcast %135 : vector<16x1xf32> to vector<16x32xf32>
    %137 = arith.mulf %127, %136 : vector<16x32xf32>
    %138 = vector.broadcast %120 : vector<1x32xf32> to vector<16x32xf32>
    %139 = arith.mulf %137, %138 : vector<16x32xf32>
    %140 = vector.broadcast %121 : vector<1x32xf32> to vector<16x32xf32>
    %141 = arith.addf %139, %140 : vector<16x32xf32>
    %c0_49 = arith.constant 0 : index
    %c0_50 = arith.constant 0 : index
    %142 = vector.load %arg11[%c0_49, %c0_50] : memref<16x32xf32, #tpu.memory_space<vmem>>, vector<16x32xf32>
    tpu.vector_store %arg11[%c0_49, %c0_50], %141 {strides = array<i32>} : memref<16x32xf32, #tpu.memory_space<vmem>>, vector<16x32xf32>,
    %c1_i32 = arith.constant 1 : i32
    %143 = arith.cmpi eq, %arg0, %c1_i32 : i32
    %144 = arith.extui %143 : i1 to i32
    %c0_i32_51 = arith.constant 0 : i32
    %145 = arith.cmpi ne, %144, %c0_i32_51 : i32
    scf.if %145 {
      %c1 = arith.constant 1 : index
      %c0_52 = arith.constant 0 : index
      %146 = vector.load %arg3[%c1, %c0_52] : memref<8x32xf32, #tpu.memory_space<vmem>>, vector<1x32xf32>
      %c2 = arith.constant 2 : index
      %c0_53 = arith.constant 0 : index
      %147 = vector.load %arg3[%c2, %c0_53] : memref<8x32xf32, #tpu.memory_space<vmem>>, vector<1x32xf32>
      %cst_54 = arith.constant dense<0.000000e+00> : vector<16xf32>
      %148 = vector.multi_reduction <add>, %141, %cst_54 [1] : vector<16x32xf32> to vector<16xf32>
      %149 = vector.shape_cast %148 : vector<16xf32> to vector<16x1xf32>
      %cst_55 = arith.constant 3.200000e+01 : f32
      %150 = vector.broadcast %cst_55 : f32 to vector<16x1xf32>
      %151 = arith.divf %149, %150 : vector<16x1xf32>
      %152 = vector.broadcast %151 : vector<16x1xf32> to vector<16x32xf32>
      %153 = arith.subf %141, %152 : vector<16x32xf32>
      %154 = arith.mulf %153, %153 : vector<16x32xf32>
      %cst_56 = arith.constant dense<0.000000e+00> : vector<16xf32>
      %155 = vector.multi_reduction <add>, %154, %cst_56 [1] : vector<16x32xf32> to vector<16xf32>
      %156 = vector.shape_cast %155 : vector<16xf32> to vector<16x1xf32>
      %cst_57 = arith.constant 3.200000e+01 : f32
      %157 = vector.broadcast %cst_57 : f32 to vector<16x1xf32>
      %158 = arith.divf %156, %157 : vector<16x1xf32>
      %cst_58 = arith.constant 9.99999974E-6 : f32
      %159 = vector.broadcast %cst_58 : f32 to vector<16x1xf32>
      %160 = arith.addf %158, %159 : vector<16x1xf32>
      %161 = math.rsqrt %160 : vector<16x1xf32>
      %162 = vector.broadcast %161 : vector<16x1xf32> to vector<16x32xf32>
      %163 = arith.mulf %153, %162 : vector<16x32xf32>
      %164 = vector.broadcast %146 : vector<1x32xf32> to vector<16x32xf32>
      %165 = arith.mulf %163, %164 : vector<16x32xf32>
      %166 = vector.broadcast %147 : vector<1x32xf32> to vector<16x32xf32>
      %167 = arith.addf %165, %166 : vector<16x32xf32>
      %c0_59 = arith.constant 0 : index
      %c0_60 = arith.constant 0 : index
      %168 = vector.load %arg10[%c0_59, %c0_60] : memref<16x32xf32, #tpu.memory_space<vmem>>, vector<16x32xf32>
      tpu.vector_store %arg10[%c0_59, %c0_60], %167 {strides = array<i32>} : memref<16x32xf32, #tpu.memory_space<vmem>>, vector<16x32xf32>,
    } else {
    }
    return
  }
  func.func @transform_0(%arg0: i32) -> (i32, i32) {
    %c0_i32 = arith.constant 0 : i32
    %c0_i32_0 = arith.constant 0 : i32
    %c0_i32_1 = arith.constant 0 : i32
    return %c0_i32, %c0_i32_0 : i32, i32
  }
  func.func @transform_1(%arg0: i32) -> (i32, i32) {
    %c0_i32 = arith.constant 0 : i32
    %c0_i32_0 = arith.constant 0 : i32
    %c0_i32_1 = arith.constant 0 : i32
    return %c0_i32, %c0_i32_0 : i32, i32
  }
  func.func @transform_2(%arg0: i32) -> (i32, i32) {
    %c0_i32 = arith.constant 0 : i32
    %c0_i32_0 = arith.constant 0 : i32
    %c0_i32_1 = arith.constant 0 : i32
    return %c0_i32, %c0_i32_0 : i32, i32
  }
  func.func @transform_3(%arg0: i32) -> (i32, i32, i32) {
    %c0_i32 = arith.constant 0 : i32
    %c0_i32_0 = arith.constant 0 : i32
    %c0_i32_1 = arith.constant 0 : i32
    return %arg0, %c0_i32, %c0_i32_0 : i32, i32, i32
  }
  func.func @transform_4(%arg0: i32) -> (i32, i32, i32) {
    %c0_i32 = arith.constant 0 : i32
    %c0_i32_0 = arith.constant 0 : i32
    %c0_i32_1 = arith.constant 0 : i32
    return %arg0, %c0_i32, %c0_i32_0 : i32, i32, i32
  }
  func.func @transform_5(%arg0: i32) -> (i32, i32, i32) {
    %c0_i32 = arith.constant 0 : i32
    %c0_i32_0 = arith.constant 0 : i32
    %c0_i32_1 = arith.constant 0 : i32
    return %arg0, %c0_i32, %c0_i32_0 : i32, i32, i32
  }
  func.func @transform_6(%arg0: i32) -> (i32, i32, i32) {
    %c0_i32 = arith.constant 0 : i32
    %c0_i32_0 = arith.constant 0 : i32
    %c0_i32_1 = arith.constant 0 : i32
    return %arg0, %c0_i32, %c0_i32_0 : i32, i32, i32
  }
  func.func @transform_7(%arg0: i32) -> (i32, i32, i32) {
    %c0_i32 = arith.constant 0 : i32
    %c0_i32_0 = arith.constant 0 : i32
    %c0_i32_1 = arith.constant 0 : i32
    return %arg0, %c0_i32, %c0_i32_0 : i32, i32, i32
  }
  func.func @transform_8(%arg0: i32) -> (i32, i32) {
    %c0_i32 = arith.constant 0 : i32
    %c0_i32_0 = arith.constant 0 : i32
    %c0_i32_1 = arith.constant 0 : i32
    return %c0_i32, %c0_i32_0 : i32, i32
  }
  func.func @transform_9(%arg0: i32) -> (i32, i32) {
    %c0_i32 = arith.constant 0 : i32
    %c0_i32_0 = arith.constant 0 : i32
    %c0_i32_1 = arith.constant 0 : i32
    return %c0_i32, %c0_i32_0 : i32, i32
  }
}

module attributes {stable_mosaic.version = 11 : i64} {
  func.func @_decoder_stack_kernel(%arg0: i32, %arg1: memref<16x32xf32, #tpu.memory_space<vmem>>, %arg2: memref<16x32xf32, #tpu.memory_space<vmem>>, %arg3: memref<8x32xf32, #tpu.memory_space<vmem>>, %arg4: memref<32x4xf32, #tpu.memory_space<vmem>>, %arg5: memref<1x32x96xf32, #tpu.memory_space<vmem>>, %arg6: memref<1x32x32xf32, #tpu.memory_space<vmem>>, %arg7: memref<1x32x32xf32, #tpu.memory_space<vmem>>, %arg8: memref<1x32x64xf32, #tpu.memory_space<vmem>>, %arg9: memref<1x32x32xf32, #tpu.memory_space<vmem>>, %arg10: memref<1x32x2048xf32, #tpu.memory_space<vmem>>, %arg11: memref<1x2048x32xf32, #tpu.memory_space<vmem>>, %arg12: memref<1x16x2048xf32, #tpu.memory_space<vmem>>, %arg13: memref<16x4xf32, #tpu.memory_space<vmem>>, %arg14: memref<16x32xf32, #tpu.memory_space<vmem>>) attributes {dimension_semantics = [#tpu.dimension_semantics<arbitrary>], iteration_bounds = array<i64: 6>, scalar_prefetch = 0 : i64, scratch_operands = 1 : i64, tpu.core_type = #tpu.core_type<tc>, window_params = [{pipeline_mode = #tpu.pipeline_mode<synchronous>, transform_indices = @transform_0, window_bounds = array<i64: 16, 32>}, {pipeline_mode = #tpu.pipeline_mode<synchronous>, transform_indices = @transform_1, window_bounds = array<i64: 16, 32>}, {pipeline_mode = #tpu.pipeline_mode<synchronous>, transform_indices = @transform_2, window_bounds = array<i64: 8, 32>}, {pipeline_mode = #tpu.pipeline_mode<synchronous>, transform_indices = @transform_3, window_bounds = array<i64: 32, 4>}, {transform_indices = @transform_4, window_bounds = array<i64: 1, 32, 96>}, {transform_indices = @transform_5, window_bounds = array<i64: 1, 32, 32>}, {transform_indices = @transform_6, window_bounds = array<i64: 1, 32, 32>}, {transform_indices = @transform_7, window_bounds = array<i64: 1, 32, 64>}, {transform_indices = @transform_8, window_bounds = array<i64: 1, 32, 32>}, {transform_indices = @transform_9, window_bounds = array<i64: 1, 32, 2048>}, {transform_indices = @transform_10, window_bounds = array<i64: 1, 2048, 32>}, {transform_indices = @transform_11, window_bounds = array<i64: 1, 16, 2048>}, {pipeline_mode = #tpu.pipeline_mode<synchronous>, transform_indices = @transform_12, window_bounds = array<i64: 16, 4>}]} {
    %c0_i32 = arith.constant 0 : i32
    %0 = arith.cmpi eq, %arg0, %c0_i32 : i32
    %1 = arith.extui %0 : i1 to i32
    %c0_i32_0 = arith.constant 0 : i32
    %2 = arith.cmpi ne, %1, %c0_i32_0 : i32
    scf.if %2 {
      %c0_89 = arith.constant 0 : index
      %c0_90 = arith.constant 0 : index
      %251 = vector.load %arg1[%c0_89, %c0_90] : memref<16x32xf32, #tpu.memory_space<vmem>>, vector<16x32xf32>
      %c0_91 = arith.constant 0 : index
      %c0_92 = arith.constant 0 : index
      %252 = vector.load %arg14[%c0_91, %c0_92] : memref<16x32xf32, #tpu.memory_space<vmem>>, vector<16x32xf32>
      tpu.vector_store %arg14[%c0_91, %c0_92], %251 {strides = array<i32>} : memref<16x32xf32, #tpu.memory_space<vmem>>, vector<16x32xf32>,
    } else {
    }
    %c0 = arith.constant 0 : index
    %c0_1 = arith.constant 0 : index
    %3 = vector.load %arg14[%c0, %c0_1] : memref<16x32xf32, #tpu.memory_space<vmem>>, vector<16x32xf32>
    %c0_2 = arith.constant 0 : index
    %c0_3 = arith.constant 0 : index
    %4 = vector.load %arg2[%c0_2, %c0_3] : memref<16x32xf32, #tpu.memory_space<vmem>>, vector<16x32xf32>
    %c0_4 = arith.constant 0 : index
    %c0_5 = arith.constant 0 : index
    %c0_6 = arith.constant 0 : index
    %5 = vector.load %arg12[%c0_4, %c0_5, %c0_6] : memref<1x16x2048xf32, #tpu.memory_space<vmem>>, vector<1x16x2048xf32>
    %6 = vector.shape_cast %5 : vector<1x16x2048xf32> to vector<16x2048xf32>
    %c0_7 = arith.constant 0 : index
    %c0_8 = arith.constant 0 : index
    %c0_9 = arith.constant 0 : index
    %7 = vector.load %arg5[%c0_7, %c0_8, %c0_9] : memref<1x32x96xf32, #tpu.memory_space<vmem>>, vector<1x32x96xf32>
    %8 = vector.shape_cast %7 : vector<1x32x96xf32> to vector<32x96xf32>
    %cst = arith.constant dense<0.000000e+00> : vector<16x96xf32>
    %9 = tpu.matmul %3, %8, %cst {dimension_numbers = #tpu.dot_dimension_numbers<[1], [0], [0], [1], [0, 0, 1, 1], [], []>} : vector<16x32xf32>, vector<32x96xf32>, vector<16x96xf32> -> vector<16x96xf32>
    %10 = vector.extract_strided_slice %6 {offsets = [0, 0], sizes = [1, 96], strides = [1, 1]} : vector<16x2048xf32> to vector<1x96xf32>
    %11 = vector.broadcast %10 : vector<1x96xf32> to vector<16x96xf32>
    %12 = arith.addf %9, %11 : vector<16x96xf32>
    %13 = vector.extract_strided_slice %12 {offsets = [0, 0], sizes = [16, 32], strides = [1, 1]} : vector<16x96xf32> to vector<16x32xf32>
    %14 = vector.extract_strided_slice %12 {offsets = [0, 32], sizes = [16, 32], strides = [1, 1]} : vector<16x96xf32> to vector<16x32xf32>
    %15 = vector.extract_strided_slice %12 {offsets = [0, 64], sizes = [16, 32], strides = [1, 1]} : vector<16x96xf32> to vector<16x32xf32>
    %c0_10 = arith.constant 0 : index
    %c0_11 = arith.constant 0 : index
    %c0_12 = arith.constant 0 : index
    %16 = vector.load %arg6[%c0_10, %c0_11, %c0_12] : memref<1x32x32xf32, #tpu.memory_space<vmem>>, vector<1x32x32xf32>
    %17 = vector.shape_cast %16 : vector<1x32x32xf32> to vector<32x32xf32>
    %18 = vector.extract_strided_slice %13 {offsets = [0, 0], sizes = [8, 8], strides = [1, 1]} : vector<16x32xf32> to vector<8x8xf32>
    %19 = vector.extract_strided_slice %14 {offsets = [0, 0], sizes = [8, 8], strides = [1, 1]} : vector<16x32xf32> to vector<8x8xf32>
    %cst_13 = arith.constant dense<0.000000e+00> : vector<8x8xf32>
    %20 = tpu.matmul %18, %19, %cst_13 {dimension_numbers = #tpu.dot_dimension_numbers<[1], [1], [0], [0], [0, 0, 1, 0], [], []>} : vector<8x8xf32>, vector<8x8xf32>, vector<8x8xf32> -> vector<8x8xf32>
    %21 = vector.extract_strided_slice %13 {offsets = [0, 8], sizes = [8, 8], strides = [1, 1]} : vector<16x32xf32> to vector<8x8xf32>
    %22 = vector.extract_strided_slice %14 {offsets = [0, 8], sizes = [8, 8], strides = [1, 1]} : vector<16x32xf32> to vector<8x8xf32>
    %cst_14 = arith.constant dense<0.000000e+00> : vector<8x8xf32>
    %23 = tpu.matmul %21, %22, %cst_14 {dimension_numbers = #tpu.dot_dimension_numbers<[1], [1], [0], [0], [0, 0, 1, 0], [], []>} : vector<8x8xf32>, vector<8x8xf32>, vector<8x8xf32> -> vector<8x8xf32>
    %24 = vector.extract_strided_slice %13 {offsets = [0, 16], sizes = [8, 8], strides = [1, 1]} : vector<16x32xf32> to vector<8x8xf32>
    %25 = vector.extract_strided_slice %14 {offsets = [0, 16], sizes = [8, 8], strides = [1, 1]} : vector<16x32xf32> to vector<8x8xf32>
    %cst_15 = arith.constant dense<0.000000e+00> : vector<8x8xf32>
    %26 = tpu.matmul %24, %25, %cst_15 {dimension_numbers = #tpu.dot_dimension_numbers<[1], [1], [0], [0], [0, 0, 1, 0], [], []>} : vector<8x8xf32>, vector<8x8xf32>, vector<8x8xf32> -> vector<8x8xf32>
    %27 = vector.extract_strided_slice %13 {offsets = [0, 24], sizes = [8, 8], strides = [1, 1]} : vector<16x32xf32> to vector<8x8xf32>
    %28 = vector.extract_strided_slice %14 {offsets = [0, 24], sizes = [8, 8], strides = [1, 1]} : vector<16x32xf32> to vector<8x8xf32>
    %cst_16 = arith.constant dense<0.000000e+00> : vector<8x8xf32>
    %29 = tpu.matmul %27, %28, %cst_16 {dimension_numbers = #tpu.dot_dimension_numbers<[1], [1], [0], [0], [0, 0, 1, 0], [], []>} : vector<8x8xf32>, vector<8x8xf32>, vector<8x8xf32> -> vector<8x8xf32>
    %30 = vector.extract_strided_slice %13 {offsets = [8, 0], sizes = [8, 8], strides = [1, 1]} : vector<16x32xf32> to vector<8x8xf32>
    %31 = vector.extract_strided_slice %14 {offsets = [8, 0], sizes = [8, 8], strides = [1, 1]} : vector<16x32xf32> to vector<8x8xf32>
    %cst_17 = arith.constant dense<0.000000e+00> : vector<8x8xf32>
    %32 = tpu.matmul %30, %31, %cst_17 {dimension_numbers = #tpu.dot_dimension_numbers<[1], [1], [0], [0], [0, 0, 1, 0], [], []>} : vector<8x8xf32>, vector<8x8xf32>, vector<8x8xf32> -> vector<8x8xf32>
    %33 = vector.extract_strided_slice %13 {offsets = [8, 8], sizes = [8, 8], strides = [1, 1]} : vector<16x32xf32> to vector<8x8xf32>
    %34 = vector.extract_strided_slice %14 {offsets = [8, 8], sizes = [8, 8], strides = [1, 1]} : vector<16x32xf32> to vector<8x8xf32>
    %cst_18 = arith.constant dense<0.000000e+00> : vector<8x8xf32>
    %35 = tpu.matmul %33, %34, %cst_18 {dimension_numbers = #tpu.dot_dimension_numbers<[1], [1], [0], [0], [0, 0, 1, 0], [], []>} : vector<8x8xf32>, vector<8x8xf32>, vector<8x8xf32> -> vector<8x8xf32>
    %36 = vector.extract_strided_slice %13 {offsets = [8, 16], sizes = [8, 8], strides = [1, 1]} : vector<16x32xf32> to vector<8x8xf32>
    %37 = vector.extract_strided_slice %14 {offsets = [8, 16], sizes = [8, 8], strides = [1, 1]} : vector<16x32xf32> to vector<8x8xf32>
    %cst_19 = arith.constant dense<0.000000e+00> : vector<8x8xf32>
    %38 = tpu.matmul %36, %37, %cst_19 {dimension_numbers = #tpu.dot_dimension_numbers<[1], [1], [0], [0], [0, 0, 1, 0], [], []>} : vector<8x8xf32>, vector<8x8xf32>, vector<8x8xf32> -> vector<8x8xf32>
    %39 = vector.extract_strided_slice %13 {offsets = [8, 24], sizes = [8, 8], strides = [1, 1]} : vector<16x32xf32> to vector<8x8xf32>
    %40 = vector.extract_strided_slice %14 {offsets = [8, 24], sizes = [8, 8], strides = [1, 1]} : vector<16x32xf32> to vector<8x8xf32>
    %cst_20 = arith.constant dense<0.000000e+00> : vector<8x8xf32>
    %41 = tpu.matmul %39, %40, %cst_20 {dimension_numbers = #tpu.dot_dimension_numbers<[1], [1], [0], [0], [0, 0, 1, 0], [], []>} : vector<8x8xf32>, vector<8x8xf32>, vector<8x8xf32> -> vector<8x8xf32>
    %42 = tpu.concatenate %20, %23, %26, %29, %32, %35, %38, %41 in 0 : vector<8x8xf32>, vector<8x8xf32>, vector<8x8xf32>, vector<8x8xf32>, vector<8x8xf32>, vector<8x8xf32>, vector<8x8xf32>, vector<8x8xf32> -> vector<64x8xf32>
    %cst_21 = arith.constant dense<0xFF800000> : vector<64xf32>
    %43 = vector.multi_reduction <maximumf>, %42, %cst_21 [1] : vector<64x8xf32> to vector<64xf32>
    %44 = vector.shape_cast %43 : vector<64xf32> to vector<64x1xf32>
    %45 = vector.broadcast %44 : vector<64x1xf32> to vector<64x8xf32>
    %46 = arith.subf %42, %45 : vector<64x8xf32>
    %47 = math.exp %46 : vector<64x8xf32>
    %cst_22 = arith.constant dense<0.000000e+00> : vector<64xf32>
    %48 = vector.multi_reduction <add>, %47, %cst_22 [1] : vector<64x8xf32> to vector<64xf32>
    %49 = vector.shape_cast %48 : vector<64xf32> to vector<64x1xf32>
    %50 = vector.broadcast %49 : vector<64x1xf32> to vector<64x8xf32>
    %51 = arith.divf %47, %50 : vector<64x8xf32>
    %52 = vector.extract_strided_slice %15 {offsets = [0, 0], sizes = [8, 8], strides = [1, 1]} : vector<16x32xf32> to vector<8x8xf32>
    %53 = vector.extract_strided_slice %51 {offsets = [0, 0], sizes = [8, 8], strides = [1, 1]} : vector<64x8xf32> to vector<8x8xf32>
    %cst_23 = arith.constant dense<0.000000e+00> : vector<8x8xf32>
    %54 = tpu.matmul %53, %52, %cst_23 {dimension_numbers = #tpu.dot_dimension_numbers<[1], [0], [0], [1], [0, 0, 1, 1], [], []>} : vector<8x8xf32>, vector<8x8xf32>, vector<8x8xf32> -> vector<8x8xf32>
    %55 = vector.extract_strided_slice %15 {offsets = [0, 8], sizes = [8, 8], strides = [1, 1]} : vector<16x32xf32> to vector<8x8xf32>
    %56 = vector.extract_strided_slice %51 {offsets = [8, 0], sizes = [8, 8], strides = [1, 1]} : vector<64x8xf32> to vector<8x8xf32>
    %cst_24 = arith.constant dense<0.000000e+00> : vector<8x8xf32>
    %57 = tpu.matmul %56, %55, %cst_24 {dimension_numbers = #tpu.dot_dimension_numbers<[1], [0], [0], [1], [0, 0, 1, 1], [], []>} : vector<8x8xf32>, vector<8x8xf32>, vector<8x8xf32> -> vector<8x8xf32>
    %58 = vector.extract_strided_slice %15 {offsets = [0, 16], sizes = [8, 8], strides = [1, 1]} : vector<16x32xf32> to vector<8x8xf32>
    %59 = vector.extract_strided_slice %51 {offsets = [16, 0], sizes = [8, 8], strides = [1, 1]} : vector<64x8xf32> to vector<8x8xf32>
    %cst_25 = arith.constant dense<0.000000e+00> : vector<8x8xf32>
    %60 = tpu.matmul %59, %58, %cst_25 {dimension_numbers = #tpu.dot_dimension_numbers<[1], [0], [0], [1], [0, 0, 1, 1], [], []>} : vector<8x8xf32>, vector<8x8xf32>, vector<8x8xf32> -> vector<8x8xf32>
    %61 = vector.extract_strided_slice %15 {offsets = [0, 24], sizes = [8, 8], strides = [1, 1]} : vector<16x32xf32> to vector<8x8xf32>
    %62 = vector.extract_strided_slice %51 {offsets = [24, 0], sizes = [8, 8], strides = [1, 1]} : vector<64x8xf32> to vector<8x8xf32>
    %cst_26 = arith.constant dense<0.000000e+00> : vector<8x8xf32>
    %63 = tpu.matmul %62, %61, %cst_26 {dimension_numbers = #tpu.dot_dimension_numbers<[1], [0], [0], [1], [0, 0, 1, 1], [], []>} : vector<8x8xf32>, vector<8x8xf32>, vector<8x8xf32> -> vector<8x8xf32>
    %64 = tpu.concatenate %54, %57, %60, %63 in 1 : vector<8x8xf32>, vector<8x8xf32>, vector<8x8xf32>, vector<8x8xf32> -> vector<8x32xf32>
    %65 = vector.extract_strided_slice %15 {offsets = [8, 0], sizes = [8, 8], strides = [1, 1]} : vector<16x32xf32> to vector<8x8xf32>
    %66 = vector.extract_strided_slice %51 {offsets = [32, 0], sizes = [8, 8], strides = [1, 1]} : vector<64x8xf32> to vector<8x8xf32>
    %cst_27 = arith.constant dense<0.000000e+00> : vector<8x8xf32>
    %67 = tpu.matmul %66, %65, %cst_27 {dimension_numbers = #tpu.dot_dimension_numbers<[1], [0], [0], [1], [0, 0, 1, 1], [], []>} : vector<8x8xf32>, vector<8x8xf32>, vector<8x8xf32> -> vector<8x8xf32>
    %68 = vector.extract_strided_slice %15 {offsets = [8, 8], sizes = [8, 8], strides = [1, 1]} : vector<16x32xf32> to vector<8x8xf32>
    %69 = vector.extract_strided_slice %51 {offsets = [40, 0], sizes = [8, 8], strides = [1, 1]} : vector<64x8xf32> to vector<8x8xf32>
    %cst_28 = arith.constant dense<0.000000e+00> : vector<8x8xf32>
    %70 = tpu.matmul %69, %68, %cst_28 {dimension_numbers = #tpu.dot_dimension_numbers<[1], [0], [0], [1], [0, 0, 1, 1], [], []>} : vector<8x8xf32>, vector<8x8xf32>, vector<8x8xf32> -> vector<8x8xf32>
    %71 = vector.extract_strided_slice %15 {offsets = [8, 16], sizes = [8, 8], strides = [1, 1]} : vector<16x32xf32> to vector<8x8xf32>
    %72 = vector.extract_strided_slice %51 {offsets = [48, 0], sizes = [8, 8], strides = [1, 1]} : vector<64x8xf32> to vector<8x8xf32>
    %cst_29 = arith.constant dense<0.000000e+00> : vector<8x8xf32>
    %73 = tpu.matmul %72, %71, %cst_29 {dimension_numbers = #tpu.dot_dimension_numbers<[1], [0], [0], [1], [0, 0, 1, 1], [], []>} : vector<8x8xf32>, vector<8x8xf32>, vector<8x8xf32> -> vector<8x8xf32>
    %74 = vector.extract_strided_slice %15 {offsets = [8, 24], sizes = [8, 8], strides = [1, 1]} : vector<16x32xf32> to vector<8x8xf32>
    %75 = vector.extract_strided_slice %51 {offsets = [56, 0], sizes = [8, 8], strides = [1, 1]} : vector<64x8xf32> to vector<8x8xf32>
    %cst_30 = arith.constant dense<0.000000e+00> : vector<8x8xf32>
    %76 = tpu.matmul %75, %74, %cst_30 {dimension_numbers = #tpu.dot_dimension_numbers<[1], [0], [0], [1], [0, 0, 1, 1], [], []>} : vector<8x8xf32>, vector<8x8xf32>, vector<8x8xf32> -> vector<8x8xf32>
    %77 = tpu.concatenate %67, %70, %73, %76 in 1 : vector<8x8xf32>, vector<8x8xf32>, vector<8x8xf32>, vector<8x8xf32> -> vector<8x32xf32>
    %78 = tpu.concatenate %64, %77 in 0 : vector<8x32xf32>, vector<8x32xf32> -> vector<16x32xf32>
    %cst_31 = arith.constant dense<0.000000e+00> : vector<16x32xf32>
    %79 = tpu.matmul %78, %17, %cst_31 {dimension_numbers = #tpu.dot_dimension_numbers<[1], [0], [0], [1], [0, 0, 1, 1], [], []>} : vector<16x32xf32>, vector<32x32xf32>, vector<16x32xf32> -> vector<16x32xf32>
    %80 = vector.extract_strided_slice %6 {offsets = [1, 0], sizes = [1, 32], strides = [1, 1]} : vector<16x2048xf32> to vector<1x32xf32>
    %81 = vector.broadcast %80 : vector<1x32xf32> to vector<16x32xf32>
    %82 = arith.addf %79, %81 : vector<16x32xf32>
    %83 = arith.addf %3, %82 : vector<16x32xf32>
    %84 = vector.extract_strided_slice %6 {offsets = [2, 0], sizes = [1, 32], strides = [1, 1]} : vector<16x2048xf32> to vector<1x32xf32>
    %85 = vector.extract_strided_slice %6 {offsets = [3, 0], sizes = [1, 32], strides = [1, 1]} : vector<16x2048xf32> to vector<1x32xf32>
    %cst_32 = arith.constant dense<0.000000e+00> : vector<16xf32>
    %86 = vector.multi_reduction <add>, %83, %cst_32 [1] : vector<16x32xf32> to vector<16xf32>
    %87 = vector.shape_cast %86 : vector<16xf32> to vector<16x1xf32>
    %cst_33 = arith.constant 3.200000e+01 : f32
    %88 = vector.broadcast %cst_33 : f32 to vector<16x1xf32>
    %89 = arith.divf %87, %88 : vector<16x1xf32>
    %90 = vector.broadcast %89 : vector<16x1xf32> to vector<16x32xf32>
    %91 = arith.subf %83, %90 : vector<16x32xf32>
    %92 = arith.mulf %91, %91 : vector<16x32xf32>
    %cst_34 = arith.constant dense<0.000000e+00> : vector<16xf32>
    %93 = vector.multi_reduction <add>, %92, %cst_34 [1] : vector<16x32xf32> to vector<16xf32>
    %94 = vector.shape_cast %93 : vector<16xf32> to vector<16x1xf32>
    %cst_35 = arith.constant 3.200000e+01 : f32
    %95 = vector.broadcast %cst_35 : f32 to vector<16x1xf32>
    %96 = arith.divf %94, %95 : vector<16x1xf32>
    %cst_36 = arith.constant 9.99999974E-6 : f32
    %97 = vector.broadcast %cst_36 : f32 to vector<16x1xf32>
    %98 = arith.addf %96, %97 : vector<16x1xf32>
    %99 = math.rsqrt %98 : vector<16x1xf32>
    %100 = vector.broadcast %99 : vector<16x1xf32> to vector<16x32xf32>
    %101 = arith.mulf %91, %100 : vector<16x32xf32>
    %102 = vector.broadcast %84 : vector<1x32xf32> to vector<16x32xf32>
    %103 = arith.mulf %101, %102 : vector<16x32xf32>
    %104 = vector.broadcast %85 : vector<1x32xf32> to vector<16x32xf32>
    %105 = arith.addf %103, %104 : vector<16x32xf32>
    %c0_37 = arith.constant 0 : index
    %c0_38 = arith.constant 0 : index
    %c0_39 = arith.constant 0 : index
    %106 = vector.load %arg7[%c0_37, %c0_38, %c0_39] : memref<1x32x32xf32, #tpu.memory_space<vmem>>, vector<1x32x32xf32>
    %107 = vector.shape_cast %106 : vector<1x32x32xf32> to vector<32x32xf32>
    %cst_40 = arith.constant dense<0.000000e+00> : vector<16x32xf32>
    %108 = tpu.matmul %105, %107, %cst_40 {dimension_numbers = #tpu.dot_dimension_numbers<[1], [0], [0], [1], [0, 0, 1, 1], [], []>} : vector<16x32xf32>, vector<32x32xf32>, vector<16x32xf32> -> vector<16x32xf32>
    %109 = vector.extract_strided_slice %6 {offsets = [4, 0], sizes = [1, 32], strides = [1, 1]} : vector<16x2048xf32> to vector<1x32xf32>
    %110 = vector.broadcast %109 : vector<1x32xf32> to vector<16x32xf32>
    %111 = arith.addf %108, %110 : vector<16x32xf32>
    %c0_41 = arith.constant 0 : index
    %c0_42 = arith.constant 0 : index
    %c0_43 = arith.constant 0 : index
    %112 = vector.load %arg8[%c0_41, %c0_42, %c0_43] : memref<1x32x64xf32, #tpu.memory_space<vmem>>, vector<1x32x64xf32>
    %113 = vector.shape_cast %112 : vector<1x32x64xf32> to vector<32x64xf32>
    %cst_44 = arith.constant dense<0.000000e+00> : vector<16x64xf32>
    %114 = tpu.matmul %4, %113, %cst_44 {dimension_numbers = #tpu.dot_dimension_numbers<[1], [0], [0], [1], [0, 0, 1, 1], [], []>} : vector<16x32xf32>, vector<32x64xf32>, vector<16x64xf32> -> vector<16x64xf32>
    %115 = vector.extract_strided_slice %6 {offsets = [5, 0], sizes = [1, 64], strides = [1, 1]} : vector<16x2048xf32> to vector<1x64xf32>
    %116 = vector.broadcast %115 : vector<1x64xf32> to vector<16x64xf32>
    %117 = arith.addf %114, %116 : vector<16x64xf32>
    %118 = vector.extract_strided_slice %117 {offsets = [0, 0], sizes = [16, 32], strides = [1, 1]} : vector<16x64xf32> to vector<16x32xf32>
    %119 = vector.extract_strided_slice %117 {offsets = [0, 32], sizes = [16, 32], strides = [1, 1]} : vector<16x64xf32> to vector<16x32xf32>
    %c0_45 = arith.constant 0 : index
    %c0_46 = arith.constant 0 : index
    %c0_47 = arith.constant 0 : index
    %120 = vector.load %arg9[%c0_45, %c0_46, %c0_47] : memref<1x32x32xf32, #tpu.memory_space<vmem>>, vector<1x32x32xf32>
    %121 = vector.shape_cast %120 : vector<1x32x32xf32> to vector<32x32xf32>
    %122 = vector.extract_strided_slice %111 {offsets = [0, 0], sizes = [8, 8], strides = [1, 1]} : vector<16x32xf32> to vector<8x8xf32>
    %123 = vector.extract_strided_slice %118 {offsets = [0, 0], sizes = [8, 8], strides = [1, 1]} : vector<16x32xf32> to vector<8x8xf32>
    %cst_48 = arith.constant dense<0.000000e+00> : vector<8x8xf32>
    %124 = tpu.matmul %122, %123, %cst_48 {dimension_numbers = #tpu.dot_dimension_numbers<[1], [1], [0], [0], [0, 0, 1, 0], [], []>} : vector<8x8xf32>, vector<8x8xf32>, vector<8x8xf32> -> vector<8x8xf32>
    %125 = vector.extract_strided_slice %111 {offsets = [0, 8], sizes = [8, 8], strides = [1, 1]} : vector<16x32xf32> to vector<8x8xf32>
    %126 = vector.extract_strided_slice %118 {offsets = [0, 8], sizes = [8, 8], strides = [1, 1]} : vector<16x32xf32> to vector<8x8xf32>
    %cst_49 = arith.constant dense<0.000000e+00> : vector<8x8xf32>
    %127 = tpu.matmul %125, %126, %cst_49 {dimension_numbers = #tpu.dot_dimension_numbers<[1], [1], [0], [0], [0, 0, 1, 0], [], []>} : vector<8x8xf32>, vector<8x8xf32>, vector<8x8xf32> -> vector<8x8xf32>
    %128 = vector.extract_strided_slice %111 {offsets = [0, 16], sizes = [8, 8], strides = [1, 1]} : vector<16x32xf32> to vector<8x8xf32>
    %129 = vector.extract_strided_slice %118 {offsets = [0, 16], sizes = [8, 8], strides = [1, 1]} : vector<16x32xf32> to vector<8x8xf32>
    %cst_50 = arith.constant dense<0.000000e+00> : vector<8x8xf32>
    %130 = tpu.matmul %128, %129, %cst_50 {dimension_numbers = #tpu.dot_dimension_numbers<[1], [1], [0], [0], [0, 0, 1, 0], [], []>} : vector<8x8xf32>, vector<8x8xf32>, vector<8x8xf32> -> vector<8x8xf32>
    %131 = vector.extract_strided_slice %111 {offsets = [0, 24], sizes = [8, 8], strides = [1, 1]} : vector<16x32xf32> to vector<8x8xf32>
    %132 = vector.extract_strided_slice %118 {offsets = [0, 24], sizes = [8, 8], strides = [1, 1]} : vector<16x32xf32> to vector<8x8xf32>
    %cst_51 = arith.constant dense<0.000000e+00> : vector<8x8xf32>
    %133 = tpu.matmul %131, %132, %cst_51 {dimension_numbers = #tpu.dot_dimension_numbers<[1], [1], [0], [0], [0, 0, 1, 0], [], []>} : vector<8x8xf32>, vector<8x8xf32>, vector<8x8xf32> -> vector<8x8xf32>
    %134 = vector.extract_strided_slice %111 {offsets = [8, 0], sizes = [8, 8], strides = [1, 1]} : vector<16x32xf32> to vector<8x8xf32>
    %135 = vector.extract_strided_slice %118 {offsets = [8, 0], sizes = [8, 8], strides = [1, 1]} : vector<16x32xf32> to vector<8x8xf32>
    %cst_52 = arith.constant dense<0.000000e+00> : vector<8x8xf32>
    %136 = tpu.matmul %134, %135, %cst_52 {dimension_numbers = #tpu.dot_dimension_numbers<[1], [1], [0], [0], [0, 0, 1, 0], [], []>} : vector<8x8xf32>, vector<8x8xf32>, vector<8x8xf32> -> vector<8x8xf32>
    %137 = vector.extract_strided_slice %111 {offsets = [8, 8], sizes = [8, 8], strides = [1, 1]} : vector<16x32xf32> to vector<8x8xf32>
    %138 = vector.extract_strided_slice %118 {offsets = [8, 8], sizes = [8, 8], strides = [1, 1]} : vector<16x32xf32> to vector<8x8xf32>
    %cst_53 = arith.constant dense<0.000000e+00> : vector<8x8xf32>
    %139 = tpu.matmul %137, %138, %cst_53 {dimension_numbers = #tpu.dot_dimension_numbers<[1], [1], [0], [0], [0, 0, 1, 0], [], []>} : vector<8x8xf32>, vector<8x8xf32>, vector<8x8xf32> -> vector<8x8xf32>
    %140 = vector.extract_strided_slice %111 {offsets = [8, 16], sizes = [8, 8], strides = [1, 1]} : vector<16x32xf32> to vector<8x8xf32>
    %141 = vector.extract_strided_slice %118 {offsets = [8, 16], sizes = [8, 8], strides = [1, 1]} : vector<16x32xf32> to vector<8x8xf32>
    %cst_54 = arith.constant dense<0.000000e+00> : vector<8x8xf32>
    %142 = tpu.matmul %140, %141, %cst_54 {dimension_numbers = #tpu.dot_dimension_numbers<[1], [1], [0], [0], [0, 0, 1, 0], [], []>} : vector<8x8xf32>, vector<8x8xf32>, vector<8x8xf32> -> vector<8x8xf32>
    %143 = vector.extract_strided_slice %111 {offsets = [8, 24], sizes = [8, 8], strides = [1, 1]} : vector<16x32xf32> to vector<8x8xf32>
    %144 = vector.extract_strided_slice %118 {offsets = [8, 24], sizes = [8, 8], strides = [1, 1]} : vector<16x32xf32> to vector<8x8xf32>
    %cst_55 = arith.constant dense<0.000000e+00> : vector<8x8xf32>
    %145 = tpu.matmul %143, %144, %cst_55 {dimension_numbers = #tpu.dot_dimension_numbers<[1], [1], [0], [0], [0, 0, 1, 0], [], []>} : vector<8x8xf32>, vector<8x8xf32>, vector<8x8xf32> -> vector<8x8xf32>
    %146 = tpu.concatenate %124, %127, %130, %133, %136, %139, %142, %145 in 0 : vector<8x8xf32>, vector<8x8xf32>, vector<8x8xf32>, vector<8x8xf32>, vector<8x8xf32>, vector<8x8xf32>, vector<8x8xf32>, vector<8x8xf32> -> vector<64x8xf32>
    %cst_56 = arith.constant dense<0xFF800000> : vector<64xf32>
    %147 = vector.multi_reduction <maximumf>, %146, %cst_56 [1] : vector<64x8xf32> to vector<64xf32>
    %148 = vector.shape_cast %147 : vector<64xf32> to vector<64x1xf32>
    %149 = vector.broadcast %148 : vector<64x1xf32> to vector<64x8xf32>
    %150 = arith.subf %146, %149 : vector<64x8xf32>
    %151 = math.exp %150 : vector<64x8xf32>
    %cst_57 = arith.constant dense<0.000000e+00> : vector<64xf32>
    %152 = vector.multi_reduction <add>, %151, %cst_57 [1] : vector<64x8xf32> to vector<64xf32>
    %153 = vector.shape_cast %152 : vector<64xf32> to vector<64x1xf32>
    %154 = vector.broadcast %153 : vector<64x1xf32> to vector<64x8xf32>
    %155 = arith.divf %151, %154 : vector<64x8xf32>
    %156 = vector.extract_strided_slice %119 {offsets = [0, 0], sizes = [8, 8], strides = [1, 1]} : vector<16x32xf32> to vector<8x8xf32>
    %157 = vector.extract_strided_slice %155 {offsets = [0, 0], sizes = [8, 8], strides = [1, 1]} : vector<64x8xf32> to vector<8x8xf32>
    %cst_58 = arith.constant dense<0.000000e+00> : vector<8x8xf32>
    %158 = tpu.matmul %157, %156, %cst_58 {dimension_numbers = #tpu.dot_dimension_numbers<[1], [0], [0], [1], [0, 0, 1, 1], [], []>} : vector<8x8xf32>, vector<8x8xf32>, vector<8x8xf32> -> vector<8x8xf32>
    %159 = vector.extract_strided_slice %119 {offsets = [0, 8], sizes = [8, 8], strides = [1, 1]} : vector<16x32xf32> to vector<8x8xf32>
    %160 = vector.extract_strided_slice %155 {offsets = [8, 0], sizes = [8, 8], strides = [1, 1]} : vector<64x8xf32> to vector<8x8xf32>
    %cst_59 = arith.constant dense<0.000000e+00> : vector<8x8xf32>
    %161 = tpu.matmul %160, %159, %cst_59 {dimension_numbers = #tpu.dot_dimension_numbers<[1], [0], [0], [1], [0, 0, 1, 1], [], []>} : vector<8x8xf32>, vector<8x8xf32>, vector<8x8xf32> -> vector<8x8xf32>
    %162 = vector.extract_strided_slice %119 {offsets = [0, 16], sizes = [8, 8], strides = [1, 1]} : vector<16x32xf32> to vector<8x8xf32>
    %163 = vector.extract_strided_slice %155 {offsets = [16, 0], sizes = [8, 8], strides = [1, 1]} : vector<64x8xf32> to vector<8x8xf32>
    %cst_60 = arith.constant dense<0.000000e+00> : vector<8x8xf32>
    %164 = tpu.matmul %163, %162, %cst_60 {dimension_numbers = #tpu.dot_dimension_numbers<[1], [0], [0], [1], [0, 0, 1, 1], [], []>} : vector<8x8xf32>, vector<8x8xf32>, vector<8x8xf32> -> vector<8x8xf32>
    %165 = vector.extract_strided_slice %119 {offsets = [0, 24], sizes = [8, 8], strides = [1, 1]} : vector<16x32xf32> to vector<8x8xf32>
    %166 = vector.extract_strided_slice %155 {offsets = [24, 0], sizes = [8, 8], strides = [1, 1]} : vector<64x8xf32> to vector<8x8xf32>
    %cst_61 = arith.constant dense<0.000000e+00> : vector<8x8xf32>
    %167 = tpu.matmul %166, %165, %cst_61 {dimension_numbers = #tpu.dot_dimension_numbers<[1], [0], [0], [1], [0, 0, 1, 1], [], []>} : vector<8x8xf32>, vector<8x8xf32>, vector<8x8xf32> -> vector<8x8xf32>
    %168 = tpu.concatenate %158, %161, %164, %167 in 1 : vector<8x8xf32>, vector<8x8xf32>, vector<8x8xf32>, vector<8x8xf32> -> vector<8x32xf32>
    %169 = vector.extract_strided_slice %119 {offsets = [8, 0], sizes = [8, 8], strides = [1, 1]} : vector<16x32xf32> to vector<8x8xf32>
    %170 = vector.extract_strided_slice %155 {offsets = [32, 0], sizes = [8, 8], strides = [1, 1]} : vector<64x8xf32> to vector<8x8xf32>
    %cst_62 = arith.constant dense<0.000000e+00> : vector<8x8xf32>
    %171 = tpu.matmul %170, %169, %cst_62 {dimension_numbers = #tpu.dot_dimension_numbers<[1], [0], [0], [1], [0, 0, 1, 1], [], []>} : vector<8x8xf32>, vector<8x8xf32>, vector<8x8xf32> -> vector<8x8xf32>
    %172 = vector.extract_strided_slice %119 {offsets = [8, 8], sizes = [8, 8], strides = [1, 1]} : vector<16x32xf32> to vector<8x8xf32>
    %173 = vector.extract_strided_slice %155 {offsets = [40, 0], sizes = [8, 8], strides = [1, 1]} : vector<64x8xf32> to vector<8x8xf32>
    %cst_63 = arith.constant dense<0.000000e+00> : vector<8x8xf32>
    %174 = tpu.matmul %173, %172, %cst_63 {dimension_numbers = #tpu.dot_dimension_numbers<[1], [0], [0], [1], [0, 0, 1, 1], [], []>} : vector<8x8xf32>, vector<8x8xf32>, vector<8x8xf32> -> vector<8x8xf32>
    %175 = vector.extract_strided_slice %119 {offsets = [8, 16], sizes = [8, 8], strides = [1, 1]} : vector<16x32xf32> to vector<8x8xf32>
    %176 = vector.extract_strided_slice %155 {offsets = [48, 0], sizes = [8, 8], strides = [1, 1]} : vector<64x8xf32> to vector<8x8xf32>
    %cst_64 = arith.constant dense<0.000000e+00> : vector<8x8xf32>
    %177 = tpu.matmul %176, %175, %cst_64 {dimension_numbers = #tpu.dot_dimension_numbers<[1], [0], [0], [1], [0, 0, 1, 1], [], []>} : vector<8x8xf32>, vector<8x8xf32>, vector<8x8xf32> -> vector<8x8xf32>
    %178 = vector.extract_strided_slice %119 {offsets = [8, 24], sizes = [8, 8], strides = [1, 1]} : vector<16x32xf32> to vector<8x8xf32>
    %179 = vector.extract_strided_slice %155 {offsets = [56, 0], sizes = [8, 8], strides = [1, 1]} : vector<64x8xf32> to vector<8x8xf32>
    %cst_65 = arith.constant dense<0.000000e+00> : vector<8x8xf32>
    %180 = tpu.matmul %179, %178, %cst_65 {dimension_numbers = #tpu.dot_dimension_numbers<[1], [0], [0], [1], [0, 0, 1, 1], [], []>} : vector<8x8xf32>, vector<8x8xf32>, vector<8x8xf32> -> vector<8x8xf32>
    %181 = tpu.concatenate %171, %174, %177, %180 in 1 : vector<8x8xf32>, vector<8x8xf32>, vector<8x8xf32>, vector<8x8xf32> -> vector<8x32xf32>
    %182 = tpu.concatenate %168, %181 in 0 : vector<8x32xf32>, vector<8x32xf32> -> vector<16x32xf32>
    %cst_66 = arith.constant dense<0.000000e+00> : vector<16x32xf32>
    %183 = tpu.matmul %182, %121, %cst_66 {dimension_numbers = #tpu.dot_dimension_numbers<[1], [0], [0], [1], [0, 0, 1, 1], [], []>} : vector<16x32xf32>, vector<32x32xf32>, vector<16x32xf32> -> vector<16x32xf32>
    %184 = vector.extract_strided_slice %6 {offsets = [6, 0], sizes = [1, 32], strides = [1, 1]} : vector<16x2048xf32> to vector<1x32xf32>
    %185 = vector.broadcast %184 : vector<1x32xf32> to vector<16x32xf32>
    %186 = arith.addf %183, %185 : vector<16x32xf32>
    %187 = arith.addf %105, %186 : vector<16x32xf32>
    %188 = vector.extract_strided_slice %6 {offsets = [7, 0], sizes = [1, 32], strides = [1, 1]} : vector<16x2048xf32> to vector<1x32xf32>
    %189 = vector.extract_strided_slice %6 {offsets = [8, 0], sizes = [1, 32], strides = [1, 1]} : vector<16x2048xf32> to vector<1x32xf32>
    %cst_67 = arith.constant dense<0.000000e+00> : vector<16xf32>
    %190 = vector.multi_reduction <add>, %187, %cst_67 [1] : vector<16x32xf32> to vector<16xf32>
    %191 = vector.shape_cast %190 : vector<16xf32> to vector<16x1xf32>
    %cst_68 = arith.constant 3.200000e+01 : f32
    %192 = vector.broadcast %cst_68 : f32 to vector<16x1xf32>
    %193 = arith.divf %191, %192 : vector<16x1xf32>
    %194 = vector.broadcast %193 : vector<16x1xf32> to vector<16x32xf32>
    %195 = arith.subf %187, %194 : vector<16x32xf32>
    %196 = arith.mulf %195, %195 : vector<16x32xf32>
    %cst_69 = arith.constant dense<0.000000e+00> : vector<16xf32>
    %197 = vector.multi_reduction <add>, %196, %cst_69 [1] : vector<16x32xf32> to vector<16xf32>
    %198 = vector.shape_cast %197 : vector<16xf32> to vector<16x1xf32>
    %cst_70 = arith.constant 3.200000e+01 : f32
    %199 = vector.broadcast %cst_70 : f32 to vector<16x1xf32>
    %200 = arith.divf %198, %199 : vector<16x1xf32>
    %cst_71 = arith.constant 9.99999974E-6 : f32
    %201 = vector.broadcast %cst_71 : f32 to vector<16x1xf32>
    %202 = arith.addf %200, %201 : vector<16x1xf32>
    %203 = math.rsqrt %202 : vector<16x1xf32>
    %204 = vector.broadcast %203 : vector<16x1xf32> to vector<16x32xf32>
    %205 = arith.mulf %195, %204 : vector<16x32xf32>
    %206 = vector.broadcast %188 : vector<1x32xf32> to vector<16x32xf32>
    %207 = arith.mulf %205, %206 : vector<16x32xf32>
    %208 = vector.broadcast %189 : vector<1x32xf32> to vector<16x32xf32>
    %209 = arith.addf %207, %208 : vector<16x32xf32>
    %c0_72 = arith.constant 0 : index
    %c0_73 = arith.constant 0 : index
    %c0_74 = arith.constant 0 : index
    %210 = vector.load %arg10[%c0_72, %c0_73, %c0_74] : memref<1x32x2048xf32, #tpu.memory_space<vmem>>, vector<1x32x2048xf32>
    %211 = vector.shape_cast %210 : vector<1x32x2048xf32> to vector<32x2048xf32>
    %cst_75 = arith.constant dense<0.000000e+00> : vector<16x2048xf32>
    %212 = tpu.matmul %209, %211, %cst_75 {dimension_numbers = #tpu.dot_dimension_numbers<[1], [0], [0], [1], [0, 0, 1, 1], [], []>} : vector<16x32xf32>, vector<32x2048xf32>, vector<16x2048xf32> -> vector<16x2048xf32>
    %213 = vector.extract_strided_slice %6 {offsets = [9, 0], sizes = [1, 2048], strides = [1, 1]} : vector<16x2048xf32> to vector<1x2048xf32>
    %214 = vector.broadcast %213 : vector<1x2048xf32> to vector<16x2048xf32>
    %215 = arith.addf %212, %214 : vector<16x2048xf32>
    %cst_76 = arith.constant 0.000000e+00 : f32
    %216 = vector.broadcast %cst_76 : f32 to vector<16x2048xf32>
    %217 = arith.maximumf %215, %216 : vector<16x2048xf32>
    %c0_77 = arith.constant 0 : index
    %c0_78 = arith.constant 0 : index
    %c0_79 = arith.constant 0 : index
    %218 = vector.load %arg11[%c0_77, %c0_78, %c0_79] : memref<1x2048x32xf32, #tpu.memory_space<vmem>>, vector<1x2048x32xf32>
    %219 = vector.shape_cast %218 : vector<1x2048x32xf32> to vector<2048x32xf32>
    %cst_80 = arith.constant dense<0.000000e+00> : vector<16x32xf32>
    %220 = tpu.matmul %217, %219, %cst_80 {dimension_numbers = #tpu.dot_dimension_numbers<[1], [0], [0], [1], [0, 0, 1, 1], [], []>} : vector<16x2048xf32>, vector<2048x32xf32>, vector<16x32xf32> -> vector<16x32xf32>
    %221 = vector.extract_strided_slice %6 {offsets = [10, 0], sizes = [1, 32], strides = [1, 1]} : vector<16x2048xf32> to vector<1x32xf32>
    %222 = vector.broadcast %221 : vector<1x32xf32> to vector<16x32xf32>
    %223 = arith.addf %220, %222 : vector<16x32xf32>
    %224 = arith.addf %209, %223 : vector<16x32xf32>
    %225 = vector.extract_strided_slice %6 {offsets = [11, 0], sizes = [1, 32], strides = [1, 1]} : vector<16x2048xf32> to vector<1x32xf32>
    %226 = vector.extract_strided_slice %6 {offsets = [12, 0], sizes = [1, 32], strides = [1, 1]} : vector<16x2048xf32> to vector<1x32xf32>
    %cst_81 = arith.constant dense<0.000000e+00> : vector<16xf32>
    %227 = vector.multi_reduction <add>, %224, %cst_81 [1] : vector<16x32xf32> to vector<16xf32>
    %228 = vector.shape_cast %227 : vector<16xf32> to vector<16x1xf32>
    %cst_82 = arith.constant 3.200000e+01 : f32
    %229 = vector.broadcast %cst_82 : f32 to vector<16x1xf32>
    %230 = arith.divf %228, %229 : vector<16x1xf32>
    %231 = vector.broadcast %230 : vector<16x1xf32> to vector<16x32xf32>
    %232 = arith.subf %224, %231 : vector<16x32xf32>
    %233 = arith.mulf %232, %232 : vector<16x32xf32>
    %cst_83 = arith.constant dense<0.000000e+00> : vector<16xf32>
    %234 = vector.multi_reduction <add>, %233, %cst_83 [1] : vector<16x32xf32> to vector<16xf32>
    %235 = vector.shape_cast %234 : vector<16xf32> to vector<16x1xf32>
    %cst_84 = arith.constant 3.200000e+01 : f32
    %236 = vector.broadcast %cst_84 : f32 to vector<16x1xf32>
    %237 = arith.divf %235, %236 : vector<16x1xf32>
    %cst_85 = arith.constant 9.99999974E-6 : f32
    %238 = vector.broadcast %cst_85 : f32 to vector<16x1xf32>
    %239 = arith.addf %237, %238 : vector<16x1xf32>
    %240 = math.rsqrt %239 : vector<16x1xf32>
    %241 = vector.broadcast %240 : vector<16x1xf32> to vector<16x32xf32>
    %242 = arith.mulf %232, %241 : vector<16x32xf32>
    %243 = vector.broadcast %225 : vector<1x32xf32> to vector<16x32xf32>
    %244 = arith.mulf %242, %243 : vector<16x32xf32>
    %245 = vector.broadcast %226 : vector<1x32xf32> to vector<16x32xf32>
    %246 = arith.addf %244, %245 : vector<16x32xf32>
    %c0_86 = arith.constant 0 : index
    %c0_87 = arith.constant 0 : index
    %247 = vector.load %arg14[%c0_86, %c0_87] : memref<16x32xf32, #tpu.memory_space<vmem>>, vector<16x32xf32>
    tpu.vector_store %arg14[%c0_86, %c0_87], %246 {strides = array<i32>} : memref<16x32xf32, #tpu.memory_space<vmem>>, vector<16x32xf32>,
    %c5_i32 = arith.constant 5 : i32
    %248 = arith.cmpi eq, %arg0, %c5_i32 : i32
    %249 = arith.extui %248 : i1 to i32
    %c0_i32_88 = arith.constant 0 : i32
    %250 = arith.cmpi ne, %249, %c0_i32_88 : i32
    scf.if %250 {
      %c0_89 = arith.constant 0 : index
      %c0_90 = arith.constant 0 : index
      %251 = vector.load %arg3[%c0_89, %c0_90] : memref<8x32xf32, #tpu.memory_space<vmem>>, vector<1x32xf32>
      %c1 = arith.constant 1 : index
      %c0_91 = arith.constant 0 : index
      %252 = vector.load %arg3[%c1, %c0_91] : memref<8x32xf32, #tpu.memory_space<vmem>>, vector<1x32xf32>
      %cst_92 = arith.constant dense<0.000000e+00> : vector<16xf32>
      %253 = vector.multi_reduction <add>, %246, %cst_92 [1] : vector<16x32xf32> to vector<16xf32>
      %254 = vector.shape_cast %253 : vector<16xf32> to vector<16x1xf32>
      %cst_93 = arith.constant 3.200000e+01 : f32
      %255 = vector.broadcast %cst_93 : f32 to vector<16x1xf32>
      %256 = arith.divf %254, %255 : vector<16x1xf32>
      %257 = vector.broadcast %256 : vector<16x1xf32> to vector<16x32xf32>
      %258 = arith.subf %246, %257 : vector<16x32xf32>
      %259 = arith.mulf %258, %258 : vector<16x32xf32>
      %cst_94 = arith.constant dense<0.000000e+00> : vector<16xf32>
      %260 = vector.multi_reduction <add>, %259, %cst_94 [1] : vector<16x32xf32> to vector<16xf32>
      %261 = vector.shape_cast %260 : vector<16xf32> to vector<16x1xf32>
      %cst_95 = arith.constant 3.200000e+01 : f32
      %262 = vector.broadcast %cst_95 : f32 to vector<16x1xf32>
      %263 = arith.divf %261, %262 : vector<16x1xf32>
      %cst_96 = arith.constant 9.99999974E-6 : f32
      %264 = vector.broadcast %cst_96 : f32 to vector<16x1xf32>
      %265 = arith.addf %263, %264 : vector<16x1xf32>
      %266 = math.rsqrt %265 : vector<16x1xf32>
      %267 = vector.broadcast %266 : vector<16x1xf32> to vector<16x32xf32>
      %268 = arith.mulf %258, %267 : vector<16x32xf32>
      %269 = vector.broadcast %251 : vector<1x32xf32> to vector<16x32xf32>
      %270 = arith.mulf %268, %269 : vector<16x32xf32>
      %271 = vector.broadcast %252 : vector<1x32xf32> to vector<16x32xf32>
      %272 = arith.addf %270, %271 : vector<16x32xf32>
      %c0_97 = arith.constant 0 : index
      %c0_98 = arith.constant 0 : index
      %273 = vector.load %arg4[%c0_97, %c0_98] : memref<32x4xf32, #tpu.memory_space<vmem>>, vector<32x4xf32>
      %cst_99 = arith.constant dense<0.000000e+00> : vector<16x4xf32>
      %274 = tpu.matmul %272, %273, %cst_99 {dimension_numbers = #tpu.dot_dimension_numbers<[1], [0], [0], [1], [0, 0, 1, 1], [], []>} : vector<16x32xf32>, vector<32x4xf32>, vector<16x4xf32> -> vector<16x4xf32>
      %c2 = arith.constant 2 : index
      %c0_100 = arith.constant 0 : index
      %275 = vector.load %arg3[%c2, %c0_100] : memref<8x32xf32, #tpu.memory_space<vmem>>, vector<1x4xf32>
      %276 = vector.broadcast %275 : vector<1x4xf32> to vector<16x4xf32>
      %277 = arith.addf %274, %276 : vector<16x4xf32>
      %c0_101 = arith.constant 0 : index
      %c0_102 = arith.constant 0 : index
      %278 = vector.load %arg13[%c0_101, %c0_102] : memref<16x4xf32, #tpu.memory_space<vmem>>, vector<16x4xf32>
      tpu.vector_store %arg13[%c0_101, %c0_102], %277 {strides = array<i32>} : memref<16x4xf32, #tpu.memory_space<vmem>>, vector<16x4xf32>,
    } else {
    }
    return
  }
  func.func @transform_0(%arg0: i32) -> (i32, i32) {
    %c0_i32 = arith.constant 0 : i32
    %c0_i32_0 = arith.constant 0 : i32
    %c0_i32_1 = arith.constant 0 : i32
    return %c0_i32, %c0_i32_0 : i32, i32
  }
  func.func @transform_1(%arg0: i32) -> (i32, i32) {
    %c0_i32 = arith.constant 0 : i32
    %c0_i32_0 = arith.constant 0 : i32
    %c0_i32_1 = arith.constant 0 : i32
    return %c0_i32, %c0_i32_0 : i32, i32
  }
  func.func @transform_2(%arg0: i32) -> (i32, i32) {
    %c0_i32 = arith.constant 0 : i32
    %c0_i32_0 = arith.constant 0 : i32
    %c0_i32_1 = arith.constant 0 : i32
    return %c0_i32, %c0_i32_0 : i32, i32
  }
  func.func @transform_3(%arg0: i32) -> (i32, i32) {
    %c0_i32 = arith.constant 0 : i32
    %c0_i32_0 = arith.constant 0 : i32
    %c0_i32_1 = arith.constant 0 : i32
    return %c0_i32, %c0_i32_0 : i32, i32
  }
  func.func @transform_4(%arg0: i32) -> (i32, i32, i32) {
    %c0_i32 = arith.constant 0 : i32
    %c0_i32_0 = arith.constant 0 : i32
    %c0_i32_1 = arith.constant 0 : i32
    return %arg0, %c0_i32, %c0_i32_0 : i32, i32, i32
  }
  func.func @transform_5(%arg0: i32) -> (i32, i32, i32) {
    %c0_i32 = arith.constant 0 : i32
    %c0_i32_0 = arith.constant 0 : i32
    %c0_i32_1 = arith.constant 0 : i32
    return %arg0, %c0_i32, %c0_i32_0 : i32, i32, i32
  }
  func.func @transform_6(%arg0: i32) -> (i32, i32, i32) {
    %c0_i32 = arith.constant 0 : i32
    %c0_i32_0 = arith.constant 0 : i32
    %c0_i32_1 = arith.constant 0 : i32
    return %arg0, %c0_i32, %c0_i32_0 : i32, i32, i32
  }
  func.func @transform_7(%arg0: i32) -> (i32, i32, i32) {
    %c0_i32 = arith.constant 0 : i32
    %c0_i32_0 = arith.constant 0 : i32
    %c0_i32_1 = arith.constant 0 : i32
    return %arg0, %c0_i32, %c0_i32_0 : i32, i32, i32
  }
  func.func @transform_8(%arg0: i32) -> (i32, i32, i32) {
    %c0_i32 = arith.constant 0 : i32
    %c0_i32_0 = arith.constant 0 : i32
    %c0_i32_1 = arith.constant 0 : i32
    return %arg0, %c0_i32, %c0_i32_0 : i32, i32, i32
  }
  func.func @transform_9(%arg0: i32) -> (i32, i32, i32) {
    %c0_i32 = arith.constant 0 : i32
    %c0_i32_0 = arith.constant 0 : i32
    %c0_i32_1 = arith.constant 0 : i32
    return %arg0, %c0_i32, %c0_i32_0 : i32, i32, i32
  }
  func.func @transform_10(%arg0: i32) -> (i32, i32, i32) {
    %c0_i32 = arith.constant 0 : i32
    %c0_i32_0 = arith.constant 0 : i32
    %c0_i32_1 = arith.constant 0 : i32
    return %arg0, %c0_i32, %c0_i32_0 : i32, i32, i32
  }
  func.func @transform_11(%arg0: i32) -> (i32, i32, i32) {
    %c0_i32 = arith.constant 0 : i32
    %c0_i32_0 = arith.constant 0 : i32
    %c0_i32_1 = arith.constant 0 : i32
    return %arg0, %c0_i32, %c0_i32_0 : i32, i32, i32
  }
  func.func @transform_12(%arg0: i32) -> (i32, i32) {
    %c0_i32 = arith.constant 0 : i32
    %c0_i32_0 = arith.constant 0 : i32
    %c0_i32_1 = arith.constant 0 : i32
    return %c0_i32, %c0_i32_0 : i32, i32
  }
}

</mosaic_0001>

<llo_original>
// kernel: transformer_forward.2
$region0: #{transformer_forward.2}
  #allocation0 [shape = 'u32[]', space=smem, size = 0x4, offset = 0x4, fixed_abs, tag = 'smem constant byte address 0x4 - core index']
  #allocation1 [shape = 'u32[72,128]{1,0:T(1,128)}', space=vmem, size = 0x9000, scoped, tag = 'internal scratch']
  #allocation2 [shape = 'f32[16,32]{1,0:T(8,128)}', space=vmem, size = 0x2000, scoped, tag = 'scratch operand']
  %s0 = inlined_call_operand.vmem [shape: f32[16,4], index: 0, kind: input, shape index: {}]
  %s1 = inlined_call_operand.vmem [shape: f32[4,32], index: 1, kind: input, shape index: {}]
  %s2 = inlined_call_operand.vmem [shape: f32[8,32], index: 2, kind: input, shape index: {}]
  %s3 = inlined_call_operand.vmem [shape: f32[2,32,96], index: 3, kind: input, shape index: {}]
  %s4 = inlined_call_operand.vmem [shape: f32[2,32,32], index: 4, kind: input, shape index: {}]
  %s5 = inlined_call_operand.vmem [shape: f32[2,32,2048], index: 5, kind: input, shape index: {}]
  %s6 = inlined_call_operand.vmem [shape: f32[2,2048,32], index: 6, kind: input, shape index: {}]
  %s7 = inlined_call_operand.vmem [shape: f32[2,8,2048], index: 7, kind: input, shape index: {}]
  %s8 = inlined_call_operand.vmem [shape: f32[16,32], index: 8, kind: output, shape index: {0}]
  %s9 = inlined_call_operand.vmem [shape: f32[16,32], index: 9, kind: output, shape index: {1}]
  %10 = xla_tuple %s8, %s9
  %s11 = sld [smem:[#allocation0]]
  $region81: #{transformer_forward.2} parent=0
    _
  %s13 = ssub.s32 1, %s11
  %s14 = scalar_select 0, %s13, %s11
  loop: start=0, step=1, limit=4
  $region2: #{transformer_forward.2} parent=0 // loop_pre_header
    _
  $region3: #{transformer_forward.2} parent=0 // loop_header
    %s16 = sphi 0, %s20
    %p17 = scmp.ge.s32.totalorder %s16, 4
    %s24 = sphi 0, %s24
    %s26 = sphi 0, %s24
    %s27 = sphi 0, %s26
    %s41 = sphi 0, %s27
    %s45 = sphi 0, %s45
    %s47 = sphi 0, %s45
    %s48 = sphi 0, %s47
    %s62 = sphi 0, %s48
    %s66 = sphi 0, %s66
    %s68 = sphi 0, %s66
    %s69 = sphi 0, %s68
    %s83 = sphi 0, %s69
    %s89 = sphi 0, %s91
    %s92 = sphi 0, %s89
    %s93 = sphi 0, %s92
    %s109 = sphi 0, %s93
    %s115 = sphi 0, %s117
    %s118 = sphi 0, %s115
    %s119 = sphi 0, %s118
    %s135 = sphi 0, %s119
    %s141 = sphi 0, %s143
    %s144 = sphi 0, %s141
    %s145 = sphi 0, %s144
    %s161 = sphi 0, %s145
    %s167 = sphi 0, %s169
    %s170 = sphi 0, %s167
    %s171 = sphi 0, %s170
    %s187 = sphi 0, %s171
    %s193 = sphi 0, %s195
    %s196 = sphi 0, %s193
    %s197 = sphi 0, %s196
    %s213 = sphi 0, %s197
    %s217 = sphi 0, %s217
    %s219 = sphi 0, %s217
    %s220 = sphi 0, %s219
    %s234 = sphi 0, %s220
    %s238 = sphi 0, %s238
    %s240 = sphi 0, %s238
    %s241 = sphi 0, %s240
    %s255 = sphi 0, %s241
  $region4: #{transformer_forward.2} parent=0 // loop_header_branch
    %19 = sbr.rel (%p17) target = $region8
  $region5: #{transformer_forward.2} parent=0 // loop_body
    %s21 = ssub.s32 %s16, 1
    %s22 = ssub.s32 %s16, 2
    %s23 = sadd.s32 %s16, 1
    %s25 = sadd.s32 %s24, 1
    %p28 = scmp.eq.s32.totalorder %s16, 1
    %p29 = scmp.ne.s32.totalorder %s24, %s26
    %p30 = scmp.eq.s32.totalorder %s16, 0
    %p31 = por %p29, %p30
    %p32 = scmp.ne.s32.totalorder %s24, %s26
    %p33 = scmp.eq.s32.totalorder %s21, 1
    %p34 = por %p32, %p33
    %p35 = scmp.ne.s32.totalorder %s26, %s27
    %p36 = scmp.eq.s32.totalorder %s21, 0
    %p37 = por %p35, %p36
    %p38 = scmp.ne.s32.totalorder %s26, %s27
    %p39 = scmp.eq.s32.totalorder %s22, 1
    %p40 = por %p38, %p39
    %p42 = scmp.ne.s32.totalorder %s27, %s41
    %p43 = scmp.eq.s32.totalorder %s22, 0
    %p44 = por %p42, %p43
    %s46 = sadd.s32 %s45, 1
    %p49 = scmp.eq.s32.totalorder %s16, 1
    %p50 = scmp.ne.s32.totalorder %s45, %s47
    %p51 = scmp.eq.s32.totalorder %s16, 0
    %p52 = por %p50, %p51
    %p53 = scmp.ne.s32.totalorder %s45, %s47
    %p54 = scmp.eq.s32.totalorder %s21, 1
    %p55 = por %p53, %p54
    %p56 = scmp.ne.s32.totalorder %s47, %s48
    %p57 = scmp.eq.s32.totalorder %s21, 0
    %p58 = por %p56, %p57
    %p59 = scmp.ne.s32.totalorder %s47, %s48
    %p60 = scmp.eq.s32.totalorder %s22, 1
    %p61 = por %p59, %p60
    %p63 = scmp.ne.s32.totalorder %s48, %s62
    %p64 = scmp.eq.s32.totalorder %s22, 0
    %p65 = por %p63, %p64
    %s67 = sadd.s32 %s66, 1
    %p70 = scmp.eq.s32.totalorder %s16, 1
    %p71 = scmp.ne.s32.totalorder %s66, %s68
    %p72 = scmp.eq.s32.totalorder %s16, 0
    %p73 = por %p71, %p72
    %p74 = scmp.ne.s32.totalorder %s66, %s68
    %p75 = scmp.eq.s32.totalorder %s21, 1
    %p76 = por %p74, %p75
    %p77 = scmp.ne.s32.totalorder %s68, %s69
    %p78 = scmp.eq.s32.totalorder %s21, 0
    %p79 = por %p77, %p78
    %p80 = scmp.ne.s32.totalorder %s68, %s69
    %p81 = scmp.eq.s32.totalorder %s22, 1
    %p82 = por %p80, %p81
    %p84 = scmp.ne.s32.totalorder %s69, %s83
    %p85 = scmp.eq.s32.totalorder %s22, 0
    %p86 = por %p84, %p85
    %s87 = ssub.s32 %s16, %s23
    %p88 = scmp.eq.s32.totalorder %s87, 0
    %s90 = sadd.s32 %s89, 1
    %s91 = scalar_select %p88, %s89, %s90
    %p94 = pneg %p88
    %p95 = scmp.eq.s32.totalorder %s16, 1
    %p96 = por %p94, %p95
    %p97 = scmp.ne.s32.totalorder %s89, %s92
    %p98 = scmp.eq.s32.totalorder %s16, 0
    %p99 = por %p97, %p98
    %p100 = scmp.ne.s32.totalorder %s89, %s92
    %p101 = scmp.eq.s32.totalorder %s21, 1
    %p102 = por %p100, %p101
    %p103 = scmp.ne.s32.totalorder %s92, %s93
    %p104 = scmp.eq.s32.totalorder %s21, 0
    %p105 = por %p103, %p104
    %p106 = scmp.ne.s32.totalorder %s92, %s93
    %p107 = scmp.eq.s32.totalorder %s22, 1
    %p108 = por %p106, %p107
    %p110 = scmp.ne.s32.totalorder %s93, %s109
    %p111 = scmp.eq.s32.totalorder %s22, 0
    %p112 = por %p110, %p111
    %s113 = ssub.s32 %s16, %s23
    %p114 = scmp.eq.s32.totalorder %s113, 0
    %s116 = sadd.s32 %s115, 1
    %s117 = scalar_select %p114, %s115, %s116
    %p120 = pneg %p114
    %p121 = scmp.eq.s32.totalorder %s16, 1
    %p122 = por %p120, %p121
    %p123 = scmp.ne.s32.totalorder %s115, %s118
    %p124 = scmp.eq.s32.totalorder %s16, 0
    %p125 = por %p123, %p124
    %p126 = scmp.ne.s32.totalorder %s115, %s118
    %p127 = scmp.eq.s32.totalorder %s21, 1
    %p128 = por %p126, %p127
    %p129 = scmp.ne.s32.totalorder %s118, %s119
    %p130 = scmp.eq.s32.totalorder %s21, 0
    %p131 = por %p129, %p130
    %p132 = scmp.ne.s32.totalorder %s118, %s119
    %p133 = scmp.eq.s32.totalorder %s22, 1
    %p134 = por %p132, %p133
    %p136 = scmp.ne.s32.totalorder %s119, %s135
    %p137 = scmp.eq.s32.totalorder %s22, 0
    %p138 = por %p136, %p137
    %s139 = ssub.s32 %s16, %s23
    %p140 = scmp.eq.s32.totalorder %s139, 0
    %s142 = sadd.s32 %s141, 1
    %s143 = scalar_select %p140, %s141, %s142
    %p146 = pneg %p140
    %p147 = scmp.eq.s32.totalorder %s16, 1
    %p148 = por %p146, %p147
    %p149 = scmp.ne.s32.totalorder %s141, %s144
    %p150 = scmp.eq.s32.totalorder %s16, 0
    %p151 = por %p149, %p150
    %p152 = scmp.ne.s32.totalorder %s141, %s144
    %p153 = scmp.eq.s32.totalorder %s21, 1
    %p154 = por %p152, %p153
    %p155 = scmp.ne.s32.totalorder %s144, %s145
    %p156 = scmp.eq.s32.totalorder %s21, 0
    %p157 = por %p155, %p156
    %p158 = scmp.ne.s32.totalorder %s144, %s145
    %p159 = scmp.eq.s32.totalorder %s22, 1
    %p160 = por %p158, %p159
    %p162 = scmp.ne.s32.totalorder %s145, %s161
    %p163 = scmp.eq.s32.totalorder %s22, 0
    %p164 = por %p162, %p163
    %s165 = ssub.s32 %s16, %s23
    %p166 = scmp.eq.s32.totalorder %s165, 0
    %s168 = sadd.s32 %s167, 1
    %s169 = scalar_select %p166, %s167, %s168
    %p172 = pneg %p166
    %p173 = scmp.eq.s32.totalorder %s16, 1
    %p174 = por %p172, %p173
    %p175 = scmp.ne.s32.totalorder %s167, %s170
    %p176 = scmp.eq.s32.totalorder %s16, 0
    %p177 = por %p175, %p176
    %p178 = scmp.ne.s32.totalorder %s167, %s170
    %p179 = scmp.eq.s32.totalorder %s21, 1
    %p180 = por %p178, %p179
    %p181 = scmp.ne.s32.totalorder %s170, %s171
    %p182 = scmp.eq.s32.totalorder %s21, 0
    %p183 = por %p181, %p182
    %p184 = scmp.ne.s32.totalorder %s170, %s171
    %p185 = scmp.eq.s32.totalorder %s22, 1
    %p186 = por %p184, %p185
    %p188 = scmp.ne.s32.totalorder %s171, %s187
    %p189 = scmp.eq.s32.totalorder %s22, 0
    %p190 = por %p188, %p189
    %s191 = ssub.s32 %s16, %s23
    %p192 = scmp.eq.s32.totalorder %s191, 0
    %s194 = sadd.s32 %s193, 1
    %s195 = scalar_select %p192, %s193, %s194
    %p198 = pneg %p192
    %p199 = scmp.eq.s32.totalorder %s16, 1
    %p200 = por %p198, %p199
    %p201 = scmp.ne.s32.totalorder %s193, %s196
    %p202 = scmp.eq.s32.totalorder %s16, 0
    %p203 = por %p201, %p202
    %p204 = scmp.ne.s32.totalorder %s193, %s196
    %p205 = scmp.eq.s32.totalorder %s21, 1
    %p206 = por %p204, %p205
    %p207 = scmp.ne.s32.totalorder %s196, %s197
    %p208 = scmp.eq.s32.totalorder %s21, 0
    %p209 = por %p207, %p208
    %p210 = scmp.ne.s32.totalorder %s196, %s197
    %p211 = scmp.eq.s32.totalorder %s22, 1
    %p212 = por %p210, %p211
    %p214 = scmp.ne.s32.totalorder %s197, %s213
    %p215 = scmp.eq.s32.totalorder %s22, 0
    %p216 = por %p214, %p215
    %s218 = sadd.s32 %s217, 1
    %p221 = scmp.eq.s32.totalorder %s16, 1
    %p222 = scmp.ne.s32.totalorder %s217, %s219
    %p223 = scmp.eq.s32.totalorder %s16, 0
    %p224 = por %p222, %p223
    %p225 = scmp.ne.s32.totalorder %s217, %s219
    %p226 = scmp.eq.s32.totalorder %s21, 1
    %p227 = por %p225, %p226
    %p228 = scmp.ne.s32.totalorder %s219, %s220
    %p229 = scmp.eq.s32.totalorder %s21, 0
    %p230 = por %p228, %p229
    %p231 = scmp.ne.s32.totalorder %s219, %s220
    %p232 = scmp.eq.s32.totalorder %s22, 1
    %p233 = por %p231, %p232
    %p235 = scmp.ne.s32.totalorder %s220, %s234
    %p236 = scmp.eq.s32.totalorder %s22, 0
    %p237 = por %p235, %p236
    %s239 = sadd.s32 %s238, 1
    %p242 = scmp.eq.s32.totalorder %s16, 1
    %p243 = scmp.ne.s32.totalorder %s238, %s240
    %p244 = scmp.eq.s32.totalorder %s16, 0
    %p245 = por %p243, %p244
    %p246 = scmp.ne.s32.totalorder %s238, %s240
    %p247 = scmp.eq.s32.totalorder %s21, 1
    %p248 = por %p246, %p247
    %p249 = scmp.ne.s32.totalorder %s240, %s241
    %p250 = scmp.eq.s32.totalorder %s21, 0
    %p251 = por %p249, %p250
    %p252 = scmp.ne.s32.totalorder %s240, %s241
    %p253 = scmp.eq.s32.totalorder %s22, 1
    %p254 = por %p252, %p253
    %p256 = scmp.ne.s32.totalorder %s241, %s255
    %p257 = scmp.eq.s32.totalorder %s22, 0
    %p258 = por %p256, %p257
    %p259 = scmp.le.s32.totalorder 1, %s16
    %p260 = scmp.lt.s32.totalorder %s16, 3
    %p261 = pnand %p259, %p260
    %p262 = pneg %p261
    // Predicated region
    $region9: #{transformer_forward.2} parent=5 // pred_check
      _
    $region10: #{transformer_forward.2} parent=5 // pred_check_branch
      %264 = sbr.rel (%p261) target = $region12
    $region11: #{transformer_forward.2} parent=5 // pred_region
      %s265 = ssub.s32 %s16, 1
      // Predicated region
      $region13: #{transformer_forward.2} parent=11 // pred_check
        %p266 = pneg %p37
      $region14: #{transformer_forward.2} parent=11 // pred_check_branch
        %268 = sbr.rel (%p266) target = $region16
      $region15: #{transformer_forward.2} parent=11 // pred_region
        _
      $region16: #{transformer_forward.2} parent=11 // pred_fallthru
        _
      // Predicated region
      $region17: #{transformer_forward.2} parent=11 // pred_check
        %p269 = pneg %p58
      $region18: #{transformer_forward.2} parent=11 // pred_check_branch
        %271 = sbr.rel (%p269) target = $region20
      $region19: #{transformer_forward.2} parent=11 // pred_region
        _
      $region20: #{transformer_forward.2} parent=11 // pred_fallthru
        _
      // Predicated region
      $region21: #{transformer_forward.2} parent=11 // pred_check
        %p272 = pneg %p79
      $region22: #{transformer_forward.2} parent=11 // pred_check_branch
        %274 = sbr.rel (%p272) target = $region24
      $region23: #{transformer_forward.2} parent=11 // pred_region
        _
      $region24: #{transformer_forward.2} parent=11 // pred_fallthru
        _
    $region12: #{transformer_forward.2} parent=5 // pred_fallthru
      _
    %p275 = scmp.lt.s32.totalorder %s16, 2
    // Predicated region
    $region25: #{transformer_forward.2} parent=5 // pred_check
      %p276 = pneg %p275
    $region26: #{transformer_forward.2} parent=5 // pred_check_branch
      %278 = sbr.rel (%p276) target = $region28
    $region27: #{transformer_forward.2} parent=5 // pred_region
      // Predicated region
      $region29: #{transformer_forward.2} parent=27 // pred_check
        %p279 = pneg %p99
      $region30: #{transformer_forward.2} parent=27 // pred_check_branch
        %281 = sbr.rel (%p279) target = $region32
      $region31: #{transformer_forward.2} parent=27 // pred_region
        %p282 = scmp.lt.s32.totalorder %s16, 1
        %s283 = scalar_select %p282, %s16, 1
        %s284 = smul.addr %s283, 4
        %s285 = smul.addr %s284, 8
        %s286 = scalar_lea.vmem %s3, %s285
      $region32: #{transformer_forward.2} parent=27 // pred_fallthru
        _
      // Predicated region
      $region33: #{transformer_forward.2} parent=27 // pred_check
        %p287 = pneg %p125
      $region34: #{transformer_forward.2} parent=27 // pred_check_branch
        %289 = sbr.rel (%p287) target = $region36
      $region35: #{transformer_forward.2} parent=27 // pred_region
        %p290 = scmp.lt.s32.totalorder %s16, 1
        %s291 = scalar_select %p290, %s16, 1
        %s292 = smul.addr %s291, 4
        %s293 = smul.addr %s292, 8
        %s294 = scalar_lea.vmem %s4, %s293
      $region36: #{transformer_forward.2} parent=27 // pred_fallthru
        _
      // Predicated region
      $region37: #{transformer_forward.2} parent=27 // pred_check
        %p295 = pneg %p151
      $region38: #{transformer_forward.2} parent=27 // pred_check_branch
        %297 = sbr.rel (%p295) target = $region40
      $region39: #{transformer_forward.2} parent=27 // pred_region
        %p298 = scmp.lt.s32.totalorder %s16, 1
        %s299 = scalar_select %p298, %s16, 1
        %s300 = smul.addr %s299, 64
        %s301 = smul.addr %s300, 8
        %s302 = scalar_lea.vmem %s5, %s301
      $region40: #{transformer_forward.2} parent=27 // pred_fallthru
        _
      // Predicated region
      $region41: #{transformer_forward.2} parent=27 // pred_check
        %p303 = pneg %p177
      $region42: #{transformer_forward.2} parent=27 // pred_check_branch
        %305 = sbr.rel (%p303) target = $region44
      $region43: #{transformer_forward.2} parent=27 // pred_region
        %p306 = scmp.lt.s32.totalorder %s16, 1
        %s307 = scalar_select %p306, %s16, 1
        %s308 = smul.addr %s307, 256
        %s309 = smul.addr %s308, 8
        %s310 = scalar_lea.vmem %s6, %s309
      $region44: #{transformer_forward.2} parent=27 // pred_fallthru
        _
      // Predicated region
      $region45: #{transformer_forward.2} parent=27 // pred_check
        %p311 = pneg %p203
      $region46: #{transformer_forward.2} parent=27 // pred_check_branch
        %313 = sbr.rel (%p311) target = $region48
      $region47: #{transformer_forward.2} parent=27 // pred_region
        %p314 = scmp.lt.s32.totalorder %s16, 1
        %s315 = scalar_select %p314, %s16, 1
        %s316 = smul.addr %s315, 16
        %s317 = smul.addr %s316, 8
        %s318 = scalar_lea.vmem %s7, %s317
      $region48: #{transformer_forward.2} parent=27 // pred_fallthru
        _
    $region28: #{transformer_forward.2} parent=5 // pred_fallthru
      _
    %p319 = scmp.le.s32.totalorder 1, %s16
    %p320 = scmp.lt.s32.totalorder %s16, 3
    %p321 = pnand %p319, %p320
    %p322 = pneg %p321
    // Predicated region
    $region49: #{transformer_forward.2} parent=5 // pred_check
      _
    $region50: #{transformer_forward.2} parent=5 // pred_check_branch
      %324 = sbr.rel (%p321) target = $region52
    $region51: #{transformer_forward.2} parent=5 // pred_region
      %s325 = ssub.s32 %s16, 1
      %p326 = pneg %p37
      %p327 = pneg %p34
      %p328 = pneg %p58
      %p329 = pneg %p55
      %p330 = pneg %p79
      %p331 = pneg %p76
      %p332 = scmp.lt.s32.totalorder %s21, 1
      %s333 = scalar_select %p332, %s21, 1
      %s334 = smul.addr %s333, 4
      %s335 = smul.addr %s334, 8
      %s336 = scalar_lea.vmem %s3, %s335
      %p337 = pneg %p105
      %p338 = pneg %p102
      %p339 = scmp.lt.s32.totalorder %s21, 1
      %s340 = scalar_select %p339, %s21, 1
      %s341 = smul.addr %s340, 4
      %s342 = smul.addr %s341, 8
      %s343 = scalar_lea.vmem %s4, %s342
      %p344 = pneg %p131
      %p345 = pneg %p128
      %p346 = scmp.lt.s32.totalorder %s21, 1
      %s347 = scalar_select %p346, %s21, 1
      %s348 = smul.addr %s347, 64
      %s349 = smul.addr %s348, 8
      %s350 = scalar_lea.vmem %s5, %s349
      %p351 = pneg %p157
      %p352 = pneg %p154
      %p353 = scmp.lt.s32.totalorder %s21, 1
      %s354 = scalar_select %p353, %s21, 1
      %s355 = smul.addr %s354, 256
      %s356 = smul.addr %s355, 8
      %s357 = scalar_lea.vmem %s6, %s356
      %p358 = pneg %p183
      %p359 = pneg %p180
      %p360 = scmp.lt.s32.totalorder %s21, 1
      %s361 = scalar_select %p360, %s21, 1
      %s362 = smul.addr %s361, 16
      %s363 = smul.addr %s362, 8
      %s364 = scalar_lea.vmem %s7, %s363
      %p365 = pneg %p209
      %p366 = pneg %p206
      %p367 = pneg %p230
      %p368 = pneg %p227
      %p369 = pneg %p251
      %p370 = pneg %p248
      %p371 = scmp.lt.s32.totalorder %s21, 1
      %s372 = scalar_select %p371, %s21, 1
      %s373 = smul.addr %s372, 4
      %s374 = smul.addr %s373, 8
      %s375 = scalar_lea.vmem %s3, %s374
      %p376 = scmp.lt.s32.totalorder %s21, 1
      %s377 = scalar_select %p376, %s21, 1
      %s378 = smul.addr %s377, 4
      %s379 = smul.addr %s378, 8
      %s380 = scalar_lea.vmem %s4, %s379
      %p381 = scmp.lt.s32.totalorder %s21, 1
      %s382 = scalar_select %p381, %s21, 1
      %s383 = smul.addr %s382, 64
      %s384 = smul.addr %s383, 8
      %s385 = scalar_lea.vmem %s5, %s384
      %p386 = scmp.lt.s32.totalorder %s21, 1
      %s387 = scalar_select %p386, %s21, 1
      %s388 = smul.addr %s387, 256
      %s389 = smul.addr %s388, 8
      %s390 = scalar_lea.vmem %s6, %s389
      %p391 = scmp.lt.s32.totalorder %s21, 1
      %s392 = scalar_select %p391, %s21, 1
      %s393 = smul.addr %s392, 16
      %s394 = smul.addr %s393, 8
      %s395 = scalar_lea.vmem %s7, %s394
      %p396 = scmp.eq.s32.totalorder %s21, 0
      // Predicated region
      $region53: #{transformer_forward.2} parent=51 // pred_check
        %p397 = pneg %p396
      $region54: #{transformer_forward.2} parent=51 // pred_check_branch
        %399 = sbr.rel (%p397) target = $region56
      $region55: #{transformer_forward.2} parent=51 // pred_region
        %v400 = vld [vmem:[%s0] sm:$0xff]
        %v401 = vld [vmem:[%s0 + $0x8] sm:$0xff]
        %v402 = vld [vmem:[%s1] sm:$0xf]
        %v403 = vld [vmem:[%s2] sm:$0x1]
        %v404 = vperm.slane %v403, 0
        %vm405 = vcmask 31744
        %v407 = vsel %vm405, %v400, 0
        %v410 = vsel %vm405, %v401, 0
        %vm412 = vcmask 1043456
        %v414 = vsel %vm412, %v402, 0
        %416 = vmatpush.msra.mxu0 0.0
        %417 = vmatpush.msra.mxu0 0.0
        %418 = vmatpush.msra.mxu0 0.0
        %419 = vmatpush.msra.mxu0 0.0
        %420 = vmatpush.msra.mxu0 0.0
        %421 = vmatpush.msra.mxu0 0.0
        %422 = vmatpush.msra.mxu0 0.0
        %423 = vmatpush.msra.mxu0 0.0
        %424 = vmatpush.msra.mxu0 0.0
        %425 = vmatpush.msra.mxu0 0.0
        %426 = vmatpush.msra.mxu0 0.0
        %427 = vmatpush.msra.mxu0 0.0
        %428 = vmatpush.msra.mxu0 0.0
        %429 = vmatpush.msra.mxu0 0.0
        %430 = vmatpush.msra.mxu0 0.0
        %431 = vmatpush.msra.mxu0 %v414
        %432 = vmatmul.f32.gmra.mxu0 %v407
        %v433 = vpop.f32.mrf.mxu0
        %v434 = vadd.f32 %v404, %v433
        %435 = vmatmul.f32.gmra.mxu0 %v410
        %v436 = vpop.f32.mrf.mxu0
        %v437 = vadd.f32 %v404, %v436
        %438 = vdwg.mxu0
        %vm439 = vcmask 261120
        %440 = vst.msk [vmem:[#allocation2] sm:$0xff] %vm439, %v434
        %441 = vst.msk [vmem:[#allocation2 + $0x8] sm:$0xff] %vm439, %v437
        %442 = vst.msk [vmem:[%s8] sm:$0xff] %vm439, %v434
        %443 = vst.msk [vmem:[%s8 + $0x8] sm:$0xff] %vm439, %v437
      $region56: #{transformer_forward.2} parent=51 // pred_fallthru
        _
      %v444 = vld [vmem:[#allocation2] sm:$0xff]
      %v445 = vld [vmem:[#allocation2 + $0x8] sm:$0xff]
      %v446 = vld [vmem:[%s395] sm:$0xff]
      %v447 = vld [vmem:[%s395 + $0x8] sm:$0xff]
      %v448 = vld [vmem:[%s395 + $0x10] sm:$0xff]
      %v449 = vld [vmem:[%s395 + $0x18] sm:$0xff]
      %v450 = vld [vmem:[%s395 + $0x20] sm:$0xff]
      %v451 = vld [vmem:[%s395 + $0x28] sm:$0xff]
      %v452 = vld [vmem:[%s395 + $0x30] sm:$0xff]
      %v453 = vld [vmem:[%s395 + $0x38] sm:$0xff]
      %v454 = vld [vmem:[%s395 + $0x40] sm:$0xff]
      %v455 = vld [vmem:[%s395 + $0x48] sm:$0xff]
      %v456 = vld [vmem:[%s395 + $0x50] sm:$0xff]
      %v457 = vld [vmem:[%s395 + $0x58] sm:$0xff]
      %v458 = vld [vmem:[%s395 + $0x60] sm:$0xff]
      %v459 = vld [vmem:[%s395 + $0x68] sm:$0xff]
      %v460 = vld [vmem:[%s395 + $0x70] sm:$0xff]
      %v461 = vld [vmem:[%s395 + $0x78] sm:$0xff]
      %v462 = vld [vmem:[%s375] sm:$0xff]
      %v463 = vld [vmem:[%s375 + $0x8] sm:$0xff]
      %v464 = vld [vmem:[%s375 + $0x10] sm:$0xff]
      %v465 = vld [vmem:[%s375 + $0x18] sm:$0xff]
      %v466 = vperm.slane %v446, 0
      %vm467 = vcmask 261120
      %v469 = vsel %vm467, %v444, 0
      %v472 = vsel %vm467, %v445, 0
      %474 = vmatpush.msra.mxu0 0.0
      %475 = vmatpush.msra.mxu0 0.0
      %476 = vmatpush.msra.mxu0 0.0
      %477 = vmatpush.msra.mxu0 0.0
      %478 = vmatpush.msra.mxu0 0.0
      %479 = vmatpush.msra.mxu0 0.0
      %480 = vmatpush.msra.mxu0 0.0
      %481 = vmatpush.msra.mxu0 0.0
      %482 = vmatpush.msra.mxu0 0.0
      %483 = vmatpush.msra.mxu0 0.0
      %484 = vmatpush.msra.mxu0 0.0
      %485 = vmatpush.msra.mxu0 0.0
      %486 = vmatpush.msra.mxu0 %v465
      %487 = vmatpush.msra.mxu0 %v464
      %488 = vmatpush.msra.mxu0 %v463
      %489 = vmatpush.msra.mxu0 %v462
      %490 = vmatmul.f32.gmra.mxu0 %v469
      %v491 = vpop.f32.mrf.mxu0
      %v492 = vadd.f32 %v466, %v491
      %493 = vmatmul.f32.gmra.mxu0 %v472
      %v494 = vpop.f32.mrf.mxu0
      %v495 = vadd.f32 %v466, %v494
      %496 = vdwg.mxu0
      %v497 = vld [vmem:[%s380] sm:$0xff]
      %v498 = vld [vmem:[%s380 + $0x8] sm:$0xff]
      %v499 = vld [vmem:[%s380 + $0x10] sm:$0xff]
      %v500 = vld [vmem:[%s380 + $0x18] sm:$0xff]
      %502 = vrot.lane.b32.xlu0 %v492, 96
      %v503 = vpop.permute.xlu0 %502
      %vm504 = vcmask 64512
      %v505 = vsel %vm504, %v492, 0
      %v507 = vsel %vm504, %v503, 0
      %509 = vmatpush.xpose.msra.mxu0 0.0
      %510 = vmatpush.xpose.msra.mxu0 0.0
      %511 = vmatpush.xpose.msra.mxu0 0.0
      %512 = vmatpush.xpose.msra.mxu0 0.0
      %513 = vmatpush.xpose.msra.mxu0 0.0
      %514 = vmatpush.xpose.msra.mxu0 0.0
      %515 = vmatpush.xpose.msra.mxu0 0.0
      %516 = vmatpush.xpose.msra.mxu0 0.0
      %517 = vmatpush.xpose.msra.mxu0 0.0
      %518 = vmatpush.xpose.msra.mxu0 0.0
      %519 = vmatpush.xpose.msra.mxu0 0.0
      %520 = vmatpush.xpose.msra.mxu0 0.0
      %521 = vmatpush.xpose.msra.mxu0 0.0
      %522 = vmatpush.xpose.msra.mxu0 0.0
      %523 = vmatpush.xpose.msra.mxu0 0.0
      %524 = vmatpush.xpose.msra.mxu0 %v507
      %525 = vmatmul.f32.gmra.mxu0 %v505
      %v526 = vpop.f32.mrf.mxu0
      %v527 = vadd.f32 0.0, %v526
      %528 = vdwg.mxu0
      %529 = vrot.lane.b32.xlu0 %v492, 120
      %v530 = vpop.permute.xlu0 %529
      %531 = vrot.lane.b32.xlu0 %v492, 88
      %v532 = vpop.permute.xlu0 %531
      %v533 = vsel %vm504, %v530, 0
      %v535 = vsel %vm504, %v532, 0
      %537 = vmatpush.xpose.msra.mxu0 0.0
      %538 = vmatpush.xpose.msra.mxu0 0.0
      %539 = vmatpush.xpose.msra.mxu0 0.0
      %540 = vmatpush.xpose.msra.mxu0 0.0
      %541 = vmatpush.xpose.msra.mxu0 0.0
      %542 = vmatpush.xpose.msra.mxu0 0.0
      %543 = vmatpush.xpose.msra.mxu0 0.0
      %544 = vmatpush.xpose.msra.mxu0 0.0
      %545 = vmatpush.xpose.msra.mxu0 0.0
      %546 = vmatpush.xpose.msra.mxu0 0.0
      %547 = vmatpush.xpose.msra.mxu0 0.0
      %548 = vmatpush.xpose.msra.mxu0 0.0
      %549 = vmatpush.xpose.msra.mxu0 0.0
      %550 = vmatpush.xpose.msra.mxu0 0.0
      %551 = vmatpush.xpose.msra.mxu0 0.0
      %552 = vmatpush.xpose.msra.mxu0 %v535
      %553 = vmatmul.f32.gmra.mxu0 %v533
      %v554 = vpop.f32.mrf.mxu0
      %v555 = vadd.f32 0.0, %v554
      %556 = vdwg.mxu0
      %557 = vrot.lane.b32.xlu0 %v492, 112
      %v558 = vpop.permute.xlu0 %557
      %559 = vrot.lane.b32.xlu0 %v492, 80
      %v560 = vpop.permute.xlu0 %559
      %v561 = vsel %vm504, %v558, 0
      %v563 = vsel %vm504, %v560, 0
      %565 = vmatpush.xpose.msra.mxu0 0.0
      %566 = vmatpush.xpose.msra.mxu0 0.0
      %567 = vmatpush.xpose.msra.mxu0 0.0
      %568 = vmatpush.xpose.msra.mxu0 0.0
      %569 = vmatpush.xpose.msra.mxu0 0.0
      %570 = vmatpush.xpose.msra.mxu0 0.0
      %571 = vmatpush.xpose.msra.mxu0 0.0
      %572 = vmatpush.xpose.msra.mxu0 0.0
      %573 = vmatpush.xpose.msra.mxu0 0.0
      %574 = vmatpush.xpose.msra.mxu0 0.0
      %575 = vmatpush.xpose.msra.mxu0 0.0
      %576 = vmatpush.xpose.msra.mxu0 0.0
      %577 = vmatpush.xpose.msra.mxu0 0.0
      %578 = vmatpush.xpose.msra.mxu0 0.0
      %579 = vmatpush.xpose.msra.mxu0 0.0
      %580 = vmatpush.xpose.msra.mxu0 %v563
      %581 = vmatmul.f32.gmra.mxu0 %v561
      %v582 = vpop.f32.mrf.mxu0
      %v583 = vadd.f32 0.0, %v582
      %584 = vdwg.mxu0
      %585 = vrot.lane.b32.xlu0 %v492, 104
      %v586 = vpop.permute.xlu0 %585
      %587 = vrot.lane.b32.xlu0 %v492, 72
      %v588 = vpop.permute.xlu0 %587
      %v589 = vsel %vm504, %v586, 0
      %v591 = vsel %vm504, %v588, 0
      %593 = vmatpush.xpose.msra.mxu0 0.0
      %594 = vmatpush.xpose.msra.mxu0 0.0
      %595 = vmatpush.xpose.msra.mxu0 0.0
      %596 = vmatpush.xpose.msra.mxu0 0.0
      %597 = vmatpush.xpose.msra.mxu0 0.0
      %598 = vmatpush.xpose.msra.mxu0 0.0
      %599 = vmatpush.xpose.msra.mxu0 0.0
      %600 = vmatpush.xpose.msra.mxu0 0.0
      %601 = vmatpush.xpose.msra.mxu0 0.0
      %602 = vmatpush.xpose.msra.mxu0 0.0
      %603 = vmatpush.xpose.msra.mxu0 0.0
      %604 = vmatpush.xpose.msra.mxu0 0.0
      %605 = vmatpush.xpose.msra.mxu0 0.0
      %606 = vmatpush.xpose.msra.mxu0 0.0
      %607 = vmatpush.xpose.msra.mxu0 0.0
      %608 = vmatpush.xpose.msra.mxu0 %v591
      %609 = vmatmul.f32.gmra.mxu0 %v589
      %v610 = vpop.f32.mrf.mxu0
      %v611 = vadd.f32 0.0, %v610
      %612 = vdwg.mxu0
      %614 = vrot.lane.b32.xlu0 %v495, 96
      %v615 = vpop.permute.xlu0 %614
      %v616 = vsel %vm504, %v495, 0
      %v618 = vsel %vm504, %v615, 0
      %620 = vmatpush.xpose.msra.mxu0 0.0
      %621 = vmatpush.xpose.msra.mxu0 0.0
      %622 = vmatpush.xpose.msra.mxu0 0.0
      %623 = vmatpush.xpose.msra.mxu0 0.0
      %624 = vmatpush.xpose.msra.mxu0 0.0
      %625 = vmatpush.xpose.msra.mxu0 0.0
      %626 = vmatpush.xpose.msra.mxu0 0.0
      %627 = vmatpush.xpose.msra.mxu0 0.0
      %628 = vmatpush.xpose.msra.mxu0 0.0
      %629 = vmatpush.xpose.msra.mxu0 0.0
      %630 = vmatpush.xpose.msra.mxu0 0.0
      %631 = vmatpush.xpose.msra.mxu0 0.0
      %632 = vmatpush.xpose.msra.mxu0 0.0
      %633 = vmatpush.xpose.msra.mxu0 0.0
      %634 = vmatpush.xpose.msra.mxu0 0.0
      %635 = vmatpush.xpose.msra.mxu0 %v618
      %636 = vmatmul.f32.gmra.mxu0 %v616
      %v637 = vpop.f32.mrf.mxu0
      %v638 = vadd.f32 0.0, %v637
      %639 = vdwg.mxu0
      %640 = vrot.lane.b32.xlu0 %v495, 120
      %v641 = vpop.permute.xlu0 %640
      %642 = vrot.lane.b32.xlu0 %v495, 88
      %v643 = vpop.permute.xlu0 %642
      %v644 = vsel %vm504, %v641, 0
      %v646 = vsel %vm504, %v643, 0
      %648 = vmatpush.xpose.msra.mxu0 0.0
      %649 = vmatpush.xpose.msra.mxu0 0.0
      %650 = vmatpush.xpose.msra.mxu0 0.0
      %651 = vmatpush.xpose.msra.mxu0 0.0
      %652 = vmatpush.xpose.msra.mxu0 0.0
      %653 = vmatpush.xpose.msra.mxu0 0.0
      %654 = vmatpush.xpose.msra.mxu0 0.0
      %655 = vmatpush.xpose.msra.mxu0 0.0
      %656 = vmatpush.xpose.msra.mxu0 0.0
      %657 = vmatpush.xpose.msra.mxu0 0.0
      %658 = vmatpush.xpose.msra.mxu0 0.0
      %659 = vmatpush.xpose.msra.mxu0 0.0
      %660 = vmatpush.xpose.msra.mxu0 0.0
      %661 = vmatpush.xpose.msra.mxu0 0.0
      %662 = vmatpush.xpose.msra.mxu0 0.0
      %663 = vmatpush.xpose.msra.mxu0 %v646
      %664 = vmatmul.f32.gmra.mxu0 %v644
      %v665 = vpop.f32.mrf.mxu0
      %v666 = vadd.f32 0.0, %v665
      %667 = vdwg.mxu0
      %668 = vrot.lane.b32.xlu0 %v495, 112
      %v669 = vpop.permute.xlu0 %668
      %670 = vrot.lane.b32.xlu0 %v495, 80
      %v671 = vpop.permute.xlu0 %670
      %v672 = vsel %vm504, %v669, 0
      %v674 = vsel %vm504, %v671, 0
      %676 = vmatpush.xpose.msra.mxu0 0.0
      %677 = vmatpush.xpose.msra.mxu0 0.0
      %678 = vmatpush.xpose.msra.mxu0 0.0
      %679 = vmatpush.xpose.msra.mxu0 0.0
      %680 = vmatpush.xpose.msra.mxu0 0.0
      %681 = vmatpush.xpose.msra.mxu0 0.0
      %682 = vmatpush.xpose.msra.mxu0 0.0
      %683 = vmatpush.xpose.msra.mxu0 0.0
      %684 = vmatpush.xpose.msra.mxu0 0.0
      %685 = vmatpush.xpose.msra.mxu0 0.0
      %686 = vmatpush.xpose.msra.mxu0 0.0
      %687 = vmatpush.xpose.msra.mxu0 0.0
      %688 = vmatpush.xpose.msra.mxu0 0.0
      %689 = vmatpush.xpose.msra.mxu0 0.0
      %690 = vmatpush.xpose.msra.mxu0 0.0
      %691 = vmatpush.xpose.msra.mxu0 %v674
      %692 = vmatmul.f32.gmra.mxu0 %v672
      %v693 = vpop.f32.mrf.mxu0
      %v694 = vadd.f32 0.0, %v693
      %695 = vdwg.mxu0
      %696 = vrot.lane.b32.xlu0 %v495, 104
      %v697 = vpop.permute.xlu0 %696
      %698 = vrot.lane.b32.xlu0 %v495, 72
      %v699 = vpop.permute.xlu0 %698
      %v700 = vsel %vm504, %v697, 0
      %v702 = vsel %vm504, %v699, 0
      %704 = vmatpush.xpose.msra.mxu0 0.0
      %705 = vmatpush.xpose.msra.mxu0 0.0
      %706 = vmatpush.xpose.msra.mxu0 0.0
      %707 = vmatpush.xpose.msra.mxu0 0.0
      %708 = vmatpush.xpose.msra.mxu0 0.0
      %709 = vmatpush.xpose.msra.mxu0 0.0
      %710 = vmatpush.xpose.msra.mxu0 0.0
      %711 = vmatpush.xpose.msra.mxu0 0.0
      %712 = vmatpush.xpose.msra.mxu0 0.0
      %713 = vmatpush.xpose.msra.mxu0 0.0
      %714 = vmatpush.xpose.msra.mxu0 0.0
      %715 = vmatpush.xpose.msra.mxu0 0.0
      %716 = vmatpush.xpose.msra.mxu0 0.0
      %717 = vmatpush.xpose.msra.mxu0 0.0
      %718 = vmatpush.xpose.msra.mxu0 0.0
      %719 = vmatpush.xpose.msra.mxu0 %v702
      %720 = vmatmul.f32.gmra.mxu0 %v700
      %v721 = vpop.f32.mrf.mxu0
      %v722 = vadd.f32 0.0, %v721
      %723 = vdwg.mxu0
      %v724 = vsel %vm504, %v527, -inf
      %725 = vmax.xlane.f32.xlu0 %v724
      %v726 = vpop.xlane.xlu0 %725
      %v727 = vsel %vm504, %v555, -inf
      %728 = vmax.xlane.f32.xlu0 %v727
      %v729 = vpop.xlane.xlu0 %728
      %v730 = vsel %vm504, %v583, -inf
      %731 = vmax.xlane.f32.xlu0 %v730
      %v732 = vpop.xlane.xlu0 %731
      %v733 = vsel %vm504, %v611, -inf
      %734 = vmax.xlane.f32.xlu0 %v733
      %v735 = vpop.xlane.xlu0 %734
      %v736 = vsel %vm504, %v638, -inf
      %737 = vmax.xlane.f32.xlu0 %v736
      %v738 = vpop.xlane.xlu0 %737
      %v739 = vsel %vm504, %v666, -inf
      %740 = vmax.xlane.f32.xlu0 %v739
      %v741 = vpop.xlane.xlu0 %740
      %v742 = vsel %vm504, %v694, -inf
      %743 = vmax.xlane.f32.xlu0 %v742
      %v744 = vpop.xlane.xlu0 %743
      %v745 = vsel %vm504, %v722, -inf
      %746 = vmax.xlane.f32.xlu0 %v745
      %v747 = vpop.xlane.xlu0 %746
      %v748 = vsub.f32 %v527, %v726
      %v749 = vsub.f32 %v555, %v729
      %v750 = vsub.f32 %v583, %v732
      %v751 = vsub.f32 %v611, %v735
      %v752 = vsub.f32 %v638, %v738
      %v753 = vsub.f32 %v666, %v741
      %v754 = vsub.f32 %v694, %v744
      %v755 = vsub.f32 %v722, %v747
      %v756 = vmul.f32 %v748, 1.442695
      %v757 = vpow.pop %v756
      %v758 = vmul.f32 %v749, 1.442695
      %v759 = vpow.pop %v758
      %v760 = vmul.f32 %v750, 1.442695
      %v761 = vpow.pop %v760
      %v762 = vmul.f32 %v751, 1.442695
      %v763 = vpow.pop %v762
      %v764 = vmul.f32 %v752, 1.442695
      %v765 = vpow.pop %v764
      %v766 = vmul.f32 %v753, 1.442695
      %v767 = vpow.pop %v766
      %v768 = vmul.f32 %v754, 1.442695
      %v769 = vpow.pop %v768
      %v770 = vmul.f32 %v755, 1.442695
      %v771 = vpow.pop %v770
      %v772 = vsel %vm504, %v757, 0.0
      %773 = vadd.xlane.f32.xlu0 %v772
      %v774 = vpop.xlane.xlu0 %773
      %v775 = vsel %vm504, %v759, 0.0
      %776 = vadd.xlane.f32.xlu0 %v775
      %v777 = vpop.xlane.xlu0 %776
      %v778 = vsel %vm504, %v761, 0.0
      %779 = vadd.xlane.f32.xlu0 %v778
      %v780 = vpop.xlane.xlu0 %779
      %v781 = vsel %vm504, %v763, 0.0
      %782 = vadd.xlane.f32.xlu0 %v781
      %v783 = vpop.xlane.xlu0 %782
      %v784 = vsel %vm504, %v765, 0.0
      %785 = vadd.xlane.f32.xlu0 %v784
      %v786 = vpop.xlane.xlu0 %785
      %v787 = vsel %vm504, %v767, 0.0
      %788 = vadd.xlane.f32.xlu0 %v787
      %v789 = vpop.xlane.xlu0 %788
      %v790 = vsel %vm504, %v769, 0.0
      %791 = vadd.xlane.f32.xlu0 %v790
      %v792 = vpop.xlane.xlu0 %791
      %v793 = vsel %vm504, %v771, 0.0
      %794 = vadd.xlane.f32.xlu0 %v793
      %v795 = vpop.xlane.xlu0 %794
      %v796 = vrcp.pop %v774
      %v797 = vmul.f32 %v774, %v796
      %v798 = vsub.f32 1.0, %v797
      %v799 = vmul.f32 %v796, %v798
      %v800 = vadd.f32 %v796, %v799
      %vm801 = vweird.f32 %v774
      %vm802 = vweird.f32 %v796
      %vm803 = vmor %vm801, %vm802
      %v804 = vsel %vm803, %v796, %v800
      %v805 = vand.u32 2147483647, %v774
      %vm806 = vcmp.eq.f32.partialorder %v805, 8.507059e+37
      %v807 = vand.u32 %v774, 2147483648
      %v808 = vor.u32 1.1754944e-38, %v807
      %v809 = vsel %vm806, %v808, %v804
      %v810 = vmul.f32 %v757, %v809
      %v811 = vrcp.pop %v777
      %v812 = vmul.f32 %v777, %v811
      %v813 = vsub.f32 1.0, %v812
      %v814 = vmul.f32 %v811, %v813
      %v815 = vadd.f32 %v811, %v814
      %vm816 = vweird.f32 %v777
      %vm817 = vweird.f32 %v811
      %vm818 = vmor %vm816, %vm817
      %v819 = vsel %vm818, %v811, %v815
      %v820 = vand.u32 2147483647, %v777
      %vm821 = vcmp.eq.f32.partialorder %v820, 8.507059e+37
      %v822 = vand.u32 %v777, 2147483648
      %v823 = vor.u32 1.1754944e-38, %v822
      %v824 = vsel %vm821, %v823, %v819
      %v825 = vmul.f32 %v759, %v824
      %v826 = vrcp.pop %v780
      %v827 = vmul.f32 %v780, %v826
      %v828 = vsub.f32 1.0, %v827
      %v829 = vmul.f32 %v826, %v828
      %v830 = vadd.f32 %v826, %v829
      %vm831 = vweird.f32 %v780
      %vm832 = vweird.f32 %v826
      %vm833 = vmor %vm831, %vm832
      %v834 = vsel %vm833, %v826, %v830
      %v835 = vand.u32 2147483647, %v780
      %vm836 = vcmp.eq.f32.partialorder %v835, 8.507059e+37
      %v837 = vand.u32 %v780, 2147483648
      %v838 = vor.u32 1.1754944e-38, %v837
      %v839 = vsel %vm836, %v838, %v834
      %v840 = vmul.f32 %v761, %v839
      %v841 = vrcp.pop %v783
      %v842 = vmul.f32 %v783, %v841
      %v843 = vsub.f32 1.0, %v842
      %v844 = vmul.f32 %v841, %v843
      %v845 = vadd.f32 %v841, %v844
      %vm846 = vweird.f32 %v783
      %vm847 = vweird.f32 %v841
      %vm848 = vmor %vm846, %vm847
      %v849 = vsel %vm848, %v841, %v845
      %v850 = vand.u32 2147483647, %v783
      %vm851 = vcmp.eq.f32.partialorder %v850, 8.507059e+37
      %v852 = vand.u32 %v783, 2147483648
      %v853 = vor.u32 1.1754944e-38, %v852
      %v854 = vsel %vm851, %v853, %v849
      %v855 = vmul.f32 %v763, %v854
      %v856 = vrcp.pop %v786
      %v857 = vmul.f32 %v786, %v856
      %v858 = vsub.f32 1.0, %v857
      %v859 = vmul.f32 %v856, %v858
      %v860 = vadd.f32 %v856, %v859
      %vm861 = vweird.f32 %v786
      %vm862 = vweird.f32 %v856
      %vm863 = vmor %vm861, %vm862
      %v864 = vsel %vm863, %v856, %v860
      %v865 = vand.u32 2147483647, %v786
      %vm866 = vcmp.eq.f32.partialorder %v865, 8.507059e+37
      %v867 = vand.u32 %v786, 2147483648
      %v868 = vor.u32 1.1754944e-38, %v867
      %v869 = vsel %vm866, %v868, %v864
      %v870 = vmul.f32 %v765, %v869
      %v871 = vrcp.pop %v789
      %v872 = vmul.f32 %v789, %v871
      %v873 = vsub.f32 1.0, %v872
      %v874 = vmul.f32 %v871, %v873
      %v875 = vadd.f32 %v871, %v874
      %vm876 = vweird.f32 %v789
      %vm877 = vweird.f32 %v871
      %vm878 = vmor %vm876, %vm877
      %v879 = vsel %vm878, %v871, %v875
      %v880 = vand.u32 2147483647, %v789
      %vm881 = vcmp.eq.f32.partialorder %v880, 8.507059e+37
      %v882 = vand.u32 %v789, 2147483648
      %v883 = vor.u32 1.1754944e-38, %v882
      %v884 = vsel %vm881, %v883, %v879
      %v885 = vmul.f32 %v767, %v884
      %v886 = vrcp.pop %v792
      %v887 = vmul.f32 %v792, %v886
      %v888 = vsub.f32 1.0, %v887
      %v889 = vmul.f32 %v886, %v888
      %v890 = vadd.f32 %v886, %v889
      %vm891 = vweird.f32 %v792
      %vm892 = vweird.f32 %v886
      %vm893 = vmor %vm891, %vm892
      %v894 = vsel %vm893, %v886, %v890
      %v895 = vand.u32 2147483647, %v792
      %vm896 = vcmp.eq.f32.partialorder %v895, 8.507059e+37
      %v897 = vand.u32 %v792, 2147483648
      %v898 = vor.u32 1.1754944e-38, %v897
      %v899 = vsel %vm896, %v898, %v894
      %v900 = vmul.f32 %v769, %v899
      %v901 = vrcp.pop %v795
      %v902 = vmul.f32 %v795, %v901
      %v903 = vsub.f32 1.0, %v902
      %v904 = vmul.f32 %v901, %v903
      %v905 = vadd.f32 %v901, %v904
      %vm906 = vweird.f32 %v795
      %vm907 = vweird.f32 %v901
      %vm908 = vmor %vm906, %vm907
      %v909 = vsel %vm908, %v901, %v905
      %v910 = vand.u32 2147483647, %v795
      %vm911 = vcmp.eq.f32.partialorder %v910, 8.507059e+37
      %v912 = vand.u32 %v795, 2147483648
      %v913 = vor.u32 1.1754944e-38, %v912
      %v914 = vsel %vm911, %v913, %v909
      %v915 = vmul.f32 %v771, %v914
      %916 = vrot.lane.b32.xlu0 %v492, 64
      %v917 = vpop.permute.xlu0 %916
      %v920 = vsel %vm504, %v810, 0
      %922 = vmatpush.msra.mxu0 0.0
      %923 = vmatpush.msra.mxu0 0.0
      %924 = vmatpush.msra.mxu0 0.0
      %925 = vmatpush.msra.mxu0 0.0
      %926 = vmatpush.msra.mxu0 0.0
      %927 = vmatpush.msra.mxu0 0.0
      %928 = vmatpush.msra.mxu0 0.0
      %929 = vmatpush.msra.mxu0 0.0
      %930 = vmatpush.msra.mxu0 0.0
      %931 = vmatpush.msra.mxu0 0.0
      %932 = vmatpush.msra.mxu0 0.0
      %933 = vmatpush.msra.mxu0 0.0
      %934 = vmatpush.msra.mxu0 0.0
      %935 = vmatpush.msra.mxu0 0.0
      %936 = vmatpush.msra.mxu0 0.0
      %937 = vmatpush.msra.mxu0 %v917
      %938 = vmatmul.f32.gmra.mxu0 %v920
      %v939 = vpop.f32.mrf.mxu0
      %v940 = vadd.f32 0.0, %v939
      %941 = vdwg.mxu0
      %942 = vrot.lane.b32.xlu0 %v492, 56
      %v943 = vpop.permute.xlu0 %942
      %v946 = vsel %vm504, %v825, 0
      %948 = vmatpush.msra.mxu0 0.0
      %949 = vmatpush.msra.mxu0 0.0
      %950 = vmatpush.msra.mxu0 0.0
      %951 = vmatpush.msra.mxu0 0.0
      %952 = vmatpush.msra.mxu0 0.0
      %953 = vmatpush.msra.mxu0 0.0
      %954 = vmatpush.msra.mxu0 0.0
      %955 = vmatpush.msra.mxu0 0.0
      %956 = vmatpush.msra.mxu0 0.0
      %957 = vmatpush.msra.mxu0 0.0
      %958 = vmatpush.msra.mxu0 0.0
      %959 = vmatpush.msra.mxu0 0.0
      %960 = vmatpush.msra.mxu0 0.0
      %961 = vmatpush.msra.mxu0 0.0
      %962 = vmatpush.msra.mxu0 0.0
      %963 = vmatpush.msra.mxu0 %v943
      %964 = vmatmul.f32.gmra.mxu0 %v946
      %v965 = vpop.f32.mrf.mxu0
      %v966 = vadd.f32 0.0, %v965
      %967 = vdwg.mxu0
      %968 = vrot.lane.b32.xlu0 %v492, 48
      %v969 = vpop.permute.xlu0 %968
      %v972 = vsel %vm504, %v840, 0
      %974 = vmatpush.msra.mxu0 0.0
      %975 = vmatpush.msra.mxu0 0.0
      %976 = vmatpush.msra.mxu0 0.0
      %977 = vmatpush.msra.mxu0 0.0
      %978 = vmatpush.msra.mxu0 0.0
      %979 = vmatpush.msra.mxu0 0.0
      %980 = vmatpush.msra.mxu0 0.0
      %981 = vmatpush.msra.mxu0 0.0
      %982 = vmatpush.msra.mxu0 0.0
      %983 = vmatpush.msra.mxu0 0.0
      %984 = vmatpush.msra.mxu0 0.0
      %985 = vmatpush.msra.mxu0 0.0
      %986 = vmatpush.msra.mxu0 0.0
      %987 = vmatpush.msra.mxu0 0.0
      %988 = vmatpush.msra.mxu0 0.0
      %989 = vmatpush.msra.mxu0 %v969
      %990 = vmatmul.f32.gmra.mxu0 %v972
      %v991 = vpop.f32.mrf.mxu0
      %v992 = vadd.f32 0.0, %v991
      %993 = vdwg.mxu0
      %994 = vrot.lane.b32.xlu0 %v492, 40
      %v995 = vpop.permute.xlu0 %994
      %v998 = vsel %vm504, %v855, 0
      %1000 = vmatpush.msra.mxu0 0.0
      %1001 = vmatpush.msra.mxu0 0.0
      %1002 = vmatpush.msra.mxu0 0.0
      %1003 = vmatpush.msra.mxu0 0.0
      %1004 = vmatpush.msra.mxu0 0.0
      %1005 = vmatpush.msra.mxu0 0.0
      %1006 = vmatpush.msra.mxu0 0.0
      %1007 = vmatpush.msra.mxu0 0.0
      %1008 = vmatpush.msra.mxu0 0.0
      %1009 = vmatpush.msra.mxu0 0.0
      %1010 = vmatpush.msra.mxu0 0.0
      %1011 = vmatpush.msra.mxu0 0.0
      %1012 = vmatpush.msra.mxu0 0.0
      %1013 = vmatpush.msra.mxu0 0.0
      %1014 = vmatpush.msra.mxu0 0.0
      %1015 = vmatpush.msra.mxu0 %v995
      %1016 = vmatmul.f32.gmra.mxu0 %v998
      %v1017 = vpop.f32.mrf.mxu0
      %v1018 = vadd.f32 0.0, %v1017
      %1019 = vdwg.mxu0
      %1021 = vrot.lane.b32.xlu0 %v966, 8
      %v1022 = vpop.permute.xlu0 %1021
      %1025 = vrot.lane.b32.xlu0 %v992, 16
      %v1026 = vpop.permute.xlu0 %1025
      %1029 = vrot.lane.b32.xlu0 %v1018, 24
      %v1030 = vpop.permute.xlu0 %1029
      %v1032 = vsel %vm504, %v940, %v1022
      %vm1033 = vcmask 130048
      %v1034 = vsel %vm1033, %v1032, %v1026
      %vm1035 = vcmask 195584
      %v1036 = vsel %vm1035, %v1034, %v1030
      %1037 = vrot.lane.b32.xlu0 %v495, 64
      %v1038 = vpop.permute.xlu0 %1037
      %v1041 = vsel %vm504, %v870, 0
      %1043 = vmatpush.msra.mxu0 0.0
      %1044 = vmatpush.msra.mxu0 0.0
      %1045 = vmatpush.msra.mxu0 0.0
      %1046 = vmatpush.msra.mxu0 0.0
      %1047 = vmatpush.msra.mxu0 0.0
      %1048 = vmatpush.msra.mxu0 0.0
      %1049 = vmatpush.msra.mxu0 0.0
      %1050 = vmatpush.msra.mxu0 0.0
      %1051 = vmatpush.msra.mxu0 0.0
      %1052 = vmatpush.msra.mxu0 0.0
      %1053 = vmatpush.msra.mxu0 0.0
      %1054 = vmatpush.msra.mxu0 0.0
      %1055 = vmatpush.msra.mxu0 0.0
      %1056 = vmatpush.msra.mxu0 0.0
      %1057 = vmatpush.msra.mxu0 0.0
      %1058 = vmatpush.msra.mxu0 %v1038
      %1059 = vmatmul.f32.gmra.mxu0 %v1041
      %v1060 = vpop.f32.mrf.mxu0
      %v1061 = vadd.f32 0.0, %v1060
      %1062 = vdwg.mxu0
      %1063 = vrot.lane.b32.xlu0 %v495, 56
      %v1064 = vpop.permute.xlu0 %1063
      %v1067 = vsel %vm504, %v885, 0
      %1069 = vmatpush.msra.mxu0 0.0
      %1070 = vmatpush.msra.mxu0 0.0
      %1071 = vmatpush.msra.mxu0 0.0
      %1072 = vmatpush.msra.mxu0 0.0
      %1073 = vmatpush.msra.mxu0 0.0
      %1074 = vmatpush.msra.mxu0 0.0
      %1075 = vmatpush.msra.mxu0 0.0
      %1076 = vmatpush.msra.mxu0 0.0
      %1077 = vmatpush.msra.mxu0 0.0
      %1078 = vmatpush.msra.mxu0 0.0
      %1079 = vmatpush.msra.mxu0 0.0
      %1080 = vmatpush.msra.mxu0 0.0
      %1081 = vmatpush.msra.mxu0 0.0
      %1082 = vmatpush.msra.mxu0 0.0
      %1083 = vmatpush.msra.mxu0 0.0
      %1084 = vmatpush.msra.mxu0 %v1064
      %1085 = vmatmul.f32.gmra.mxu0 %v1067
      %v1086 = vpop.f32.mrf.mxu0
      %v1087 = vadd.f32 0.0, %v1086
      %1088 = vdwg.mxu0
      %1089 = vrot.lane.b32.xlu0 %v495, 48
      %v1090 = vpop.permute.xlu0 %1089
      %v1093 = vsel %vm504, %v900, 0
      %1095 = vmatpush.msra.mxu0 0.0
      %1096 = vmatpush.msra.mxu0 0.0
      %1097 = vmatpush.msra.mxu0 0.0
      %1098 = vmatpush.msra.mxu0 0.0
      %1099 = vmatpush.msra.mxu0 0.0
      %1100 = vmatpush.msra.mxu0 0.0
      %1101 = vmatpush.msra.mxu0 0.0
      %1102 = vmatpush.msra.mxu0 0.0
      %1103 = vmatpush.msra.mxu0 0.0
      %1104 = vmatpush.msra.mxu0 0.0
      %1105 = vmatpush.msra.mxu0 0.0
      %1106 = vmatpush.msra.mxu0 0.0
      %1107 = vmatpush.msra.mxu0 0.0
      %1108 = vmatpush.msra.mxu0 0.0
      %1109 = vmatpush.msra.mxu0 0.0
      %1110 = vmatpush.msra.mxu0 %v1090
      %1111 = vmatmul.f32.gmra.mxu0 %v1093
      %v1112 = vpop.f32.mrf.mxu0
      %v1113 = vadd.f32 0.0, %v1112
      %1114 = vdwg.mxu0
      %1115 = vrot.lane.b32.xlu0 %v495, 40
      %v1116 = vpop.permute.xlu0 %1115
      %v1119 = vsel %vm504, %v915, 0
      %1121 = vmatpush.msra.mxu0 0.0
      %1122 = vmatpush.msra.mxu0 0.0
      %1123 = vmatpush.msra.mxu0 0.0
      %1124 = vmatpush.msra.mxu0 0.0
      %1125 = vmatpush.msra.mxu0 0.0
      %1126 = vmatpush.msra.mxu0 0.0
      %1127 = vmatpush.msra.mxu0 0.0
      %1128 = vmatpush.msra.mxu0 0.0
      %1129 = vmatpush.msra.mxu0 0.0
      %1130 = vmatpush.msra.mxu0 0.0
      %1131 = vmatpush.msra.mxu0 0.0
      %1132 = vmatpush.msra.mxu0 0.0
      %1133 = vmatpush.msra.mxu0 0.0
      %1134 = vmatpush.msra.mxu0 0.0
      %1135 = vmatpush.msra.mxu0 0.0
      %1136 = vmatpush.msra.mxu0 %v1116
      %1137 = vmatmul.f32.gmra.mxu0 %v1119
      %v1138 = vpop.f32.mrf.mxu0
      %v1139 = vadd.f32 0.0, %v1138
      %1140 = vdwg.mxu0
      %1142 = vrot.lane.b32.xlu0 %v1087, 8
      %v1143 = vpop.permute.xlu0 %1142
      %1146 = vrot.lane.b32.xlu0 %v1113, 16
      %v1147 = vpop.permute.xlu0 %1146
      %1150 = vrot.lane.b32.xlu0 %v1139, 24
      %v1151 = vpop.permute.xlu0 %1150
      %v1153 = vsel %vm504, %v1061, %v1143
      %v1154 = vsel %vm1033, %v1153, %v1147
      %v1155 = vsel %vm1035, %v1154, %v1151
      %v1156 = vperm.slane %v446, 1
      %v1158 = vsel %vm467, %v1036, 0
      %v1161 = vsel %vm467, %v1155, 0
      %1163 = vmatpush.msra.mxu0 0.0
      %1164 = vmatpush.msra.mxu0 0.0
      %1165 = vmatpush.msra.mxu0 0.0
      %1166 = vmatpush.msra.mxu0 0.0
      %1167 = vmatpush.msra.mxu0 0.0
      %1168 = vmatpush.msra.mxu0 0.0
      %1169 = vmatpush.msra.mxu0 0.0
      %1170 = vmatpush.msra.mxu0 0.0
      %1171 = vmatpush.msra.mxu0 0.0
      %1172 = vmatpush.msra.mxu0 0.0
      %1173 = vmatpush.msra.mxu0 0.0
      %1174 = vmatpush.msra.mxu0 0.0
      %1175 = vmatpush.msra.mxu0 %v500
      %1176 = vmatpush.msra.mxu0 %v499
      %1177 = vmatpush.msra.mxu0 %v498
      %1178 = vmatpush.msra.mxu0 %v497
      %1179 = vmatmul.f32.gmra.mxu0 %v1158
      %v1180 = vpop.f32.mrf.mxu0
      %v1181 = vadd.f32 %v1156, %v1180
      %1182 = vmatmul.f32.gmra.mxu0 %v1161
      %v1183 = vpop.f32.mrf.mxu0
      %v1184 = vadd.f32 %v1156, %v1183
      %1185 = vdwg.mxu0
      %v1186 = vadd.f32 %v444, %v1181
      %v1187 = vadd.f32 %v445, %v1184
      %v1188 = vsel %vm467, %v1186, 0.0
      %1189 = vadd.xlane.f32.xlu0 %v1188
      %v1190 = vpop.xlane.xlu0 %1189
      %v1191 = vsel %vm467, %v1187, 0.0
      %1192 = vadd.xlane.f32.xlu0 %v1191
      %v1193 = vpop.xlane.xlu0 %1192
      %v1194 = vrcp.pop 32.0
      %v1195 = vmul.f32 32.0, %v1194
      %v1196 = vsub.f32 1.0, %v1195
      %v1197 = vmul.f32 %v1194, %v1196
      %v1198 = vadd.f32 %v1194, %v1197
      %vm1199 = vweird.f32 %v1194
      %v1200 = vsel %vm1199, %v1194, %v1198
      %v1201 = vmul.f32 %v1190, %v1200
      %v1202 = vmul.f32 %v1193, %v1200
      %v1203 = vsub.f32 %v1186, %v1201
      %v1204 = vsub.f32 %v1187, %v1202
      %v1205 = vmul.f32 %v1203, %v1203
      %v1206 = vmul.f32 %v1204, %v1204
      %v1207 = vsel %vm467, %v1205, 0.0
      %1208 = vadd.xlane.f32.xlu0 %v1207
      %v1209 = vpop.xlane.xlu0 %1208
      %v1210 = vsel %vm467, %v1206, 0.0
      %1211 = vadd.xlane.f32.xlu0 %v1210
      %v1212 = vpop.xlane.xlu0 %1211
      %v1213 = vmul.f32 %v1209, %v1200
      %v1214 = vmul.f32 %v1212, %v1200
      %v1215 = vadd.f32 %v1213, 1e-05
      %v1216 = vadd.f32 %v1214, 1e-05
      %v1217 = vrsqrt.pop %v1215
      %v1218 = vmul.f32 %v1217, %v1215
      %v1219 = vmul.f32 %v1218, %v1217
      %v1220 = vmul.f32 0.5, %v1219
      %v1221 = vsub.f32 1.5, %v1220
      %v1222 = vmul.f32 %v1217, %v1221
      %vm1223 = vweird.f32 %v1215
      %vm1224 = vweird.f32 %v1217
      %vm1225 = vmor %vm1223, %vm1224
      %v1226 = vsel %vm1225, %v1217, %v1222
      %v1227 = vrsqrt.pop %v1216
      %v1228 = vmul.f32 %v1227, %v1216
      %v1229 = vmul.f32 %v1228, %v1227
      %v1230 = vmul.f32 0.5, %v1229
      %v1231 = vsub.f32 1.5, %v1230
      %v1232 = vmul.f32 %v1227, %v1231
      %vm1233 = vweird.f32 %v1216
      %vm1234 = vweird.f32 %v1227
      %vm1235 = vmor %vm1233, %vm1234
      %v1236 = vsel %vm1235, %v1227, %v1232
      %v1237 = vmul.f32 %v1203, %v1226
      %v1238 = vmul.f32 %v1204, %v1236
      %v1239 = vperm.slane %v446, 2
      %v1240 = vmul.f32 %v1237, %v1239
      %v1241 = vmul.f32 %v1238, %v1239
      %v1242 = vperm.slane %v446, 3
      %v1243 = vadd.f32 %v1240, %v1242
      %v1244 = vadd.f32 %v1241, %v1242
      %v1245 = vld [vmem:[%s385] sm:$0xff]
      %v1246 = vld [vmem:[%s385 + $0x8] sm:$0xff]
      %v1247 = vld [vmem:[%s385 + $0x10] sm:$0xff]
      %v1248 = vld [vmem:[%s385 + $0x18] sm:$0xff]
      %v1249 = vld [vmem:[%s385 + $0x20] sm:$0xff]
      %v1250 = vld [vmem:[%s385 + $0x28] sm:$0xff]
      %v1251 = vld [vmem:[%s385 + $0x30] sm:$0xff]
      %v1252 = vld [vmem:[%s385 + $0x38] sm:$0xff]
      %v1253 = vld [vmem:[%s385 + $0x40] sm:$0xff]
      %v1254 = vld [vmem:[%s385 + $0x48] sm:$0xff]
      %v1255 = vld [vmem:[%s385 + $0x50] sm:$0xff]
      %v1256 = vld [vmem:[%s385 + $0x58] sm:$0xff]
      %v1257 = vld [vmem:[%s385 + $0x60] sm:$0xff]
      %v1258 = vld [vmem:[%s385 + $0x68] sm:$0xff]
      %v1259 = vld [vmem:[%s385 + $0x70] sm:$0xff]
      %v1260 = vld [vmem:[%s385 + $0x78] sm:$0xff]
      %v1261 = vld [vmem:[%s385 + $0x80] sm:$0xff]
      %v1262 = vld [vmem:[%s385 + $0x88] sm:$0xff]
      %v1263 = vld [vmem:[%s385 + $0x90] sm:$0xff]
      %v1264 = vld [vmem:[%s385 + $0x98] sm:$0xff]
      %v1265 = vld [vmem:[%s385 + $0xa0] sm:$0xff]
      %v1266 = vld [vmem:[%s385 + $0xa8] sm:$0xff]
      %v1267 = vld [vmem:[%s385 + $0xb0] sm:$0xff]
      %v1268 = vld [vmem:[%s385 + $0xb8] sm:$0xff]
      %v1269 = vld [vmem:[%s385 + $0xc0] sm:$0xff]
      %v1270 = vld [vmem:[%s385 + $0xc8] sm:$0xff]
      %v1271 = vld [vmem:[%s385 + $0xd0] sm:$0xff]
      %v1272 = vld [vmem:[%s385 + $0xd8] sm:$0xff]
      %v1273 = vld [vmem:[%s385 + $0xe0] sm:$0xff]
      %v1274 = vld [vmem:[%s385 + $0xe8] sm:$0xff]
      %v1275 = vld [vmem:[%s385 + $0xf0] sm:$0xff]
      %v1276 = vld [vmem:[%s385 + $0xf8] sm:$0xff]
      %v1277 = vld [vmem:[%s385 + $0x100] sm:$0xff]
      %v1278 = vld [vmem:[%s385 + $0x108] sm:$0xff]
      %v1279 = vld [vmem:[%s385 + $0x110] sm:$0xff]
      %v1280 = vld [vmem:[%s385 + $0x118] sm:$0xff]
      %v1281 = vld [vmem:[%s385 + $0x120] sm:$0xff]
      %v1282 = vld [vmem:[%s385 + $0x128] sm:$0xff]
      %v1283 = vld [vmem:[%s385 + $0x130] sm:$0xff]
      %v1284 = vld [vmem:[%s385 + $0x138] sm:$0xff]
      %v1285 = vld [vmem:[%s385 + $0x140] sm:$0xff]
      %v1286 = vld [vmem:[%s385 + $0x148] sm:$0xff]
      %v1287 = vld [vmem:[%s385 + $0x150] sm:$0xff]
      %v1288 = vld [vmem:[%s385 + $0x158] sm:$0xff]
      %v1289 = vld [vmem:[%s385 + $0x160] sm:$0xff]
      %v1290 = vld [vmem:[%s385 + $0x168] sm:$0xff]
      %v1291 = vld [vmem:[%s385 + $0x170] sm:$0xff]
      %v1292 = vld [vmem:[%s385 + $0x178] sm:$0xff]
      %v1293 = vld [vmem:[%s385 + $0x180] sm:$0xff]
      %v1294 = vld [vmem:[%s385 + $0x188] sm:$0xff]
      %v1295 = vld [vmem:[%s385 + $0x190] sm:$0xff]
      %v1296 = vld [vmem:[%s385 + $0x198] sm:$0xff]
      %v1297 = vld [vmem:[%s385 + $0x1a0] sm:$0xff]
      %v1298 = vld [vmem:[%s385 + $0x1a8] sm:$0xff]
      %v1299 = vld [vmem:[%s385 + $0x1b0] sm:$0xff]
      %v1300 = vld [vmem:[%s385 + $0x1b8] sm:$0xff]
      %v1301 = vld [vmem:[%s385 + $0x1c0] sm:$0xff]
      %v1302 = vld [vmem:[%s385 + $0x1c8] sm:$0xff]
      %v1303 = vld [vmem:[%s385 + $0x1d0] sm:$0xff]
      %v1304 = vld [vmem:[%s385 + $0x1d8] sm:$0xff]
      %v1305 = vld [vmem:[%s385 + $0x1e0] sm:$0xff]
      %v1306 = vld [vmem:[%s385 + $0x1e8] sm:$0xff]
      %v1307 = vld [vmem:[%s385 + $0x1f0] sm:$0xff]
      %v1308 = vld [vmem:[%s385 + $0x1f8] sm:$0xff]
      %v1309 = vperm.slane %v446, 4
      %v1310 = vperm.slane %v447, 4
      %v1311 = vperm.slane %v448, 4
      %v1312 = vperm.slane %v449, 4
      %v1313 = vperm.slane %v450, 4
      %v1314 = vperm.slane %v451, 4
      %v1315 = vperm.slane %v452, 4
      %v1316 = vperm.slane %v453, 4
      %v1317 = vperm.slane %v454, 4
      %v1318 = vperm.slane %v455, 4
      %v1319 = vperm.slane %v456, 4
      %v1320 = vperm.slane %v457, 4
      %v1321 = vperm.slane %v458, 4
      %v1322 = vperm.slane %v459, 4
      %v1323 = vperm.slane %v460, 4
      %v1324 = vperm.slane %v461, 4
      %v1326 = vsel %vm467, %v1243, 0
      %v1329 = vsel %vm467, %v1244, 0
      %1331 = vmatpush.msra.mxu0 0.0
      %1332 = vmatpush.msra.mxu0 0.0
      %1333 = vmatpush.msra.mxu0 0.0
      %1334 = vmatpush.msra.mxu0 0.0
      %1335 = vmatpush.msra.mxu0 0.0
      %1336 = vmatpush.msra.mxu0 0.0
      %1337 = vmatpush.msra.mxu0 0.0
      %1338 = vmatpush.msra.mxu0 0.0
      %1339 = vmatpush.msra.mxu0 0.0
      %1340 = vmatpush.msra.mxu0 0.0
      %1341 = vmatpush.msra.mxu0 0.0
      %1342 = vmatpush.msra.mxu0 0.0
      %1343 = vmatpush.msra.mxu0 %v1293
      %1344 = vmatpush.msra.mxu0 %v1277
      %1345 = vmatpush.msra.mxu0 %v1261
      %1346 = vmatpush.msra.mxu0 %v1245
      %1347 = vmatmul.f32.gmra.mxu0 %v1326
      %v1348 = vpop.f32.mrf.mxu0
      %v1349 = vadd.f32 %v1309, %v1348
      %1350 = vmatmul.f32.gmra.mxu0 %v1329
      %v1351 = vpop.f32.mrf.mxu0
      %v1352 = vadd.f32 %v1309, %v1351
      %1353 = vdwg.mxu0
      %1354 = vmatpush.msra.mxu0 0.0
      %1355 = vmatpush.msra.mxu0 0.0
      %1356 = vmatpush.msra.mxu0 0.0
      %1357 = vmatpush.msra.mxu0 0.0
      %1358 = vmatpush.msra.mxu0 0.0
      %1359 = vmatpush.msra.mxu0 0.0
      %1360 = vmatpush.msra.mxu0 0.0
      %1361 = vmatpush.msra.mxu0 0.0
      %1362 = vmatpush.msra.mxu0 0.0
      %1363 = vmatpush.msra.mxu0 0.0
      %1364 = vmatpush.msra.mxu0 0.0
      %1365 = vmatpush.msra.mxu0 0.0
      %1366 = vmatpush.msra.mxu0 %v1294
      %1367 = vmatpush.msra.mxu0 %v1278
      %1368 = vmatpush.msra.mxu0 %v1262
      %1369 = vmatpush.msra.mxu0 %v1246
      %1370 = vmatmul.f32.gmra.mxu0 %v1326
      %v1371 = vpop.f32.mrf.mxu0
      %v1372 = vadd.f32 %v1310, %v1371
      %1373 = vmatmul.f32.gmra.mxu0 %v1329
      %v1374 = vpop.f32.mrf.mxu0
      %v1375 = vadd.f32 %v1310, %v1374
      %1376 = vdwg.mxu0
      %1377 = vmatpush.msra.mxu0 0.0
      %1378 = vmatpush.msra.mxu0 0.0
      %1379 = vmatpush.msra.mxu0 0.0
      %1380 = vmatpush.msra.mxu0 0.0
      %1381 = vmatpush.msra.mxu0 0.0
      %1382 = vmatpush.msra.mxu0 0.0
      %1383 = vmatpush.msra.mxu0 0.0
      %1384 = vmatpush.msra.mxu0 0.0
      %1385 = vmatpush.msra.mxu0 0.0
      %1386 = vmatpush.msra.mxu0 0.0
      %1387 = vmatpush.msra.mxu0 0.0
      %1388 = vmatpush.msra.mxu0 0.0
      %1389 = vmatpush.msra.mxu0 %v1295
      %1390 = vmatpush.msra.mxu0 %v1279
      %1391 = vmatpush.msra.mxu0 %v1263
      %1392 = vmatpush.msra.mxu0 %v1247
      %1393 = vmatmul.f32.gmra.mxu0 %v1326
      %v1394 = vpop.f32.mrf.mxu0
      %v1395 = vadd.f32 %v1311, %v1394
      %1396 = vmatmul.f32.gmra.mxu0 %v1329
      %v1397 = vpop.f32.mrf.mxu0
      %v1398 = vadd.f32 %v1311, %v1397
      %1399 = vdwg.mxu0
      %1400 = vmatpush.msra.mxu0 0.0
      %1401 = vmatpush.msra.mxu0 0.0
      %1402 = vmatpush.msra.mxu0 0.0
      %1403 = vmatpush.msra.mxu0 0.0
      %1404 = vmatpush.msra.mxu0 0.0
      %1405 = vmatpush.msra.mxu0 0.0
      %1406 = vmatpush.msra.mxu0 0.0
      %1407 = vmatpush.msra.mxu0 0.0
      %1408 = vmatpush.msra.mxu0 0.0
      %1409 = vmatpush.msra.mxu0 0.0
      %1410 = vmatpush.msra.mxu0 0.0
      %1411 = vmatpush.msra.mxu0 0.0
      %1412 = vmatpush.msra.mxu0 %v1296
      %1413 = vmatpush.msra.mxu0 %v1280
      %1414 = vmatpush.msra.mxu0 %v1264
      %1415 = vmatpush.msra.mxu0 %v1248
      %1416 = vmatmul.f32.gmra.mxu0 %v1326
      %v1417 = vpop.f32.mrf.mxu0
      %v1418 = vadd.f32 %v1312, %v1417
      %1419 = vmatmul.f32.gmra.mxu0 %v1329
      %v1420 = vpop.f32.mrf.mxu0
      %v1421 = vadd.f32 %v1312, %v1420
      %1422 = vdwg.mxu0
      %1423 = vmatpush.msra.mxu0 0.0
      %1424 = vmatpush.msra.mxu0 0.0
      %1425 = vmatpush.msra.mxu0 0.0
      %1426 = vmatpush.msra.mxu0 0.0
      %1427 = vmatpush.msra.mxu0 0.0
      %1428 = vmatpush.msra.mxu0 0.0
      %1429 = vmatpush.msra.mxu0 0.0
      %1430 = vmatpush.msra.mxu0 0.0
      %1431 = vmatpush.msra.mxu0 0.0
      %1432 = vmatpush.msra.mxu0 0.0
      %1433 = vmatpush.msra.mxu0 0.0
      %1434 = vmatpush.msra.mxu0 0.0
      %1435 = vmatpush.msra.mxu0 %v1297
      %1436 = vmatpush.msra.mxu0 %v1281
      %1437 = vmatpush.msra.mxu0 %v1265
      %1438 = vmatpush.msra.mxu0 %v1249
      %1439 = vmatmul.f32.gmra.mxu0 %v1326
      %v1440 = vpop.f32.mrf.mxu0
      %v1441 = vadd.f32 %v1313, %v1440
      %1442 = vmatmul.f32.gmra.mxu0 %v1329
      %v1443 = vpop.f32.mrf.mxu0
      %v1444 = vadd.f32 %v1313, %v1443
      %1445 = vdwg.mxu0
      %1446 = vmatpush.msra.mxu0 0.0
      %1447 = vmatpush.msra.mxu0 0.0
      %1448 = vmatpush.msra.mxu0 0.0
      %1449 = vmatpush.msra.mxu0 0.0
      %1450 = vmatpush.msra.mxu0 0.0
      %1451 = vmatpush.msra.mxu0 0.0
      %1452 = vmatpush.msra.mxu0 0.0
      %1453 = vmatpush.msra.mxu0 0.0
      %1454 = vmatpush.msra.mxu0 0.0
      %1455 = vmatpush.msra.mxu0 0.0
      %1456 = vmatpush.msra.mxu0 0.0
      %1457 = vmatpush.msra.mxu0 0.0
      %1458 = vmatpush.msra.mxu0 %v1298
      %1459 = vmatpush.msra.mxu0 %v1282
      %1460 = vmatpush.msra.mxu0 %v1266
      %1461 = vmatpush.msra.mxu0 %v1250
      %1462 = vmatmul.f32.gmra.mxu0 %v1326
      %v1463 = vpop.f32.mrf.mxu0
      %v1464 = vadd.f32 %v1314, %v1463
      %1465 = vmatmul.f32.gmra.mxu0 %v1329
      %v1466 = vpop.f32.mrf.mxu0
      %v1467 = vadd.f32 %v1314, %v1466
      %1468 = vdwg.mxu0
      %1469 = vmatpush.msra.mxu0 0.0
      %1470 = vmatpush.msra.mxu0 0.0
      %1471 = vmatpush.msra.mxu0 0.0
      %1472 = vmatpush.msra.mxu0 0.0
      %1473 = vmatpush.msra.mxu0 0.0
      %1474 = vmatpush.msra.mxu0 0.0
      %1475 = vmatpush.msra.mxu0 0.0
      %1476 = vmatpush.msra.mxu0 0.0
      %1477 = vmatpush.msra.mxu0 0.0
      %1478 = vmatpush.msra.mxu0 0.0
      %1479 = vmatpush.msra.mxu0 0.0
      %1480 = vmatpush.msra.mxu0 0.0
      %1481 = vmatpush.msra.mxu0 %v1299
      %1482 = vmatpush.msra.mxu0 %v1283
      %1483 = vmatpush.msra.mxu0 %v1267
      %1484 = vmatpush.msra.mxu0 %v1251
      %1485 = vmatmul.f32.gmra.mxu0 %v1326
      %v1486 = vpop.f32.mrf.mxu0
      %v1487 = vadd.f32 %v1315, %v1486
      %1488 = vmatmul.f32.gmra.mxu0 %v1329
      %v1489 = vpop.f32.mrf.mxu0
      %v1490 = vadd.f32 %v1315, %v1489
      %1491 = vdwg.mxu0
      %1492 = vmatpush.msra.mxu0 0.0
      %1493 = vmatpush.msra.mxu0 0.0
      %1494 = vmatpush.msra.mxu0 0.0
      %1495 = vmatpush.msra.mxu0 0.0
      %1496 = vmatpush.msra.mxu0 0.0
      %1497 = vmatpush.msra.mxu0 0.0
      %1498 = vmatpush.msra.mxu0 0.0
      %1499 = vmatpush.msra.mxu0 0.0
      %1500 = vmatpush.msra.mxu0 0.0
      %1501 = vmatpush.msra.mxu0 0.0
      %1502 = vmatpush.msra.mxu0 0.0
      %1503 = vmatpush.msra.mxu0 0.0
      %1504 = vmatpush.msra.mxu0 %v1300
      %1505 = vmatpush.msra.mxu0 %v1284
      %1506 = vmatpush.msra.mxu0 %v1268
      %1507 = vmatpush.msra.mxu0 %v1252
      %1508 = vmatmul.f32.gmra.mxu0 %v1326
      %v1509 = vpop.f32.mrf.mxu0
      %v1510 = vadd.f32 %v1316, %v1509
      %1511 = vmatmul.f32.gmra.mxu0 %v1329
      %v1512 = vpop.f32.mrf.mxu0
      %v1513 = vadd.f32 %v1316, %v1512
      %1514 = vdwg.mxu0
      %1515 = vmatpush.msra.mxu0 0.0
      %1516 = vmatpush.msra.mxu0 0.0
      %1517 = vmatpush.msra.mxu0 0.0
      %1518 = vmatpush.msra.mxu0 0.0
      %1519 = vmatpush.msra.mxu0 0.0
      %1520 = vmatpush.msra.mxu0 0.0
      %1521 = vmatpush.msra.mxu0 0.0
      %1522 = vmatpush.msra.mxu0 0.0
      %1523 = vmatpush.msra.mxu0 0.0
      %1524 = vmatpush.msra.mxu0 0.0
      %1525 = vmatpush.msra.mxu0 0.0
      %1526 = vmatpush.msra.mxu0 0.0
      %1527 = vmatpush.msra.mxu0 %v1301
      %1528 = vmatpush.msra.mxu0 %v1285
      %1529 = vmatpush.msra.mxu0 %v1269
      %1530 = vmatpush.msra.mxu0 %v1253
      %1531 = vmatmul.f32.gmra.mxu0 %v1326
      %v1532 = vpop.f32.mrf.mxu0
      %v1533 = vadd.f32 %v1317, %v1532
      %1534 = vmatmul.f32.gmra.mxu0 %v1329
      %v1535 = vpop.f32.mrf.mxu0
      %v1536 = vadd.f32 %v1317, %v1535
      %1537 = vdwg.mxu0
      %1538 = vmatpush.msra.mxu0 0.0
      %1539 = vmatpush.msra.mxu0 0.0
      %1540 = vmatpush.msra.mxu0 0.0
      %1541 = vmatpush.msra.mxu0 0.0
      %1542 = vmatpush.msra.mxu0 0.0
      %1543 = vmatpush.msra.mxu0 0.0
      %1544 = vmatpush.msra.mxu0 0.0
      %1545 = vmatpush.msra.mxu0 0.0
      %1546 = vmatpush.msra.mxu0 0.0
      %1547 = vmatpush.msra.mxu0 0.0
      %1548 = vmatpush.msra.mxu0 0.0
      %1549 = vmatpush.msra.mxu0 0.0
      %1550 = vmatpush.msra.mxu0 %v1302
      %1551 = vmatpush.msra.mxu0 %v1286
      %1552 = vmatpush.msra.mxu0 %v1270
      %1553 = vmatpush.msra.mxu0 %v1254
      %1554 = vmatmul.f32.gmra.mxu0 %v1326
      %v1555 = vpop.f32.mrf.mxu0
      %v1556 = vadd.f32 %v1318, %v1555
      %1557 = vmatmul.f32.gmra.mxu0 %v1329
      %v1558 = vpop.f32.mrf.mxu0
      %v1559 = vadd.f32 %v1318, %v1558
      %1560 = vdwg.mxu0
      %1561 = vmatpush.msra.mxu0 0.0
      %1562 = vmatpush.msra.mxu0 0.0
      %1563 = vmatpush.msra.mxu0 0.0
      %1564 = vmatpush.msra.mxu0 0.0
      %1565 = vmatpush.msra.mxu0 0.0
      %1566 = vmatpush.msra.mxu0 0.0
      %1567 = vmatpush.msra.mxu0 0.0
      %1568 = vmatpush.msra.mxu0 0.0
      %1569 = vmatpush.msra.mxu0 0.0
      %1570 = vmatpush.msra.mxu0 0.0
      %1571 = vmatpush.msra.mxu0 0.0
      %1572 = vmatpush.msra.mxu0 0.0
      %1573 = vmatpush.msra.mxu0 %v1303
      %1574 = vmatpush.msra.mxu0 %v1287
      %1575 = vmatpush.msra.mxu0 %v1271
      %1576 = vmatpush.msra.mxu0 %v1255
      %1577 = vmatmul.f32.gmra.mxu0 %v1326
      %v1578 = vpop.f32.mrf.mxu0
      %v1579 = vadd.f32 %v1319, %v1578
      %1580 = vmatmul.f32.gmra.mxu0 %v1329
      %v1581 = vpop.f32.mrf.mxu0
      %v1582 = vadd.f32 %v1319, %v1581
      %1583 = vdwg.mxu0
      %1584 = vmatpush.msra.mxu0 0.0
      %1585 = vmatpush.msra.mxu0 0.0
      %1586 = vmatpush.msra.mxu0 0.0
      %1587 = vmatpush.msra.mxu0 0.0
      %1588 = vmatpush.msra.mxu0 0.0
      %1589 = vmatpush.msra.mxu0 0.0
      %1590 = vmatpush.msra.mxu0 0.0
      %1591 = vmatpush.msra.mxu0 0.0
      %1592 = vmatpush.msra.mxu0 0.0
      %1593 = vmatpush.msra.mxu0 0.0
      %1594 = vmatpush.msra.mxu0 0.0
      %1595 = vmatpush.msra.mxu0 0.0
      %1596 = vmatpush.msra.mxu0 %v1304
      %1597 = vmatpush.msra.mxu0 %v1288
      %1598 = vmatpush.msra.mxu0 %v1272
      %1599 = vmatpush.msra.mxu0 %v1256
      %1600 = vmatmul.f32.gmra.mxu0 %v1326
      %v1601 = vpop.f32.mrf.mxu0
      %v1602 = vadd.f32 %v1320, %v1601
      %1603 = vmatmul.f32.gmra.mxu0 %v1329
      %v1604 = vpop.f32.mrf.mxu0
      %v1605 = vadd.f32 %v1320, %v1604
      %1606 = vdwg.mxu0
      %1607 = vmatpush.msra.mxu0 0.0
      %1608 = vmatpush.msra.mxu0 0.0
      %1609 = vmatpush.msra.mxu0 0.0
      %1610 = vmatpush.msra.mxu0 0.0
      %1611 = vmatpush.msra.mxu0 0.0
      %1612 = vmatpush.msra.mxu0 0.0
      %1613 = vmatpush.msra.mxu0 0.0
      %1614 = vmatpush.msra.mxu0 0.0
      %1615 = vmatpush.msra.mxu0 0.0
      %1616 = vmatpush.msra.mxu0 0.0
      %1617 = vmatpush.msra.mxu0 0.0
      %1618 = vmatpush.msra.mxu0 0.0
      %1619 = vmatpush.msra.mxu0 %v1305
      %1620 = vmatpush.msra.mxu0 %v1289
      %1621 = vmatpush.msra.mxu0 %v1273
      %1622 = vmatpush.msra.mxu0 %v1257
      %1623 = vmatmul.f32.gmra.mxu0 %v1326
      %v1624 = vpop.f32.mrf.mxu0
      %v1625 = vadd.f32 %v1321, %v1624
      %1626 = vmatmul.f32.gmra.mxu0 %v1329
      %v1627 = vpop.f32.mrf.mxu0
      %v1628 = vadd.f32 %v1321, %v1627
      %1629 = vdwg.mxu0
      %1630 = vmatpush.msra.mxu0 0.0
      %1631 = vmatpush.msra.mxu0 0.0
      %1632 = vmatpush.msra.mxu0 0.0
      %1633 = vmatpush.msra.mxu0 0.0
      %1634 = vmatpush.msra.mxu0 0.0
      %1635 = vmatpush.msra.mxu0 0.0
      %1636 = vmatpush.msra.mxu0 0.0
      %1637 = vmatpush.msra.mxu0 0.0
      %1638 = vmatpush.msra.mxu0 0.0
      %1639 = vmatpush.msra.mxu0 0.0
      %1640 = vmatpush.msra.mxu0 0.0
      %1641 = vmatpush.msra.mxu0 0.0
      %1642 = vmatpush.msra.mxu0 %v1306
      %1643 = vmatpush.msra.mxu0 %v1290
      %1644 = vmatpush.msra.mxu0 %v1274
      %1645 = vmatpush.msra.mxu0 %v1258
      %1646 = vmatmul.f32.gmra.mxu0 %v1326
      %v1647 = vpop.f32.mrf.mxu0
      %v1648 = vadd.f32 %v1322, %v1647
      %1649 = vmatmul.f32.gmra.mxu0 %v1329
      %v1650 = vpop.f32.mrf.mxu0
      %v1651 = vadd.f32 %v1322, %v1650
      %1652 = vdwg.mxu0
      %1653 = vmatpush.msra.mxu0 0.0
      %1654 = vmatpush.msra.mxu0 0.0
      %1655 = vmatpush.msra.mxu0 0.0
      %1656 = vmatpush.msra.mxu0 0.0
      %1657 = vmatpush.msra.mxu0 0.0
      %1658 = vmatpush.msra.mxu0 0.0
      %1659 = vmatpush.msra.mxu0 0.0
      %1660 = vmatpush.msra.mxu0 0.0
      %1661 = vmatpush.msra.mxu0 0.0
      %1662 = vmatpush.msra.mxu0 0.0
      %1663 = vmatpush.msra.mxu0 0.0
      %1664 = vmatpush.msra.mxu0 0.0
      %1665 = vmatpush.msra.mxu0 %v1307
      %1666 = vmatpush.msra.mxu0 %v1291
      %1667 = vmatpush.msra.mxu0 %v1275
      %1668 = vmatpush.msra.mxu0 %v1259
      %1669 = vmatmul.f32.gmra.mxu0 %v1326
      %v1670 = vpop.f32.mrf.mxu0
      %v1671 = vadd.f32 %v1323, %v1670
      %1672 = vmatmul.f32.gmra.mxu0 %v1329
      %v1673 = vpop.f32.mrf.mxu0
      %v1674 = vadd.f32 %v1323, %v1673
      %1675 = vdwg.mxu0
      %1676 = vmatpush.msra.mxu0 0.0
      %1677 = vmatpush.msra.mxu0 0.0
      %1678 = vmatpush.msra.mxu0 0.0
      %1679 = vmatpush.msra.mxu0 0.0
      %1680 = vmatpush.msra.mxu0 0.0
      %1681 = vmatpush.msra.mxu0 0.0
      %1682 = vmatpush.msra.mxu0 0.0
      %1683 = vmatpush.msra.mxu0 0.0
      %1684 = vmatpush.msra.mxu0 0.0
      %1685 = vmatpush.msra.mxu0 0.0
      %1686 = vmatpush.msra.mxu0 0.0
      %1687 = vmatpush.msra.mxu0 0.0
      %1688 = vmatpush.msra.mxu0 %v1308
      %1689 = vmatpush.msra.mxu0 %v1292
      %1690 = vmatpush.msra.mxu0 %v1276
      %1691 = vmatpush.msra.mxu0 %v1260
      %1692 = vmatmul.f32.gmra.mxu0 %v1326
      %v1693 = vpop.f32.mrf.mxu0
      %v1694 = vadd.f32 %v1324, %v1693
      %1695 = vmatmul.f32.gmra.mxu0 %v1329
      %v1696 = vpop.f32.mrf.mxu0
      %v1697 = vadd.f32 %v1324, %v1696
      %1698 = vdwg.mxu0
      %v1699 = vmax.f32 %v1349, 0.0
      %v1700 = vmax.f32 %v1372, 0.0
      %v1701 = vmax.f32 %v1395, 0.0
      %v1702 = vmax.f32 %v1418, 0.0
      %v1703 = vmax.f32 %v1441, 0.0
      %v1704 = vmax.f32 %v1464, 0.0
      %v1705 = vmax.f32 %v1487, 0.0
      %v1706 = vmax.f32 %v1510, 0.0
      %v1707 = vmax.f32 %v1533, 0.0
      %v1708 = vmax.f32 %v1556, 0.0
      %v1709 = vmax.f32 %v1579, 0.0
      %v1710 = vmax.f32 %v1602, 0.0
      %v1711 = vmax.f32 %v1625, 0.0
      %v1712 = vmax.f32 %v1648, 0.0
      %v1713 = vmax.f32 %v1671, 0.0
      %v1714 = vmax.f32 %v1694, 0.0
      %v1715 = vmax.f32 %v1352, 0.0
      %v1716 = vmax.f32 %v1375, 0.0
      %v1717 = vmax.f32 %v1398, 0.0
      %v1718 = vmax.f32 %v1421, 0.0
      %v1719 = vmax.f32 %v1444, 0.0
      %v1720 = vmax.f32 %v1467, 0.0
      %v1721 = vmax.f32 %v1490, 0.0
      %v1722 = vmax.f32 %v1513, 0.0
      %v1723 = vmax.f32 %v1536, 0.0
      %v1724 = vmax.f32 %v1559, 0.0
      %v1725 = vmax.f32 %v1582, 0.0
      %v1726 = vmax.f32 %v1605, 0.0
      %v1727 = vmax.f32 %v1628, 0.0
      %v1728 = vmax.f32 %v1651, 0.0
      %v1729 = vmax.f32 %v1674, 0.0
      %v1730 = vmax.f32 %v1697, 0.0
      %v1731 = vld [vmem:[%s390] sm:$0xff]
      %v1732 = vld [vmem:[%s390 + $0x8] sm:$0xff]
      %v1733 = vld [vmem:[%s390 + $0x10] sm:$0xff]
      %v1734 = vld [vmem:[%s390 + $0x18] sm:$0xff]
      %v1735 = vld [vmem:[%s390 + $0x20] sm:$0xff]
      %v1736 = vld [vmem:[%s390 + $0x28] sm:$0xff]
      %v1737 = vld [vmem:[%s390 + $0x30] sm:$0xff]
      %v1738 = vld [vmem:[%s390 + $0x38] sm:$0xff]
      %v1739 = vld [vmem:[%s390 + $0x40] sm:$0xff]
      %v1740 = vld [vmem:[%s390 + $0x48] sm:$0xff]
      %v1741 = vld [vmem:[%s390 + $0x50] sm:$0xff]
      %v1742 = vld [vmem:[%s390 + $0x58] sm:$0xff]
      %v1743 = vld [vmem:[%s390 + $0x60] sm:$0xff]
      %v1744 = vld [vmem:[%s390 + $0x68] sm:$0xff]
      %v1745 = vld [vmem:[%s390 + $0x70] sm:$0xff]
      %v1746 = vld [vmem:[%s390 + $0x78] sm:$0xff]
      %v1747 = vld [vmem:[%s390 + $0x80] sm:$0xff]
      %v1748 = vld [vmem:[%s390 + $0x88] sm:$0xff]
      %v1749 = vld [vmem:[%s390 + $0x90] sm:$0xff]
      %v1750 = vld [vmem:[%s390 + $0x98] sm:$0xff]
      %v1751 = vld [vmem:[%s390 + $0xa0] sm:$0xff]
      %v1752 = vld [vmem:[%s390 + $0xa8] sm:$0xff]
      %v1753 = vld [vmem:[%s390 + $0xb0] sm:$0xff]
      %v1754 = vld [vmem:[%s390 + $0xb8] sm:$0xff]
      %v1755 = vld [vmem:[%s390 + $0xc0] sm:$0xff]
      %v1756 = vld [vmem:[%s390 + $0xc8] sm:$0xff]
      %v1757 = vld [vmem:[%s390 + $0xd0] sm:$0xff]
      %v1758 = vld [vmem:[%s390 + $0xd8] sm:$0xff]
      %v1759 = vld [vmem:[%s390 + $0xe0] sm:$0xff]
      %v1760 = vld [vmem:[%s390 + $0xe8] sm:$0xff]
      %v1761 = vld [vmem:[%s390 + $0xf0] sm:$0xff]
      %v1762 = vld [vmem:[%s390 + $0xf8] sm:$0xff]
      %v1763 = vld [vmem:[%s390 + $0x100] sm:$0xff]
      %v1764 = vld [vmem:[%s390 + $0x108] sm:$0xff]
      %v1765 = vld [vmem:[%s390 + $0x110] sm:$0xff]
      %v1766 = vld [vmem:[%s390 + $0x118] sm:$0xff]
      %v1767 = vld [vmem:[%s390 + $0x120] sm:$0xff]
      %v1768 = vld [vmem:[%s390 + $0x128] sm:$0xff]
      %v1769 = vld [vmem:[%s390 + $0x130] sm:$0xff]
      %v1770 = vld [vmem:[%s390 + $0x138] sm:$0xff]
      %v1771 = vld [vmem:[%s390 + $0x140] sm:$0xff]
      %v1772 = vld [vmem:[%s390 + $0x148] sm:$0xff]
      %v1773 = vld [vmem:[%s390 + $0x150] sm:$0xff]
      %v1774 = vld [vmem:[%s390 + $0x158] sm:$0xff]
      %v1775 = vld [vmem:[%s390 + $0x160] sm:$0xff]
      %v1776 = vld [vmem:[%s390 + $0x168] sm:$0xff]
      %v1777 = vld [vmem:[%s390 + $0x170] sm:$0xff]
      %v1778 = vld [vmem:[%s390 + $0x178] sm:$0xff]
      %v1779 = vld [vmem:[%s390 + $0x180] sm:$0xff]
      %v1780 = vld [vmem:[%s390 + $0x188] sm:$0xff]
      %v1781 = vld [vmem:[%s390 + $0x190] sm:$0xff]
      %v1782 = vld [vmem:[%s390 + $0x198] sm:$0xff]
      %v1783 = vld [vmem:[%s390 + $0x1a0] sm:$0xff]
      %v1784 = vld [vmem:[%s390 + $0x1a8] sm:$0xff]
      %v1785 = vld [vmem:[%s390 + $0x1b0] sm:$0xff]
      %v1786 = vld [vmem:[%s390 + $0x1b8] sm:$0xff]
      %v1787 = vld [vmem:[%s390 + $0x1c0] sm:$0xff]
      %v1788 = vld [vmem:[%s390 + $0x1c8] sm:$0xff]
      %v1789 = vld [vmem:[%s390 + $0x1d0] sm:$0xff]
      %v1790 = vld [vmem:[%s390 + $0x1d8] sm:$0xff]
      %v1791 = vld [vmem:[%s390 + $0x1e0] sm:$0xff]
      %v1792 = vld [vmem:[%s390 + $0x1e8] sm:$0xff]
      %v1793 = vld [vmem:[%s390 + $0x1f0] sm:$0xff]
      %v1794 = vld [vmem:[%s390 + $0x1f8] sm:$0xff]
      %v1795 = vld [vmem:[%s390 + $0x200] sm:$0xff]
      %v1796 = vld [vmem:[%s390 + $0x208] sm:$0xff]
      %v1797 = vld [vmem:[%s390 + $0x210] sm:$0xff]
      %v1798 = vld [vmem:[%s390 + $0x218] sm:$0xff]
      %v1799 = vld [vmem:[%s390 + $0x220] sm:$0xff]
      %v1800 = vld [vmem:[%s390 + $0x228] sm:$0xff]
      %v1801 = vld [vmem:[%s390 + $0x230] sm:$0xff]
      %v1802 = vld [vmem:[%s390 + $0x238] sm:$0xff]
      %v1803 = vld [vmem:[%s390 + $0x240] sm:$0xff]
      %v1804 = vld [vmem:[%s390 + $0x248] sm:$0xff]
      %v1805 = vld [vmem:[%s390 + $0x250] sm:$0xff]
      %v1806 = vld [vmem:[%s390 + $0x258] sm:$0xff]
      %v1807 = vld [vmem:[%s390 + $0x260] sm:$0xff]
      %v1808 = vld [vmem:[%s390 + $0x268] sm:$0xff]
      %v1809 = vld [vmem:[%s390 + $0x270] sm:$0xff]
      %v1810 = vld [vmem:[%s390 + $0x278] sm:$0xff]
      %v1811 = vld [vmem:[%s390 + $0x280] sm:$0xff]
      %v1812 = vld [vmem:[%s390 + $0x288] sm:$0xff]
      %v1813 = vld [vmem:[%s390 + $0x290] sm:$0xff]
      %v1814 = vld [vmem:[%s390 + $0x298] sm:$0xff]
      %v1815 = vld [vmem:[%s390 + $0x2a0] sm:$0xff]
      %v1816 = vld [vmem:[%s390 + $0x2a8] sm:$0xff]
      %v1817 = vld [vmem:[%s390 + $0x2b0] sm:$0xff]
      %v1818 = vld [vmem:[%s390 + $0x2b8] sm:$0xff]
      %v1819 = vld [vmem:[%s390 + $0x2c0] sm:$0xff]
      %v1820 = vld [vmem:[%s390 + $0x2c8] sm:$0xff]
      %v1821 = vld [vmem:[%s390 + $0x2d0] sm:$0xff]
      %v1822 = vld [vmem:[%s390 + $0x2d8] sm:$0xff]
      %v1823 = vld [vmem:[%s390 + $0x2e0] sm:$0xff]
      %v1824 = vld [vmem:[%s390 + $0x2e8] sm:$0xff]
      %v1825 = vld [vmem:[%s390 + $0x2f0] sm:$0xff]
      %v1826 = vld [vmem:[%s390 + $0x2f8] sm:$0xff]
      %v1827 = vld [vmem:[%s390 + $0x300] sm:$0xff]
      %v1828 = vld [vmem:[%s390 + $0x308] sm:$0xff]
      %v1829 = vld [vmem:[%s390 + $0x310] sm:$0xff]
      %v1830 = vld [vmem:[%s390 + $0x318] sm:$0xff]
      %v1831 = vld [vmem:[%s390 + $0x320] sm:$0xff]
      %v1832 = vld [vmem:[%s390 + $0x328] sm:$0xff]
      %v1833 = vld [vmem:[%s390 + $0x330] sm:$0xff]
      %v1834 = vld [vmem:[%s390 + $0x338] sm:$0xff]
      %v1835 = vld [vmem:[%s390 + $0x340] sm:$0xff]
      %v1836 = vld [vmem:[%s390 + $0x348] sm:$0xff]
      %v1837 = vld [vmem:[%s390 + $0x350] sm:$0xff]
      %v1838 = vld [vmem:[%s390 + $0x358] sm:$0xff]
      %v1839 = vld [vmem:[%s390 + $0x360] sm:$0xff]
      %v1840 = vld [vmem:[%s390 + $0x368] sm:$0xff]
      %v1841 = vld [vmem:[%s390 + $0x370] sm:$0xff]
      %v1842 = vld [vmem:[%s390 + $0x378] sm:$0xff]
      %v1843 = vld [vmem:[%s390 + $0x380] sm:$0xff]
      %v1844 = vld [vmem:[%s390 + $0x388] sm:$0xff]
      %v1845 = vld [vmem:[%s390 + $0x390] sm:$0xff]
      %v1846 = vld [vmem:[%s390 + $0x398] sm:$0xff]
      %v1847 = vld [vmem:[%s390 + $0x3a0] sm:$0xff]
      %v1848 = vld [vmem:[%s390 + $0x3a8] sm:$0xff]
      %v1849 = vld [vmem:[%s390 + $0x3b0] sm:$0xff]
      %v1850 = vld [vmem:[%s390 + $0x3b8] sm:$0xff]
      %v1851 = vld [vmem:[%s390 + $0x3c0] sm:$0xff]
      %v1852 = vld [vmem:[%s390 + $0x3c8] sm:$0xff]
      %v1853 = vld [vmem:[%s390 + $0x3d0] sm:$0xff]
      %v1854 = vld [vmem:[%s390 + $0x3d8] sm:$0xff]
      %v1855 = vld [vmem:[%s390 + $0x3e0] sm:$0xff]
      %v1856 = vld [vmem:[%s390 + $0x3e8] sm:$0xff]
      %v1857 = vld [vmem:[%s390 + $0x3f0] sm:$0xff]
      %v1858 = vld [vmem:[%s390 + $0x3f8] sm:$0xff]
      %v1859 = vld [vmem:[%s390 + $0x400] sm:$0xff]
      %v1860 = vld [vmem:[%s390 + $0x408] sm:$0xff]
      %v1861 = vld [vmem:[%s390 + $0x410] sm:$0xff]
      %v1862 = vld [vmem:[%s390 + $0x418] sm:$0xff]
      %v1863 = vld [vmem:[%s390 + $0x420] sm:$0xff]
      %v1864 = vld [vmem:[%s390 + $0x428] sm:$0xff]
      %v1865 = vld [vmem:[%s390 + $0x430] sm:$0xff]
      %v1866 = vld [vmem:[%s390 + $0x438] sm:$0xff]
      %v1867 = vld [vmem:[%s390 + $0x440] sm:$0xff]
      %v1868 = vld [vmem:[%s390 + $0x448] sm:$0xff]
      %v1869 = vld [vmem:[%s390 + $0x450] sm:$0xff]
      %v1870 = vld [vmem:[%s390 + $0x458] sm:$0xff]
      %v1871 = vld [vmem:[%s390 + $0x460] sm:$0xff]
      %v1872 = vld [vmem:[%s390 + $0x468] sm:$0xff]
      %v1873 = vld [vmem:[%s390 + $0x470] sm:$0xff]
      %v1874 = vld [vmem:[%s390 + $0x478] sm:$0xff]
      %v1875 = vld [vmem:[%s390 + $0x480] sm:$0xff]
      %v1876 = vld [vmem:[%s390 + $0x488] sm:$0xff]
      %v1877 = vld [vmem:[%s390 + $0x490] sm:$0xff]
      %v1878 = vld [vmem:[%s390 + $0x498] sm:$0xff]
      %v1879 = vld [vmem:[%s390 + $0x4a0] sm:$0xff]
      %v1880 = vld [vmem:[%s390 + $0x4a8] sm:$0xff]
      %v1881 = vld [vmem:[%s390 + $0x4b0] sm:$0xff]
      %v1882 = vld [vmem:[%s390 + $0x4b8] sm:$0xff]
      %v1883 = vld [vmem:[%s390 + $0x4c0] sm:$0xff]
      %v1884 = vld [vmem:[%s390 + $0x4c8] sm:$0xff]
      %v1885 = vld [vmem:[%s390 + $0x4d0] sm:$0xff]
      %v1886 = vld [vmem:[%s390 + $0x4d8] sm:$0xff]
      %v1887 = vld [vmem:[%s390 + $0x4e0] sm:$0xff]
      %v1888 = vld [vmem:[%s390 + $0x4e8] sm:$0xff]
      %v1889 = vld [vmem:[%s390 + $0x4f0] sm:$0xff]
      %v1890 = vld [vmem:[%s390 + $0x4f8] sm:$0xff]
      %v1891 = vld [vmem:[%s390 + $0x500] sm:$0xff]
      %v1892 = vld [vmem:[%s390 + $0x508] sm:$0xff]
      %v1893 = vld [vmem:[%s390 + $0x510] sm:$0xff]
      %v1894 = vld [vmem:[%s390 + $0x518] sm:$0xff]
      %v1895 = vld [vmem:[%s390 + $0x520] sm:$0xff]
      %v1896 = vld [vmem:[%s390 + $0x528] sm:$0xff]
      %v1897 = vld [vmem:[%s390 + $0x530] sm:$0xff]
      %v1898 = vld [vmem:[%s390 + $0x538] sm:$0xff]
      %v1899 = vld [vmem:[%s390 + $0x540] sm:$0xff]
      %v1900 = vld [vmem:[%s390 + $0x548] sm:$0xff]
      %v1901 = vld [vmem:[%s390 + $0x550] sm:$0xff]
      %v1902 = vld [vmem:[%s390 + $0x558] sm:$0xff]
      %v1903 = vld [vmem:[%s390 + $0x560] sm:$0xff]
      %v1904 = vld [vmem:[%s390 + $0x568] sm:$0xff]
      %v1905 = vld [vmem:[%s390 + $0x570] sm:$0xff]
      %v1906 = vld [vmem:[%s390 + $0x578] sm:$0xff]
      %v1907 = vld [vmem:[%s390 + $0x580] sm:$0xff]
      %v1908 = vld [vmem:[%s390 + $0x588] sm:$0xff]
      %v1909 = vld [vmem:[%s390 + $0x590] sm:$0xff]
      %v1910 = vld [vmem:[%s390 + $0x598] sm:$0xff]
      %v1911 = vld [vmem:[%s390 + $0x5a0] sm:$0xff]
      %v1912 = vld [vmem:[%s390 + $0x5a8] sm:$0xff]
      %v1913 = vld [vmem:[%s390 + $0x5b0] sm:$0xff]
      %v1914 = vld [vmem:[%s390 + $0x5b8] sm:$0xff]
      %v1915 = vld [vmem:[%s390 + $0x5c0] sm:$0xff]
      %v1916 = vld [vmem:[%s390 + $0x5c8] sm:$0xff]
      %v1917 = vld [vmem:[%s390 + $0x5d0] sm:$0xff]
      %v1918 = vld [vmem:[%s390 + $0x5d8] sm:$0xff]
      %v1919 = vld [vmem:[%s390 + $0x5e0] sm:$0xff]
      %v1920 = vld [vmem:[%s390 + $0x5e8] sm:$0xff]
      %v1921 = vld [vmem:[%s390 + $0x5f0] sm:$0xff]
      %v1922 = vld [vmem:[%s390 + $0x5f8] sm:$0xff]
      %v1923 = vld [vmem:[%s390 + $0x600] sm:$0xff]
      %v1924 = vld [vmem:[%s390 + $0x608] sm:$0xff]
      %v1925 = vld [vmem:[%s390 + $0x610] sm:$0xff]
      %v1926 = vld [vmem:[%s390 + $0x618] sm:$0xff]
      %v1927 = vld [vmem:[%s390 + $0x620] sm:$0xff]
      %v1928 = vld [vmem:[%s390 + $0x628] sm:$0xff]
      %v1929 = vld [vmem:[%s390 + $0x630] sm:$0xff]
      %v1930 = vld [vmem:[%s390 + $0x638] sm:$0xff]
      %v1931 = vld [vmem:[%s390 + $0x640] sm:$0xff]
      %v1932 = vld [vmem:[%s390 + $0x648] sm:$0xff]
      %v1933 = vld [vmem:[%s390 + $0x650] sm:$0xff]
      %v1934 = vld [vmem:[%s390 + $0x658] sm:$0xff]
      %v1935 = vld [vmem:[%s390 + $0x660] sm:$0xff]
      %v1936 = vld [vmem:[%s390 + $0x668] sm:$0xff]
      %v1937 = vld [vmem:[%s390 + $0x670] sm:$0xff]
      %v1938 = vld [vmem:[%s390 + $0x678] sm:$0xff]
      %v1939 = vld [vmem:[%s390 + $0x680] sm:$0xff]
      %v1940 = vld [vmem:[%s390 + $0x688] sm:$0xff]
      %v1941 = vld [vmem:[%s390 + $0x690] sm:$0xff]
      %v1942 = vld [vmem:[%s390 + $0x698] sm:$0xff]
      %v1943 = vld [vmem:[%s390 + $0x6a0] sm:$0xff]
      %v1944 = vld [vmem:[%s390 + $0x6a8] sm:$0xff]
      %v1945 = vld [vmem:[%s390 + $0x6b0] sm:$0xff]
      %v1946 = vld [vmem:[%s390 + $0x6b8] sm:$0xff]
      %v1947 = vld [vmem:[%s390 + $0x6c0] sm:$0xff]
      %v1948 = vld [vmem:[%s390 + $0x6c8] sm:$0xff]
      %v1949 = vld [vmem:[%s390 + $0x6d0] sm:$0xff]
      %v1950 = vld [vmem:[%s390 + $0x6d8] sm:$0xff]
      %v1951 = vld [vmem:[%s390 + $0x6e0] sm:$0xff]
      %v1952 = vld [vmem:[%s390 + $0x6e8] sm:$0xff]
      %v1953 = vld [vmem:[%s390 + $0x6f0] sm:$0xff]
      %v1954 = vld [vmem:[%s390 + $0x6f8] sm:$0xff]
      %v1955 = vld [vmem:[%s390 + $0x700] sm:$0xff]
      %v1956 = vld [vmem:[%s390 + $0x708] sm:$0xff]
      %v1957 = vld [vmem:[%s390 + $0x710] sm:$0xff]
      %v1958 = vld [vmem:[%s390 + $0x718] sm:$0xff]
      %v1959 = vld [vmem:[%s390 + $0x720] sm:$0xff]
      %v1960 = vld [vmem:[%s390 + $0x728] sm:$0xff]
      %v1961 = vld [vmem:[%s390 + $0x730] sm:$0xff]
      %v1962 = vld [vmem:[%s390 + $0x738] sm:$0xff]
      %v1963 = vld [vmem:[%s390 + $0x740] sm:$0xff]
      %v1964 = vld [vmem:[%s390 + $0x748] sm:$0xff]
      %v1965 = vld [vmem:[%s390 + $0x750] sm:$0xff]
      %v1966 = vld [vmem:[%s390 + $0x758] sm:$0xff]
      %v1967 = vld [vmem:[%s390 + $0x760] sm:$0xff]
      %v1968 = vld [vmem:[%s390 + $0x768] sm:$0xff]
      %v1969 = vld [vmem:[%s390 + $0x770] sm:$0xff]
      %v1970 = vld [vmem:[%s390 + $0x778] sm:$0xff]
      %v1971 = vld [vmem:[%s390 + $0x780] sm:$0xff]
      %v1972 = vld [vmem:[%s390 + $0x788] sm:$0xff]
      %v1973 = vld [vmem:[%s390 + $0x790] sm:$0xff]
      %v1974 = vld [vmem:[%s390 + $0x798] sm:$0xff]
      %v1975 = vld [vmem:[%s390 + $0x7a0] sm:$0xff]
      %v1976 = vld [vmem:[%s390 + $0x7a8] sm:$0xff]
      %v1977 = vld [vmem:[%s390 + $0x7b0] sm:$0xff]
      %v1978 = vld [vmem:[%s390 + $0x7b8] sm:$0xff]
      %v1979 = vld [vmem:[%s390 + $0x7c0] sm:$0xff]
      %v1980 = vld [vmem:[%s390 + $0x7c8] sm:$0xff]
      %v1981 = vld [vmem:[%s390 + $0x7d0] sm:$0xff]
      %v1982 = vld [vmem:[%s390 + $0x7d8] sm:$0xff]
      %v1983 = vld [vmem:[%s390 + $0x7e0] sm:$0xff]
      %v1984 = vld [vmem:[%s390 + $0x7e8] sm:$0xff]
      %v1985 = vld [vmem:[%s390 + $0x7f0] sm:$0xff]
      %v1986 = vld [vmem:[%s390 + $0x7f8] sm:$0xff]
      %v1987 = vperm.slane %v446, 5
      %1988 = vmatpush.msra.mxu0 %v1746
      %1989 = vmatpush.msra.mxu0 %v1745
      %1990 = vmatpush.msra.mxu0 %v1744
      %1991 = vmatpush.msra.mxu0 %v1743
      %1992 = vmatpush.msra.mxu0 %v1742
      %1993 = vmatpush.msra.mxu0 %v1741
      %1994 = vmatpush.msra.mxu0 %v1740
      %1995 = vmatpush.msra.mxu0 %v1739
      %1996 = vmatpush.msra.mxu0 %v1738
      %1997 = vmatpush.msra.mxu0 %v1737
      %1998 = vmatpush.msra.mxu0 %v1736
      %1999 = vmatpush.msra.mxu0 %v1735
      %2000 = vmatpush.msra.mxu0 %v1734
      %2001 = vmatpush.msra.mxu0 %v1733
      %2002 = vmatpush.msra.mxu0 %v1732
      %2003 = vmatpush.msra.mxu0 %v1731
      %2004 = vmatmul.f32.gmra.mxu0 %v1699
      %v2005 = vpop.f32.mrf.mxu0
      %v2006 = vadd.f32 %v1987, %v2005
      %2007 = vmatmul.f32.gmra.mxu0 %v1715
      %v2008 = vpop.f32.mrf.mxu0
      %v2009 = vadd.f32 %v1987, %v2008
      %2010 = vdwg.mxu0
      %2011 = vmatpush.msra.mxu0 %v1762
      %2012 = vmatpush.msra.mxu0 %v1761
      %2013 = vmatpush.msra.mxu0 %v1760
      %2014 = vmatpush.msra.mxu0 %v1759
      %2015 = vmatpush.msra.mxu0 %v1758
      %2016 = vmatpush.msra.mxu0 %v1757
      %2017 = vmatpush.msra.mxu0 %v1756
      %2018 = vmatpush.msra.mxu0 %v1755
      %2019 = vmatpush.msra.mxu0 %v1754
      %2020 = vmatpush.msra.mxu0 %v1753
      %2021 = vmatpush.msra.mxu0 %v1752
      %2022 = vmatpush.msra.mxu0 %v1751
      %2023 = vmatpush.msra.mxu0 %v1750
      %2024 = vmatpush.msra.mxu0 %v1749
      %2025 = vmatpush.msra.mxu0 %v1748
      %2026 = vmatpush.msra.mxu0 %v1747
      %2027 = vmatmul.f32.gmra.mxu0 %v1700
      %v2028 = vpop.f32.mrf.mxu0
      %v2029 = vadd.f32 %v2006, %v2028
      %2030 = vmatmul.f32.gmra.mxu0 %v1716
      %v2031 = vpop.f32.mrf.mxu0
      %v2032 = vadd.f32 %v2009, %v2031
      %2033 = vdwg.mxu0
      %2034 = vmatpush.msra.mxu0 %v1778
      %2035 = vmatpush.msra.mxu0 %v1777
      %2036 = vmatpush.msra.mxu0 %v1776
      %2037 = vmatpush.msra.mxu0 %v1775
      %2038 = vmatpush.msra.mxu0 %v1774
      %2039 = vmatpush.msra.mxu0 %v1773
      %2040 = vmatpush.msra.mxu0 %v1772
      %2041 = vmatpush.msra.mxu0 %v1771
      %2042 = vmatpush.msra.mxu0 %v1770
      %2043 = vmatpush.msra.mxu0 %v1769
      %2044 = vmatpush.msra.mxu0 %v1768
      %2045 = vmatpush.msra.mxu0 %v1767
      %2046 = vmatpush.msra.mxu0 %v1766
      %2047 = vmatpush.msra.mxu0 %v1765
      %2048 = vmatpush.msra.mxu0 %v1764
      %2049 = vmatpush.msra.mxu0 %v1763
      %2050 = vmatmul.f32.gmra.mxu0 %v1701
      %v2051 = vpop.f32.mrf.mxu0
      %v2052 = vadd.f32 %v2029, %v2051
      %2053 = vmatmul.f32.gmra.mxu0 %v1717
      %v2054 = vpop.f32.mrf.mxu0
      %v2055 = vadd.f32 %v2032, %v2054
      %2056 = vdwg.mxu0
      %2057 = vmatpush.msra.mxu0 %v1794
      %2058 = vmatpush.msra.mxu0 %v1793
      %2059 = vmatpush.msra.mxu0 %v1792
      %2060 = vmatpush.msra.mxu0 %v1791
      %2061 = vmatpush.msra.mxu0 %v1790
      %2062 = vmatpush.msra.mxu0 %v1789
      %2063 = vmatpush.msra.mxu0 %v1788
      %2064 = vmatpush.msra.mxu0 %v1787
      %2065 = vmatpush.msra.mxu0 %v1786
      %2066 = vmatpush.msra.mxu0 %v1785
      %2067 = vmatpush.msra.mxu0 %v1784
      %2068 = vmatpush.msra.mxu0 %v1783
      %2069 = vmatpush.msra.mxu0 %v1782
      %2070 = vmatpush.msra.mxu0 %v1781
      %2071 = vmatpush.msra.mxu0 %v1780
      %2072 = vmatpush.msra.mxu0 %v1779
      %2073 = vmatmul.f32.gmra.mxu0 %v1702
      %v2074 = vpop.f32.mrf.mxu0
      %v2075 = vadd.f32 %v2052, %v2074
      %2076 = vmatmul.f32.gmra.mxu0 %v1718
      %v2077 = vpop.f32.mrf.mxu0
      %v2078 = vadd.f32 %v2055, %v2077
      %2079 = vdwg.mxu0
      %2080 = vmatpush.msra.mxu0 %v1810
      %2081 = vmatpush.msra.mxu0 %v1809
      %2082 = vmatpush.msra.mxu0 %v1808
      %2083 = vmatpush.msra.mxu0 %v1807
      %2084 = vmatpush.msra.mxu0 %v1806
      %2085 = vmatpush.msra.mxu0 %v1805
      %2086 = vmatpush.msra.mxu0 %v1804
      %2087 = vmatpush.msra.mxu0 %v1803
      %2088 = vmatpush.msra.mxu0 %v1802
      %2089 = vmatpush.msra.mxu0 %v1801
      %2090 = vmatpush.msra.mxu0 %v1800
      %2091 = vmatpush.msra.mxu0 %v1799
      %2092 = vmatpush.msra.mxu0 %v1798
      %2093 = vmatpush.msra.mxu0 %v1797
      %2094 = vmatpush.msra.mxu0 %v1796
      %2095 = vmatpush.msra.mxu0 %v1795
      %2096 = vmatmul.f32.gmra.mxu0 %v1703
      %v2097 = vpop.f32.mrf.mxu0
      %v2098 = vadd.f32 %v2075, %v2097
      %2099 = vmatmul.f32.gmra.mxu0 %v1719
      %v2100 = vpop.f32.mrf.mxu0
      %v2101 = vadd.f32 %v2078, %v2100
      %2102 = vdwg.mxu0
      %2103 = vmatpush.msra.mxu0 %v1826
      %2104 = vmatpush.msra.mxu0 %v1825
      %2105 = vmatpush.msra.mxu0 %v1824
      %2106 = vmatpush.msra.mxu0 %v1823
      %2107 = vmatpush.msra.mxu0 %v1822
      %2108 = vmatpush.msra.mxu0 %v1821
      %2109 = vmatpush.msra.mxu0 %v1820
      %2110 = vmatpush.msra.mxu0 %v1819
      %2111 = vmatpush.msra.mxu0 %v1818
      %2112 = vmatpush.msra.mxu0 %v1817
      %2113 = vmatpush.msra.mxu0 %v1816
      %2114 = vmatpush.msra.mxu0 %v1815
      %2115 = vmatpush.msra.mxu0 %v1814
      %2116 = vmatpush.msra.mxu0 %v1813
      %2117 = vmatpush.msra.mxu0 %v1812
      %2118 = vmatpush.msra.mxu0 %v1811
      %2119 = vmatmul.f32.gmra.mxu0 %v1704
      %v2120 = vpop.f32.mrf.mxu0
      %v2121 = vadd.f32 %v2098, %v2120
      %2122 = vmatmul.f32.gmra.mxu0 %v1720
      %v2123 = vpop.f32.mrf.mxu0
      %v2124 = vadd.f32 %v2101, %v2123
      %2125 = vdwg.mxu0
      %2126 = vmatpush.msra.mxu0 %v1842
      %2127 = vmatpush.msra.mxu0 %v1841
      %2128 = vmatpush.msra.mxu0 %v1840
      %2129 = vmatpush.msra.mxu0 %v1839
      %2130 = vmatpush.msra.mxu0 %v1838
      %2131 = vmatpush.msra.mxu0 %v1837
      %2132 = vmatpush.msra.mxu0 %v1836
      %2133 = vmatpush.msra.mxu0 %v1835
      %2134 = vmatpush.msra.mxu0 %v1834
      %2135 = vmatpush.msra.mxu0 %v1833
      %2136 = vmatpush.msra.mxu0 %v1832
      %2137 = vmatpush.msra.mxu0 %v1831
      %2138 = vmatpush.msra.mxu0 %v1830
      %2139 = vmatpush.msra.mxu0 %v1829
      %2140 = vmatpush.msra.mxu0 %v1828
      %2141 = vmatpush.msra.mxu0 %v1827
      %2142 = vmatmul.f32.gmra.mxu0 %v1705
      %v2143 = vpop.f32.mrf.mxu0
      %v2144 = vadd.f32 %v2121, %v2143
      %2145 = vmatmul.f32.gmra.mxu0 %v1721
      %v2146 = vpop.f32.mrf.mxu0
      %v2147 = vadd.f32 %v2124, %v2146
      %2148 = vdwg.mxu0
      %2149 = vmatpush.msra.mxu0 %v1858
      %2150 = vmatpush.msra.mxu0 %v1857
      %2151 = vmatpush.msra.mxu0 %v1856
      %2152 = vmatpush.msra.mxu0 %v1855
      %2153 = vmatpush.msra.mxu0 %v1854
      %2154 = vmatpush.msra.mxu0 %v1853
      %2155 = vmatpush.msra.mxu0 %v1852
      %2156 = vmatpush.msra.mxu0 %v1851
      %2157 = vmatpush.msra.mxu0 %v1850
      %2158 = vmatpush.msra.mxu0 %v1849
      %2159 = vmatpush.msra.mxu0 %v1848
      %2160 = vmatpush.msra.mxu0 %v1847
      %2161 = vmatpush.msra.mxu0 %v1846
      %2162 = vmatpush.msra.mxu0 %v1845
      %2163 = vmatpush.msra.mxu0 %v1844
      %2164 = vmatpush.msra.mxu0 %v1843
      %2165 = vmatmul.f32.gmra.mxu0 %v1706
      %v2166 = vpop.f32.mrf.mxu0
      %v2167 = vadd.f32 %v2144, %v2166
      %2168 = vmatmul.f32.gmra.mxu0 %v1722
      %v2169 = vpop.f32.mrf.mxu0
      %v2170 = vadd.f32 %v2147, %v2169
      %2171 = vdwg.mxu0
      %2172 = vmatpush.msra.mxu0 %v1874
      %2173 = vmatpush.msra.mxu0 %v1873
      %2174 = vmatpush.msra.mxu0 %v1872
      %2175 = vmatpush.msra.mxu0 %v1871
      %2176 = vmatpush.msra.mxu0 %v1870
      %2177 = vmatpush.msra.mxu0 %v1869
      %2178 = vmatpush.msra.mxu0 %v1868
      %2179 = vmatpush.msra.mxu0 %v1867
      %2180 = vmatpush.msra.mxu0 %v1866
      %2181 = vmatpush.msra.mxu0 %v1865
      %2182 = vmatpush.msra.mxu0 %v1864
      %2183 = vmatpush.msra.mxu0 %v1863
      %2184 = vmatpush.msra.mxu0 %v1862
      %2185 = vmatpush.msra.mxu0 %v1861
      %2186 = vmatpush.msra.mxu0 %v1860
      %2187 = vmatpush.msra.mxu0 %v1859
      %2188 = vmatmul.f32.gmra.mxu0 %v1707
      %v2189 = vpop.f32.mrf.mxu0
      %v2190 = vadd.f32 %v2167, %v2189
      %2191 = vmatmul.f32.gmra.mxu0 %v1723
      %v2192 = vpop.f32.mrf.mxu0
      %v2193 = vadd.f32 %v2170, %v2192
      %2194 = vdwg.mxu0
      %2195 = vmatpush.msra.mxu0 %v1890
      %2196 = vmatpush.msra.mxu0 %v1889
      %2197 = vmatpush.msra.mxu0 %v1888
      %2198 = vmatpush.msra.mxu0 %v1887
      %2199 = vmatpush.msra.mxu0 %v1886
      %2200 = vmatpush.msra.mxu0 %v1885
      %2201 = vmatpush.msra.mxu0 %v1884
      %2202 = vmatpush.msra.mxu0 %v1883
      %2203 = vmatpush.msra.mxu0 %v1882
      %2204 = vmatpush.msra.mxu0 %v1881
      %2205 = vmatpush.msra.mxu0 %v1880
      %2206 = vmatpush.msra.mxu0 %v1879
      %2207 = vmatpush.msra.mxu0 %v1878
      %2208 = vmatpush.msra.mxu0 %v1877
      %2209 = vmatpush.msra.mxu0 %v1876
      %2210 = vmatpush.msra.mxu0 %v1875
      %2211 = vmatmul.f32.gmra.mxu0 %v1708
      %v2212 = vpop.f32.mrf.mxu0
      %v2213 = vadd.f32 %v2190, %v2212
      %2214 = vmatmul.f32.gmra.mxu0 %v1724
      %v2215 = vpop.f32.mrf.mxu0
      %v2216 = vadd.f32 %v2193, %v2215
      %2217 = vdwg.mxu0
      %2218 = vmatpush.msra.mxu0 %v1906
      %2219 = vmatpush.msra.mxu0 %v1905
      %2220 = vmatpush.msra.mxu0 %v1904
      %2221 = vmatpush.msra.mxu0 %v1903
      %2222 = vmatpush.msra.mxu0 %v1902
      %2223 = vmatpush.msra.mxu0 %v1901
      %2224 = vmatpush.msra.mxu0 %v1900
      %2225 = vmatpush.msra.mxu0 %v1899
      %2226 = vmatpush.msra.mxu0 %v1898
      %2227 = vmatpush.msra.mxu0 %v1897
      %2228 = vmatpush.msra.mxu0 %v1896
      %2229 = vmatpush.msra.mxu0 %v1895
      %2230 = vmatpush.msra.mxu0 %v1894
      %2231 = vmatpush.msra.mxu0 %v1893
      %2232 = vmatpush.msra.mxu0 %v1892
      %2233 = vmatpush.msra.mxu0 %v1891
      %2234 = vmatmul.f32.gmra.mxu0 %v1709
      %v2235 = vpop.f32.mrf.mxu0
      %v2236 = vadd.f32 %v2213, %v2235
      %2237 = vmatmul.f32.gmra.mxu0 %v1725
      %v2238 = vpop.f32.mrf.mxu0
      %v2239 = vadd.f32 %v2216, %v2238
      %2240 = vdwg.mxu0
      %2241 = vmatpush.msra.mxu0 %v1922
      %2242 = vmatpush.msra.mxu0 %v1921
      %2243 = vmatpush.msra.mxu0 %v1920
      %2244 = vmatpush.msra.mxu0 %v1919
      %2245 = vmatpush.msra.mxu0 %v1918
      %2246 = vmatpush.msra.mxu0 %v1917
      %2247 = vmatpush.msra.mxu0 %v1916
      %2248 = vmatpush.msra.mxu0 %v1915
      %2249 = vmatpush.msra.mxu0 %v1914
      %2250 = vmatpush.msra.mxu0 %v1913
      %2251 = vmatpush.msra.mxu0 %v1912
      %2252 = vmatpush.msra.mxu0 %v1911
      %2253 = vmatpush.msra.mxu0 %v1910
      %2254 = vmatpush.msra.mxu0 %v1909
      %2255 = vmatpush.msra.mxu0 %v1908
      %2256 = vmatpush.msra.mxu0 %v1907
      %2257 = vmatmul.f32.gmra.mxu0 %v1710
      %v2258 = vpop.f32.mrf.mxu0
      %v2259 = vadd.f32 %v2236, %v2258
      %2260 = vmatmul.f32.gmra.mxu0 %v1726
      %v2261 = vpop.f32.mrf.mxu0
      %v2262 = vadd.f32 %v2239, %v2261
      %2263 = vdwg.mxu0
      %2264 = vmatpush.msra.mxu0 %v1938
      %2265 = vmatpush.msra.mxu0 %v1937
      %2266 = vmatpush.msra.mxu0 %v1936
      %2267 = vmatpush.msra.mxu0 %v1935
      %2268 = vmatpush.msra.mxu0 %v1934
      %2269 = vmatpush.msra.mxu0 %v1933
      %2270 = vmatpush.msra.mxu0 %v1932
      %2271 = vmatpush.msra.mxu0 %v1931
      %2272 = vmatpush.msra.mxu0 %v1930
      %2273 = vmatpush.msra.mxu0 %v1929
      %2274 = vmatpush.msra.mxu0 %v1928
      %2275 = vmatpush.msra.mxu0 %v1927
      %2276 = vmatpush.msra.mxu0 %v1926
      %2277 = vmatpush.msra.mxu0 %v1925
      %2278 = vmatpush.msra.mxu0 %v1924
      %2279 = vmatpush.msra.mxu0 %v1923
      %2280 = vmatmul.f32.gmra.mxu0 %v1711
      %v2281 = vpop.f32.mrf.mxu0
      %v2282 = vadd.f32 %v2259, %v2281
      %2283 = vmatmul.f32.gmra.mxu0 %v1727
      %v2284 = vpop.f32.mrf.mxu0
      %v2285 = vadd.f32 %v2262, %v2284
      %2286 = vdwg.mxu0
      %2287 = vmatpush.msra.mxu0 %v1954
      %2288 = vmatpush.msra.mxu0 %v1953
      %2289 = vmatpush.msra.mxu0 %v1952
      %2290 = vmatpush.msra.mxu0 %v1951
      %2291 = vmatpush.msra.mxu0 %v1950
      %2292 = vmatpush.msra.mxu0 %v1949
      %2293 = vmatpush.msra.mxu0 %v1948
      %2294 = vmatpush.msra.mxu0 %v1947
      %2295 = vmatpush.msra.mxu0 %v1946
      %2296 = vmatpush.msra.mxu0 %v1945
      %2297 = vmatpush.msra.mxu0 %v1944
      %2298 = vmatpush.msra.mxu0 %v1943
      %2299 = vmatpush.msra.mxu0 %v1942
      %2300 = vmatpush.msra.mxu0 %v1941
      %2301 = vmatpush.msra.mxu0 %v1940
      %2302 = vmatpush.msra.mxu0 %v1939
      %2303 = vmatmul.f32.gmra.mxu0 %v1712
      %v2304 = vpop.f32.mrf.mxu0
      %v2305 = vadd.f32 %v2282, %v2304
      %2306 = vmatmul.f32.gmra.mxu0 %v1728
      %v2307 = vpop.f32.mrf.mxu0
      %v2308 = vadd.f32 %v2285, %v2307
      %2309 = vdwg.mxu0
      %2310 = vmatpush.msra.mxu0 %v1970
      %2311 = vmatpush.msra.mxu0 %v1969
      %2312 = vmatpush.msra.mxu0 %v1968
      %2313 = vmatpush.msra.mxu0 %v1967
      %2314 = vmatpush.msra.mxu0 %v1966
      %2315 = vmatpush.msra.mxu0 %v1965
      %2316 = vmatpush.msra.mxu0 %v1964
      %2317 = vmatpush.msra.mxu0 %v1963
      %2318 = vmatpush.msra.mxu0 %v1962
      %2319 = vmatpush.msra.mxu0 %v1961
      %2320 = vmatpush.msra.mxu0 %v1960
      %2321 = vmatpush.msra.mxu0 %v1959
      %2322 = vmatpush.msra.mxu0 %v1958
      %2323 = vmatpush.msra.mxu0 %v1957
      %2324 = vmatpush.msra.mxu0 %v1956
      %2325 = vmatpush.msra.mxu0 %v1955
      %2326 = vmatmul.f32.gmra.mxu0 %v1713
      %v2327 = vpop.f32.mrf.mxu0
      %v2328 = vadd.f32 %v2305, %v2327
      %2329 = vmatmul.f32.gmra.mxu0 %v1729
      %v2330 = vpop.f32.mrf.mxu0
      %v2331 = vadd.f32 %v2308, %v2330
      %2332 = vdwg.mxu0
      %2333 = vmatpush.msra.mxu0 %v1986
      %2334 = vmatpush.msra.mxu0 %v1985
      %2335 = vmatpush.msra.mxu0 %v1984
      %2336 = vmatpush.msra.mxu0 %v1983
      %2337 = vmatpush.msra.mxu0 %v1982
      %2338 = vmatpush.msra.mxu0 %v1981
      %2339 = vmatpush.msra.mxu0 %v1980
      %2340 = vmatpush.msra.mxu0 %v1979
      %2341 = vmatpush.msra.mxu0 %v1978
      %2342 = vmatpush.msra.mxu0 %v1977
      %2343 = vmatpush.msra.mxu0 %v1976
      %2344 = vmatpush.msra.mxu0 %v1975
      %2345 = vmatpush.msra.mxu0 %v1974
      %2346 = vmatpush.msra.mxu0 %v1973
      %2347 = vmatpush.msra.mxu0 %v1972
      %2348 = vmatpush.msra.mxu0 %v1971
      %2349 = vmatmul.f32.gmra.mxu0 %v1714
      %v2350 = vpop.f32.mrf.mxu0
      %v2351 = vadd.f32 %v2328, %v2350
      %2352 = vmatmul.f32.gmra.mxu0 %v1730
      %v2353 = vpop.f32.mrf.mxu0
      %v2354 = vadd.f32 %v2331, %v2353
      %2355 = vdwg.mxu0
      %v2356 = vadd.f32 %v1243, %v2351
      %v2357 = vadd.f32 %v1244, %v2354
      %v2358 = vsel %vm467, %v2356, 0.0
      %2359 = vadd.xlane.f32.xlu0 %v2358
      %v2360 = vpop.xlane.xlu0 %2359
      %v2361 = vsel %vm467, %v2357, 0.0
      %2362 = vadd.xlane.f32.xlu0 %v2361
      %v2363 = vpop.xlane.xlu0 %2362
      %v2364 = vmul.f32 %v2360, %v1200
      %v2365 = vmul.f32 %v2363, %v1200
      %v2366 = vsub.f32 %v2356, %v2364
      %v2367 = vsub.f32 %v2357, %v2365
      %v2368 = vmul.f32 %v2366, %v2366
      %v2369 = vmul.f32 %v2367, %v2367
      %v2370 = vsel %vm467, %v2368, 0.0
      %2371 = vadd.xlane.f32.xlu0 %v2370
      %v2372 = vpop.xlane.xlu0 %2371
      %v2373 = vsel %vm467, %v2369, 0.0
      %2374 = vadd.xlane.f32.xlu0 %v2373
      %v2375 = vpop.xlane.xlu0 %2374
      %v2376 = vmul.f32 %v2372, %v1200
      %v2377 = vmul.f32 %v2375, %v1200
      %v2378 = vadd.f32 %v2376, 1e-05
      %v2379 = vadd.f32 %v2377, 1e-05
      %v2380 = vrsqrt.pop %v2378
      %v2381 = vmul.f32 %v2380, %v2378
      %v2382 = vmul.f32 %v2381, %v2380
      %v2383 = vmul.f32 0.5, %v2382
      %v2384 = vsub.f32 1.5, %v2383
      %v2385 = vmul.f32 %v2380, %v2384
      %vm2386 = vweird.f32 %v2378
      %vm2387 = vweird.f32 %v2380
      %vm2388 = vmor %vm2386, %vm2387
      %v2389 = vsel %vm2388, %v2380, %v2385
      %v2390 = vrsqrt.pop %v2379
      %v2391 = vmul.f32 %v2390, %v2379
      %v2392 = vmul.f32 %v2391, %v2390
      %v2393 = vmul.f32 0.5, %v2392
      %v2394 = vsub.f32 1.5, %v2393
      %v2395 = vmul.f32 %v2390, %v2394
      %vm2396 = vweird.f32 %v2379
      %vm2397 = vweird.f32 %v2390
      %vm2398 = vmor %vm2396, %vm2397
      %v2399 = vsel %vm2398, %v2390, %v2395
      %v2400 = vmul.f32 %v2366, %v2389
      %v2401 = vmul.f32 %v2367, %v2399
      %v2402 = vperm.slane %v446, 6
      %v2403 = vmul.f32 %v2400, %v2402
      %v2404 = vmul.f32 %v2401, %v2402
      %v2405 = vperm.slane %v446, 7
      %v2406 = vadd.f32 %v2403, %v2405
      %v2407 = vadd.f32 %v2404, %v2405
      %2408 = vst.msk [vmem:[#allocation2] sm:$0xff] %vm467, %v2406
      %2409 = vst.msk [vmem:[#allocation2 + $0x8] sm:$0xff] %vm467, %v2407
      %p2410 = scmp.eq.s32.totalorder %s21, 1
      // Predicated region
      $region57: #{transformer_forward.2} parent=51 // pred_check
        %p2411 = pneg %p2410
      $region58: #{transformer_forward.2} parent=51 // pred_check_branch
        %2413 = sbr.rel (%p2411) target = $region60
      $region59: #{transformer_forward.2} parent=51 // pred_region
        %v2414 = vld [vmem:[%s2 + $0x1] sm:$0x1]
        %v2415 = vld [vmem:[%s2 + $0x2] sm:$0x1]
        %v2416 = vsel %vm467, %v2406, 0.0
        %2417 = vadd.xlane.f32.xlu0 %v2416
        %v2418 = vpop.xlane.xlu0 %2417
        %v2419 = vsel %vm467, %v2407, 0.0
        %2420 = vadd.xlane.f32.xlu0 %v2419
        %v2421 = vpop.xlane.xlu0 %2420
        %v2422 = vmul.f32 %v2418, %v1200
        %v2423 = vmul.f32 %v2421, %v1200
        %v2424 = vsub.f32 %v2406, %v2422
        %v2425 = vsub.f32 %v2407, %v2423
        %v2426 = vmul.f32 %v2424, %v2424
        %v2427 = vmul.f32 %v2425, %v2425
        %v2428 = vsel %vm467, %v2426, 0.0
        %2429 = vadd.xlane.f32.xlu0 %v2428
        %v2430 = vpop.xlane.xlu0 %2429
        %v2431 = vsel %vm467, %v2427, 0.0
        %2432 = vadd.xlane.f32.xlu0 %v2431
        %v2433 = vpop.xlane.xlu0 %2432
        %v2434 = vmul.f32 %v2430, %v1200
        %v2435 = vmul.f32 %v2433, %v1200
        %v2436 = vadd.f32 %v2434, 1e-05
        %v2437 = vadd.f32 %v2435, 1e-05
        %v2438 = vrsqrt.pop %v2436
        %v2439 = vmul.f32 %v2438, %v2436
        %v2440 = vmul.f32 %v2439, %v2438
        %v2441 = vmul.f32 0.5, %v2440
        %v2442 = vsub.f32 1.5, %v2441
        %v2443 = vmul.f32 %v2438, %v2442
        %vm2444 = vweird.f32 %v2436
        %vm2445 = vweird.f32 %v2438
        %vm2446 = vmor %vm2444, %vm2445
        %v2447 = vsel %vm2446, %v2438, %v2443
        %v2448 = vrsqrt.pop %v2437
        %v2449 = vmul.f32 %v2448, %v2437
        %v2450 = vmul.f32 %v2449, %v2448
        %v2451 = vmul.f32 0.5, %v2450
        %v2452 = vsub.f32 1.5, %v2451
        %v2453 = vmul.f32 %v2448, %v2452
        %vm2454 = vweird.f32 %v2437
        %vm2455 = vweird.f32 %v2448
        %vm2456 = vmor %vm2454, %vm2455
        %v2457 = vsel %vm2456, %v2448, %v2453
        %v2458 = vmul.f32 %v2424, %v2447
        %v2459 = vmul.f32 %v2425, %v2457
        %v2460 = vperm.slane %v2414, 0
        %v2461 = vmul.f32 %v2458, %v2460
        %v2462 = vmul.f32 %v2459, %v2460
        %v2463 = vperm.slane %v2415, 0
        %v2464 = vadd.f32 %v2461, %v2463
        %v2465 = vadd.f32 %v2462, %v2463
        %2466 = vst.msk [vmem:[%s9] sm:$0xff] %vm467, %v2464
        %2467 = vst.msk [vmem:[%s9 + $0x8] sm:$0xff] %vm467, %v2465
      $region60: #{transformer_forward.2} parent=51 // pred_fallthru
        _
      // Predicated region
      $region61: #{transformer_forward.2} parent=51 // pred_check
        %p2468 = pneg %p227
      $region62: #{transformer_forward.2} parent=51 // pred_check_branch
        %2470 = sbr.rel (%p2468) target = $region64
      $region63: #{transformer_forward.2} parent=51 // pred_region
        _
      $region64: #{transformer_forward.2} parent=51 // pred_fallthru
        _
      // Predicated region
      $region65: #{transformer_forward.2} parent=51 // pred_check
        %p2471 = pneg %p248
      $region66: #{transformer_forward.2} parent=51 // pred_check_branch
        %2473 = sbr.rel (%p2471) target = $region68
      $region67: #{transformer_forward.2} parent=51 // pred_region
        _
      $region68: #{transformer_forward.2} parent=51 // pred_fallthru
        _
      // Predicated region
      $region69: #{transformer_forward.2} parent=51 // pred_check
        %p2474 = pneg %p227
      $region70: #{transformer_forward.2} parent=51 // pred_check_branch
        %2476 = sbr.rel (%p2474) target = $region72
      $region71: #{transformer_forward.2} parent=51 // pred_region
        _
      $region72: #{transformer_forward.2} parent=51 // pred_fallthru
        _
      // Predicated region
      $region73: #{transformer_forward.2} parent=51 // pred_check
        %p2477 = pneg %p248
      $region74: #{transformer_forward.2} parent=51 // pred_check_branch
        %2479 = sbr.rel (%p2477) target = $region76
      $region75: #{transformer_forward.2} parent=51 // pred_region
        _
      $region76: #{transformer_forward.2} parent=51 // pred_fallthru
        _
    $region52: #{transformer_forward.2} parent=5 // pred_fallthru
      _
    %p2480 = scmp.le.s32.totalorder 2, %s16
    // Predicated region
    $region77: #{transformer_forward.2} parent=5 // pred_check
      %p2481 = pneg %p2480
    $region78: #{transformer_forward.2} parent=5 // pred_check_branch
      %2483 = sbr.rel (%p2481) target = $region80
    $region79: #{transformer_forward.2} parent=5 // pred_region
      %s2484 = ssub.s32 %s16, 2
    $region80: #{transformer_forward.2} parent=5 // pred_fallthru
      _
  $region6: #{transformer_forward.2} parent=0 // loop_footer
    %s20 = sadd.s32 1, %s16
  $region7: #{transformer_forward.2} parent=0 // loop_footer_branch
    %15 = sbr.rel target = $region3
  $region8: #{transformer_forward.2} parent=0 // loop_exit
    _

// kernel: transformer_forward.3
$region0: #{transformer_forward.3}
  #allocation0 [shape = 'u32[]', space=smem, size = 0x4, offset = 0x4, fixed_abs, tag = 'smem constant byte address 0x4 - core index']
  #allocation1 [shape = 'u32[72,128]{1,0:T(1,128)}', space=vmem, size = 0x9000, scoped, tag = 'internal scratch']
  #allocation2 [shape = 'f32[16,32]{1,0:T(8,128)}', space=vmem, size = 0x2000, scoped, tag = 'scratch operand']
  %s0 = inlined_call_operand.vmem [shape: f32[16,32], index: 0, kind: input, shape index: {}]
  %s1 = inlined_call_operand.vmem [shape: f32[16,32], index: 1, kind: input, shape index: {}]
  %s2 = inlined_call_operand.vmem [shape: f32[8,32], index: 2, kind: input, shape index: {}]
  %s3 = inlined_call_operand.vmem [shape: f32[32,4], index: 3, kind: input, shape index: {}]
  %s4 = inlined_call_operand.vmem [shape: f32[6,32,96], index: 4, kind: input, shape index: {}]
  %s5 = inlined_call_operand.vmem [shape: f32[6,32,32], index: 5, kind: input, shape index: {}]
  %s6 = inlined_call_operand.vmem [shape: f32[6,32,32], index: 6, kind: input, shape index: {}]
  %s7 = inlined_call_operand.vmem [shape: f32[6,32,64], index: 7, kind: input, shape index: {}]
  %s8 = inlined_call_operand.vmem [shape: f32[6,32,32], index: 8, kind: input, shape index: {}]
  %s9 = inlined_call_operand.vmem [shape: f32[6,32,2048], index: 9, kind: input, shape index: {}]
  %s10 = inlined_call_operand.vmem [shape: f32[6,2048,32], index: 10, kind: input, shape index: {}]
  %s11 = inlined_call_operand.vmem [shape: f32[6,16,2048], index: 11, kind: input, shape index: {}]
  %s12 = inlined_call_operand.vmem [shape: f32[16,4], index: 12, kind: output, shape index: {}]
  %s13 = sld [smem:[#allocation0]]
  $region89: #{transformer_forward.3} parent=0
    _
  %s15 = ssub.s32 1, %s13
  %s16 = scalar_select 0, %s15, %s13
  loop: start=0, step=1, limit=8
  $region2: #{transformer_forward.3} parent=0 // loop_pre_header
    _
  $region3: #{transformer_forward.3} parent=0 // loop_header
    %s18 = sphi 0, %s22
    %p19 = scmp.ge.s32.totalorder %s18, 8
    %s26 = sphi 0, %s26
    %s28 = sphi 0, %s26
    %s29 = sphi 0, %s28
    %s43 = sphi 0, %s29
    %s47 = sphi 0, %s47
    %s49 = sphi 0, %s47
    %s50 = sphi 0, %s49
    %s64 = sphi 0, %s50
    %s68 = sphi 0, %s68
    %s70 = sphi 0, %s68
    %s71 = sphi 0, %s70
    %s85 = sphi 0, %s71
    %s89 = sphi 0, %s89
    %s91 = sphi 0, %s89
    %s92 = sphi 0, %s91
    %s106 = sphi 0, %s92
    %s112 = sphi 0, %s114
    %s115 = sphi 0, %s112
    %s116 = sphi 0, %s115
    %s132 = sphi 0, %s116
    %s138 = sphi 0, %s140
    %s141 = sphi 0, %s138
    %s142 = sphi 0, %s141
    %s158 = sphi 0, %s142
    %s164 = sphi 0, %s166
    %s167 = sphi 0, %s164
    %s168 = sphi 0, %s167
    %s184 = sphi 0, %s168
    %s190 = sphi 0, %s192
    %s193 = sphi 0, %s190
    %s194 = sphi 0, %s193
    %s210 = sphi 0, %s194
    %s216 = sphi 0, %s218
    %s219 = sphi 0, %s216
    %s220 = sphi 0, %s219
    %s236 = sphi 0, %s220
    %s242 = sphi 0, %s244
    %s245 = sphi 0, %s242
    %s246 = sphi 0, %s245
    %s262 = sphi 0, %s246
    %s268 = sphi 0, %s270
    %s271 = sphi 0, %s268
    %s272 = sphi 0, %s271
    %s288 = sphi 0, %s272
    %s294 = sphi 0, %s296
    %s297 = sphi 0, %s294
    %s298 = sphi 0, %s297
    %s314 = sphi 0, %s298
    %s318 = sphi 0, %s318
    %s320 = sphi 0, %s318
    %s321 = sphi 0, %s320
    %s335 = sphi 0, %s321
  $region4: #{transformer_forward.3} parent=0 // loop_header_branch
    %21 = sbr.rel (%p19) target = $region8
  $region5: #{transformer_forward.3} parent=0 // loop_body
    %s23 = ssub.s32 %s18, 1
    %s24 = ssub.s32 %s18, 2
    %s25 = sadd.s32 %s18, 1
    %s27 = sadd.s32 %s26, 1
    %p30 = scmp.eq.s32.totalorder %s18, 5
    %p31 = scmp.ne.s32.totalorder %s26, %s28
    %p32 = scmp.eq.s32.totalorder %s18, 0
    %p33 = por %p31, %p32
    %p34 = scmp.ne.s32.totalorder %s26, %s28
    %p35 = scmp.eq.s32.totalorder %s23, 5
    %p36 = por %p34, %p35
    %p37 = scmp.ne.s32.totalorder %s28, %s29
    %p38 = scmp.eq.s32.totalorder %s23, 0
    %p39 = por %p37, %p38
    %p40 = scmp.ne.s32.totalorder %s28, %s29
    %p41 = scmp.eq.s32.totalorder %s24, 5
    %p42 = por %p40, %p41
    %p44 = scmp.ne.s32.totalorder %s29, %s43
    %p45 = scmp.eq.s32.totalorder %s24, 0
    %p46 = por %p44, %p45
    %s48 = sadd.s32 %s47, 1
    %p51 = scmp.eq.s32.totalorder %s18, 5
    %p52 = scmp.ne.s32.totalorder %s47, %s49
    %p53 = scmp.eq.s32.totalorder %s18, 0
    %p54 = por %p52, %p53
    %p55 = scmp.ne.s32.totalorder %s47, %s49
    %p56 = scmp.eq.s32.totalorder %s23, 5
    %p57 = por %p55, %p56
    %p58 = scmp.ne.s32.totalorder %s49, %s50
    %p59 = scmp.eq.s32.totalorder %s23, 0
    %p60 = por %p58, %p59
    %p61 = scmp.ne.s32.totalorder %s49, %s50
    %p62 = scmp.eq.s32.totalorder %s24, 5
    %p63 = por %p61, %p62
    %p65 = scmp.ne.s32.totalorder %s50, %s64
    %p66 = scmp.eq.s32.totalorder %s24, 0
    %p67 = por %p65, %p66
    %s69 = sadd.s32 %s68, 1
    %p72 = scmp.eq.s32.totalorder %s18, 5
    %p73 = scmp.ne.s32.totalorder %s68, %s70
    %p74 = scmp.eq.s32.totalorder %s18, 0
    %p75 = por %p73, %p74
    %p76 = scmp.ne.s32.totalorder %s68, %s70
    %p77 = scmp.eq.s32.totalorder %s23, 5
    %p78 = por %p76, %p77
    %p79 = scmp.ne.s32.totalorder %s70, %s71
    %p80 = scmp.eq.s32.totalorder %s23, 0
    %p81 = por %p79, %p80
    %p82 = scmp.ne.s32.totalorder %s70, %s71
    %p83 = scmp.eq.s32.totalorder %s24, 5
    %p84 = por %p82, %p83
    %p86 = scmp.ne.s32.totalorder %s71, %s85
    %p87 = scmp.eq.s32.totalorder %s24, 0
    %p88 = por %p86, %p87
    %s90 = sadd.s32 %s89, 1
    %p93 = scmp.eq.s32.totalorder %s18, 5
    %p94 = scmp.ne.s32.totalorder %s89, %s91
    %p95 = scmp.eq.s32.totalorder %s18, 0
    %p96 = por %p94, %p95
    %p97 = scmp.ne.s32.totalorder %s89, %s91
    %p98 = scmp.eq.s32.totalorder %s23, 5
    %p99 = por %p97, %p98
    %p100 = scmp.ne.s32.totalorder %s91, %s92
    %p101 = scmp.eq.s32.totalorder %s23, 0
    %p102 = por %p100, %p101
    %p103 = scmp.ne.s32.totalorder %s91, %s92
    %p104 = scmp.eq.s32.totalorder %s24, 5
    %p105 = por %p103, %p104
    %p107 = scmp.ne.s32.totalorder %s92, %s106
    %p108 = scmp.eq.s32.totalorder %s24, 0
    %p109 = por %p107, %p108
    %s110 = ssub.s32 %s18, %s25
    %p111 = scmp.eq.s32.totalorder %s110, 0
    %s113 = sadd.s32 %s112, 1
    %s114 = scalar_select %p111, %s112, %s113
    %p117 = pneg %p111
    %p118 = scmp.eq.s32.totalorder %s18, 5
    %p119 = por %p117, %p118
    %p120 = scmp.ne.s32.totalorder %s112, %s115
    %p121 = scmp.eq.s32.totalorder %s18, 0
    %p122 = por %p120, %p121
    %p123 = scmp.ne.s32.totalorder %s112, %s115
    %p124 = scmp.eq.s32.totalorder %s23, 5
    %p125 = por %p123, %p124
    %p126 = scmp.ne.s32.totalorder %s115, %s116
    %p127 = scmp.eq.s32.totalorder %s23, 0
    %p128 = por %p126, %p127
    %p129 = scmp.ne.s32.totalorder %s115, %s116
    %p130 = scmp.eq.s32.totalorder %s24, 5
    %p131 = por %p129, %p130
    %p133 = scmp.ne.s32.totalorder %s116, %s132
    %p134 = scmp.eq.s32.totalorder %s24, 0
    %p135 = por %p133, %p134
    %s136 = ssub.s32 %s18, %s25
    %p137 = scmp.eq.s32.totalorder %s136, 0
    %s139 = sadd.s32 %s138, 1
    %s140 = scalar_select %p137, %s138, %s139
    %p143 = pneg %p137
    %p144 = scmp.eq.s32.totalorder %s18, 5
    %p145 = por %p143, %p144
    %p146 = scmp.ne.s32.totalorder %s138, %s141
    %p147 = scmp.eq.s32.totalorder %s18, 0
    %p148 = por %p146, %p147
    %p149 = scmp.ne.s32.totalorder %s138, %s141
    %p150 = scmp.eq.s32.totalorder %s23, 5
    %p151 = por %p149, %p150
    %p152 = scmp.ne.s32.totalorder %s141, %s142
    %p153 = scmp.eq.s32.totalorder %s23, 0
    %p154 = por %p152, %p153
    %p155 = scmp.ne.s32.totalorder %s141, %s142
    %p156 = scmp.eq.s32.totalorder %s24, 5
    %p157 = por %p155, %p156
    %p159 = scmp.ne.s32.totalorder %s142, %s158
    %p160 = scmp.eq.s32.totalorder %s24, 0
    %p161 = por %p159, %p160
    %s162 = ssub.s32 %s18, %s25
    %p163 = scmp.eq.s32.totalorder %s162, 0
    %s165 = sadd.s32 %s164, 1
    %s166 = scalar_select %p163, %s164, %s165
    %p169 = pneg %p163
    %p170 = scmp.eq.s32.totalorder %s18, 5
    %p171 = por %p169, %p170
    %p172 = scmp.ne.s32.totalorder %s164, %s167
    %p173 = scmp.eq.s32.totalorder %s18, 0
    %p174 = por %p172, %p173
    %p175 = scmp.ne.s32.totalorder %s164, %s167
    %p176 = scmp.eq.s32.totalorder %s23, 5
    %p177 = por %p175, %p176
    %p178 = scmp.ne.s32.totalorder %s167, %s168
    %p179 = scmp.eq.s32.totalorder %s23, 0
    %p180 = por %p178, %p179
    %p181 = scmp.ne.s32.totalorder %s167, %s168
    %p182 = scmp.eq.s32.totalorder %s24, 5
    %p183 = por %p181, %p182
    %p185 = scmp.ne.s32.totalorder %s168, %s184
    %p186 = scmp.eq.s32.totalorder %s24, 0
    %p187 = por %p185, %p186
    %s188 = ssub.s32 %s18, %s25
    %p189 = scmp.eq.s32.totalorder %s188, 0
    %s191 = sadd.s32 %s190, 1
    %s192 = scalar_select %p189, %s190, %s191
    %p195 = pneg %p189
    %p196 = scmp.eq.s32.totalorder %s18, 5
    %p197 = por %p195, %p196
    %p198 = scmp.ne.s32.totalorder %s190, %s193
    %p199 = scmp.eq.s32.totalorder %s18, 0
    %p200 = por %p198, %p199
    %p201 = scmp.ne.s32.totalorder %s190, %s193
    %p202 = scmp.eq.s32.totalorder %s23, 5
    %p203 = por %p201, %p202
    %p204 = scmp.ne.s32.totalorder %s193, %s194
    %p205 = scmp.eq.s32.totalorder %s23, 0
    %p206 = por %p204, %p205
    %p207 = scmp.ne.s32.totalorder %s193, %s194
    %p208 = scmp.eq.s32.totalorder %s24, 5
    %p209 = por %p207, %p208
    %p211 = scmp.ne.s32.totalorder %s194, %s210
    %p212 = scmp.eq.s32.totalorder %s24, 0
    %p213 = por %p211, %p212
    %s214 = ssub.s32 %s18, %s25
    %p215 = scmp.eq.s32.totalorder %s214, 0
    %s217 = sadd.s32 %s216, 1
    %s218 = scalar_select %p215, %s216, %s217
    %p221 = pneg %p215
    %p222 = scmp.eq.s32.totalorder %s18, 5
    %p223 = por %p221, %p222
    %p224 = scmp.ne.s32.totalorder %s216, %s219
    %p225 = scmp.eq.s32.totalorder %s18, 0
    %p226 = por %p224, %p225
    %p227 = scmp.ne.s32.totalorder %s216, %s219
    %p228 = scmp.eq.s32.totalorder %s23, 5
    %p229 = por %p227, %p228
    %p230 = scmp.ne.s32.totalorder %s219, %s220
    %p231 = scmp.eq.s32.totalorder %s23, 0
    %p232 = por %p230, %p231
    %p233 = scmp.ne.s32.totalorder %s219, %s220
    %p234 = scmp.eq.s32.totalorder %s24, 5
    %p235 = por %p233, %p234
    %p237 = scmp.ne.s32.totalorder %s220, %s236
    %p238 = scmp.eq.s32.totalorder %s24, 0
    %p239 = por %p237, %p238
    %s240 = ssub.s32 %s18, %s25
    %p241 = scmp.eq.s32.totalorder %s240, 0
    %s243 = sadd.s32 %s242, 1
    %s244 = scalar_select %p241, %s242, %s243
    %p247 = pneg %p241
    %p248 = scmp.eq.s32.totalorder %s18, 5
    %p249 = por %p247, %p248
    %p250 = scmp.ne.s32.totalorder %s242, %s245
    %p251 = scmp.eq.s32.totalorder %s18, 0
    %p252 = por %p250, %p251
    %p253 = scmp.ne.s32.totalorder %s242, %s245
    %p254 = scmp.eq.s32.totalorder %s23, 5
    %p255 = por %p253, %p254
    %p256 = scmp.ne.s32.totalorder %s245, %s246
    %p257 = scmp.eq.s32.totalorder %s23, 0
    %p258 = por %p256, %p257
    %p259 = scmp.ne.s32.totalorder %s245, %s246
    %p260 = scmp.eq.s32.totalorder %s24, 5
    %p261 = por %p259, %p260
    %p263 = scmp.ne.s32.totalorder %s246, %s262
    %p264 = scmp.eq.s32.totalorder %s24, 0
    %p265 = por %p263, %p264
    %s266 = ssub.s32 %s18, %s25
    %p267 = scmp.eq.s32.totalorder %s266, 0
    %s269 = sadd.s32 %s268, 1
    %s270 = scalar_select %p267, %s268, %s269
    %p273 = pneg %p267
    %p274 = scmp.eq.s32.totalorder %s18, 5
    %p275 = por %p273, %p274
    %p276 = scmp.ne.s32.totalorder %s268, %s271
    %p277 = scmp.eq.s32.totalorder %s18, 0
    %p278 = por %p276, %p277
    %p279 = scmp.ne.s32.totalorder %s268, %s271
    %p280 = scmp.eq.s32.totalorder %s23, 5
    %p281 = por %p279, %p280
    %p282 = scmp.ne.s32.totalorder %s271, %s272
    %p283 = scmp.eq.s32.totalorder %s23, 0
    %p284 = por %p282, %p283
    %p285 = scmp.ne.s32.totalorder %s271, %s272
    %p286 = scmp.eq.s32.totalorder %s24, 5
    %p287 = por %p285, %p286
    %p289 = scmp.ne.s32.totalorder %s272, %s288
    %p290 = scmp.eq.s32.totalorder %s24, 0
    %p291 = por %p289, %p290
    %s292 = ssub.s32 %s18, %s25
    %p293 = scmp.eq.s32.totalorder %s292, 0
    %s295 = sadd.s32 %s294, 1
    %s296 = scalar_select %p293, %s294, %s295
    %p299 = pneg %p293
    %p300 = scmp.eq.s32.totalorder %s18, 5
    %p301 = por %p299, %p300
    %p302 = scmp.ne.s32.totalorder %s294, %s297
    %p303 = scmp.eq.s32.totalorder %s18, 0
    %p304 = por %p302, %p303
    %p305 = scmp.ne.s32.totalorder %s294, %s297
    %p306 = scmp.eq.s32.totalorder %s23, 5
    %p307 = por %p305, %p306
    %p308 = scmp.ne.s32.totalorder %s297, %s298
    %p309 = scmp.eq.s32.totalorder %s23, 0
    %p310 = por %p308, %p309
    %p311 = scmp.ne.s32.totalorder %s297, %s298
    %p312 = scmp.eq.s32.totalorder %s24, 5
    %p313 = por %p311, %p312
    %p315 = scmp.ne.s32.totalorder %s298, %s314
    %p316 = scmp.eq.s32.totalorder %s24, 0
    %p317 = por %p315, %p316
    %s319 = sadd.s32 %s318, 1
    %p322 = scmp.eq.s32.totalorder %s18, 5
    %p323 = scmp.ne.s32.totalorder %s318, %s320
    %p324 = scmp.eq.s32.totalorder %s18, 0
    %p325 = por %p323, %p324
    %p326 = scmp.ne.s32.totalorder %s318, %s320
    %p327 = scmp.eq.s32.totalorder %s23, 5
    %p328 = por %p326, %p327
    %p329 = scmp.ne.s32.totalorder %s320, %s321
    %p330 = scmp.eq.s32.totalorder %s23, 0
    %p331 = por %p329, %p330
    %p332 = scmp.ne.s32.totalorder %s320, %s321
    %p333 = scmp.eq.s32.totalorder %s24, 5
    %p334 = por %p332, %p333
    %p336 = scmp.ne.s32.totalorder %s321, %s335
    %p337 = scmp.eq.s32.totalorder %s24, 0
    %p338 = por %p336, %p337
    %p339 = scmp.le.s32.totalorder 1, %s18
    %p340 = scmp.lt.s32.totalorder %s18, 7
    %p341 = pnand %p339, %p340
    %p342 = pneg %p341
    // Predicated region
    $region9: #{transformer_forward.3} parent=5 // pred_check
      _
    $region10: #{transformer_forward.3} parent=5 // pred_check_branch
      %344 = sbr.rel (%p341) target = $region12
    $region11: #{transformer_forward.3} parent=5 // pred_region
      %s345 = ssub.s32 %s18, 1
      // Predicated region
      $region13: #{transformer_forward.3} parent=11 // pred_check
        %p346 = pneg %p39
      $region14: #{transformer_forward.3} parent=11 // pred_check_branch
        %348 = sbr.rel (%p346) target = $region16
      $region15: #{transformer_forward.3} parent=11 // pred_region
        _
      $region16: #{transformer_forward.3} parent=11 // pred_fallthru
        _
      // Predicated region
      $region17: #{transformer_forward.3} parent=11 // pred_check
        %p349 = pneg %p60
      $region18: #{transformer_forward.3} parent=11 // pred_check_branch
        %351 = sbr.rel (%p349) target = $region20
      $region19: #{transformer_forward.3} parent=11 // pred_region
        _
      $region20: #{transformer_forward.3} parent=11 // pred_fallthru
        _
      // Predicated region
      $region21: #{transformer_forward.3} parent=11 // pred_check
        %p352 = pneg %p81
      $region22: #{transformer_forward.3} parent=11 // pred_check_branch
        %354 = sbr.rel (%p352) target = $region24
      $region23: #{transformer_forward.3} parent=11 // pred_region
        _
      $region24: #{transformer_forward.3} parent=11 // pred_fallthru
        _
      // Predicated region
      $region25: #{transformer_forward.3} parent=11 // pred_check
        %p355 = pneg %p102
      $region26: #{transformer_forward.3} parent=11 // pred_check_branch
        %357 = sbr.rel (%p355) target = $region28
      $region27: #{transformer_forward.3} parent=11 // pred_region
        _
      $region28: #{transformer_forward.3} parent=11 // pred_fallthru
        _
    $region12: #{transformer_forward.3} parent=5 // pred_fallthru
      _
    %p358 = scmp.lt.s32.totalorder %s18, 6
    // Predicated region
    $region29: #{transformer_forward.3} parent=5 // pred_check
      %p359 = pneg %p358
    $region30: #{transformer_forward.3} parent=5 // pred_check_branch
      %361 = sbr.rel (%p359) target = $region32
    $region31: #{transformer_forward.3} parent=5 // pred_region
      // Predicated region
      $region33: #{transformer_forward.3} parent=31 // pred_check
        %p362 = pneg %p122
      $region34: #{transformer_forward.3} parent=31 // pred_check_branch
        %364 = sbr.rel (%p362) target = $region36
      $region35: #{transformer_forward.3} parent=31 // pred_region
        %p365 = scmp.lt.s32.totalorder %s18, 5
        %s366 = scalar_select %p365, %s18, 5
        %s367 = smul.addr %s366, 4
        %s368 = smul.addr %s367, 8
        %s369 = scalar_lea.vmem %s4, %s368
      $region36: #{transformer_forward.3} parent=31 // pred_fallthru
        _
      // Predicated region
      $region37: #{transformer_forward.3} parent=31 // pred_check
        %p370 = pneg %p148
      $region38: #{transformer_forward.3} parent=31 // pred_check_branch
        %372 = sbr.rel (%p370) target = $region40
      $region39: #{transformer_forward.3} parent=31 // pred_region
        %p373 = scmp.lt.s32.totalorder %s18, 5
        %s374 = scalar_select %p373, %s18, 5
        %s375 = smul.addr %s374, 4
        %s376 = smul.addr %s375, 8
        %s377 = scalar_lea.vmem %s5, %s376
      $region40: #{transformer_forward.3} parent=31 // pred_fallthru
        _
      // Predicated region
      $region41: #{transformer_forward.3} parent=31 // pred_check
        %p378 = pneg %p174
      $region42: #{transformer_forward.3} parent=31 // pred_check_branch
        %380 = sbr.rel (%p378) target = $region44
      $region43: #{transformer_forward.3} parent=31 // pred_region
        %p381 = scmp.lt.s32.totalorder %s18, 5
        %s382 = scalar_select %p381, %s18, 5
        %s383 = smul.addr %s382, 4
        %s384 = smul.addr %s383, 8
        %s385 = scalar_lea.vmem %s6, %s384
      $region44: #{transformer_forward.3} parent=31 // pred_fallthru
        _
      // Predicated region
      $region45: #{transformer_forward.3} parent=31 // pred_check
        %p386 = pneg %p200
      $region46: #{transformer_forward.3} parent=31 // pred_check_branch
        %388 = sbr.rel (%p386) target = $region48
      $region47: #{transformer_forward.3} parent=31 // pred_region
        %p389 = scmp.lt.s32.totalorder %s18, 5
        %s390 = scalar_select %p389, %s18, 5
        %s391 = smul.addr %s390, 4
        %s392 = smul.addr %s391, 8
        %s393 = scalar_lea.vmem %s7, %s392
      $region48: #{transformer_forward.3} parent=31 // pred_fallthru
        _
      // Predicated region
      $region49: #{transformer_forward.3} parent=31 // pred_check
        %p394 = pneg %p226
      $region50: #{transformer_forward.3} parent=31 // pred_check_branch
        %396 = sbr.rel (%p394) target = $region52
      $region51: #{transformer_forward.3} parent=31 // pred_region
        %p397 = scmp.lt.s32.totalorder %s18, 5
        %s398 = scalar_select %p397, %s18, 5
        %s399 = smul.addr %s398, 4
        %s400 = smul.addr %s399, 8
        %s401 = scalar_lea.vmem %s8, %s400
      $region52: #{transformer_forward.3} parent=31 // pred_fallthru
        _
      // Predicated region
      $region53: #{transformer_forward.3} parent=31 // pred_check
        %p402 = pneg %p252
      $region54: #{transformer_forward.3} parent=31 // pred_check_branch
        %404 = sbr.rel (%p402) target = $region56
      $region55: #{transformer_forward.3} parent=31 // pred_region
        %p405 = scmp.lt.s32.totalorder %s18, 5
        %s406 = scalar_select %p405, %s18, 5
        %s407 = smul.addr %s406, 64
        %s408 = smul.addr %s407, 8
        %s409 = scalar_lea.vmem %s9, %s408
      $region56: #{transformer_forward.3} parent=31 // pred_fallthru
        _
      // Predicated region
      $region57: #{transformer_forward.3} parent=31 // pred_check
        %p410 = pneg %p278
      $region58: #{transformer_forward.3} parent=31 // pred_check_branch
        %412 = sbr.rel (%p410) target = $region60
      $region59: #{transformer_forward.3} parent=31 // pred_region
        %p413 = scmp.lt.s32.totalorder %s18, 5
        %s414 = scalar_select %p413, %s18, 5
        %s415 = smul.addr %s414, 256
        %s416 = smul.addr %s415, 8
        %s417 = scalar_lea.vmem %s10, %s416
      $region60: #{transformer_forward.3} parent=31 // pred_fallthru
        _
      // Predicated region
      $region61: #{transformer_forward.3} parent=31 // pred_check
        %p418 = pneg %p304
      $region62: #{transformer_forward.3} parent=31 // pred_check_branch
        %420 = sbr.rel (%p418) target = $region64
      $region63: #{transformer_forward.3} parent=31 // pred_region
        %p421 = scmp.lt.s32.totalorder %s18, 5
        %s422 = scalar_select %p421, %s18, 5
        %s423 = smul.addr %s422, 32
        %s424 = smul.addr %s423, 8
        %s425 = scalar_lea.vmem %s11, %s424
      $region64: #{transformer_forward.3} parent=31 // pred_fallthru
        _
    $region32: #{transformer_forward.3} parent=5 // pred_fallthru
      _
    %p426 = scmp.le.s32.totalorder 1, %s18
    %p427 = scmp.lt.s32.totalorder %s18, 7
    %p428 = pnand %p426, %p427
    %p429 = pneg %p428
    // Predicated region
    $region65: #{transformer_forward.3} parent=5 // pred_check
      _
    $region66: #{transformer_forward.3} parent=5 // pred_check_branch
      %431 = sbr.rel (%p428) target = $region68
    $region67: #{transformer_forward.3} parent=5 // pred_region
      %s432 = ssub.s32 %s18, 1
      %p433 = pneg %p39
      %p434 = pneg %p36
      %p435 = pneg %p60
      %p436 = pneg %p57
      %p437 = pneg %p81
      %p438 = pneg %p78
      %p439 = pneg %p102
      %p440 = pneg %p99
      %p441 = scmp.lt.s32.totalorder %s23, 5
      %s442 = scalar_select %p441, %s23, 5
      %s443 = smul.addr %s442, 4
      %s444 = smul.addr %s443, 8
      %s445 = scalar_lea.vmem %s4, %s444
      %p446 = pneg %p128
      %p447 = pneg %p125
      %p448 = scmp.lt.s32.totalorder %s23, 5
      %s449 = scalar_select %p448, %s23, 5
      %s450 = smul.addr %s449, 4
      %s451 = smul.addr %s450, 8
      %s452 = scalar_lea.vmem %s5, %s451
      %p453 = pneg %p154
      %p454 = pneg %p151
      %p455 = scmp.lt.s32.totalorder %s23, 5
      %s456 = scalar_select %p455, %s23, 5
      %s457 = smul.addr %s456, 4
      %s458 = smul.addr %s457, 8
      %s459 = scalar_lea.vmem %s6, %s458
      %p460 = pneg %p180
      %p461 = pneg %p177
      %p462 = scmp.lt.s32.totalorder %s23, 5
      %s463 = scalar_select %p462, %s23, 5
      %s464 = smul.addr %s463, 4
      %s465 = smul.addr %s464, 8
      %s466 = scalar_lea.vmem %s7, %s465
      %p467 = pneg %p206
      %p468 = pneg %p203
      %p469 = scmp.lt.s32.totalorder %s23, 5
      %s470 = scalar_select %p469, %s23, 5
      %s471 = smul.addr %s470, 4
      %s472 = smul.addr %s471, 8
      %s473 = scalar_lea.vmem %s8, %s472
      %p474 = pneg %p232
      %p475 = pneg %p229
      %p476 = scmp.lt.s32.totalorder %s23, 5
      %s477 = scalar_select %p476, %s23, 5
      %s478 = smul.addr %s477, 64
      %s479 = smul.addr %s478, 8
      %s480 = scalar_lea.vmem %s9, %s479
      %p481 = pneg %p258
      %p482 = pneg %p255
      %p483 = scmp.lt.s32.totalorder %s23, 5
      %s484 = scalar_select %p483, %s23, 5
      %s485 = smul.addr %s484, 256
      %s486 = smul.addr %s485, 8
      %s487 = scalar_lea.vmem %s10, %s486
      %p488 = pneg %p284
      %p489 = pneg %p281
      %p490 = scmp.lt.s32.totalorder %s23, 5
      %s491 = scalar_select %p490, %s23, 5
      %s492 = smul.addr %s491, 32
      %s493 = smul.addr %s492, 8
      %s494 = scalar_lea.vmem %s11, %s493
      %p495 = pneg %p310
      %p496 = pneg %p307
      %p497 = pneg %p331
      %p498 = pneg %p328
      %p499 = scmp.lt.s32.totalorder %s23, 5
      %s500 = scalar_select %p499, %s23, 5
      %s501 = smul.addr %s500, 4
      %s502 = smul.addr %s501, 8
      %s503 = scalar_lea.vmem %s4, %s502
      %p504 = scmp.lt.s32.totalorder %s23, 5
      %s505 = scalar_select %p504, %s23, 5
      %s506 = smul.addr %s505, 4
      %s507 = smul.addr %s506, 8
      %s508 = scalar_lea.vmem %s5, %s507
      %p509 = scmp.lt.s32.totalorder %s23, 5
      %s510 = scalar_select %p509, %s23, 5
      %s511 = smul.addr %s510, 4
      %s512 = smul.addr %s511, 8
      %s513 = scalar_lea.vmem %s6, %s512
      %p514 = scmp.lt.s32.totalorder %s23, 5
      %s515 = scalar_select %p514, %s23, 5
      %s516 = smul.addr %s515, 4
      %s517 = smul.addr %s516, 8
      %s518 = scalar_lea.vmem %s7, %s517
      %p519 = scmp.lt.s32.totalorder %s23, 5
      %s520 = scalar_select %p519, %s23, 5
      %s521 = smul.addr %s520, 4
      %s522 = smul.addr %s521, 8
      %s523 = scalar_lea.vmem %s8, %s522
      %p524 = scmp.lt.s32.totalorder %s23, 5
      %s525 = scalar_select %p524, %s23, 5
      %s526 = smul.addr %s525, 64
      %s527 = smul.addr %s526, 8
      %s528 = scalar_lea.vmem %s9, %s527
      %p529 = scmp.lt.s32.totalorder %s23, 5
      %s530 = scalar_select %p529, %s23, 5
      %s531 = smul.addr %s530, 256
      %s532 = smul.addr %s531, 8
      %s533 = scalar_lea.vmem %s10, %s532
      %p534 = scmp.lt.s32.totalorder %s23, 5
      %s535 = scalar_select %p534, %s23, 5
      %s536 = smul.addr %s535, 32
      %s537 = smul.addr %s536, 8
      %s538 = scalar_lea.vmem %s11, %s537
      %p539 = scmp.eq.s32.totalorder %s23, 0
      // Predicated region
      $region69: #{transformer_forward.3} parent=67 // pred_check
        %p540 = pneg %p539
      $region70: #{transformer_forward.3} parent=67 // pred_check_branch
        %542 = sbr.rel (%p540) target = $region72
      $region71: #{transformer_forward.3} parent=67 // pred_region
        %v543 = vld [vmem:[%s0] sm:$0xff]
        %v544 = vld [vmem:[%s0 + $0x8] sm:$0xff]
        %vm545 = vcmask 261120
        %546 = vst.msk [vmem:[#allocation2] sm:$0xff] %vm545, %v543
        %547 = vst.msk [vmem:[#allocation2 + $0x8] sm:$0xff] %vm545, %v544
      $region72: #{transformer_forward.3} parent=67 // pred_fallthru
        _
      %v548 = vld [vmem:[#allocation2] sm:$0xff]
      %v549 = vld [vmem:[#allocation2 + $0x8] sm:$0xff]
      %v550 = vld [vmem:[%s1] sm:$0xff]
      %v551 = vld [vmem:[%s1 + $0x8] sm:$0xff]
      %v552 = vld [vmem:[%s538] sm:$0xff]
      %v553 = vld [vmem:[%s538 + $0x80] sm:$0xff]
      %v554 = vld [vmem:[%s538 + $0x88] sm:$0xff]
      %v555 = vld [vmem:[%s538 + $0x90] sm:$0xff]
      %v556 = vld [vmem:[%s538 + $0x98] sm:$0xff]
      %v557 = vld [vmem:[%s538 + $0xa0] sm:$0xff]
      %v558 = vld [vmem:[%s538 + $0xa8] sm:$0xff]
      %v559 = vld [vmem:[%s538 + $0xb0] sm:$0xff]
      %v560 = vld [vmem:[%s538 + $0xb8] sm:$0xff]
      %v561 = vld [vmem:[%s538 + $0xc0] sm:$0xff]
      %v562 = vld [vmem:[%s538 + $0xc8] sm:$0xff]
      %v563 = vld [vmem:[%s538 + $0xd0] sm:$0xff]
      %v564 = vld [vmem:[%s538 + $0xd8] sm:$0xff]
      %v565 = vld [vmem:[%s538 + $0xe0] sm:$0xff]
      %v566 = vld [vmem:[%s538 + $0xe8] sm:$0xff]
      %v567 = vld [vmem:[%s538 + $0xf0] sm:$0xff]
      %v568 = vld [vmem:[%s538 + $0xf8] sm:$0xff]
      %v569 = vld [vmem:[%s503] sm:$0xff]
      %v570 = vld [vmem:[%s503 + $0x8] sm:$0xff]
      %v571 = vld [vmem:[%s503 + $0x10] sm:$0xff]
      %v572 = vld [vmem:[%s503 + $0x18] sm:$0xff]
      %v573 = vperm.slane %v552, 0
      %vm574 = vcmask 261120
      %v576 = vsel %vm574, %v548, 0
      %v579 = vsel %vm574, %v549, 0
      %581 = vmatpush.msra.mxu0 0.0
      %582 = vmatpush.msra.mxu0 0.0
      %583 = vmatpush.msra.mxu0 0.0
      %584 = vmatpush.msra.mxu0 0.0
      %585 = vmatpush.msra.mxu0 0.0
      %586 = vmatpush.msra.mxu0 0.0
      %587 = vmatpush.msra.mxu0 0.0
      %588 = vmatpush.msra.mxu0 0.0
      %589 = vmatpush.msra.mxu0 0.0
      %590 = vmatpush.msra.mxu0 0.0
      %591 = vmatpush.msra.mxu0 0.0
      %592 = vmatpush.msra.mxu0 0.0
      %593 = vmatpush.msra.mxu0 %v572
      %594 = vmatpush.msra.mxu0 %v571
      %595 = vmatpush.msra.mxu0 %v570
      %596 = vmatpush.msra.mxu0 %v569
      %597 = vmatmul.f32.gmra.mxu0 %v576
      %v598 = vpop.f32.mrf.mxu0
      %v599 = vadd.f32 %v573, %v598
      %600 = vmatmul.f32.gmra.mxu0 %v579
      %v601 = vpop.f32.mrf.mxu0
      %v602 = vadd.f32 %v573, %v601
      %603 = vdwg.mxu0
      %v604 = vld [vmem:[%s508] sm:$0xff]
      %v605 = vld [vmem:[%s508 + $0x8] sm:$0xff]
      %v606 = vld [vmem:[%s508 + $0x10] sm:$0xff]
      %v607 = vld [vmem:[%s508 + $0x18] sm:$0xff]
      %609 = vrot.lane.b32.xlu0 %v599, 96
      %v610 = vpop.permute.xlu0 %609
      %vm611 = vcmask 64512
      %v612 = vsel %vm611, %v599, 0
      %v614 = vsel %vm611, %v610, 0
      %616 = vmatpush.xpose.msra.mxu0 0.0
      %617 = vmatpush.xpose.msra.mxu0 0.0
      %618 = vmatpush.xpose.msra.mxu0 0.0
      %619 = vmatpush.xpose.msra.mxu0 0.0
      %620 = vmatpush.xpose.msra.mxu0 0.0
      %621 = vmatpush.xpose.msra.mxu0 0.0
      %622 = vmatpush.xpose.msra.mxu0 0.0
      %623 = vmatpush.xpose.msra.mxu0 0.0
      %624 = vmatpush.xpose.msra.mxu0 0.0
      %625 = vmatpush.xpose.msra.mxu0 0.0
      %626 = vmatpush.xpose.msra.mxu0 0.0
      %627 = vmatpush.xpose.msra.mxu0 0.0
      %628 = vmatpush.xpose.msra.mxu0 0.0
      %629 = vmatpush.xpose.msra.mxu0 0.0
      %630 = vmatpush.xpose.msra.mxu0 0.0
      %631 = vmatpush.xpose.msra.mxu0 %v614
      %632 = vmatmul.f32.gmra.mxu0 %v612
      %v633 = vpop.f32.mrf.mxu0
      %v634 = vadd.f32 0.0, %v633
      %635 = vdwg.mxu0
      %636 = vrot.lane.b32.xlu0 %v599, 120
      %v637 = vpop.permute.xlu0 %636
      %638 = vrot.lane.b32.xlu0 %v599, 88
      %v639 = vpop.permute.xlu0 %638
      %v640 = vsel %vm611, %v637, 0
      %v642 = vsel %vm611, %v639, 0
      %644 = vmatpush.xpose.msra.mxu0 0.0
      %645 = vmatpush.xpose.msra.mxu0 0.0
      %646 = vmatpush.xpose.msra.mxu0 0.0
      %647 = vmatpush.xpose.msra.mxu0 0.0
      %648 = vmatpush.xpose.msra.mxu0 0.0
      %649 = vmatpush.xpose.msra.mxu0 0.0
      %650 = vmatpush.xpose.msra.mxu0 0.0
      %651 = vmatpush.xpose.msra.mxu0 0.0
      %652 = vmatpush.xpose.msra.mxu0 0.0
      %653 = vmatpush.xpose.msra.mxu0 0.0
      %654 = vmatpush.xpose.msra.mxu0 0.0
      %655 = vmatpush.xpose.msra.mxu0 0.0
      %656 = vmatpush.xpose.msra.mxu0 0.0
      %657 = vmatpush.xpose.msra.mxu0 0.0
      %658 = vmatpush.xpose.msra.mxu0 0.0
      %659 = vmatpush.xpose.msra.mxu0 %v642
      %660 = vmatmul.f32.gmra.mxu0 %v640
      %v661 = vpop.f32.mrf.mxu0
      %v662 = vadd.f32 0.0, %v661
      %663 = vdwg.mxu0
      %664 = vrot.lane.b32.xlu0 %v599, 112
      %v665 = vpop.permute.xlu0 %664
      %666 = vrot.lane.b32.xlu0 %v599, 80
      %v667 = vpop.permute.xlu0 %666
      %v668 = vsel %vm611, %v665, 0
      %v670 = vsel %vm611, %v667, 0
      %672 = vmatpush.xpose.msra.mxu0 0.0
      %673 = vmatpush.xpose.msra.mxu0 0.0
      %674 = vmatpush.xpose.msra.mxu0 0.0
      %675 = vmatpush.xpose.msra.mxu0 0.0
      %676 = vmatpush.xpose.msra.mxu0 0.0
      %677 = vmatpush.xpose.msra.mxu0 0.0
      %678 = vmatpush.xpose.msra.mxu0 0.0
      %679 = vmatpush.xpose.msra.mxu0 0.0
      %680 = vmatpush.xpose.msra.mxu0 0.0
      %681 = vmatpush.xpose.msra.mxu0 0.0
      %682 = vmatpush.xpose.msra.mxu0 0.0
      %683 = vmatpush.xpose.msra.mxu0 0.0
      %684 = vmatpush.xpose.msra.mxu0 0.0
      %685 = vmatpush.xpose.msra.mxu0 0.0
      %686 = vmatpush.xpose.msra.mxu0 0.0
      %687 = vmatpush.xpose.msra.mxu0 %v670
      %688 = vmatmul.f32.gmra.mxu0 %v668
      %v689 = vpop.f32.mrf.mxu0
      %v690 = vadd.f32 0.0, %v689
      %691 = vdwg.mxu0
      %692 = vrot.lane.b32.xlu0 %v599, 104
      %v693 = vpop.permute.xlu0 %692
      %694 = vrot.lane.b32.xlu0 %v599, 72
      %v695 = vpop.permute.xlu0 %694
      %v696 = vsel %vm611, %v693, 0
      %v698 = vsel %vm611, %v695, 0
      %700 = vmatpush.xpose.msra.mxu0 0.0
      %701 = vmatpush.xpose.msra.mxu0 0.0
      %702 = vmatpush.xpose.msra.mxu0 0.0
      %703 = vmatpush.xpose.msra.mxu0 0.0
      %704 = vmatpush.xpose.msra.mxu0 0.0
      %705 = vmatpush.xpose.msra.mxu0 0.0
      %706 = vmatpush.xpose.msra.mxu0 0.0
      %707 = vmatpush.xpose.msra.mxu0 0.0
      %708 = vmatpush.xpose.msra.mxu0 0.0
      %709 = vmatpush.xpose.msra.mxu0 0.0
      %710 = vmatpush.xpose.msra.mxu0 0.0
      %711 = vmatpush.xpose.msra.mxu0 0.0
      %712 = vmatpush.xpose.msra.mxu0 0.0
      %713 = vmatpush.xpose.msra.mxu0 0.0
      %714 = vmatpush.xpose.msra.mxu0 0.0
      %715 = vmatpush.xpose.msra.mxu0 %v698
      %716 = vmatmul.f32.gmra.mxu0 %v696
      %v717 = vpop.f32.mrf.mxu0
      %v718 = vadd.f32 0.0, %v717
      %719 = vdwg.mxu0
      %721 = vrot.lane.b32.xlu0 %v602, 96
      %v722 = vpop.permute.xlu0 %721
      %v723 = vsel %vm611, %v602, 0
      %v725 = vsel %vm611, %v722, 0
      %727 = vmatpush.xpose.msra.mxu0 0.0
      %728 = vmatpush.xpose.msra.mxu0 0.0
      %729 = vmatpush.xpose.msra.mxu0 0.0
      %730 = vmatpush.xpose.msra.mxu0 0.0
      %731 = vmatpush.xpose.msra.mxu0 0.0
      %732 = vmatpush.xpose.msra.mxu0 0.0
      %733 = vmatpush.xpose.msra.mxu0 0.0
      %734 = vmatpush.xpose.msra.mxu0 0.0
      %735 = vmatpush.xpose.msra.mxu0 0.0
      %736 = vmatpush.xpose.msra.mxu0 0.0
      %737 = vmatpush.xpose.msra.mxu0 0.0
      %738 = vmatpush.xpose.msra.mxu0 0.0
      %739 = vmatpush.xpose.msra.mxu0 0.0
      %740 = vmatpush.xpose.msra.mxu0 0.0
      %741 = vmatpush.xpose.msra.mxu0 0.0
      %742 = vmatpush.xpose.msra.mxu0 %v725
      %743 = vmatmul.f32.gmra.mxu0 %v723
      %v744 = vpop.f32.mrf.mxu0
      %v745 = vadd.f32 0.0, %v744
      %746 = vdwg.mxu0
      %747 = vrot.lane.b32.xlu0 %v602, 120
      %v748 = vpop.permute.xlu0 %747
      %749 = vrot.lane.b32.xlu0 %v602, 88
      %v750 = vpop.permute.xlu0 %749
      %v751 = vsel %vm611, %v748, 0
      %v753 = vsel %vm611, %v750, 0
      %755 = vmatpush.xpose.msra.mxu0 0.0
      %756 = vmatpush.xpose.msra.mxu0 0.0
      %757 = vmatpush.xpose.msra.mxu0 0.0
      %758 = vmatpush.xpose.msra.mxu0 0.0
      %759 = vmatpush.xpose.msra.mxu0 0.0
      %760 = vmatpush.xpose.msra.mxu0 0.0
      %761 = vmatpush.xpose.msra.mxu0 0.0
      %762 = vmatpush.xpose.msra.mxu0 0.0
      %763 = vmatpush.xpose.msra.mxu0 0.0
      %764 = vmatpush.xpose.msra.mxu0 0.0
      %765 = vmatpush.xpose.msra.mxu0 0.0
      %766 = vmatpush.xpose.msra.mxu0 0.0
      %767 = vmatpush.xpose.msra.mxu0 0.0
      %768 = vmatpush.xpose.msra.mxu0 0.0
      %769 = vmatpush.xpose.msra.mxu0 0.0
      %770 = vmatpush.xpose.msra.mxu0 %v753
      %771 = vmatmul.f32.gmra.mxu0 %v751
      %v772 = vpop.f32.mrf.mxu0
      %v773 = vadd.f32 0.0, %v772
      %774 = vdwg.mxu0
      %775 = vrot.lane.b32.xlu0 %v602, 112
      %v776 = vpop.permute.xlu0 %775
      %777 = vrot.lane.b32.xlu0 %v602, 80
      %v778 = vpop.permute.xlu0 %777
      %v779 = vsel %vm611, %v776, 0
      %v781 = vsel %vm611, %v778, 0
      %783 = vmatpush.xpose.msra.mxu0 0.0
      %784 = vmatpush.xpose.msra.mxu0 0.0
      %785 = vmatpush.xpose.msra.mxu0 0.0
      %786 = vmatpush.xpose.msra.mxu0 0.0
      %787 = vmatpush.xpose.msra.mxu0 0.0
      %788 = vmatpush.xpose.msra.mxu0 0.0
      %789 = vmatpush.xpose.msra.mxu0 0.0
      %790 = vmatpush.xpose.msra.mxu0 0.0
      %791 = vmatpush.xpose.msra.mxu0 0.0
      %792 = vmatpush.xpose.msra.mxu0 0.0
      %793 = vmatpush.xpose.msra.mxu0 0.0
      %794 = vmatpush.xpose.msra.mxu0 0.0
      %795 = vmatpush.xpose.msra.mxu0 0.0
      %796 = vmatpush.xpose.msra.mxu0 0.0
      %797 = vmatpush.xpose.msra.mxu0 0.0
      %798 = vmatpush.xpose.msra.mxu0 %v781
      %799 = vmatmul.f32.gmra.mxu0 %v779
      %v800 = vpop.f32.mrf.mxu0
      %v801 = vadd.f32 0.0, %v800
      %802 = vdwg.mxu0
      %803 = vrot.lane.b32.xlu0 %v602, 104
      %v804 = vpop.permute.xlu0 %803
      %805 = vrot.lane.b32.xlu0 %v602, 72
      %v806 = vpop.permute.xlu0 %805
      %v807 = vsel %vm611, %v804, 0
      %v809 = vsel %vm611, %v806, 0
      %811 = vmatpush.xpose.msra.mxu0 0.0
      %812 = vmatpush.xpose.msra.mxu0 0.0
      %813 = vmatpush.xpose.msra.mxu0 0.0
      %814 = vmatpush.xpose.msra.mxu0 0.0
      %815 = vmatpush.xpose.msra.mxu0 0.0
      %816 = vmatpush.xpose.msra.mxu0 0.0
      %817 = vmatpush.xpose.msra.mxu0 0.0
      %818 = vmatpush.xpose.msra.mxu0 0.0
      %819 = vmatpush.xpose.msra.mxu0 0.0
      %820 = vmatpush.xpose.msra.mxu0 0.0
      %821 = vmatpush.xpose.msra.mxu0 0.0
      %822 = vmatpush.xpose.msra.mxu0 0.0
      %823 = vmatpush.xpose.msra.mxu0 0.0
      %824 = vmatpush.xpose.msra.mxu0 0.0
      %825 = vmatpush.xpose.msra.mxu0 0.0
      %826 = vmatpush.xpose.msra.mxu0 %v809
      %827 = vmatmul.f32.gmra.mxu0 %v807
      %v828 = vpop.f32.mrf.mxu0
      %v829 = vadd.f32 0.0, %v828
      %830 = vdwg.mxu0
      %v831 = vsel %vm611, %v634, -inf
      %832 = vmax.xlane.f32.xlu0 %v831
      %v833 = vpop.xlane.xlu0 %832
      %v834 = vsel %vm611, %v662, -inf
      %835 = vmax.xlane.f32.xlu0 %v834
      %v836 = vpop.xlane.xlu0 %835
      %v837 = vsel %vm611, %v690, -inf
      %838 = vmax.xlane.f32.xlu0 %v837
      %v839 = vpop.xlane.xlu0 %838
      %v840 = vsel %vm611, %v718, -inf
      %841 = vmax.xlane.f32.xlu0 %v840
      %v842 = vpop.xlane.xlu0 %841
      %v843 = vsel %vm611, %v745, -inf
      %844 = vmax.xlane.f32.xlu0 %v843
      %v845 = vpop.xlane.xlu0 %844
      %v846 = vsel %vm611, %v773, -inf
      %847 = vmax.xlane.f32.xlu0 %v846
      %v848 = vpop.xlane.xlu0 %847
      %v849 = vsel %vm611, %v801, -inf
      %850 = vmax.xlane.f32.xlu0 %v849
      %v851 = vpop.xlane.xlu0 %850
      %v852 = vsel %vm611, %v829, -inf
      %853 = vmax.xlane.f32.xlu0 %v852
      %v854 = vpop.xlane.xlu0 %853
      %v855 = vsub.f32 %v634, %v833
      %v856 = vsub.f32 %v662, %v836
      %v857 = vsub.f32 %v690, %v839
      %v858 = vsub.f32 %v718, %v842
      %v859 = vsub.f32 %v745, %v845
      %v860 = vsub.f32 %v773, %v848
      %v861 = vsub.f32 %v801, %v851
      %v862 = vsub.f32 %v829, %v854
      %v863 = vmul.f32 %v855, 1.442695
      %v864 = vpow.pop %v863
      %v865 = vmul.f32 %v856, 1.442695
      %v866 = vpow.pop %v865
      %v867 = vmul.f32 %v857, 1.442695
      %v868 = vpow.pop %v867
      %v869 = vmul.f32 %v858, 1.442695
      %v870 = vpow.pop %v869
      %v871 = vmul.f32 %v859, 1.442695
      %v872 = vpow.pop %v871
      %v873 = vmul.f32 %v860, 1.442695
      %v874 = vpow.pop %v873
      %v875 = vmul.f32 %v861, 1.442695
      %v876 = vpow.pop %v875
      %v877 = vmul.f32 %v862, 1.442695
      %v878 = vpow.pop %v877
      %v879 = vsel %vm611, %v864, 0.0
      %880 = vadd.xlane.f32.xlu0 %v879
      %v881 = vpop.xlane.xlu0 %880
      %v882 = vsel %vm611, %v866, 0.0
      %883 = vadd.xlane.f32.xlu0 %v882
      %v884 = vpop.xlane.xlu0 %883
      %v885 = vsel %vm611, %v868, 0.0
      %886 = vadd.xlane.f32.xlu0 %v885
      %v887 = vpop.xlane.xlu0 %886
      %v888 = vsel %vm611, %v870, 0.0
      %889 = vadd.xlane.f32.xlu0 %v888
      %v890 = vpop.xlane.xlu0 %889
      %v891 = vsel %vm611, %v872, 0.0
      %892 = vadd.xlane.f32.xlu0 %v891
      %v893 = vpop.xlane.xlu0 %892
      %v894 = vsel %vm611, %v874, 0.0
      %895 = vadd.xlane.f32.xlu0 %v894
      %v896 = vpop.xlane.xlu0 %895
      %v897 = vsel %vm611, %v876, 0.0
      %898 = vadd.xlane.f32.xlu0 %v897
      %v899 = vpop.xlane.xlu0 %898
      %v900 = vsel %vm611, %v878, 0.0
      %901 = vadd.xlane.f32.xlu0 %v900
      %v902 = vpop.xlane.xlu0 %901
      %v903 = vrcp.pop %v881
      %v904 = vmul.f32 %v881, %v903
      %v905 = vsub.f32 1.0, %v904
      %v906 = vmul.f32 %v903, %v905
      %v907 = vadd.f32 %v903, %v906
      %vm908 = vweird.f32 %v881
      %vm909 = vweird.f32 %v903
      %vm910 = vmor %vm908, %vm909
      %v911 = vsel %vm910, %v903, %v907
      %v912 = vand.u32 2147483647, %v881
      %vm913 = vcmp.eq.f32.partialorder %v912, 8.507059e+37
      %v914 = vand.u32 %v881, 2147483648
      %v915 = vor.u32 1.1754944e-38, %v914
      %v916 = vsel %vm913, %v915, %v911
      %v917 = vmul.f32 %v864, %v916
      %v918 = vrcp.pop %v884
      %v919 = vmul.f32 %v884, %v918
      %v920 = vsub.f32 1.0, %v919
      %v921 = vmul.f32 %v918, %v920
      %v922 = vadd.f32 %v918, %v921
      %vm923 = vweird.f32 %v884
      %vm924 = vweird.f32 %v918
      %vm925 = vmor %vm923, %vm924
      %v926 = vsel %vm925, %v918, %v922
      %v927 = vand.u32 2147483647, %v884
      %vm928 = vcmp.eq.f32.partialorder %v927, 8.507059e+37
      %v929 = vand.u32 %v884, 2147483648
      %v930 = vor.u32 1.1754944e-38, %v929
      %v931 = vsel %vm928, %v930, %v926
      %v932 = vmul.f32 %v866, %v931
      %v933 = vrcp.pop %v887
      %v934 = vmul.f32 %v887, %v933
      %v935 = vsub.f32 1.0, %v934
      %v936 = vmul.f32 %v933, %v935
      %v937 = vadd.f32 %v933, %v936
      %vm938 = vweird.f32 %v887
      %vm939 = vweird.f32 %v933
      %vm940 = vmor %vm938, %vm939
      %v941 = vsel %vm940, %v933, %v937
      %v942 = vand.u32 2147483647, %v887
      %vm943 = vcmp.eq.f32.partialorder %v942, 8.507059e+37
      %v944 = vand.u32 %v887, 2147483648
      %v945 = vor.u32 1.1754944e-38, %v944
      %v946 = vsel %vm943, %v945, %v941
      %v947 = vmul.f32 %v868, %v946
      %v948 = vrcp.pop %v890
      %v949 = vmul.f32 %v890, %v948
      %v950 = vsub.f32 1.0, %v949
      %v951 = vmul.f32 %v948, %v950
      %v952 = vadd.f32 %v948, %v951
      %vm953 = vweird.f32 %v890
      %vm954 = vweird.f32 %v948
      %vm955 = vmor %vm953, %vm954
      %v956 = vsel %vm955, %v948, %v952
      %v957 = vand.u32 2147483647, %v890
      %vm958 = vcmp.eq.f32.partialorder %v957, 8.507059e+37
      %v959 = vand.u32 %v890, 2147483648
      %v960 = vor.u32 1.1754944e-38, %v959
      %v961 = vsel %vm958, %v960, %v956
      %v962 = vmul.f32 %v870, %v961
      %v963 = vrcp.pop %v893
      %v964 = vmul.f32 %v893, %v963
      %v965 = vsub.f32 1.0, %v964
      %v966 = vmul.f32 %v963, %v965
      %v967 = vadd.f32 %v963, %v966
      %vm968 = vweird.f32 %v893
      %vm969 = vweird.f32 %v963
      %vm970 = vmor %vm968, %vm969
      %v971 = vsel %vm970, %v963, %v967
      %v972 = vand.u32 2147483647, %v893
      %vm973 = vcmp.eq.f32.partialorder %v972, 8.507059e+37
      %v974 = vand.u32 %v893, 2147483648
      %v975 = vor.u32 1.1754944e-38, %v974
      %v976 = vsel %vm973, %v975, %v971
      %v977 = vmul.f32 %v872, %v976
      %v978 = vrcp.pop %v896
      %v979 = vmul.f32 %v896, %v978
      %v980 = vsub.f32 1.0, %v979
      %v981 = vmul.f32 %v978, %v980
      %v982 = vadd.f32 %v978, %v981
      %vm983 = vweird.f32 %v896
      %vm984 = vweird.f32 %v978
      %vm985 = vmor %vm983, %vm984
      %v986 = vsel %vm985, %v978, %v982
      %v987 = vand.u32 2147483647, %v896
      %vm988 = vcmp.eq.f32.partialorder %v987, 8.507059e+37
      %v989 = vand.u32 %v896, 2147483648
      %v990 = vor.u32 1.1754944e-38, %v989
      %v991 = vsel %vm988, %v990, %v986
      %v992 = vmul.f32 %v874, %v991
      %v993 = vrcp.pop %v899
      %v994 = vmul.f32 %v899, %v993
      %v995 = vsub.f32 1.0, %v994
      %v996 = vmul.f32 %v993, %v995
      %v997 = vadd.f32 %v993, %v996
      %vm998 = vweird.f32 %v899
      %vm999 = vweird.f32 %v993
      %vm1000 = vmor %vm998, %vm999
      %v1001 = vsel %vm1000, %v993, %v997
      %v1002 = vand.u32 2147483647, %v899
      %vm1003 = vcmp.eq.f32.partialorder %v1002, 8.507059e+37
      %v1004 = vand.u32 %v899, 2147483648
      %v1005 = vor.u32 1.1754944e-38, %v1004
      %v1006 = vsel %vm1003, %v1005, %v1001
      %v1007 = vmul.f32 %v876, %v1006
      %v1008 = vrcp.pop %v902
      %v1009 = vmul.f32 %v902, %v1008
      %v1010 = vsub.f32 1.0, %v1009
      %v1011 = vmul.f32 %v1008, %v1010
      %v1012 = vadd.f32 %v1008, %v1011
      %vm1013 = vweird.f32 %v902
      %vm1014 = vweird.f32 %v1008
      %vm1015 = vmor %vm1013, %vm1014
      %v1016 = vsel %vm1015, %v1008, %v1012
      %v1017 = vand.u32 2147483647, %v902
      %vm1018 = vcmp.eq.f32.partialorder %v1017, 8.507059e+37
      %v1019 = vand.u32 %v902, 2147483648
      %v1020 = vor.u32 1.1754944e-38, %v1019
      %v1021 = vsel %vm1018, %v1020, %v1016
      %v1022 = vmul.f32 %v878, %v1021
      %1023 = vrot.lane.b32.xlu0 %v599, 64
      %v1024 = vpop.permute.xlu0 %1023
      %v1027 = vsel %vm611, %v917, 0
      %1029 = vmatpush.msra.mxu0 0.0
      %1030 = vmatpush.msra.mxu0 0.0
      %1031 = vmatpush.msra.mxu0 0.0
      %1032 = vmatpush.msra.mxu0 0.0
      %1033 = vmatpush.msra.mxu0 0.0
      %1034 = vmatpush.msra.mxu0 0.0
      %1035 = vmatpush.msra.mxu0 0.0
      %1036 = vmatpush.msra.mxu0 0.0
      %1037 = vmatpush.msra.mxu0 0.0
      %1038 = vmatpush.msra.mxu0 0.0
      %1039 = vmatpush.msra.mxu0 0.0
      %1040 = vmatpush.msra.mxu0 0.0
      %1041 = vmatpush.msra.mxu0 0.0
      %1042 = vmatpush.msra.mxu0 0.0
      %1043 = vmatpush.msra.mxu0 0.0
      %1044 = vmatpush.msra.mxu0 %v1024
      %1045 = vmatmul.f32.gmra.mxu0 %v1027
      %v1046 = vpop.f32.mrf.mxu0
      %v1047 = vadd.f32 0.0, %v1046
      %1048 = vdwg.mxu0
      %1049 = vrot.lane.b32.xlu0 %v599, 56
      %v1050 = vpop.permute.xlu0 %1049
      %v1053 = vsel %vm611, %v932, 0
      %1055 = vmatpush.msra.mxu0 0.0
      %1056 = vmatpush.msra.mxu0 0.0
      %1057 = vmatpush.msra.mxu0 0.0
      %1058 = vmatpush.msra.mxu0 0.0
      %1059 = vmatpush.msra.mxu0 0.0
      %1060 = vmatpush.msra.mxu0 0.0
      %1061 = vmatpush.msra.mxu0 0.0
      %1062 = vmatpush.msra.mxu0 0.0
      %1063 = vmatpush.msra.mxu0 0.0
      %1064 = vmatpush.msra.mxu0 0.0
      %1065 = vmatpush.msra.mxu0 0.0
      %1066 = vmatpush.msra.mxu0 0.0
      %1067 = vmatpush.msra.mxu0 0.0
      %1068 = vmatpush.msra.mxu0 0.0
      %1069 = vmatpush.msra.mxu0 0.0
      %1070 = vmatpush.msra.mxu0 %v1050
      %1071 = vmatmul.f32.gmra.mxu0 %v1053
      %v1072 = vpop.f32.mrf.mxu0
      %v1073 = vadd.f32 0.0, %v1072
      %1074 = vdwg.mxu0
      %1075 = vrot.lane.b32.xlu0 %v599, 48
      %v1076 = vpop.permute.xlu0 %1075
      %v1079 = vsel %vm611, %v947, 0
      %1081 = vmatpush.msra.mxu0 0.0
      %1082 = vmatpush.msra.mxu0 0.0
      %1083 = vmatpush.msra.mxu0 0.0
      %1084 = vmatpush.msra.mxu0 0.0
      %1085 = vmatpush.msra.mxu0 0.0
      %1086 = vmatpush.msra.mxu0 0.0
      %1087 = vmatpush.msra.mxu0 0.0
      %1088 = vmatpush.msra.mxu0 0.0
      %1089 = vmatpush.msra.mxu0 0.0
      %1090 = vmatpush.msra.mxu0 0.0
      %1091 = vmatpush.msra.mxu0 0.0
      %1092 = vmatpush.msra.mxu0 0.0
      %1093 = vmatpush.msra.mxu0 0.0
      %1094 = vmatpush.msra.mxu0 0.0
      %1095 = vmatpush.msra.mxu0 0.0
      %1096 = vmatpush.msra.mxu0 %v1076
      %1097 = vmatmul.f32.gmra.mxu0 %v1079
      %v1098 = vpop.f32.mrf.mxu0
      %v1099 = vadd.f32 0.0, %v1098
      %1100 = vdwg.mxu0
      %1101 = vrot.lane.b32.xlu0 %v599, 40
      %v1102 = vpop.permute.xlu0 %1101
      %v1105 = vsel %vm611, %v962, 0
      %1107 = vmatpush.msra.mxu0 0.0
      %1108 = vmatpush.msra.mxu0 0.0
      %1109 = vmatpush.msra.mxu0 0.0
      %1110 = vmatpush.msra.mxu0 0.0
      %1111 = vmatpush.msra.mxu0 0.0
      %1112 = vmatpush.msra.mxu0 0.0
      %1113 = vmatpush.msra.mxu0 0.0
      %1114 = vmatpush.msra.mxu0 0.0
      %1115 = vmatpush.msra.mxu0 0.0
      %1116 = vmatpush.msra.mxu0 0.0
      %1117 = vmatpush.msra.mxu0 0.0
      %1118 = vmatpush.msra.mxu0 0.0
      %1119 = vmatpush.msra.mxu0 0.0
      %1120 = vmatpush.msra.mxu0 0.0
      %1121 = vmatpush.msra.mxu0 0.0
      %1122 = vmatpush.msra.mxu0 %v1102
      %1123 = vmatmul.f32.gmra.mxu0 %v1105
      %v1124 = vpop.f32.mrf.mxu0
      %v1125 = vadd.f32 0.0, %v1124
      %1126 = vdwg.mxu0
      %1128 = vrot.lane.b32.xlu0 %v1073, 8
      %v1129 = vpop.permute.xlu0 %1128
      %1132 = vrot.lane.b32.xlu0 %v1099, 16
      %v1133 = vpop.permute.xlu0 %1132
      %1136 = vrot.lane.b32.xlu0 %v1125, 24
      %v1137 = vpop.permute.xlu0 %1136
      %v1139 = vsel %vm611, %v1047, %v1129
      %vm1140 = vcmask 130048
      %v1141 = vsel %vm1140, %v1139, %v1133
      %vm1142 = vcmask 195584
      %v1143 = vsel %vm1142, %v1141, %v1137
      %1144 = vrot.lane.b32.xlu0 %v602, 64
      %v1145 = vpop.permute.xlu0 %1144
      %v1148 = vsel %vm611, %v977, 0
      %1150 = vmatpush.msra.mxu0 0.0
      %1151 = vmatpush.msra.mxu0 0.0
      %1152 = vmatpush.msra.mxu0 0.0
      %1153 = vmatpush.msra.mxu0 0.0
      %1154 = vmatpush.msra.mxu0 0.0
      %1155 = vmatpush.msra.mxu0 0.0
      %1156 = vmatpush.msra.mxu0 0.0
      %1157 = vmatpush.msra.mxu0 0.0
      %1158 = vmatpush.msra.mxu0 0.0
      %1159 = vmatpush.msra.mxu0 0.0
      %1160 = vmatpush.msra.mxu0 0.0
      %1161 = vmatpush.msra.mxu0 0.0
      %1162 = vmatpush.msra.mxu0 0.0
      %1163 = vmatpush.msra.mxu0 0.0
      %1164 = vmatpush.msra.mxu0 0.0
      %1165 = vmatpush.msra.mxu0 %v1145
      %1166 = vmatmul.f32.gmra.mxu0 %v1148
      %v1167 = vpop.f32.mrf.mxu0
      %v1168 = vadd.f32 0.0, %v1167
      %1169 = vdwg.mxu0
      %1170 = vrot.lane.b32.xlu0 %v602, 56
      %v1171 = vpop.permute.xlu0 %1170
      %v1174 = vsel %vm611, %v992, 0
      %1176 = vmatpush.msra.mxu0 0.0
      %1177 = vmatpush.msra.mxu0 0.0
      %1178 = vmatpush.msra.mxu0 0.0
      %1179 = vmatpush.msra.mxu0 0.0
      %1180 = vmatpush.msra.mxu0 0.0
      %1181 = vmatpush.msra.mxu0 0.0
      %1182 = vmatpush.msra.mxu0 0.0
      %1183 = vmatpush.msra.mxu0 0.0
      %1184 = vmatpush.msra.mxu0 0.0
      %1185 = vmatpush.msra.mxu0 0.0
      %1186 = vmatpush.msra.mxu0 0.0
      %1187 = vmatpush.msra.mxu0 0.0
      %1188 = vmatpush.msra.mxu0 0.0
      %1189 = vmatpush.msra.mxu0 0.0
      %1190 = vmatpush.msra.mxu0 0.0
      %1191 = vmatpush.msra.mxu0 %v1171
      %1192 = vmatmul.f32.gmra.mxu0 %v1174
      %v1193 = vpop.f32.mrf.mxu0
      %v1194 = vadd.f32 0.0, %v1193
      %1195 = vdwg.mxu0
      %1196 = vrot.lane.b32.xlu0 %v602, 48
      %v1197 = vpop.permute.xlu0 %1196
      %v1200 = vsel %vm611, %v1007, 0
      %1202 = vmatpush.msra.mxu0 0.0
      %1203 = vmatpush.msra.mxu0 0.0
      %1204 = vmatpush.msra.mxu0 0.0
      %1205 = vmatpush.msra.mxu0 0.0
      %1206 = vmatpush.msra.mxu0 0.0
      %1207 = vmatpush.msra.mxu0 0.0
      %1208 = vmatpush.msra.mxu0 0.0
      %1209 = vmatpush.msra.mxu0 0.0
      %1210 = vmatpush.msra.mxu0 0.0
      %1211 = vmatpush.msra.mxu0 0.0
      %1212 = vmatpush.msra.mxu0 0.0
      %1213 = vmatpush.msra.mxu0 0.0
      %1214 = vmatpush.msra.mxu0 0.0
      %1215 = vmatpush.msra.mxu0 0.0
      %1216 = vmatpush.msra.mxu0 0.0
      %1217 = vmatpush.msra.mxu0 %v1197
      %1218 = vmatmul.f32.gmra.mxu0 %v1200
      %v1219 = vpop.f32.mrf.mxu0
      %v1220 = vadd.f32 0.0, %v1219
      %1221 = vdwg.mxu0
      %1222 = vrot.lane.b32.xlu0 %v602, 40
      %v1223 = vpop.permute.xlu0 %1222
      %v1226 = vsel %vm611, %v1022, 0
      %1228 = vmatpush.msra.mxu0 0.0
      %1229 = vmatpush.msra.mxu0 0.0
      %1230 = vmatpush.msra.mxu0 0.0
      %1231 = vmatpush.msra.mxu0 0.0
      %1232 = vmatpush.msra.mxu0 0.0
      %1233 = vmatpush.msra.mxu0 0.0
      %1234 = vmatpush.msra.mxu0 0.0
      %1235 = vmatpush.msra.mxu0 0.0
      %1236 = vmatpush.msra.mxu0 0.0
      %1237 = vmatpush.msra.mxu0 0.0
      %1238 = vmatpush.msra.mxu0 0.0
      %1239 = vmatpush.msra.mxu0 0.0
      %1240 = vmatpush.msra.mxu0 0.0
      %1241 = vmatpush.msra.mxu0 0.0
      %1242 = vmatpush.msra.mxu0 0.0
      %1243 = vmatpush.msra.mxu0 %v1223
      %1244 = vmatmul.f32.gmra.mxu0 %v1226
      %v1245 = vpop.f32.mrf.mxu0
      %v1246 = vadd.f32 0.0, %v1245
      %1247 = vdwg.mxu0
      %1249 = vrot.lane.b32.xlu0 %v1194, 8
      %v1250 = vpop.permute.xlu0 %1249
      %1253 = vrot.lane.b32.xlu0 %v1220, 16
      %v1254 = vpop.permute.xlu0 %1253
      %1257 = vrot.lane.b32.xlu0 %v1246, 24
      %v1258 = vpop.permute.xlu0 %1257
      %v1260 = vsel %vm611, %v1168, %v1250
      %v1261 = vsel %vm1140, %v1260, %v1254
      %v1262 = vsel %vm1142, %v1261, %v1258
      %v1263 = vperm.slane %v552, 1
      %v1265 = vsel %vm574, %v1143, 0
      %v1268 = vsel %vm574, %v1262, 0
      %1270 = vmatpush.msra.mxu0 0.0
      %1271 = vmatpush.msra.mxu0 0.0
      %1272 = vmatpush.msra.mxu0 0.0
      %1273 = vmatpush.msra.mxu0 0.0
      %1274 = vmatpush.msra.mxu0 0.0
      %1275 = vmatpush.msra.mxu0 0.0
      %1276 = vmatpush.msra.mxu0 0.0
      %1277 = vmatpush.msra.mxu0 0.0
      %1278 = vmatpush.msra.mxu0 0.0
      %1279 = vmatpush.msra.mxu0 0.0
      %1280 = vmatpush.msra.mxu0 0.0
      %1281 = vmatpush.msra.mxu0 0.0
      %1282 = vmatpush.msra.mxu0 %v607
      %1283 = vmatpush.msra.mxu0 %v606
      %1284 = vmatpush.msra.mxu0 %v605
      %1285 = vmatpush.msra.mxu0 %v604
      %1286 = vmatmul.f32.gmra.mxu0 %v1265
      %v1287 = vpop.f32.mrf.mxu0
      %v1288 = vadd.f32 %v1263, %v1287
      %1289 = vmatmul.f32.gmra.mxu0 %v1268
      %v1290 = vpop.f32.mrf.mxu0
      %v1291 = vadd.f32 %v1263, %v1290
      %1292 = vdwg.mxu0
      %v1293 = vadd.f32 %v548, %v1288
      %v1294 = vadd.f32 %v549, %v1291
      %v1295 = vsel %vm574, %v1293, 0.0
      %1296 = vadd.xlane.f32.xlu0 %v1295
      %v1297 = vpop.xlane.xlu0 %1296
      %v1298 = vsel %vm574, %v1294, 0.0
      %1299 = vadd.xlane.f32.xlu0 %v1298
      %v1300 = vpop.xlane.xlu0 %1299
      %v1301 = vrcp.pop 32.0
      %v1302 = vmul.f32 32.0, %v1301
      %v1303 = vsub.f32 1.0, %v1302
      %v1304 = vmul.f32 %v1301, %v1303
      %v1305 = vadd.f32 %v1301, %v1304
      %vm1306 = vweird.f32 %v1301
      %v1307 = vsel %vm1306, %v1301, %v1305
      %v1308 = vmul.f32 %v1297, %v1307
      %v1309 = vmul.f32 %v1300, %v1307
      %v1310 = vsub.f32 %v1293, %v1308
      %v1311 = vsub.f32 %v1294, %v1309
      %v1312 = vmul.f32 %v1310, %v1310
      %v1313 = vmul.f32 %v1311, %v1311
      %v1314 = vsel %vm574, %v1312, 0.0
      %1315 = vadd.xlane.f32.xlu0 %v1314
      %v1316 = vpop.xlane.xlu0 %1315
      %v1317 = vsel %vm574, %v1313, 0.0
      %1318 = vadd.xlane.f32.xlu0 %v1317
      %v1319 = vpop.xlane.xlu0 %1318
      %v1320 = vmul.f32 %v1316, %v1307
      %v1321 = vmul.f32 %v1319, %v1307
      %v1322 = vadd.f32 %v1320, 1e-05
      %v1323 = vadd.f32 %v1321, 1e-05
      %v1324 = vrsqrt.pop %v1322
      %v1325 = vmul.f32 %v1324, %v1322
      %v1326 = vmul.f32 %v1325, %v1324
      %v1327 = vmul.f32 0.5, %v1326
      %v1328 = vsub.f32 1.5, %v1327
      %v1329 = vmul.f32 %v1324, %v1328
      %vm1330 = vweird.f32 %v1322
      %vm1331 = vweird.f32 %v1324
      %vm1332 = vmor %vm1330, %vm1331
      %v1333 = vsel %vm1332, %v1324, %v1329
      %v1334 = vrsqrt.pop %v1323
      %v1335 = vmul.f32 %v1334, %v1323
      %v1336 = vmul.f32 %v1335, %v1334
      %v1337 = vmul.f32 0.5, %v1336
      %v1338 = vsub.f32 1.5, %v1337
      %v1339 = vmul.f32 %v1334, %v1338
      %vm1340 = vweird.f32 %v1323
      %vm1341 = vweird.f32 %v1334
      %vm1342 = vmor %vm1340, %vm1341
      %v1343 = vsel %vm1342, %v1334, %v1339
      %v1344 = vmul.f32 %v1310, %v1333
      %v1345 = vmul.f32 %v1311, %v1343
      %v1346 = vperm.slane %v552, 2
      %v1347 = vmul.f32 %v1344, %v1346
      %v1348 = vmul.f32 %v1345, %v1346
      %v1349 = vperm.slane %v552, 3
      %v1350 = vadd.f32 %v1347, %v1349
      %v1351 = vadd.f32 %v1348, %v1349
      %v1352 = vld [vmem:[%s513] sm:$0xff]
      %v1353 = vld [vmem:[%s513 + $0x8] sm:$0xff]
      %v1354 = vld [vmem:[%s513 + $0x10] sm:$0xff]
      %v1355 = vld [vmem:[%s513 + $0x18] sm:$0xff]
      %v1356 = vperm.slane %v552, 4
      %v1358 = vsel %vm574, %v1350, 0
      %v1361 = vsel %vm574, %v1351, 0
      %1363 = vmatpush.msra.mxu0 0.0
      %1364 = vmatpush.msra.mxu0 0.0
      %1365 = vmatpush.msra.mxu0 0.0
      %1366 = vmatpush.msra.mxu0 0.0
      %1367 = vmatpush.msra.mxu0 0.0
      %1368 = vmatpush.msra.mxu0 0.0
      %1369 = vmatpush.msra.mxu0 0.0
      %1370 = vmatpush.msra.mxu0 0.0
      %1371 = vmatpush.msra.mxu0 0.0
      %1372 = vmatpush.msra.mxu0 0.0
      %1373 = vmatpush.msra.mxu0 0.0
      %1374 = vmatpush.msra.mxu0 0.0
      %1375 = vmatpush.msra.mxu0 %v1355
      %1376 = vmatpush.msra.mxu0 %v1354
      %1377 = vmatpush.msra.mxu0 %v1353
      %1378 = vmatpush.msra.mxu0 %v1352
      %1379 = vmatmul.f32.gmra.mxu0 %v1358
      %v1380 = vpop.f32.mrf.mxu0
      %v1381 = vadd.f32 %v1356, %v1380
      %1382 = vmatmul.f32.gmra.mxu0 %v1361
      %v1383 = vpop.f32.mrf.mxu0
      %v1384 = vadd.f32 %v1356, %v1383
      %1385 = vdwg.mxu0
      %v1386 = vld [vmem:[%s518] sm:$0xff]
      %v1387 = vld [vmem:[%s518 + $0x8] sm:$0xff]
      %v1388 = vld [vmem:[%s518 + $0x10] sm:$0xff]
      %v1389 = vld [vmem:[%s518 + $0x18] sm:$0xff]
      %v1390 = vperm.slane %v552, 5
      %v1392 = vsel %vm574, %v550, 0
      %v1395 = vsel %vm574, %v551, 0
      %1397 = vmatpush.msra.mxu0 0.0
      %1398 = vmatpush.msra.mxu0 0.0
      %1399 = vmatpush.msra.mxu0 0.0
      %1400 = vmatpush.msra.mxu0 0.0
      %1401 = vmatpush.msra.mxu0 0.0
      %1402 = vmatpush.msra.mxu0 0.0
      %1403 = vmatpush.msra.mxu0 0.0
      %1404 = vmatpush.msra.mxu0 0.0
      %1405 = vmatpush.msra.mxu0 0.0
      %1406 = vmatpush.msra.mxu0 0.0
      %1407 = vmatpush.msra.mxu0 0.0
      %1408 = vmatpush.msra.mxu0 0.0
      %1409 = vmatpush.msra.mxu0 %v1389
      %1410 = vmatpush.msra.mxu0 %v1388
      %1411 = vmatpush.msra.mxu0 %v1387
      %1412 = vmatpush.msra.mxu0 %v1386
      %1413 = vmatmul.f32.gmra.mxu0 %v1392
      %v1414 = vpop.f32.mrf.mxu0
      %v1415 = vadd.f32 %v1390, %v1414
      %1416 = vmatmul.f32.gmra.mxu0 %v1395
      %v1417 = vpop.f32.mrf.mxu0
      %v1418 = vadd.f32 %v1390, %v1417
      %1419 = vdwg.mxu0
      %v1420 = vld [vmem:[%s523] sm:$0xff]
      %v1421 = vld [vmem:[%s523 + $0x8] sm:$0xff]
      %v1422 = vld [vmem:[%s523 + $0x10] sm:$0xff]
      %v1423 = vld [vmem:[%s523 + $0x18] sm:$0xff]
      %v1425 = vsel %vm611, %v1381, 0
      %v1428 = vsel %vm611, %v1415, 0
      %1430 = vmatpush.xpose.msra.mxu0 0.0
      %1431 = vmatpush.xpose.msra.mxu0 0.0
      %1432 = vmatpush.xpose.msra.mxu0 0.0
      %1433 = vmatpush.xpose.msra.mxu0 0.0
      %1434 = vmatpush.xpose.msra.mxu0 0.0
      %1435 = vmatpush.xpose.msra.mxu0 0.0
      %1436 = vmatpush.xpose.msra.mxu0 0.0
      %1437 = vmatpush.xpose.msra.mxu0 0.0
      %1438 = vmatpush.xpose.msra.mxu0 0.0
      %1439 = vmatpush.xpose.msra.mxu0 0.0
      %1440 = vmatpush.xpose.msra.mxu0 0.0
      %1441 = vmatpush.xpose.msra.mxu0 0.0
      %1442 = vmatpush.xpose.msra.mxu0 0.0
      %1443 = vmatpush.xpose.msra.mxu0 0.0
      %1444 = vmatpush.xpose.msra.mxu0 0.0
      %1445 = vmatpush.xpose.msra.mxu0 %v1428
      %1446 = vmatmul.f32.gmra.mxu0 %v1425
      %v1447 = vpop.f32.mrf.mxu0
      %v1448 = vadd.f32 0.0, %v1447
      %1449 = vdwg.mxu0
      %1450 = vrot.lane.b32.xlu0 %v1381, 120
      %v1451 = vpop.permute.xlu0 %1450
      %1452 = vrot.lane.b32.xlu0 %v1415, 120
      %v1453 = vpop.permute.xlu0 %1452
      %v1454 = vsel %vm611, %v1451, 0
      %v1456 = vsel %vm611, %v1453, 0
      %1458 = vmatpush.xpose.msra.mxu0 0.0
      %1459 = vmatpush.xpose.msra.mxu0 0.0
      %1460 = vmatpush.xpose.msra.mxu0 0.0
      %1461 = vmatpush.xpose.msra.mxu0 0.0
      %1462 = vmatpush.xpose.msra.mxu0 0.0
      %1463 = vmatpush.xpose.msra.mxu0 0.0
      %1464 = vmatpush.xpose.msra.mxu0 0.0
      %1465 = vmatpush.xpose.msra.mxu0 0.0
      %1466 = vmatpush.xpose.msra.mxu0 0.0
      %1467 = vmatpush.xpose.msra.mxu0 0.0
      %1468 = vmatpush.xpose.msra.mxu0 0.0
      %1469 = vmatpush.xpose.msra.mxu0 0.0
      %1470 = vmatpush.xpose.msra.mxu0 0.0
      %1471 = vmatpush.xpose.msra.mxu0 0.0
      %1472 = vmatpush.xpose.msra.mxu0 0.0
      %1473 = vmatpush.xpose.msra.mxu0 %v1456
      %1474 = vmatmul.f32.gmra.mxu0 %v1454
      %v1475 = vpop.f32.mrf.mxu0
      %v1476 = vadd.f32 0.0, %v1475
      %1477 = vdwg.mxu0
      %1478 = vrot.lane.b32.xlu0 %v1381, 112
      %v1479 = vpop.permute.xlu0 %1478
      %1480 = vrot.lane.b32.xlu0 %v1415, 112
      %v1481 = vpop.permute.xlu0 %1480
      %v1482 = vsel %vm611, %v1479, 0
      %v1484 = vsel %vm611, %v1481, 0
      %1486 = vmatpush.xpose.msra.mxu0 0.0
      %1487 = vmatpush.xpose.msra.mxu0 0.0
      %1488 = vmatpush.xpose.msra.mxu0 0.0
      %1489 = vmatpush.xpose.msra.mxu0 0.0
      %1490 = vmatpush.xpose.msra.mxu0 0.0
      %1491 = vmatpush.xpose.msra.mxu0 0.0
      %1492 = vmatpush.xpose.msra.mxu0 0.0
      %1493 = vmatpush.xpose.msra.mxu0 0.0
      %1494 = vmatpush.xpose.msra.mxu0 0.0
      %1495 = vmatpush.xpose.msra.mxu0 0.0
      %1496 = vmatpush.xpose.msra.mxu0 0.0
      %1497 = vmatpush.xpose.msra.mxu0 0.0
      %1498 = vmatpush.xpose.msra.mxu0 0.0
      %1499 = vmatpush.xpose.msra.mxu0 0.0
      %1500 = vmatpush.xpose.msra.mxu0 0.0
      %1501 = vmatpush.xpose.msra.mxu0 %v1484
      %1502 = vmatmul.f32.gmra.mxu0 %v1482
      %v1503 = vpop.f32.mrf.mxu0
      %v1504 = vadd.f32 0.0, %v1503
      %1505 = vdwg.mxu0
      %1506 = vrot.lane.b32.xlu0 %v1381, 104
      %v1507 = vpop.permute.xlu0 %1506
      %1508 = vrot.lane.b32.xlu0 %v1415, 104
      %v1509 = vpop.permute.xlu0 %1508
      %v1510 = vsel %vm611, %v1507, 0
      %v1512 = vsel %vm611, %v1509, 0
      %1514 = vmatpush.xpose.msra.mxu0 0.0
      %1515 = vmatpush.xpose.msra.mxu0 0.0
      %1516 = vmatpush.xpose.msra.mxu0 0.0
      %1517 = vmatpush.xpose.msra.mxu0 0.0
      %1518 = vmatpush.xpose.msra.mxu0 0.0
      %1519 = vmatpush.xpose.msra.mxu0 0.0
      %1520 = vmatpush.xpose.msra.mxu0 0.0
      %1521 = vmatpush.xpose.msra.mxu0 0.0
      %1522 = vmatpush.xpose.msra.mxu0 0.0
      %1523 = vmatpush.xpose.msra.mxu0 0.0
      %1524 = vmatpush.xpose.msra.mxu0 0.0
      %1525 = vmatpush.xpose.msra.mxu0 0.0
      %1526 = vmatpush.xpose.msra.mxu0 0.0
      %1527 = vmatpush.xpose.msra.mxu0 0.0
      %1528 = vmatpush.xpose.msra.mxu0 0.0
      %1529 = vmatpush.xpose.msra.mxu0 %v1512
      %1530 = vmatmul.f32.gmra.mxu0 %v1510
      %v1531 = vpop.f32.mrf.mxu0
      %v1532 = vadd.f32 0.0, %v1531
      %1533 = vdwg.mxu0
      %v1535 = vsel %vm611, %v1384, 0
      %v1538 = vsel %vm611, %v1418, 0
      %1540 = vmatpush.xpose.msra.mxu0 0.0
      %1541 = vmatpush.xpose.msra.mxu0 0.0
      %1542 = vmatpush.xpose.msra.mxu0 0.0
      %1543 = vmatpush.xpose.msra.mxu0 0.0
      %1544 = vmatpush.xpose.msra.mxu0 0.0
      %1545 = vmatpush.xpose.msra.mxu0 0.0
      %1546 = vmatpush.xpose.msra.mxu0 0.0
      %1547 = vmatpush.xpose.msra.mxu0 0.0
      %1548 = vmatpush.xpose.msra.mxu0 0.0
      %1549 = vmatpush.xpose.msra.mxu0 0.0
      %1550 = vmatpush.xpose.msra.mxu0 0.0
      %1551 = vmatpush.xpose.msra.mxu0 0.0
      %1552 = vmatpush.xpose.msra.mxu0 0.0
      %1553 = vmatpush.xpose.msra.mxu0 0.0
      %1554 = vmatpush.xpose.msra.mxu0 0.0
      %1555 = vmatpush.xpose.msra.mxu0 %v1538
      %1556 = vmatmul.f32.gmra.mxu0 %v1535
      %v1557 = vpop.f32.mrf.mxu0
      %v1558 = vadd.f32 0.0, %v1557
      %1559 = vdwg.mxu0
      %1560 = vrot.lane.b32.xlu0 %v1384, 120
      %v1561 = vpop.permute.xlu0 %1560
      %1562 = vrot.lane.b32.xlu0 %v1418, 120
      %v1563 = vpop.permute.xlu0 %1562
      %v1564 = vsel %vm611, %v1561, 0
      %v1566 = vsel %vm611, %v1563, 0
      %1568 = vmatpush.xpose.msra.mxu0 0.0
      %1569 = vmatpush.xpose.msra.mxu0 0.0
      %1570 = vmatpush.xpose.msra.mxu0 0.0
      %1571 = vmatpush.xpose.msra.mxu0 0.0
      %1572 = vmatpush.xpose.msra.mxu0 0.0
      %1573 = vmatpush.xpose.msra.mxu0 0.0
      %1574 = vmatpush.xpose.msra.mxu0 0.0
      %1575 = vmatpush.xpose.msra.mxu0 0.0
      %1576 = vmatpush.xpose.msra.mxu0 0.0
      %1577 = vmatpush.xpose.msra.mxu0 0.0
      %1578 = vmatpush.xpose.msra.mxu0 0.0
      %1579 = vmatpush.xpose.msra.mxu0 0.0
      %1580 = vmatpush.xpose.msra.mxu0 0.0
      %1581 = vmatpush.xpose.msra.mxu0 0.0
      %1582 = vmatpush.xpose.msra.mxu0 0.0
      %1583 = vmatpush.xpose.msra.mxu0 %v1566
      %1584 = vmatmul.f32.gmra.mxu0 %v1564
      %v1585 = vpop.f32.mrf.mxu0
      %v1586 = vadd.f32 0.0, %v1585
      %1587 = vdwg.mxu0
      %1588 = vrot.lane.b32.xlu0 %v1384, 112
      %v1589 = vpop.permute.xlu0 %1588
      %1590 = vrot.lane.b32.xlu0 %v1418, 112
      %v1591 = vpop.permute.xlu0 %1590
      %v1592 = vsel %vm611, %v1589, 0
      %v1594 = vsel %vm611, %v1591, 0
      %1596 = vmatpush.xpose.msra.mxu0 0.0
      %1597 = vmatpush.xpose.msra.mxu0 0.0
      %1598 = vmatpush.xpose.msra.mxu0 0.0
      %1599 = vmatpush.xpose.msra.mxu0 0.0
      %1600 = vmatpush.xpose.msra.mxu0 0.0
      %1601 = vmatpush.xpose.msra.mxu0 0.0
      %1602 = vmatpush.xpose.msra.mxu0 0.0
      %1603 = vmatpush.xpose.msra.mxu0 0.0
      %1604 = vmatpush.xpose.msra.mxu0 0.0
      %1605 = vmatpush.xpose.msra.mxu0 0.0
      %1606 = vmatpush.xpose.msra.mxu0 0.0
      %1607 = vmatpush.xpose.msra.mxu0 0.0
      %1608 = vmatpush.xpose.msra.mxu0 0.0
      %1609 = vmatpush.xpose.msra.mxu0 0.0
      %1610 = vmatpush.xpose.msra.mxu0 0.0
      %1611 = vmatpush.xpose.msra.mxu0 %v1594
      %1612 = vmatmul.f32.gmra.mxu0 %v1592
      %v1613 = vpop.f32.mrf.mxu0
      %v1614 = vadd.f32 0.0, %v1613
      %1615 = vdwg.mxu0
      %1616 = vrot.lane.b32.xlu0 %v1384, 104
      %v1617 = vpop.permute.xlu0 %1616
      %1618 = vrot.lane.b32.xlu0 %v1418, 104
      %v1619 = vpop.permute.xlu0 %1618
      %v1620 = vsel %vm611, %v1617, 0
      %v1622 = vsel %vm611, %v1619, 0
      %1624 = vmatpush.xpose.msra.mxu0 0.0
      %1625 = vmatpush.xpose.msra.mxu0 0.0
      %1626 = vmatpush.xpose.msra.mxu0 0.0
      %1627 = vmatpush.xpose.msra.mxu0 0.0
      %1628 = vmatpush.xpose.msra.mxu0 0.0
      %1629 = vmatpush.xpose.msra.mxu0 0.0
      %1630 = vmatpush.xpose.msra.mxu0 0.0
      %1631 = vmatpush.xpose.msra.mxu0 0.0
      %1632 = vmatpush.xpose.msra.mxu0 0.0
      %1633 = vmatpush.xpose.msra.mxu0 0.0
      %1634 = vmatpush.xpose.msra.mxu0 0.0
      %1635 = vmatpush.xpose.msra.mxu0 0.0
      %1636 = vmatpush.xpose.msra.mxu0 0.0
      %1637 = vmatpush.xpose.msra.mxu0 0.0
      %1638 = vmatpush.xpose.msra.mxu0 0.0
      %1639 = vmatpush.xpose.msra.mxu0 %v1622
      %1640 = vmatmul.f32.gmra.mxu0 %v1620
      %v1641 = vpop.f32.mrf.mxu0
      %v1642 = vadd.f32 0.0, %v1641
      %1643 = vdwg.mxu0
      %v1644 = vsel %vm611, %v1448, -inf
      %1645 = vmax.xlane.f32.xlu0 %v1644
      %v1646 = vpop.xlane.xlu0 %1645
      %v1647 = vsel %vm611, %v1476, -inf
      %1648 = vmax.xlane.f32.xlu0 %v1647
      %v1649 = vpop.xlane.xlu0 %1648
      %v1650 = vsel %vm611, %v1504, -inf
      %1651 = vmax.xlane.f32.xlu0 %v1650
      %v1652 = vpop.xlane.xlu0 %1651
      %v1653 = vsel %vm611, %v1532, -inf
      %1654 = vmax.xlane.f32.xlu0 %v1653
      %v1655 = vpop.xlane.xlu0 %1654
      %v1656 = vsel %vm611, %v1558, -inf
      %1657 = vmax.xlane.f32.xlu0 %v1656
      %v1658 = vpop.xlane.xlu0 %1657
      %v1659 = vsel %vm611, %v1586, -inf
      %1660 = vmax.xlane.f32.xlu0 %v1659
      %v1661 = vpop.xlane.xlu0 %1660
      %v1662 = vsel %vm611, %v1614, -inf
      %1663 = vmax.xlane.f32.xlu0 %v1662
      %v1664 = vpop.xlane.xlu0 %1663
      %v1665 = vsel %vm611, %v1642, -inf
      %1666 = vmax.xlane.f32.xlu0 %v1665
      %v1667 = vpop.xlane.xlu0 %1666
      %v1668 = vsub.f32 %v1448, %v1646
      %v1669 = vsub.f32 %v1476, %v1649
      %v1670 = vsub.f32 %v1504, %v1652
      %v1671 = vsub.f32 %v1532, %v1655
      %v1672 = vsub.f32 %v1558, %v1658
      %v1673 = vsub.f32 %v1586, %v1661
      %v1674 = vsub.f32 %v1614, %v1664
      %v1675 = vsub.f32 %v1642, %v1667
      %v1676 = vmul.f32 %v1668, 1.442695
      %v1677 = vpow.pop %v1676
      %v1678 = vmul.f32 %v1669, 1.442695
      %v1679 = vpow.pop %v1678
      %v1680 = vmul.f32 %v1670, 1.442695
      %v1681 = vpow.pop %v1680
      %v1682 = vmul.f32 %v1671, 1.442695
      %v1683 = vpow.pop %v1682
      %v1684 = vmul.f32 %v1672, 1.442695
      %v1685 = vpow.pop %v1684
      %v1686 = vmul.f32 %v1673, 1.442695
      %v1687 = vpow.pop %v1686
      %v1688 = vmul.f32 %v1674, 1.442695
      %v1689 = vpow.pop %v1688
      %v1690 = vmul.f32 %v1675, 1.442695
      %v1691 = vpow.pop %v1690
      %v1692 = vsel %vm611, %v1677, 0.0
      %1693 = vadd.xlane.f32.xlu0 %v1692
      %v1694 = vpop.xlane.xlu0 %1693
      %v1695 = vsel %vm611, %v1679, 0.0
      %1696 = vadd.xlane.f32.xlu0 %v1695
      %v1697 = vpop.xlane.xlu0 %1696
      %v1698 = vsel %vm611, %v1681, 0.0
      %1699 = vadd.xlane.f32.xlu0 %v1698
      %v1700 = vpop.xlane.xlu0 %1699
      %v1701 = vsel %vm611, %v1683, 0.0
      %1702 = vadd.xlane.f32.xlu0 %v1701
      %v1703 = vpop.xlane.xlu0 %1702
      %v1704 = vsel %vm611, %v1685, 0.0
      %1705 = vadd.xlane.f32.xlu0 %v1704
      %v1706 = vpop.xlane.xlu0 %1705
      %v1707 = vsel %vm611, %v1687, 0.0
      %1708 = vadd.xlane.f32.xlu0 %v1707
      %v1709 = vpop.xlane.xlu0 %1708
      %v1710 = vsel %vm611, %v1689, 0.0
      %1711 = vadd.xlane.f32.xlu0 %v1710
      %v1712 = vpop.xlane.xlu0 %1711
      %v1713 = vsel %vm611, %v1691, 0.0
      %1714 = vadd.xlane.f32.xlu0 %v1713
      %v1715 = vpop.xlane.xlu0 %1714
      %v1716 = vrcp.pop %v1694
      %v1717 = vmul.f32 %v1694, %v1716
      %v1718 = vsub.f32 1.0, %v1717
      %v1719 = vmul.f32 %v1716, %v1718
      %v1720 = vadd.f32 %v1716, %v1719
      %vm1721 = vweird.f32 %v1694
      %vm1722 = vweird.f32 %v1716
      %vm1723 = vmor %vm1721, %vm1722
      %v1724 = vsel %vm1723, %v1716, %v1720
      %v1725 = vand.u32 2147483647, %v1694
      %vm1726 = vcmp.eq.f32.partialorder %v1725, 8.507059e+37
      %v1727 = vand.u32 %v1694, 2147483648
      %v1728 = vor.u32 1.1754944e-38, %v1727
      %v1729 = vsel %vm1726, %v1728, %v1724
      %v1730 = vmul.f32 %v1677, %v1729
      %v1731 = vrcp.pop %v1697
      %v1732 = vmul.f32 %v1697, %v1731
      %v1733 = vsub.f32 1.0, %v1732
      %v1734 = vmul.f32 %v1731, %v1733
      %v1735 = vadd.f32 %v1731, %v1734
      %vm1736 = vweird.f32 %v1697
      %vm1737 = vweird.f32 %v1731
      %vm1738 = vmor %vm1736, %vm1737
      %v1739 = vsel %vm1738, %v1731, %v1735
      %v1740 = vand.u32 2147483647, %v1697
      %vm1741 = vcmp.eq.f32.partialorder %v1740, 8.507059e+37
      %v1742 = vand.u32 %v1697, 2147483648
      %v1743 = vor.u32 1.1754944e-38, %v1742
      %v1744 = vsel %vm1741, %v1743, %v1739
      %v1745 = vmul.f32 %v1679, %v1744
      %v1746 = vrcp.pop %v1700
      %v1747 = vmul.f32 %v1700, %v1746
      %v1748 = vsub.f32 1.0, %v1747
      %v1749 = vmul.f32 %v1746, %v1748
      %v1750 = vadd.f32 %v1746, %v1749
      %vm1751 = vweird.f32 %v1700
      %vm1752 = vweird.f32 %v1746
      %vm1753 = vmor %vm1751, %vm1752
      %v1754 = vsel %vm1753, %v1746, %v1750
      %v1755 = vand.u32 2147483647, %v1700
      %vm1756 = vcmp.eq.f32.partialorder %v1755, 8.507059e+37
      %v1757 = vand.u32 %v1700, 2147483648
      %v1758 = vor.u32 1.1754944e-38, %v1757
      %v1759 = vsel %vm1756, %v1758, %v1754
      %v1760 = vmul.f32 %v1681, %v1759
      %v1761 = vrcp.pop %v1703
      %v1762 = vmul.f32 %v1703, %v1761
      %v1763 = vsub.f32 1.0, %v1762
      %v1764 = vmul.f32 %v1761, %v1763
      %v1765 = vadd.f32 %v1761, %v1764
      %vm1766 = vweird.f32 %v1703
      %vm1767 = vweird.f32 %v1761
      %vm1768 = vmor %vm1766, %vm1767
      %v1769 = vsel %vm1768, %v1761, %v1765
      %v1770 = vand.u32 2147483647, %v1703
      %vm1771 = vcmp.eq.f32.partialorder %v1770, 8.507059e+37
      %v1772 = vand.u32 %v1703, 2147483648
      %v1773 = vor.u32 1.1754944e-38, %v1772
      %v1774 = vsel %vm1771, %v1773, %v1769
      %v1775 = vmul.f32 %v1683, %v1774
      %v1776 = vrcp.pop %v1706
      %v1777 = vmul.f32 %v1706, %v1776
      %v1778 = vsub.f32 1.0, %v1777
      %v1779 = vmul.f32 %v1776, %v1778
      %v1780 = vadd.f32 %v1776, %v1779
      %vm1781 = vweird.f32 %v1706
      %vm1782 = vweird.f32 %v1776
      %vm1783 = vmor %vm1781, %vm1782
      %v1784 = vsel %vm1783, %v1776, %v1780
      %v1785 = vand.u32 2147483647, %v1706
      %vm1786 = vcmp.eq.f32.partialorder %v1785, 8.507059e+37
      %v1787 = vand.u32 %v1706, 2147483648
      %v1788 = vor.u32 1.1754944e-38, %v1787
      %v1789 = vsel %vm1786, %v1788, %v1784
      %v1790 = vmul.f32 %v1685, %v1789
      %v1791 = vrcp.pop %v1709
      %v1792 = vmul.f32 %v1709, %v1791
      %v1793 = vsub.f32 1.0, %v1792
      %v1794 = vmul.f32 %v1791, %v1793
      %v1795 = vadd.f32 %v1791, %v1794
      %vm1796 = vweird.f32 %v1709
      %vm1797 = vweird.f32 %v1791
      %vm1798 = vmor %vm1796, %vm1797
      %v1799 = vsel %vm1798, %v1791, %v1795
      %v1800 = vand.u32 2147483647, %v1709
      %vm1801 = vcmp.eq.f32.partialorder %v1800, 8.507059e+37
      %v1802 = vand.u32 %v1709, 2147483648
      %v1803 = vor.u32 1.1754944e-38, %v1802
      %v1804 = vsel %vm1801, %v1803, %v1799
      %v1805 = vmul.f32 %v1687, %v1804
      %v1806 = vrcp.pop %v1712
      %v1807 = vmul.f32 %v1712, %v1806
      %v1808 = vsub.f32 1.0, %v1807
      %v1809 = vmul.f32 %v1806, %v1808
      %v1810 = vadd.f32 %v1806, %v1809
      %vm1811 = vweird.f32 %v1712
      %vm1812 = vweird.f32 %v1806
      %vm1813 = vmor %vm1811, %vm1812
      %v1814 = vsel %vm1813, %v1806, %v1810
      %v1815 = vand.u32 2147483647, %v1712
      %vm1816 = vcmp.eq.f32.partialorder %v1815, 8.507059e+37
      %v1817 = vand.u32 %v1712, 2147483648
      %v1818 = vor.u32 1.1754944e-38, %v1817
      %v1819 = vsel %vm1816, %v1818, %v1814
      %v1820 = vmul.f32 %v1689, %v1819
      %v1821 = vrcp.pop %v1715
      %v1822 = vmul.f32 %v1715, %v1821
      %v1823 = vsub.f32 1.0, %v1822
      %v1824 = vmul.f32 %v1821, %v1823
      %v1825 = vadd.f32 %v1821, %v1824
      %vm1826 = vweird.f32 %v1715
      %vm1827 = vweird.f32 %v1821
      %vm1828 = vmor %vm1826, %vm1827
      %v1829 = vsel %vm1828, %v1821, %v1825
      %v1830 = vand.u32 2147483647, %v1715
      %vm1831 = vcmp.eq.f32.partialorder %v1830, 8.507059e+37
      %v1832 = vand.u32 %v1715, 2147483648
      %v1833 = vor.u32 1.1754944e-38, %v1832
      %v1834 = vsel %vm1831, %v1833, %v1829
      %v1835 = vmul.f32 %v1691, %v1834
      %1836 = vrot.lane.b32.xlu0 %v1415, 96
      %v1837 = vpop.permute.xlu0 %1836
      %v1840 = vsel %vm611, %v1730, 0
      %1842 = vmatpush.msra.mxu0 0.0
      %1843 = vmatpush.msra.mxu0 0.0
      %1844 = vmatpush.msra.mxu0 0.0
      %1845 = vmatpush.msra.mxu0 0.0
      %1846 = vmatpush.msra.mxu0 0.0
      %1847 = vmatpush.msra.mxu0 0.0
      %1848 = vmatpush.msra.mxu0 0.0
      %1849 = vmatpush.msra.mxu0 0.0
      %1850 = vmatpush.msra.mxu0 0.0
      %1851 = vmatpush.msra.mxu0 0.0
      %1852 = vmatpush.msra.mxu0 0.0
      %1853 = vmatpush.msra.mxu0 0.0
      %1854 = vmatpush.msra.mxu0 0.0
      %1855 = vmatpush.msra.mxu0 0.0
      %1856 = vmatpush.msra.mxu0 0.0
      %1857 = vmatpush.msra.mxu0 %v1837
      %1858 = vmatmul.f32.gmra.mxu0 %v1840
      %v1859 = vpop.f32.mrf.mxu0
      %v1860 = vadd.f32 0.0, %v1859
      %1861 = vdwg.mxu0
      %1862 = vrot.lane.b32.xlu0 %v1415, 88
      %v1863 = vpop.permute.xlu0 %1862
      %v1866 = vsel %vm611, %v1745, 0
      %1868 = vmatpush.msra.mxu0 0.0
      %1869 = vmatpush.msra.mxu0 0.0
      %1870 = vmatpush.msra.mxu0 0.0
      %1871 = vmatpush.msra.mxu0 0.0
      %1872 = vmatpush.msra.mxu0 0.0
      %1873 = vmatpush.msra.mxu0 0.0
      %1874 = vmatpush.msra.mxu0 0.0
      %1875 = vmatpush.msra.mxu0 0.0
      %1876 = vmatpush.msra.mxu0 0.0
      %1877 = vmatpush.msra.mxu0 0.0
      %1878 = vmatpush.msra.mxu0 0.0
      %1879 = vmatpush.msra.mxu0 0.0
      %1880 = vmatpush.msra.mxu0 0.0
      %1881 = vmatpush.msra.mxu0 0.0
      %1882 = vmatpush.msra.mxu0 0.0
      %1883 = vmatpush.msra.mxu0 %v1863
      %1884 = vmatmul.f32.gmra.mxu0 %v1866
      %v1885 = vpop.f32.mrf.mxu0
      %v1886 = vadd.f32 0.0, %v1885
      %1887 = vdwg.mxu0
      %1888 = vrot.lane.b32.xlu0 %v1415, 80
      %v1889 = vpop.permute.xlu0 %1888
      %v1892 = vsel %vm611, %v1760, 0
      %1894 = vmatpush.msra.mxu0 0.0
      %1895 = vmatpush.msra.mxu0 0.0
      %1896 = vmatpush.msra.mxu0 0.0
      %1897 = vmatpush.msra.mxu0 0.0
      %1898 = vmatpush.msra.mxu0 0.0
      %1899 = vmatpush.msra.mxu0 0.0
      %1900 = vmatpush.msra.mxu0 0.0
      %1901 = vmatpush.msra.mxu0 0.0
      %1902 = vmatpush.msra.mxu0 0.0
      %1903 = vmatpush.msra.mxu0 0.0
      %1904 = vmatpush.msra.mxu0 0.0
      %1905 = vmatpush.msra.mxu0 0.0
      %1906 = vmatpush.msra.mxu0 0.0
      %1907 = vmatpush.msra.mxu0 0.0
      %1908 = vmatpush.msra.mxu0 0.0
      %1909 = vmatpush.msra.mxu0 %v1889
      %1910 = vmatmul.f32.gmra.mxu0 %v1892
      %v1911 = vpop.f32.mrf.mxu0
      %v1912 = vadd.f32 0.0, %v1911
      %1913 = vdwg.mxu0
      %1914 = vrot.lane.b32.xlu0 %v1415, 72
      %v1915 = vpop.permute.xlu0 %1914
      %v1918 = vsel %vm611, %v1775, 0
      %1920 = vmatpush.msra.mxu0 0.0
      %1921 = vmatpush.msra.mxu0 0.0
      %1922 = vmatpush.msra.mxu0 0.0
      %1923 = vmatpush.msra.mxu0 0.0
      %1924 = vmatpush.msra.mxu0 0.0
      %1925 = vmatpush.msra.mxu0 0.0
      %1926 = vmatpush.msra.mxu0 0.0
      %1927 = vmatpush.msra.mxu0 0.0
      %1928 = vmatpush.msra.mxu0 0.0
      %1929 = vmatpush.msra.mxu0 0.0
      %1930 = vmatpush.msra.mxu0 0.0
      %1931 = vmatpush.msra.mxu0 0.0
      %1932 = vmatpush.msra.mxu0 0.0
      %1933 = vmatpush.msra.mxu0 0.0
      %1934 = vmatpush.msra.mxu0 0.0
      %1935 = vmatpush.msra.mxu0 %v1915
      %1936 = vmatmul.f32.gmra.mxu0 %v1918
      %v1937 = vpop.f32.mrf.mxu0
      %v1938 = vadd.f32 0.0, %v1937
      %1939 = vdwg.mxu0
      %1941 = vrot.lane.b32.xlu0 %v1886, 8
      %v1942 = vpop.permute.xlu0 %1941
      %1945 = vrot.lane.b32.xlu0 %v1912, 16
      %v1946 = vpop.permute.xlu0 %1945
      %1949 = vrot.lane.b32.xlu0 %v1938, 24
      %v1950 = vpop.permute.xlu0 %1949
      %v1952 = vsel %vm611, %v1860, %v1942
      %v1953 = vsel %vm1140, %v1952, %v1946
      %v1954 = vsel %vm1142, %v1953, %v1950
      %1955 = vrot.lane.b32.xlu0 %v1418, 96
      %v1956 = vpop.permute.xlu0 %1955
      %v1959 = vsel %vm611, %v1790, 0
      %1961 = vmatpush.msra.mxu0 0.0
      %1962 = vmatpush.msra.mxu0 0.0
      %1963 = vmatpush.msra.mxu0 0.0
      %1964 = vmatpush.msra.mxu0 0.0
      %1965 = vmatpush.msra.mxu0 0.0
      %1966 = vmatpush.msra.mxu0 0.0
      %1967 = vmatpush.msra.mxu0 0.0
      %1968 = vmatpush.msra.mxu0 0.0
      %1969 = vmatpush.msra.mxu0 0.0
      %1970 = vmatpush.msra.mxu0 0.0
      %1971 = vmatpush.msra.mxu0 0.0
      %1972 = vmatpush.msra.mxu0 0.0
      %1973 = vmatpush.msra.mxu0 0.0
      %1974 = vmatpush.msra.mxu0 0.0
      %1975 = vmatpush.msra.mxu0 0.0
      %1976 = vmatpush.msra.mxu0 %v1956
      %1977 = vmatmul.f32.gmra.mxu0 %v1959
      %v1978 = vpop.f32.mrf.mxu0
      %v1979 = vadd.f32 0.0, %v1978
      %1980 = vdwg.mxu0
      %1981 = vrot.lane.b32.xlu0 %v1418, 88
      %v1982 = vpop.permute.xlu0 %1981
      %v1985 = vsel %vm611, %v1805, 0
      %1987 = vmatpush.msra.mxu0 0.0
      %1988 = vmatpush.msra.mxu0 0.0
      %1989 = vmatpush.msra.mxu0 0.0
      %1990 = vmatpush.msra.mxu0 0.0
      %1991 = vmatpush.msra.mxu0 0.0
      %1992 = vmatpush.msra.mxu0 0.0
      %1993 = vmatpush.msra.mxu0 0.0
      %1994 = vmatpush.msra.mxu0 0.0
      %1995 = vmatpush.msra.mxu0 0.0
      %1996 = vmatpush.msra.mxu0 0.0
      %1997 = vmatpush.msra.mxu0 0.0
      %1998 = vmatpush.msra.mxu0 0.0
      %1999 = vmatpush.msra.mxu0 0.0
      %2000 = vmatpush.msra.mxu0 0.0
      %2001 = vmatpush.msra.mxu0 0.0
      %2002 = vmatpush.msra.mxu0 %v1982
      %2003 = vmatmul.f32.gmra.mxu0 %v1985
      %v2004 = vpop.f32.mrf.mxu0
      %v2005 = vadd.f32 0.0, %v2004
      %2006 = vdwg.mxu0
      %2007 = vrot.lane.b32.xlu0 %v1418, 80
      %v2008 = vpop.permute.xlu0 %2007
      %v2011 = vsel %vm611, %v1820, 0
      %2013 = vmatpush.msra.mxu0 0.0
      %2014 = vmatpush.msra.mxu0 0.0
      %2015 = vmatpush.msra.mxu0 0.0
      %2016 = vmatpush.msra.mxu0 0.0
      %2017 = vmatpush.msra.mxu0 0.0
      %2018 = vmatpush.msra.mxu0 0.0
      %2019 = vmatpush.msra.mxu0 0.0
      %2020 = vmatpush.msra.mxu0 0.0
      %2021 = vmatpush.msra.mxu0 0.0
      %2022 = vmatpush.msra.mxu0 0.0
      %2023 = vmatpush.msra.mxu0 0.0
      %2024 = vmatpush.msra.mxu0 0.0
      %2025 = vmatpush.msra.mxu0 0.0
      %2026 = vmatpush.msra.mxu0 0.0
      %2027 = vmatpush.msra.mxu0 0.0
      %2028 = vmatpush.msra.mxu0 %v2008
      %2029 = vmatmul.f32.gmra.mxu0 %v2011
      %v2030 = vpop.f32.mrf.mxu0
      %v2031 = vadd.f32 0.0, %v2030
      %2032 = vdwg.mxu0
      %2033 = vrot.lane.b32.xlu0 %v1418, 72
      %v2034 = vpop.permute.xlu0 %2033
      %v2037 = vsel %vm611, %v1835, 0
      %2039 = vmatpush.msra.mxu0 0.0
      %2040 = vmatpush.msra.mxu0 0.0
      %2041 = vmatpush.msra.mxu0 0.0
      %2042 = vmatpush.msra.mxu0 0.0
      %2043 = vmatpush.msra.mxu0 0.0
      %2044 = vmatpush.msra.mxu0 0.0
      %2045 = vmatpush.msra.mxu0 0.0
      %2046 = vmatpush.msra.mxu0 0.0
      %2047 = vmatpush.msra.mxu0 0.0
      %2048 = vmatpush.msra.mxu0 0.0
      %2049 = vmatpush.msra.mxu0 0.0
      %2050 = vmatpush.msra.mxu0 0.0
      %2051 = vmatpush.msra.mxu0 0.0
      %2052 = vmatpush.msra.mxu0 0.0
      %2053 = vmatpush.msra.mxu0 0.0
      %2054 = vmatpush.msra.mxu0 %v2034
      %2055 = vmatmul.f32.gmra.mxu0 %v2037
      %v2056 = vpop.f32.mrf.mxu0
      %v2057 = vadd.f32 0.0, %v2056
      %2058 = vdwg.mxu0
      %2060 = vrot.lane.b32.xlu0 %v2005, 8
      %v2061 = vpop.permute.xlu0 %2060
      %2064 = vrot.lane.b32.xlu0 %v2031, 16
      %v2065 = vpop.permute.xlu0 %2064
      %2068 = vrot.lane.b32.xlu0 %v2057, 24
      %v2069 = vpop.permute.xlu0 %2068
      %v2071 = vsel %vm611, %v1979, %v2061
      %v2072 = vsel %vm1140, %v2071, %v2065
      %v2073 = vsel %vm1142, %v2072, %v2069
      %v2074 = vperm.slane %v552, 6
      %v2076 = vsel %vm574, %v1954, 0
      %v2079 = vsel %vm574, %v2073, 0
      %2081 = vmatpush.msra.mxu0 0.0
      %2082 = vmatpush.msra.mxu0 0.0
      %2083 = vmatpush.msra.mxu0 0.0
      %2084 = vmatpush.msra.mxu0 0.0
      %2085 = vmatpush.msra.mxu0 0.0
      %2086 = vmatpush.msra.mxu0 0.0
      %2087 = vmatpush.msra.mxu0 0.0
      %2088 = vmatpush.msra.mxu0 0.0
      %2089 = vmatpush.msra.mxu0 0.0
      %2090 = vmatpush.msra.mxu0 0.0
      %2091 = vmatpush.msra.mxu0 0.0
      %2092 = vmatpush.msra.mxu0 0.0
      %2093 = vmatpush.msra.mxu0 %v1423
      %2094 = vmatpush.msra.mxu0 %v1422
      %2095 = vmatpush.msra.mxu0 %v1421
      %2096 = vmatpush.msra.mxu0 %v1420
      %2097 = vmatmul.f32.gmra.mxu0 %v2076
      %v2098 = vpop.f32.mrf.mxu0
      %v2099 = vadd.f32 %v2074, %v2098
      %2100 = vmatmul.f32.gmra.mxu0 %v2079
      %v2101 = vpop.f32.mrf.mxu0
      %v2102 = vadd.f32 %v2074, %v2101
      %2103 = vdwg.mxu0
      %v2104 = vadd.f32 %v1350, %v2099
      %v2105 = vadd.f32 %v1351, %v2102
      %v2106 = vsel %vm574, %v2104, 0.0
      %2107 = vadd.xlane.f32.xlu0 %v2106
      %v2108 = vpop.xlane.xlu0 %2107
      %v2109 = vsel %vm574, %v2105, 0.0
      %2110 = vadd.xlane.f32.xlu0 %v2109
      %v2111 = vpop.xlane.xlu0 %2110
      %v2112 = vmul.f32 %v2108, %v1307
      %v2113 = vmul.f32 %v2111, %v1307
      %v2114 = vsub.f32 %v2104, %v2112
      %v2115 = vsub.f32 %v2105, %v2113
      %v2116 = vmul.f32 %v2114, %v2114
      %v2117 = vmul.f32 %v2115, %v2115
      %v2118 = vsel %vm574, %v2116, 0.0
      %2119 = vadd.xlane.f32.xlu0 %v2118
      %v2120 = vpop.xlane.xlu0 %2119
      %v2121 = vsel %vm574, %v2117, 0.0
      %2122 = vadd.xlane.f32.xlu0 %v2121
      %v2123 = vpop.xlane.xlu0 %2122
      %v2124 = vmul.f32 %v2120, %v1307
      %v2125 = vmul.f32 %v2123, %v1307
      %v2126 = vadd.f32 %v2124, 1e-05
      %v2127 = vadd.f32 %v2125, 1e-05
      %v2128 = vrsqrt.pop %v2126
      %v2129 = vmul.f32 %v2128, %v2126
      %v2130 = vmul.f32 %v2129, %v2128
      %v2131 = vmul.f32 0.5, %v2130
      %v2132 = vsub.f32 1.5, %v2131
      %v2133 = vmul.f32 %v2128, %v2132
      %vm2134 = vweird.f32 %v2126
      %vm2135 = vweird.f32 %v2128
      %vm2136 = vmor %vm2134, %vm2135
      %v2137 = vsel %vm2136, %v2128, %v2133
      %v2138 = vrsqrt.pop %v2127
      %v2139 = vmul.f32 %v2138, %v2127
      %v2140 = vmul.f32 %v2139, %v2138
      %v2141 = vmul.f32 0.5, %v2140
      %v2142 = vsub.f32 1.5, %v2141
      %v2143 = vmul.f32 %v2138, %v2142
      %vm2144 = vweird.f32 %v2127
      %vm2145 = vweird.f32 %v2138
      %vm2146 = vmor %vm2144, %vm2145
      %v2147 = vsel %vm2146, %v2138, %v2143
      %v2148 = vmul.f32 %v2114, %v2137
      %v2149 = vmul.f32 %v2115, %v2147
      %v2150 = vperm.slane %v552, 7
      %v2151 = vmul.f32 %v2148, %v2150
      %v2152 = vmul.f32 %v2149, %v2150
      %v2153 = vperm.slane %v553, 0
      %v2154 = vadd.f32 %v2151, %v2153
      %v2155 = vadd.f32 %v2152, %v2153
      %v2156 = vld [vmem:[%s528] sm:$0xff]
      %v2157 = vld [vmem:[%s528 + $0x8] sm:$0xff]
      %v2158 = vld [vmem:[%s528 + $0x10] sm:$0xff]
      %v2159 = vld [vmem:[%s528 + $0x18] sm:$0xff]
      %v2160 = vld [vmem:[%s528 + $0x20] sm:$0xff]
      %v2161 = vld [vmem:[%s528 + $0x28] sm:$0xff]
      %v2162 = vld [vmem:[%s528 + $0x30] sm:$0xff]
      %v2163 = vld [vmem:[%s528 + $0x38] sm:$0xff]
      %v2164 = vld [vmem:[%s528 + $0x40] sm:$0xff]
      %v2165 = vld [vmem:[%s528 + $0x48] sm:$0xff]
      %v2166 = vld [vmem:[%s528 + $0x50] sm:$0xff]
      %v2167 = vld [vmem:[%s528 + $0x58] sm:$0xff]
      %v2168 = vld [vmem:[%s528 + $0x60] sm:$0xff]
      %v2169 = vld [vmem:[%s528 + $0x68] sm:$0xff]
      %v2170 = vld [vmem:[%s528 + $0x70] sm:$0xff]
      %v2171 = vld [vmem:[%s528 + $0x78] sm:$0xff]
      %v2172 = vld [vmem:[%s528 + $0x80] sm:$0xff]
      %v2173 = vld [vmem:[%s528 + $0x88] sm:$0xff]
      %v2174 = vld [vmem:[%s528 + $0x90] sm:$0xff]
      %v2175 = vld [vmem:[%s528 + $0x98] sm:$0xff]
      %v2176 = vld [vmem:[%s528 + $0xa0] sm:$0xff]
      %v2177 = vld [vmem:[%s528 + $0xa8] sm:$0xff]
      %v2178 = vld [vmem:[%s528 + $0xb0] sm:$0xff]
      %v2179 = vld [vmem:[%s528 + $0xb8] sm:$0xff]
      %v2180 = vld [vmem:[%s528 + $0xc0] sm:$0xff]
      %v2181 = vld [vmem:[%s528 + $0xc8] sm:$0xff]
      %v2182 = vld [vmem:[%s528 + $0xd0] sm:$0xff]
      %v2183 = vld [vmem:[%s528 + $0xd8] sm:$0xff]
      %v2184 = vld [vmem:[%s528 + $0xe0] sm:$0xff]
      %v2185 = vld [vmem:[%s528 + $0xe8] sm:$0xff]
      %v2186 = vld [vmem:[%s528 + $0xf0] sm:$0xff]
      %v2187 = vld [vmem:[%s528 + $0xf8] sm:$0xff]
      %v2188 = vld [vmem:[%s528 + $0x100] sm:$0xff]
      %v2189 = vld [vmem:[%s528 + $0x108] sm:$0xff]
      %v2190 = vld [vmem:[%s528 + $0x110] sm:$0xff]
      %v2191 = vld [vmem:[%s528 + $0x118] sm:$0xff]
      %v2192 = vld [vmem:[%s528 + $0x120] sm:$0xff]
      %v2193 = vld [vmem:[%s528 + $0x128] sm:$0xff]
      %v2194 = vld [vmem:[%s528 + $0x130] sm:$0xff]
      %v2195 = vld [vmem:[%s528 + $0x138] sm:$0xff]
      %v2196 = vld [vmem:[%s528 + $0x140] sm:$0xff]
      %v2197 = vld [vmem:[%s528 + $0x148] sm:$0xff]
      %v2198 = vld [vmem:[%s528 + $0x150] sm:$0xff]
      %v2199 = vld [vmem:[%s528 + $0x158] sm:$0xff]
      %v2200 = vld [vmem:[%s528 + $0x160] sm:$0xff]
      %v2201 = vld [vmem:[%s528 + $0x168] sm:$0xff]
      %v2202 = vld [vmem:[%s528 + $0x170] sm:$0xff]
      %v2203 = vld [vmem:[%s528 + $0x178] sm:$0xff]
      %v2204 = vld [vmem:[%s528 + $0x180] sm:$0xff]
      %v2205 = vld [vmem:[%s528 + $0x188] sm:$0xff]
      %v2206 = vld [vmem:[%s528 + $0x190] sm:$0xff]
      %v2207 = vld [vmem:[%s528 + $0x198] sm:$0xff]
      %v2208 = vld [vmem:[%s528 + $0x1a0] sm:$0xff]
      %v2209 = vld [vmem:[%s528 + $0x1a8] sm:$0xff]
      %v2210 = vld [vmem:[%s528 + $0x1b0] sm:$0xff]
      %v2211 = vld [vmem:[%s528 + $0x1b8] sm:$0xff]
      %v2212 = vld [vmem:[%s528 + $0x1c0] sm:$0xff]
      %v2213 = vld [vmem:[%s528 + $0x1c8] sm:$0xff]
      %v2214 = vld [vmem:[%s528 + $0x1d0] sm:$0xff]
      %v2215 = vld [vmem:[%s528 + $0x1d8] sm:$0xff]
      %v2216 = vld [vmem:[%s528 + $0x1e0] sm:$0xff]
      %v2217 = vld [vmem:[%s528 + $0x1e8] sm:$0xff]
      %v2218 = vld [vmem:[%s528 + $0x1f0] sm:$0xff]
      %v2219 = vld [vmem:[%s528 + $0x1f8] sm:$0xff]
      %v2220 = vperm.slane %v553, 1
      %v2221 = vperm.slane %v554, 1
      %v2222 = vperm.slane %v555, 1
      %v2223 = vperm.slane %v556, 1
      %v2224 = vperm.slane %v557, 1
      %v2225 = vperm.slane %v558, 1
      %v2226 = vperm.slane %v559, 1
      %v2227 = vperm.slane %v560, 1
      %v2228 = vperm.slane %v561, 1
      %v2229 = vperm.slane %v562, 1
      %v2230 = vperm.slane %v563, 1
      %v2231 = vperm.slane %v564, 1
      %v2232 = vperm.slane %v565, 1
      %v2233 = vperm.slane %v566, 1
      %v2234 = vperm.slane %v567, 1
      %v2235 = vperm.slane %v568, 1
      %v2237 = vsel %vm574, %v2154, 0
      %v2240 = vsel %vm574, %v2155, 0
      %2242 = vmatpush.msra.mxu0 0.0
      %2243 = vmatpush.msra.mxu0 0.0
      %2244 = vmatpush.msra.mxu0 0.0
      %2245 = vmatpush.msra.mxu0 0.0
      %2246 = vmatpush.msra.mxu0 0.0
      %2247 = vmatpush.msra.mxu0 0.0
      %2248 = vmatpush.msra.mxu0 0.0
      %2249 = vmatpush.msra.mxu0 0.0
      %2250 = vmatpush.msra.mxu0 0.0
      %2251 = vmatpush.msra.mxu0 0.0
      %2252 = vmatpush.msra.mxu0 0.0
      %2253 = vmatpush.msra.mxu0 0.0
      %2254 = vmatpush.msra.mxu0 %v2204
      %2255 = vmatpush.msra.mxu0 %v2188
      %2256 = vmatpush.msra.mxu0 %v2172
      %2257 = vmatpush.msra.mxu0 %v2156
      %2258 = vmatmul.f32.gmra.mxu0 %v2237
      %v2259 = vpop.f32.mrf.mxu0
      %v2260 = vadd.f32 %v2220, %v2259
      %2261 = vmatmul.f32.gmra.mxu0 %v2240
      %v2262 = vpop.f32.mrf.mxu0
      %v2263 = vadd.f32 %v2220, %v2262
      %2264 = vdwg.mxu0
      %2265 = vmatpush.msra.mxu0 0.0
      %2266 = vmatpush.msra.mxu0 0.0
      %2267 = vmatpush.msra.mxu0 0.0
      %2268 = vmatpush.msra.mxu0 0.0
      %2269 = vmatpush.msra.mxu0 0.0
      %2270 = vmatpush.msra.mxu0 0.0
      %2271 = vmatpush.msra.mxu0 0.0
      %2272 = vmatpush.msra.mxu0 0.0
      %2273 = vmatpush.msra.mxu0 0.0
      %2274 = vmatpush.msra.mxu0 0.0
      %2275 = vmatpush.msra.mxu0 0.0
      %2276 = vmatpush.msra.mxu0 0.0
      %2277 = vmatpush.msra.mxu0 %v2205
      %2278 = vmatpush.msra.mxu0 %v2189
      %2279 = vmatpush.msra.mxu0 %v2173
      %2280 = vmatpush.msra.mxu0 %v2157
      %2281 = vmatmul.f32.gmra.mxu0 %v2237
      %v2282 = vpop.f32.mrf.mxu0
      %v2283 = vadd.f32 %v2221, %v2282
      %2284 = vmatmul.f32.gmra.mxu0 %v2240
      %v2285 = vpop.f32.mrf.mxu0
      %v2286 = vadd.f32 %v2221, %v2285
      %2287 = vdwg.mxu0
      %2288 = vmatpush.msra.mxu0 0.0
      %2289 = vmatpush.msra.mxu0 0.0
      %2290 = vmatpush.msra.mxu0 0.0
      %2291 = vmatpush.msra.mxu0 0.0
      %2292 = vmatpush.msra.mxu0 0.0
      %2293 = vmatpush.msra.mxu0 0.0
      %2294 = vmatpush.msra.mxu0 0.0
      %2295 = vmatpush.msra.mxu0 0.0
      %2296 = vmatpush.msra.mxu0 0.0
      %2297 = vmatpush.msra.mxu0 0.0
      %2298 = vmatpush.msra.mxu0 0.0
      %2299 = vmatpush.msra.mxu0 0.0
      %2300 = vmatpush.msra.mxu0 %v2206
      %2301 = vmatpush.msra.mxu0 %v2190
      %2302 = vmatpush.msra.mxu0 %v2174
      %2303 = vmatpush.msra.mxu0 %v2158
      %2304 = vmatmul.f32.gmra.mxu0 %v2237
      %v2305 = vpop.f32.mrf.mxu0
      %v2306 = vadd.f32 %v2222, %v2305
      %2307 = vmatmul.f32.gmra.mxu0 %v2240
      %v2308 = vpop.f32.mrf.mxu0
      %v2309 = vadd.f32 %v2222, %v2308
      %2310 = vdwg.mxu0
      %2311 = vmatpush.msra.mxu0 0.0
      %2312 = vmatpush.msra.mxu0 0.0
      %2313 = vmatpush.msra.mxu0 0.0
      %2314 = vmatpush.msra.mxu0 0.0
      %2315 = vmatpush.msra.mxu0 0.0
      %2316 = vmatpush.msra.mxu0 0.0
      %2317 = vmatpush.msra.mxu0 0.0
      %2318 = vmatpush.msra.mxu0 0.0
      %2319 = vmatpush.msra.mxu0 0.0
      %2320 = vmatpush.msra.mxu0 0.0
      %2321 = vmatpush.msra.mxu0 0.0
      %2322 = vmatpush.msra.mxu0 0.0
      %2323 = vmatpush.msra.mxu0 %v2207
      %2324 = vmatpush.msra.mxu0 %v2191
      %2325 = vmatpush.msra.mxu0 %v2175
      %2326 = vmatpush.msra.mxu0 %v2159
      %2327 = vmatmul.f32.gmra.mxu0 %v2237
      %v2328 = vpop.f32.mrf.mxu0
      %v2329 = vadd.f32 %v2223, %v2328
      %2330 = vmatmul.f32.gmra.mxu0 %v2240
      %v2331 = vpop.f32.mrf.mxu0
      %v2332 = vadd.f32 %v2223, %v2331
      %2333 = vdwg.mxu0
      %2334 = vmatpush.msra.mxu0 0.0
      %2335 = vmatpush.msra.mxu0 0.0
      %2336 = vmatpush.msra.mxu0 0.0
      %2337 = vmatpush.msra.mxu0 0.0
      %2338 = vmatpush.msra.mxu0 0.0
      %2339 = vmatpush.msra.mxu0 0.0
      %2340 = vmatpush.msra.mxu0 0.0
      %2341 = vmatpush.msra.mxu0 0.0
      %2342 = vmatpush.msra.mxu0 0.0
      %2343 = vmatpush.msra.mxu0 0.0
      %2344 = vmatpush.msra.mxu0 0.0
      %2345 = vmatpush.msra.mxu0 0.0
      %2346 = vmatpush.msra.mxu0 %v2208
      %2347 = vmatpush.msra.mxu0 %v2192
      %2348 = vmatpush.msra.mxu0 %v2176
      %2349 = vmatpush.msra.mxu0 %v2160
      %2350 = vmatmul.f32.gmra.mxu0 %v2237
      %v2351 = vpop.f32.mrf.mxu0
      %v2352 = vadd.f32 %v2224, %v2351
      %2353 = vmatmul.f32.gmra.mxu0 %v2240
      %v2354 = vpop.f32.mrf.mxu0
      %v2355 = vadd.f32 %v2224, %v2354
      %2356 = vdwg.mxu0
      %2357 = vmatpush.msra.mxu0 0.0
      %2358 = vmatpush.msra.mxu0 0.0
      %2359 = vmatpush.msra.mxu0 0.0
      %2360 = vmatpush.msra.mxu0 0.0
      %2361 = vmatpush.msra.mxu0 0.0
      %2362 = vmatpush.msra.mxu0 0.0
      %2363 = vmatpush.msra.mxu0 0.0
      %2364 = vmatpush.msra.mxu0 0.0
      %2365 = vmatpush.msra.mxu0 0.0
      %2366 = vmatpush.msra.mxu0 0.0
      %2367 = vmatpush.msra.mxu0 0.0
      %2368 = vmatpush.msra.mxu0 0.0
      %2369 = vmatpush.msra.mxu0 %v2209
      %2370 = vmatpush.msra.mxu0 %v2193
      %2371 = vmatpush.msra.mxu0 %v2177
      %2372 = vmatpush.msra.mxu0 %v2161
      %2373 = vmatmul.f32.gmra.mxu0 %v2237
      %v2374 = vpop.f32.mrf.mxu0
      %v2375 = vadd.f32 %v2225, %v2374
      %2376 = vmatmul.f32.gmra.mxu0 %v2240
      %v2377 = vpop.f32.mrf.mxu0
      %v2378 = vadd.f32 %v2225, %v2377
      %2379 = vdwg.mxu0
      %2380 = vmatpush.msra.mxu0 0.0
      %2381 = vmatpush.msra.mxu0 0.0
      %2382 = vmatpush.msra.mxu0 0.0
      %2383 = vmatpush.msra.mxu0 0.0
      %2384 = vmatpush.msra.mxu0 0.0
      %2385 = vmatpush.msra.mxu0 0.0
      %2386 = vmatpush.msra.mxu0 0.0
      %2387 = vmatpush.msra.mxu0 0.0
      %2388 = vmatpush.msra.mxu0 0.0
      %2389 = vmatpush.msra.mxu0 0.0
      %2390 = vmatpush.msra.mxu0 0.0
      %2391 = vmatpush.msra.mxu0 0.0
      %2392 = vmatpush.msra.mxu0 %v2210
      %2393 = vmatpush.msra.mxu0 %v2194
      %2394 = vmatpush.msra.mxu0 %v2178
      %2395 = vmatpush.msra.mxu0 %v2162
      %2396 = vmatmul.f32.gmra.mxu0 %v2237
      %v2397 = vpop.f32.mrf.mxu0
      %v2398 = vadd.f32 %v2226, %v2397
      %2399 = vmatmul.f32.gmra.mxu0 %v2240
      %v2400 = vpop.f32.mrf.mxu0
      %v2401 = vadd.f32 %v2226, %v2400
      %2402 = vdwg.mxu0
      %2403 = vmatpush.msra.mxu0 0.0
      %2404 = vmatpush.msra.mxu0 0.0
      %2405 = vmatpush.msra.mxu0 0.0
      %2406 = vmatpush.msra.mxu0 0.0
      %2407 = vmatpush.msra.mxu0 0.0
      %2408 = vmatpush.msra.mxu0 0.0
      %2409 = vmatpush.msra.mxu0 0.0
      %2410 = vmatpush.msra.mxu0 0.0
      %2411 = vmatpush.msra.mxu0 0.0
      %2412 = vmatpush.msra.mxu0 0.0
      %2413 = vmatpush.msra.mxu0 0.0
      %2414 = vmatpush.msra.mxu0 0.0
      %2415 = vmatpush.msra.mxu0 %v2211
      %2416 = vmatpush.msra.mxu0 %v2195
      %2417 = vmatpush.msra.mxu0 %v2179
      %2418 = vmatpush.msra.mxu0 %v2163
      %2419 = vmatmul.f32.gmra.mxu0 %v2237
      %v2420 = vpop.f32.mrf.mxu0
      %v2421 = vadd.f32 %v2227, %v2420
      %2422 = vmatmul.f32.gmra.mxu0 %v2240
      %v2423 = vpop.f32.mrf.mxu0
      %v2424 = vadd.f32 %v2227, %v2423
      %2425 = vdwg.mxu0
      %2426 = vmatpush.msra.mxu0 0.0
      %2427 = vmatpush.msra.mxu0 0.0
      %2428 = vmatpush.msra.mxu0 0.0
      %2429 = vmatpush.msra.mxu0 0.0
      %2430 = vmatpush.msra.mxu0 0.0
      %2431 = vmatpush.msra.mxu0 0.0
      %2432 = vmatpush.msra.mxu0 0.0
      %2433 = vmatpush.msra.mxu0 0.0
      %2434 = vmatpush.msra.mxu0 0.0
      %2435 = vmatpush.msra.mxu0 0.0
      %2436 = vmatpush.msra.mxu0 0.0
      %2437 = vmatpush.msra.mxu0 0.0
      %2438 = vmatpush.msra.mxu0 %v2212
      %2439 = vmatpush.msra.mxu0 %v2196
      %2440 = vmatpush.msra.mxu0 %v2180
      %2441 = vmatpush.msra.mxu0 %v2164
      %2442 = vmatmul.f32.gmra.mxu0 %v2237
      %v2443 = vpop.f32.mrf.mxu0
      %v2444 = vadd.f32 %v2228, %v2443
      %2445 = vmatmul.f32.gmra.mxu0 %v2240
      %v2446 = vpop.f32.mrf.mxu0
      %v2447 = vadd.f32 %v2228, %v2446
      %2448 = vdwg.mxu0
      %2449 = vmatpush.msra.mxu0 0.0
      %2450 = vmatpush.msra.mxu0 0.0
      %2451 = vmatpush.msra.mxu0 0.0
      %2452 = vmatpush.msra.mxu0 0.0
      %2453 = vmatpush.msra.mxu0 0.0
      %2454 = vmatpush.msra.mxu0 0.0
      %2455 = vmatpush.msra.mxu0 0.0
      %2456 = vmatpush.msra.mxu0 0.0
      %2457 = vmatpush.msra.mxu0 0.0
      %2458 = vmatpush.msra.mxu0 0.0
      %2459 = vmatpush.msra.mxu0 0.0
      %2460 = vmatpush.msra.mxu0 0.0
      %2461 = vmatpush.msra.mxu0 %v2213
      %2462 = vmatpush.msra.mxu0 %v2197
      %2463 = vmatpush.msra.mxu0 %v2181
      %2464 = vmatpush.msra.mxu0 %v2165
      %2465 = vmatmul.f32.gmra.mxu0 %v2237
      %v2466 = vpop.f32.mrf.mxu0
      %v2467 = vadd.f32 %v2229, %v2466
      %2468 = vmatmul.f32.gmra.mxu0 %v2240
      %v2469 = vpop.f32.mrf.mxu0
      %v2470 = vadd.f32 %v2229, %v2469
      %2471 = vdwg.mxu0
      %2472 = vmatpush.msra.mxu0 0.0
      %2473 = vmatpush.msra.mxu0 0.0
      %2474 = vmatpush.msra.mxu0 0.0
      %2475 = vmatpush.msra.mxu0 0.0
      %2476 = vmatpush.msra.mxu0 0.0
      %2477 = vmatpush.msra.mxu0 0.0
      %2478 = vmatpush.msra.mxu0 0.0
      %2479 = vmatpush.msra.mxu0 0.0
      %2480 = vmatpush.msra.mxu0 0.0
      %2481 = vmatpush.msra.mxu0 0.0
      %2482 = vmatpush.msra.mxu0 0.0
      %2483 = vmatpush.msra.mxu0 0.0
      %2484 = vmatpush.msra.mxu0 %v2214
      %2485 = vmatpush.msra.mxu0 %v2198
      %2486 = vmatpush.msra.mxu0 %v2182
      %2487 = vmatpush.msra.mxu0 %v2166
      %2488 = vmatmul.f32.gmra.mxu0 %v2237
      %v2489 = vpop.f32.mrf.mxu0
      %v2490 = vadd.f32 %v2230, %v2489
      %2491 = vmatmul.f32.gmra.mxu0 %v2240
      %v2492 = vpop.f32.mrf.mxu0
      %v2493 = vadd.f32 %v2230, %v2492
      %2494 = vdwg.mxu0
      %2495 = vmatpush.msra.mxu0 0.0
      %2496 = vmatpush.msra.mxu0 0.0
      %2497 = vmatpush.msra.mxu0 0.0
      %2498 = vmatpush.msra.mxu0 0.0
      %2499 = vmatpush.msra.mxu0 0.0
      %2500 = vmatpush.msra.mxu0 0.0
      %2501 = vmatpush.msra.mxu0 0.0
      %2502 = vmatpush.msra.mxu0 0.0
      %2503 = vmatpush.msra.mxu0 0.0
      %2504 = vmatpush.msra.mxu0 0.0
      %2505 = vmatpush.msra.mxu0 0.0
      %2506 = vmatpush.msra.mxu0 0.0
      %2507 = vmatpush.msra.mxu0 %v2215
      %2508 = vmatpush.msra.mxu0 %v2199
      %2509 = vmatpush.msra.mxu0 %v2183
      %2510 = vmatpush.msra.mxu0 %v2167
      %2511 = vmatmul.f32.gmra.mxu0 %v2237
      %v2512 = vpop.f32.mrf.mxu0
      %v2513 = vadd.f32 %v2231, %v2512
      %2514 = vmatmul.f32.gmra.mxu0 %v2240
      %v2515 = vpop.f32.mrf.mxu0
      %v2516 = vadd.f32 %v2231, %v2515
      %2517 = vdwg.mxu0
      %2518 = vmatpush.msra.mxu0 0.0
      %2519 = vmatpush.msra.mxu0 0.0
      %2520 = vmatpush.msra.mxu0 0.0
      %2521 = vmatpush.msra.mxu0 0.0
      %2522 = vmatpush.msra.mxu0 0.0
      %2523 = vmatpush.msra.mxu0 0.0
      %2524 = vmatpush.msra.mxu0 0.0
      %2525 = vmatpush.msra.mxu0 0.0
      %2526 = vmatpush.msra.mxu0 0.0
      %2527 = vmatpush.msra.mxu0 0.0
      %2528 = vmatpush.msra.mxu0 0.0
      %2529 = vmatpush.msra.mxu0 0.0
      %2530 = vmatpush.msra.mxu0 %v2216
      %2531 = vmatpush.msra.mxu0 %v2200
      %2532 = vmatpush.msra.mxu0 %v2184
      %2533 = vmatpush.msra.mxu0 %v2168
      %2534 = vmatmul.f32.gmra.mxu0 %v2237
      %v2535 = vpop.f32.mrf.mxu0
      %v2536 = vadd.f32 %v2232, %v2535
      %2537 = vmatmul.f32.gmra.mxu0 %v2240
      %v2538 = vpop.f32.mrf.mxu0
      %v2539 = vadd.f32 %v2232, %v2538
      %2540 = vdwg.mxu0
      %2541 = vmatpush.msra.mxu0 0.0
      %2542 = vmatpush.msra.mxu0 0.0
      %2543 = vmatpush.msra.mxu0 0.0
      %2544 = vmatpush.msra.mxu0 0.0
      %2545 = vmatpush.msra.mxu0 0.0
      %2546 = vmatpush.msra.mxu0 0.0
      %2547 = vmatpush.msra.mxu0 0.0
      %2548 = vmatpush.msra.mxu0 0.0
      %2549 = vmatpush.msra.mxu0 0.0
      %2550 = vmatpush.msra.mxu0 0.0
      %2551 = vmatpush.msra.mxu0 0.0
      %2552 = vmatpush.msra.mxu0 0.0
      %2553 = vmatpush.msra.mxu0 %v2217
      %2554 = vmatpush.msra.mxu0 %v2201
      %2555 = vmatpush.msra.mxu0 %v2185
      %2556 = vmatpush.msra.mxu0 %v2169
      %2557 = vmatmul.f32.gmra.mxu0 %v2237
      %v2558 = vpop.f32.mrf.mxu0
      %v2559 = vadd.f32 %v2233, %v2558
      %2560 = vmatmul.f32.gmra.mxu0 %v2240
      %v2561 = vpop.f32.mrf.mxu0
      %v2562 = vadd.f32 %v2233, %v2561
      %2563 = vdwg.mxu0
      %2564 = vmatpush.msra.mxu0 0.0
      %2565 = vmatpush.msra.mxu0 0.0
      %2566 = vmatpush.msra.mxu0 0.0
      %2567 = vmatpush.msra.mxu0 0.0
      %2568 = vmatpush.msra.mxu0 0.0
      %2569 = vmatpush.msra.mxu0 0.0
      %2570 = vmatpush.msra.mxu0 0.0
      %2571 = vmatpush.msra.mxu0 0.0
      %2572 = vmatpush.msra.mxu0 0.0
      %2573 = vmatpush.msra.mxu0 0.0
      %2574 = vmatpush.msra.mxu0 0.0
      %2575 = vmatpush.msra.mxu0 0.0
      %2576 = vmatpush.msra.mxu0 %v2218
      %2577 = vmatpush.msra.mxu0 %v2202
      %2578 = vmatpush.msra.mxu0 %v2186
      %2579 = vmatpush.msra.mxu0 %v2170
      %2580 = vmatmul.f32.gmra.mxu0 %v2237
      %v2581 = vpop.f32.mrf.mxu0
      %v2582 = vadd.f32 %v2234, %v2581
      %2583 = vmatmul.f32.gmra.mxu0 %v2240
      %v2584 = vpop.f32.mrf.mxu0
      %v2585 = vadd.f32 %v2234, %v2584
      %2586 = vdwg.mxu0
      %2587 = vmatpush.msra.mxu0 0.0
      %2588 = vmatpush.msra.mxu0 0.0
      %2589 = vmatpush.msra.mxu0 0.0
      %2590 = vmatpush.msra.mxu0 0.0
      %2591 = vmatpush.msra.mxu0 0.0
      %2592 = vmatpush.msra.mxu0 0.0
      %2593 = vmatpush.msra.mxu0 0.0
      %2594 = vmatpush.msra.mxu0 0.0
      %2595 = vmatpush.msra.mxu0 0.0
      %2596 = vmatpush.msra.mxu0 0.0
      %2597 = vmatpush.msra.mxu0 0.0
      %2598 = vmatpush.msra.mxu0 0.0
      %2599 = vmatpush.msra.mxu0 %v2219
      %2600 = vmatpush.msra.mxu0 %v2203
      %2601 = vmatpush.msra.mxu0 %v2187
      %2602 = vmatpush.msra.mxu0 %v2171
      %2603 = vmatmul.f32.gmra.mxu0 %v2237
      %v2604 = vpop.f32.mrf.mxu0
      %v2605 = vadd.f32 %v2235, %v2604
      %2606 = vmatmul.f32.gmra.mxu0 %v2240
      %v2607 = vpop.f32.mrf.mxu0
      %v2608 = vadd.f32 %v2235, %v2607
      %2609 = vdwg.mxu0
      %v2610 = vmax.f32 %v2260, 0.0
      %v2611 = vmax.f32 %v2283, 0.0
      %v2612 = vmax.f32 %v2306, 0.0
      %v2613 = vmax.f32 %v2329, 0.0
      %v2614 = vmax.f32 %v2352, 0.0
      %v2615 = vmax.f32 %v2375, 0.0
      %v2616 = vmax.f32 %v2398, 0.0
      %v2617 = vmax.f32 %v2421, 0.0
      %v2618 = vmax.f32 %v2444, 0.0
      %v2619 = vmax.f32 %v2467, 0.0
      %v2620 = vmax.f32 %v2490, 0.0
      %v2621 = vmax.f32 %v2513, 0.0
      %v2622 = vmax.f32 %v2536, 0.0
      %v2623 = vmax.f32 %v2559, 0.0
      %v2624 = vmax.f32 %v2582, 0.0
      %v2625 = vmax.f32 %v2605, 0.0
      %v2626 = vmax.f32 %v2263, 0.0
      %v2627 = vmax.f32 %v2286, 0.0
      %v2628 = vmax.f32 %v2309, 0.0
      %v2629 = vmax.f32 %v2332, 0.0
      %v2630 = vmax.f32 %v2355, 0.0
      %v2631 = vmax.f32 %v2378, 0.0
      %v2632 = vmax.f32 %v2401, 0.0
      %v2633 = vmax.f32 %v2424, 0.0
      %v2634 = vmax.f32 %v2447, 0.0
      %v2635 = vmax.f32 %v2470, 0.0
      %v2636 = vmax.f32 %v2493, 0.0
      %v2637 = vmax.f32 %v2516, 0.0
      %v2638 = vmax.f32 %v2539, 0.0
      %v2639 = vmax.f32 %v2562, 0.0
      %v2640 = vmax.f32 %v2585, 0.0
      %v2641 = vmax.f32 %v2608, 0.0
      %v2642 = vld [vmem:[%s533] sm:$0xff]
      %v2643 = vld [vmem:[%s533 + $0x8] sm:$0xff]
      %v2644 = vld [vmem:[%s533 + $0x10] sm:$0xff]
      %v2645 = vld [vmem:[%s533 + $0x18] sm:$0xff]
      %v2646 = vld [vmem:[%s533 + $0x20] sm:$0xff]
      %v2647 = vld [vmem:[%s533 + $0x28] sm:$0xff]
      %v2648 = vld [vmem:[%s533 + $0x30] sm:$0xff]
      %v2649 = vld [vmem:[%s533 + $0x38] sm:$0xff]
      %v2650 = vld [vmem:[%s533 + $0x40] sm:$0xff]
      %v2651 = vld [vmem:[%s533 + $0x48] sm:$0xff]
      %v2652 = vld [vmem:[%s533 + $0x50] sm:$0xff]
      %v2653 = vld [vmem:[%s533 + $0x58] sm:$0xff]
      %v2654 = vld [vmem:[%s533 + $0x60] sm:$0xff]
      %v2655 = vld [vmem:[%s533 + $0x68] sm:$0xff]
      %v2656 = vld [vmem:[%s533 + $0x70] sm:$0xff]
      %v2657 = vld [vmem:[%s533 + $0x78] sm:$0xff]
      %v2658 = vld [vmem:[%s533 + $0x80] sm:$0xff]
      %v2659 = vld [vmem:[%s533 + $0x88] sm:$0xff]
      %v2660 = vld [vmem:[%s533 + $0x90] sm:$0xff]
      %v2661 = vld [vmem:[%s533 + $0x98] sm:$0xff]
      %v2662 = vld [vmem:[%s533 + $0xa0] sm:$0xff]
      %v2663 = vld [vmem:[%s533 + $0xa8] sm:$0xff]
      %v2664 = vld [vmem:[%s533 + $0xb0] sm:$0xff]
      %v2665 = vld [vmem:[%s533 + $0xb8] sm:$0xff]
      %v2666 = vld [vmem:[%s533 + $0xc0] sm:$0xff]
      %v2667 = vld [vmem:[%s533 + $0xc8] sm:$0xff]
      %v2668 = vld [vmem:[%s533 + $0xd0] sm:$0xff]
      %v2669 = vld [vmem:[%s533 + $0xd8] sm:$0xff]
      %v2670 = vld [vmem:[%s533 + $0xe0] sm:$0xff]
      %v2671 = vld [vmem:[%s533 + $0xe8] sm:$0xff]
      %v2672 = vld [vmem:[%s533 + $0xf0] sm:$0xff]
      %v2673 = vld [vmem:[%s533 + $0xf8] sm:$0xff]
      %v2674 = vld [vmem:[%s533 + $0x100] sm:$0xff]
      %v2675 = vld [vmem:[%s533 + $0x108] sm:$0xff]
      %v2676 = vld [vmem:[%s533 + $0x110] sm:$0xff]
      %v2677 = vld [vmem:[%s533 + $0x118] sm:$0xff]
      %v2678 = vld [vmem:[%s533 + $0x120] sm:$0xff]
      %v2679 = vld [vmem:[%s533 + $0x128] sm:$0xff]
      %v2680 = vld [vmem:[%s533 + $0x130] sm:$0xff]
      %v2681 = vld [vmem:[%s533 + $0x138] sm:$0xff]
      %v2682 = vld [vmem:[%s533 + $0x140] sm:$0xff]
      %v2683 = vld [vmem:[%s533 + $0x148] sm:$0xff]
      %v2684 = vld [vmem:[%s533 + $0x150] sm:$0xff]
      %v2685 = vld [vmem:[%s533 + $0x158] sm:$0xff]
      %v2686 = vld [vmem:[%s533 + $0x160] sm:$0xff]
      %v2687 = vld [vmem:[%s533 + $0x168] sm:$0xff]
      %v2688 = vld [vmem:[%s533 + $0x170] sm:$0xff]
      %v2689 = vld [vmem:[%s533 + $0x178] sm:$0xff]
      %v2690 = vld [vmem:[%s533 + $0x180] sm:$0xff]
      %v2691 = vld [vmem:[%s533 + $0x188] sm:$0xff]
      %v2692 = vld [vmem:[%s533 + $0x190] sm:$0xff]
      %v2693 = vld [vmem:[%s533 + $0x198] sm:$0xff]
      %v2694 = vld [vmem:[%s533 + $0x1a0] sm:$0xff]
      %v2695 = vld [vmem:[%s533 + $0x1a8] sm:$0xff]
      %v2696 = vld [vmem:[%s533 + $0x1b0] sm:$0xff]
      %v2697 = vld [vmem:[%s533 + $0x1b8] sm:$0xff]
      %v2698 = vld [vmem:[%s533 + $0x1c0] sm:$0xff]
      %v2699 = vld [vmem:[%s533 + $0x1c8] sm:$0xff]
      %v2700 = vld [vmem:[%s533 + $0x1d0] sm:$0xff]
      %v2701 = vld [vmem:[%s533 + $0x1d8] sm:$0xff]
      %v2702 = vld [vmem:[%s533 + $0x1e0] sm:$0xff]
      %v2703 = vld [vmem:[%s533 + $0x1e8] sm:$0xff]
      %v2704 = vld [vmem:[%s533 + $0x1f0] sm:$0xff]
      %v2705 = vld [vmem:[%s533 + $0x1f8] sm:$0xff]
      %v2706 = vld [vmem:[%s533 + $0x200] sm:$0xff]
      %v2707 = vld [vmem:[%s533 + $0x208] sm:$0xff]
      %v2708 = vld [vmem:[%s533 + $0x210] sm:$0xff]
      %v2709 = vld [vmem:[%s533 + $0x218] sm:$0xff]
      %v2710 = vld [vmem:[%s533 + $0x220] sm:$0xff]
      %v2711 = vld [vmem:[%s533 + $0x228] sm:$0xff]
      %v2712 = vld [vmem:[%s533 + $0x230] sm:$0xff]
      %v2713 = vld [vmem:[%s533 + $0x238] sm:$0xff]
      %v2714 = vld [vmem:[%s533 + $0x240] sm:$0xff]
      %v2715 = vld [vmem:[%s533 + $0x248] sm:$0xff]
      %v2716 = vld [vmem:[%s533 + $0x250] sm:$0xff]
      %v2717 = vld [vmem:[%s533 + $0x258] sm:$0xff]
      %v2718 = vld [vmem:[%s533 + $0x260] sm:$0xff]
      %v2719 = vld [vmem:[%s533 + $0x268] sm:$0xff]
      %v2720 = vld [vmem:[%s533 + $0x270] sm:$0xff]
      %v2721 = vld [vmem:[%s533 + $0x278] sm:$0xff]
      %v2722 = vld [vmem:[%s533 + $0x280] sm:$0xff]
      %v2723 = vld [vmem:[%s533 + $0x288] sm:$0xff]
      %v2724 = vld [vmem:[%s533 + $0x290] sm:$0xff]
      %v2725 = vld [vmem:[%s533 + $0x298] sm:$0xff]
      %v2726 = vld [vmem:[%s533 + $0x2a0] sm:$0xff]
      %v2727 = vld [vmem:[%s533 + $0x2a8] sm:$0xff]
      %v2728 = vld [vmem:[%s533 + $0x2b0] sm:$0xff]
      %v2729 = vld [vmem:[%s533 + $0x2b8] sm:$0xff]
      %v2730 = vld [vmem:[%s533 + $0x2c0] sm:$0xff]
      %v2731 = vld [vmem:[%s533 + $0x2c8] sm:$0xff]
      %v2732 = vld [vmem:[%s533 + $0x2d0] sm:$0xff]
      %v2733 = vld [vmem:[%s533 + $0x2d8] sm:$0xff]
      %v2734 = vld [vmem:[%s533 + $0x2e0] sm:$0xff]
      %v2735 = vld [vmem:[%s533 + $0x2e8] sm:$0xff]
      %v2736 = vld [vmem:[%s533 + $0x2f0] sm:$0xff]
      %v2737 = vld [vmem:[%s533 + $0x2f8] sm:$0xff]
      %v2738 = vld [vmem:[%s533 + $0x300] sm:$0xff]
      %v2739 = vld [vmem:[%s533 + $0x308] sm:$0xff]
      %v2740 = vld [vmem:[%s533 + $0x310] sm:$0xff]
      %v2741 = vld [vmem:[%s533 + $0x318] sm:$0xff]
      %v2742 = vld [vmem:[%s533 + $0x320] sm:$0xff]
      %v2743 = vld [vmem:[%s533 + $0x328] sm:$0xff]
      %v2744 = vld [vmem:[%s533 + $0x330] sm:$0xff]
      %v2745 = vld [vmem:[%s533 + $0x338] sm:$0xff]
      %v2746 = vld [vmem:[%s533 + $0x340] sm:$0xff]
      %v2747 = vld [vmem:[%s533 + $0x348] sm:$0xff]
      %v2748 = vld [vmem:[%s533 + $0x350] sm:$0xff]
      %v2749 = vld [vmem:[%s533 + $0x358] sm:$0xff]
      %v2750 = vld [vmem:[%s533 + $0x360] sm:$0xff]
      %v2751 = vld [vmem:[%s533 + $0x368] sm:$0xff]
      %v2752 = vld [vmem:[%s533 + $0x370] sm:$0xff]
      %v2753 = vld [vmem:[%s533 + $0x378] sm:$0xff]
      %v2754 = vld [vmem:[%s533 + $0x380] sm:$0xff]
      %v2755 = vld [vmem:[%s533 + $0x388] sm:$0xff]
      %v2756 = vld [vmem:[%s533 + $0x390] sm:$0xff]
      %v2757 = vld [vmem:[%s533 + $0x398] sm:$0xff]
      %v2758 = vld [vmem:[%s533 + $0x3a0] sm:$0xff]
      %v2759 = vld [vmem:[%s533 + $0x3a8] sm:$0xff]
      %v2760 = vld [vmem:[%s533 + $0x3b0] sm:$0xff]
      %v2761 = vld [vmem:[%s533 + $0x3b8] sm:$0xff]
      %v2762 = vld [vmem:[%s533 + $0x3c0] sm:$0xff]
      %v2763 = vld [vmem:[%s533 + $0x3c8] sm:$0xff]
      %v2764 = vld [vmem:[%s533 + $0x3d0] sm:$0xff]
      %v2765 = vld [vmem:[%s533 + $0x3d8] sm:$0xff]
      %v2766 = vld [vmem:[%s533 + $0x3e0] sm:$0xff]
      %v2767 = vld [vmem:[%s533 + $0x3e8] sm:$0xff]
      %v2768 = vld [vmem:[%s533 + $0x3f0] sm:$0xff]
      %v2769 = vld [vmem:[%s533 + $0x3f8] sm:$0xff]
      %v2770 = vld [vmem:[%s533 + $0x400] sm:$0xff]
      %v2771 = vld [vmem:[%s533 + $0x408] sm:$0xff]
      %v2772 = vld [vmem:[%s533 + $0x410] sm:$0xff]
      %v2773 = vld [vmem:[%s533 + $0x418] sm:$0xff]
      %v2774 = vld [vmem:[%s533 + $0x420] sm:$0xff]
      %v2775 = vld [vmem:[%s533 + $0x428] sm:$0xff]
      %v2776 = vld [vmem:[%s533 + $0x430] sm:$0xff]
      %v2777 = vld [vmem:[%s533 + $0x438] sm:$0xff]
      %v2778 = vld [vmem:[%s533 + $0x440] sm:$0xff]
      %v2779 = vld [vmem:[%s533 + $0x448] sm:$0xff]
      %v2780 = vld [vmem:[%s533 + $0x450] sm:$0xff]
      %v2781 = vld [vmem:[%s533 + $0x458] sm:$0xff]
      %v2782 = vld [vmem:[%s533 + $0x460] sm:$0xff]
      %v2783 = vld [vmem:[%s533 + $0x468] sm:$0xff]
      %v2784 = vld [vmem:[%s533 + $0x470] sm:$0xff]
      %v2785 = vld [vmem:[%s533 + $0x478] sm:$0xff]
      %v2786 = vld [vmem:[%s533 + $0x480] sm:$0xff]
      %v2787 = vld [vmem:[%s533 + $0x488] sm:$0xff]
      %v2788 = vld [vmem:[%s533 + $0x490] sm:$0xff]
      %v2789 = vld [vmem:[%s533 + $0x498] sm:$0xff]
      %v2790 = vld [vmem:[%s533 + $0x4a0] sm:$0xff]
      %v2791 = vld [vmem:[%s533 + $0x4a8] sm:$0xff]
      %v2792 = vld [vmem:[%s533 + $0x4b0] sm:$0xff]
      %v2793 = vld [vmem:[%s533 + $0x4b8] sm:$0xff]
      %v2794 = vld [vmem:[%s533 + $0x4c0] sm:$0xff]
      %v2795 = vld [vmem:[%s533 + $0x4c8] sm:$0xff]
      %v2796 = vld [vmem:[%s533 + $0x4d0] sm:$0xff]
      %v2797 = vld [vmem:[%s533 + $0x4d8] sm:$0xff]
      %v2798 = vld [vmem:[%s533 + $0x4e0] sm:$0xff]
      %v2799 = vld [vmem:[%s533 + $0x4e8] sm:$0xff]
      %v2800 = vld [vmem:[%s533 + $0x4f0] sm:$0xff]
      %v2801 = vld [vmem:[%s533 + $0x4f8] sm:$0xff]
      %v2802 = vld [vmem:[%s533 + $0x500] sm:$0xff]
      %v2803 = vld [vmem:[%s533 + $0x508] sm:$0xff]
      %v2804 = vld [vmem:[%s533 + $0x510] sm:$0xff]
      %v2805 = vld [vmem:[%s533 + $0x518] sm:$0xff]
      %v2806 = vld [vmem:[%s533 + $0x520] sm:$0xff]
      %v2807 = vld [vmem:[%s533 + $0x528] sm:$0xff]
      %v2808 = vld [vmem:[%s533 + $0x530] sm:$0xff]
      %v2809 = vld [vmem:[%s533 + $0x538] sm:$0xff]
      %v2810 = vld [vmem:[%s533 + $0x540] sm:$0xff]
      %v2811 = vld [vmem:[%s533 + $0x548] sm:$0xff]
      %v2812 = vld [vmem:[%s533 + $0x550] sm:$0xff]
      %v2813 = vld [vmem:[%s533 + $0x558] sm:$0xff]
      %v2814 = vld [vmem:[%s533 + $0x560] sm:$0xff]
      %v2815 = vld [vmem:[%s533 + $0x568] sm:$0xff]
      %v2816 = vld [vmem:[%s533 + $0x570] sm:$0xff]
      %v2817 = vld [vmem:[%s533 + $0x578] sm:$0xff]
      %v2818 = vld [vmem:[%s533 + $0x580] sm:$0xff]
      %v2819 = vld [vmem:[%s533 + $0x588] sm:$0xff]
      %v2820 = vld [vmem:[%s533 + $0x590] sm:$0xff]
      %v2821 = vld [vmem:[%s533 + $0x598] sm:$0xff]
      %v2822 = vld [vmem:[%s533 + $0x5a0] sm:$0xff]
      %v2823 = vld [vmem:[%s533 + $0x5a8] sm:$0xff]
      %v2824 = vld [vmem:[%s533 + $0x5b0] sm:$0xff]
      %v2825 = vld [vmem:[%s533 + $0x5b8] sm:$0xff]
      %v2826 = vld [vmem:[%s533 + $0x5c0] sm:$0xff]
      %v2827 = vld [vmem:[%s533 + $0x5c8] sm:$0xff]
      %v2828 = vld [vmem:[%s533 + $0x5d0] sm:$0xff]
      %v2829 = vld [vmem:[%s533 + $0x5d8] sm:$0xff]
      %v2830 = vld [vmem:[%s533 + $0x5e0] sm:$0xff]
      %v2831 = vld [vmem:[%s533 + $0x5e8] sm:$0xff]
      %v2832 = vld [vmem:[%s533 + $0x5f0] sm:$0xff]
      %v2833 = vld [vmem:[%s533 + $0x5f8] sm:$0xff]
      %v2834 = vld [vmem:[%s533 + $0x600] sm:$0xff]
      %v2835 = vld [vmem:[%s533 + $0x608] sm:$0xff]
      %v2836 = vld [vmem:[%s533 + $0x610] sm:$0xff]
      %v2837 = vld [vmem:[%s533 + $0x618] sm:$0xff]
      %v2838 = vld [vmem:[%s533 + $0x620] sm:$0xff]
      %v2839 = vld [vmem:[%s533 + $0x628] sm:$0xff]
      %v2840 = vld [vmem:[%s533 + $0x630] sm:$0xff]
      %v2841 = vld [vmem:[%s533 + $0x638] sm:$0xff]
      %v2842 = vld [vmem:[%s533 + $0x640] sm:$0xff]
      %v2843 = vld [vmem:[%s533 + $0x648] sm:$0xff]
      %v2844 = vld [vmem:[%s533 + $0x650] sm:$0xff]
      %v2845 = vld [vmem:[%s533 + $0x658] sm:$0xff]
      %v2846 = vld [vmem:[%s533 + $0x660] sm:$0xff]
      %v2847 = vld [vmem:[%s533 + $0x668] sm:$0xff]
      %v2848 = vld [vmem:[%s533 + $0x670] sm:$0xff]
      %v2849 = vld [vmem:[%s533 + $0x678] sm:$0xff]
      %v2850 = vld [vmem:[%s533 + $0x680] sm:$0xff]
      %v2851 = vld [vmem:[%s533 + $0x688] sm:$0xff]
      %v2852 = vld [vmem:[%s533 + $0x690] sm:$0xff]
      %v2853 = vld [vmem:[%s533 + $0x698] sm:$0xff]
      %v2854 = vld [vmem:[%s533 + $0x6a0] sm:$0xff]
      %v2855 = vld [vmem:[%s533 + $0x6a8] sm:$0xff]
      %v2856 = vld [vmem:[%s533 + $0x6b0] sm:$0xff]
      %v2857 = vld [vmem:[%s533 + $0x6b8] sm:$0xff]
      %v2858 = vld [vmem:[%s533 + $0x6c0] sm:$0xff]
      %v2859 = vld [vmem:[%s533 + $0x6c8] sm:$0xff]
      %v2860 = vld [vmem:[%s533 + $0x6d0] sm:$0xff]
      %v2861 = vld [vmem:[%s533 + $0x6d8] sm:$0xff]
      %v2862 = vld [vmem:[%s533 + $0x6e0] sm:$0xff]
      %v2863 = vld [vmem:[%s533 + $0x6e8] sm:$0xff]
      %v2864 = vld [vmem:[%s533 + $0x6f0] sm:$0xff]
      %v2865 = vld [vmem:[%s533 + $0x6f8] sm:$0xff]
      %v2866 = vld [vmem:[%s533 + $0x700] sm:$0xff]
      %v2867 = vld [vmem:[%s533 + $0x708] sm:$0xff]
      %v2868 = vld [vmem:[%s533 + $0x710] sm:$0xff]
      %v2869 = vld [vmem:[%s533 + $0x718] sm:$0xff]
      %v2870 = vld [vmem:[%s533 + $0x720] sm:$0xff]
      %v2871 = vld [vmem:[%s533 + $0x728] sm:$0xff]
      %v2872 = vld [vmem:[%s533 + $0x730] sm:$0xff]
      %v2873 = vld [vmem:[%s533 + $0x738] sm:$0xff]
      %v2874 = vld [vmem:[%s533 + $0x740] sm:$0xff]
      %v2875 = vld [vmem:[%s533 + $0x748] sm:$0xff]
      %v2876 = vld [vmem:[%s533 + $0x750] sm:$0xff]
      %v2877 = vld [vmem:[%s533 + $0x758] sm:$0xff]
      %v2878 = vld [vmem:[%s533 + $0x760] sm:$0xff]
      %v2879 = vld [vmem:[%s533 + $0x768] sm:$0xff]
      %v2880 = vld [vmem:[%s533 + $0x770] sm:$0xff]
      %v2881 = vld [vmem:[%s533 + $0x778] sm:$0xff]
      %v2882 = vld [vmem:[%s533 + $0x780] sm:$0xff]
      %v2883 = vld [vmem:[%s533 + $0x788] sm:$0xff]
      %v2884 = vld [vmem:[%s533 + $0x790] sm:$0xff]
      %v2885 = vld [vmem:[%s533 + $0x798] sm:$0xff]
      %v2886 = vld [vmem:[%s533 + $0x7a0] sm:$0xff]
      %v2887 = vld [vmem:[%s533 + $0x7a8] sm:$0xff]
      %v2888 = vld [vmem:[%s533 + $0x7b0] sm:$0xff]
      %v2889 = vld [vmem:[%s533 + $0x7b8] sm:$0xff]
      %v2890 = vld [vmem:[%s533 + $0x7c0] sm:$0xff]
      %v2891 = vld [vmem:[%s533 + $0x7c8] sm:$0xff]
      %v2892 = vld [vmem:[%s533 + $0x7d0] sm:$0xff]
      %v2893 = vld [vmem:[%s533 + $0x7d8] sm:$0xff]
      %v2894 = vld [vmem:[%s533 + $0x7e0] sm:$0xff]
      %v2895 = vld [vmem:[%s533 + $0x7e8] sm:$0xff]
      %v2896 = vld [vmem:[%s533 + $0x7f0] sm:$0xff]
      %v2897 = vld [vmem:[%s533 + $0x7f8] sm:$0xff]
      %v2898 = vperm.slane %v553, 2
      %2899 = vmatpush.msra.mxu0 %v2657
      %2900 = vmatpush.msra.mxu0 %v2656
      %2901 = vmatpush.msra.mxu0 %v2655
      %2902 = vmatpush.msra.mxu0 %v2654
      %2903 = vmatpush.msra.mxu0 %v2653
      %2904 = vmatpush.msra.mxu0 %v2652
      %2905 = vmatpush.msra.mxu0 %v2651
      %2906 = vmatpush.msra.mxu0 %v2650
      %2907 = vmatpush.msra.mxu0 %v2649
      %2908 = vmatpush.msra.mxu0 %v2648
      %2909 = vmatpush.msra.mxu0 %v2647
      %2910 = vmatpush.msra.mxu0 %v2646
      %2911 = vmatpush.msra.mxu0 %v2645
      %2912 = vmatpush.msra.mxu0 %v2644
      %2913 = vmatpush.msra.mxu0 %v2643
      %2914 = vmatpush.msra.mxu0 %v2642
      %2915 = vmatmul.f32.gmra.mxu0 %v2610
      %v2916 = vpop.f32.mrf.mxu0
      %v2917 = vadd.f32 %v2898, %v2916
      %2918 = vmatmul.f32.gmra.mxu0 %v2626
      %v2919 = vpop.f32.mrf.mxu0
      %v2920 = vadd.f32 %v2898, %v2919
      %2921 = vdwg.mxu0
      %2922 = vmatpush.msra.mxu0 %v2673
      %2923 = vmatpush.msra.mxu0 %v2672
      %2924 = vmatpush.msra.mxu0 %v2671
      %2925 = vmatpush.msra.mxu0 %v2670
      %2926 = vmatpush.msra.mxu0 %v2669
      %2927 = vmatpush.msra.mxu0 %v2668
      %2928 = vmatpush.msra.mxu0 %v2667
      %2929 = vmatpush.msra.mxu0 %v2666
      %2930 = vmatpush.msra.mxu0 %v2665
      %2931 = vmatpush.msra.mxu0 %v2664
      %2932 = vmatpush.msra.mxu0 %v2663
      %2933 = vmatpush.msra.mxu0 %v2662
      %2934 = vmatpush.msra.mxu0 %v2661
      %2935 = vmatpush.msra.mxu0 %v2660
      %2936 = vmatpush.msra.mxu0 %v2659
      %2937 = vmatpush.msra.mxu0 %v2658
      %2938 = vmatmul.f32.gmra.mxu0 %v2611
      %v2939 = vpop.f32.mrf.mxu0
      %v2940 = vadd.f32 %v2917, %v2939
      %2941 = vmatmul.f32.gmra.mxu0 %v2627
      %v2942 = vpop.f32.mrf.mxu0
      %v2943 = vadd.f32 %v2920, %v2942
      %2944 = vdwg.mxu0
      %2945 = vmatpush.msra.mxu0 %v2689
      %2946 = vmatpush.msra.mxu0 %v2688
      %2947 = vmatpush.msra.mxu0 %v2687
      %2948 = vmatpush.msra.mxu0 %v2686
      %2949 = vmatpush.msra.mxu0 %v2685
      %2950 = vmatpush.msra.mxu0 %v2684
      %2951 = vmatpush.msra.mxu0 %v2683
      %2952 = vmatpush.msra.mxu0 %v2682
      %2953 = vmatpush.msra.mxu0 %v2681
      %2954 = vmatpush.msra.mxu0 %v2680
      %2955 = vmatpush.msra.mxu0 %v2679
      %2956 = vmatpush.msra.mxu0 %v2678
      %2957 = vmatpush.msra.mxu0 %v2677
      %2958 = vmatpush.msra.mxu0 %v2676
      %2959 = vmatpush.msra.mxu0 %v2675
      %2960 = vmatpush.msra.mxu0 %v2674
      %2961 = vmatmul.f32.gmra.mxu0 %v2612
      %v2962 = vpop.f32.mrf.mxu0
      %v2963 = vadd.f32 %v2940, %v2962
      %2964 = vmatmul.f32.gmra.mxu0 %v2628
      %v2965 = vpop.f32.mrf.mxu0
      %v2966 = vadd.f32 %v2943, %v2965
      %2967 = vdwg.mxu0
      %2968 = vmatpush.msra.mxu0 %v2705
      %2969 = vmatpush.msra.mxu0 %v2704
      %2970 = vmatpush.msra.mxu0 %v2703
      %2971 = vmatpush.msra.mxu0 %v2702
      %2972 = vmatpush.msra.mxu0 %v2701
      %2973 = vmatpush.msra.mxu0 %v2700
      %2974 = vmatpush.msra.mxu0 %v2699
      %2975 = vmatpush.msra.mxu0 %v2698
      %2976 = vmatpush.msra.mxu0 %v2697
      %2977 = vmatpush.msra.mxu0 %v2696
      %2978 = vmatpush.msra.mxu0 %v2695
      %2979 = vmatpush.msra.mxu0 %v2694
      %2980 = vmatpush.msra.mxu0 %v2693
      %2981 = vmatpush.msra.mxu0 %v2692
      %2982 = vmatpush.msra.mxu0 %v2691
      %2983 = vmatpush.msra.mxu0 %v2690
      %2984 = vmatmul.f32.gmra.mxu0 %v2613
      %v2985 = vpop.f32.mrf.mxu0
      %v2986 = vadd.f32 %v2963, %v2985
      %2987 = vmatmul.f32.gmra.mxu0 %v2629
      %v2988 = vpop.f32.mrf.mxu0
      %v2989 = vadd.f32 %v2966, %v2988
      %2990 = vdwg.mxu0
      %2991 = vmatpush.msra.mxu0 %v2721
      %2992 = vmatpush.msra.mxu0 %v2720
      %2993 = vmatpush.msra.mxu0 %v2719
      %2994 = vmatpush.msra.mxu0 %v2718
      %2995 = vmatpush.msra.mxu0 %v2717
      %2996 = vmatpush.msra.mxu0 %v2716
      %2997 = vmatpush.msra.mxu0 %v2715
      %2998 = vmatpush.msra.mxu0 %v2714
      %2999 = vmatpush.msra.mxu0 %v2713
      %3000 = vmatpush.msra.mxu0 %v2712
      %3001 = vmatpush.msra.mxu0 %v2711
      %3002 = vmatpush.msra.mxu0 %v2710
      %3003 = vmatpush.msra.mxu0 %v2709
      %3004 = vmatpush.msra.mxu0 %v2708
      %3005 = vmatpush.msra.mxu0 %v2707
      %3006 = vmatpush.msra.mxu0 %v2706
      %3007 = vmatmul.f32.gmra.mxu0 %v2614
      %v3008 = vpop.f32.mrf.mxu0
      %v3009 = vadd.f32 %v2986, %v3008
      %3010 = vmatmul.f32.gmra.mxu0 %v2630
      %v3011 = vpop.f32.mrf.mxu0
      %v3012 = vadd.f32 %v2989, %v3011
      %3013 = vdwg.mxu0
      %3014 = vmatpush.msra.mxu0 %v2737
      %3015 = vmatpush.msra.mxu0 %v2736
      %3016 = vmatpush.msra.mxu0 %v2735
      %3017 = vmatpush.msra.mxu0 %v2734
      %3018 = vmatpush.msra.mxu0 %v2733
      %3019 = vmatpush.msra.mxu0 %v2732
      %3020 = vmatpush.msra.mxu0 %v2731
      %3021 = vmatpush.msra.mxu0 %v2730
      %3022 = vmatpush.msra.mxu0 %v2729
      %3023 = vmatpush.msra.mxu0 %v2728
      %3024 = vmatpush.msra.mxu0 %v2727
      %3025 = vmatpush.msra.mxu0 %v2726
      %3026 = vmatpush.msra.mxu0 %v2725
      %3027 = vmatpush.msra.mxu0 %v2724
      %3028 = vmatpush.msra.mxu0 %v2723
      %3029 = vmatpush.msra.mxu0 %v2722
      %3030 = vmatmul.f32.gmra.mxu0 %v2615
      %v3031 = vpop.f32.mrf.mxu0
      %v3032 = vadd.f32 %v3009, %v3031
      %3033 = vmatmul.f32.gmra.mxu0 %v2631
      %v3034 = vpop.f32.mrf.mxu0
      %v3035 = vadd.f32 %v3012, %v3034
      %3036 = vdwg.mxu0
      %3037 = vmatpush.msra.mxu0 %v2753
      %3038 = vmatpush.msra.mxu0 %v2752
      %3039 = vmatpush.msra.mxu0 %v2751
      %3040 = vmatpush.msra.mxu0 %v2750
      %3041 = vmatpush.msra.mxu0 %v2749
      %3042 = vmatpush.msra.mxu0 %v2748
      %3043 = vmatpush.msra.mxu0 %v2747
      %3044 = vmatpush.msra.mxu0 %v2746
      %3045 = vmatpush.msra.mxu0 %v2745
      %3046 = vmatpush.msra.mxu0 %v2744
      %3047 = vmatpush.msra.mxu0 %v2743
      %3048 = vmatpush.msra.mxu0 %v2742
      %3049 = vmatpush.msra.mxu0 %v2741
      %3050 = vmatpush.msra.mxu0 %v2740
      %3051 = vmatpush.msra.mxu0 %v2739
      %3052 = vmatpush.msra.mxu0 %v2738
      %3053 = vmatmul.f32.gmra.mxu0 %v2616
      %v3054 = vpop.f32.mrf.mxu0
      %v3055 = vadd.f32 %v3032, %v3054
      %3056 = vmatmul.f32.gmra.mxu0 %v2632
      %v3057 = vpop.f32.mrf.mxu0
      %v3058 = vadd.f32 %v3035, %v3057
      %3059 = vdwg.mxu0
      %3060 = vmatpush.msra.mxu0 %v2769
      %3061 = vmatpush.msra.mxu0 %v2768
      %3062 = vmatpush.msra.mxu0 %v2767
      %3063 = vmatpush.msra.mxu0 %v2766
      %3064 = vmatpush.msra.mxu0 %v2765
      %3065 = vmatpush.msra.mxu0 %v2764
      %3066 = vmatpush.msra.mxu0 %v2763
      %3067 = vmatpush.msra.mxu0 %v2762
      %3068 = vmatpush.msra.mxu0 %v2761
      %3069 = vmatpush.msra.mxu0 %v2760
      %3070 = vmatpush.msra.mxu0 %v2759
      %3071 = vmatpush.msra.mxu0 %v2758
      %3072 = vmatpush.msra.mxu0 %v2757
      %3073 = vmatpush.msra.mxu0 %v2756
      %3074 = vmatpush.msra.mxu0 %v2755
      %3075 = vmatpush.msra.mxu0 %v2754
      %3076 = vmatmul.f32.gmra.mxu0 %v2617
      %v3077 = vpop.f32.mrf.mxu0
      %v3078 = vadd.f32 %v3055, %v3077
      %3079 = vmatmul.f32.gmra.mxu0 %v2633
      %v3080 = vpop.f32.mrf.mxu0
      %v3081 = vadd.f32 %v3058, %v3080
      %3082 = vdwg.mxu0
      %3083 = vmatpush.msra.mxu0 %v2785
      %3084 = vmatpush.msra.mxu0 %v2784
      %3085 = vmatpush.msra.mxu0 %v2783
      %3086 = vmatpush.msra.mxu0 %v2782
      %3087 = vmatpush.msra.mxu0 %v2781
      %3088 = vmatpush.msra.mxu0 %v2780
      %3089 = vmatpush.msra.mxu0 %v2779
      %3090 = vmatpush.msra.mxu0 %v2778
      %3091 = vmatpush.msra.mxu0 %v2777
      %3092 = vmatpush.msra.mxu0 %v2776
      %3093 = vmatpush.msra.mxu0 %v2775
      %3094 = vmatpush.msra.mxu0 %v2774
      %3095 = vmatpush.msra.mxu0 %v2773
      %3096 = vmatpush.msra.mxu0 %v2772
      %3097 = vmatpush.msra.mxu0 %v2771
      %3098 = vmatpush.msra.mxu0 %v2770
      %3099 = vmatmul.f32.gmra.mxu0 %v2618
      %v3100 = vpop.f32.mrf.mxu0
      %v3101 = vadd.f32 %v3078, %v3100
      %3102 = vmatmul.f32.gmra.mxu0 %v2634
      %v3103 = vpop.f32.mrf.mxu0
      %v3104 = vadd.f32 %v3081, %v3103
      %3105 = vdwg.mxu0
      %3106 = vmatpush.msra.mxu0 %v2801
      %3107 = vmatpush.msra.mxu0 %v2800
      %3108 = vmatpush.msra.mxu0 %v2799
      %3109 = vmatpush.msra.mxu0 %v2798
      %3110 = vmatpush.msra.mxu0 %v2797
      %3111 = vmatpush.msra.mxu0 %v2796
      %3112 = vmatpush.msra.mxu0 %v2795
      %3113 = vmatpush.msra.mxu0 %v2794
      %3114 = vmatpush.msra.mxu0 %v2793
      %3115 = vmatpush.msra.mxu0 %v2792
      %3116 = vmatpush.msra.mxu0 %v2791
      %3117 = vmatpush.msra.mxu0 %v2790
      %3118 = vmatpush.msra.mxu0 %v2789
      %3119 = vmatpush.msra.mxu0 %v2788
      %3120 = vmatpush.msra.mxu0 %v2787
      %3121 = vmatpush.msra.mxu0 %v2786
      %3122 = vmatmul.f32.gmra.mxu0 %v2619
      %v3123 = vpop.f32.mrf.mxu0
      %v3124 = vadd.f32 %v3101, %v3123
      %3125 = vmatmul.f32.gmra.mxu0 %v2635
      %v3126 = vpop.f32.mrf.mxu0
      %v3127 = vadd.f32 %v3104, %v3126
      %3128 = vdwg.mxu0
      %3129 = vmatpush.msra.mxu0 %v2817
      %3130 = vmatpush.msra.mxu0 %v2816
      %3131 = vmatpush.msra.mxu0 %v2815
      %3132 = vmatpush.msra.mxu0 %v2814
      %3133 = vmatpush.msra.mxu0 %v2813
      %3134 = vmatpush.msra.mxu0 %v2812
      %3135 = vmatpush.msra.mxu0 %v2811
      %3136 = vmatpush.msra.mxu0 %v2810
      %3137 = vmatpush.msra.mxu0 %v2809
      %3138 = vmatpush.msra.mxu0 %v2808
      %3139 = vmatpush.msra.mxu0 %v2807
      %3140 = vmatpush.msra.mxu0 %v2806
      %3141 = vmatpush.msra.mxu0 %v2805
      %3142 = vmatpush.msra.mxu0 %v2804
      %3143 = vmatpush.msra.mxu0 %v2803
      %3144 = vmatpush.msra.mxu0 %v2802
      %3145 = vmatmul.f32.gmra.mxu0 %v2620
      %v3146 = vpop.f32.mrf.mxu0
      %v3147 = vadd.f32 %v3124, %v3146
      %3148 = vmatmul.f32.gmra.mxu0 %v2636
      %v3149 = vpop.f32.mrf.mxu0
      %v3150 = vadd.f32 %v3127, %v3149
      %3151 = vdwg.mxu0
      %3152 = vmatpush.msra.mxu0 %v2833
      %3153 = vmatpush.msra.mxu0 %v2832
      %3154 = vmatpush.msra.mxu0 %v2831
      %3155 = vmatpush.msra.mxu0 %v2830
      %3156 = vmatpush.msra.mxu0 %v2829
      %3157 = vmatpush.msra.mxu0 %v2828
      %3158 = vmatpush.msra.mxu0 %v2827
      %3159 = vmatpush.msra.mxu0 %v2826
      %3160 = vmatpush.msra.mxu0 %v2825
      %3161 = vmatpush.msra.mxu0 %v2824
      %3162 = vmatpush.msra.mxu0 %v2823
      %3163 = vmatpush.msra.mxu0 %v2822
      %3164 = vmatpush.msra.mxu0 %v2821
      %3165 = vmatpush.msra.mxu0 %v2820
      %3166 = vmatpush.msra.mxu0 %v2819
      %3167 = vmatpush.msra.mxu0 %v2818
      %3168 = vmatmul.f32.gmra.mxu0 %v2621
      %v3169 = vpop.f32.mrf.mxu0
      %v3170 = vadd.f32 %v3147, %v3169
      %3171 = vmatmul.f32.gmra.mxu0 %v2637
      %v3172 = vpop.f32.mrf.mxu0
      %v3173 = vadd.f32 %v3150, %v3172
      %3174 = vdwg.mxu0
      %3175 = vmatpush.msra.mxu0 %v2849
      %3176 = vmatpush.msra.mxu0 %v2848
      %3177 = vmatpush.msra.mxu0 %v2847
      %3178 = vmatpush.msra.mxu0 %v2846
      %3179 = vmatpush.msra.mxu0 %v2845
      %3180 = vmatpush.msra.mxu0 %v2844
      %3181 = vmatpush.msra.mxu0 %v2843
      %3182 = vmatpush.msra.mxu0 %v2842
      %3183 = vmatpush.msra.mxu0 %v2841
      %3184 = vmatpush.msra.mxu0 %v2840
      %3185 = vmatpush.msra.mxu0 %v2839
      %3186 = vmatpush.msra.mxu0 %v2838
      %3187 = vmatpush.msra.mxu0 %v2837
      %3188 = vmatpush.msra.mxu0 %v2836
      %3189 = vmatpush.msra.mxu0 %v2835
      %3190 = vmatpush.msra.mxu0 %v2834
      %3191 = vmatmul.f32.gmra.mxu0 %v2622
      %v3192 = vpop.f32.mrf.mxu0
      %v3193 = vadd.f32 %v3170, %v3192
      %3194 = vmatmul.f32.gmra.mxu0 %v2638
      %v3195 = vpop.f32.mrf.mxu0
      %v3196 = vadd.f32 %v3173, %v3195
      %3197 = vdwg.mxu0
      %3198 = vmatpush.msra.mxu0 %v2865
      %3199 = vmatpush.msra.mxu0 %v2864
      %3200 = vmatpush.msra.mxu0 %v2863
      %3201 = vmatpush.msra.mxu0 %v2862
      %3202 = vmatpush.msra.mxu0 %v2861
      %3203 = vmatpush.msra.mxu0 %v2860
      %3204 = vmatpush.msra.mxu0 %v2859
      %3205 = vmatpush.msra.mxu0 %v2858
      %3206 = vmatpush.msra.mxu0 %v2857
      %3207 = vmatpush.msra.mxu0 %v2856
      %3208 = vmatpush.msra.mxu0 %v2855
      %3209 = vmatpush.msra.mxu0 %v2854
      %3210 = vmatpush.msra.mxu0 %v2853
      %3211 = vmatpush.msra.mxu0 %v2852
      %3212 = vmatpush.msra.mxu0 %v2851
      %3213 = vmatpush.msra.mxu0 %v2850
      %3214 = vmatmul.f32.gmra.mxu0 %v2623
      %v3215 = vpop.f32.mrf.mxu0
      %v3216 = vadd.f32 %v3193, %v3215
      %3217 = vmatmul.f32.gmra.mxu0 %v2639
      %v3218 = vpop.f32.mrf.mxu0
      %v3219 = vadd.f32 %v3196, %v3218
      %3220 = vdwg.mxu0
      %3221 = vmatpush.msra.mxu0 %v2881
      %3222 = vmatpush.msra.mxu0 %v2880
      %3223 = vmatpush.msra.mxu0 %v2879
      %3224 = vmatpush.msra.mxu0 %v2878
      %3225 = vmatpush.msra.mxu0 %v2877
      %3226 = vmatpush.msra.mxu0 %v2876
      %3227 = vmatpush.msra.mxu0 %v2875
      %3228 = vmatpush.msra.mxu0 %v2874
      %3229 = vmatpush.msra.mxu0 %v2873
      %3230 = vmatpush.msra.mxu0 %v2872
      %3231 = vmatpush.msra.mxu0 %v2871
      %3232 = vmatpush.msra.mxu0 %v2870
      %3233 = vmatpush.msra.mxu0 %v2869
      %3234 = vmatpush.msra.mxu0 %v2868
      %3235 = vmatpush.msra.mxu0 %v2867
      %3236 = vmatpush.msra.mxu0 %v2866
      %3237 = vmatmul.f32.gmra.mxu0 %v2624
      %v3238 = vpop.f32.mrf.mxu0
      %v3239 = vadd.f32 %v3216, %v3238
      %3240 = vmatmul.f32.gmra.mxu0 %v2640
      %v3241 = vpop.f32.mrf.mxu0
      %v3242 = vadd.f32 %v3219, %v3241
      %3243 = vdwg.mxu0
      %3244 = vmatpush.msra.mxu0 %v2897
      %3245 = vmatpush.msra.mxu0 %v2896
      %3246 = vmatpush.msra.mxu0 %v2895
      %3247 = vmatpush.msra.mxu0 %v2894
      %3248 = vmatpush.msra.mxu0 %v2893
      %3249 = vmatpush.msra.mxu0 %v2892
      %3250 = vmatpush.msra.mxu0 %v2891
      %3251 = vmatpush.msra.mxu0 %v2890
      %3252 = vmatpush.msra.mxu0 %v2889
      %3253 = vmatpush.msra.mxu0 %v2888
      %3254 = vmatpush.msra.mxu0 %v2887
      %3255 = vmatpush.msra.mxu0 %v2886
      %3256 = vmatpush.msra.mxu0 %v2885
      %3257 = vmatpush.msra.mxu0 %v2884
      %3258 = vmatpush.msra.mxu0 %v2883
      %3259 = vmatpush.msra.mxu0 %v2882
      %3260 = vmatmul.f32.gmra.mxu0 %v2625
      %v3261 = vpop.f32.mrf.mxu0
      %v3262 = vadd.f32 %v3239, %v3261
      %3263 = vmatmul.f32.gmra.mxu0 %v2641
      %v3264 = vpop.f32.mrf.mxu0
      %v3265 = vadd.f32 %v3242, %v3264
      %3266 = vdwg.mxu0
      %v3267 = vadd.f32 %v2154, %v3262
      %v3268 = vadd.f32 %v2155, %v3265
      %v3269 = vsel %vm574, %v3267, 0.0
      %3270 = vadd.xlane.f32.xlu0 %v3269
      %v3271 = vpop.xlane.xlu0 %3270
      %v3272 = vsel %vm574, %v3268, 0.0
      %3273 = vadd.xlane.f32.xlu0 %v3272
      %v3274 = vpop.xlane.xlu0 %3273
      %v3275 = vmul.f32 %v3271, %v1307
      %v3276 = vmul.f32 %v3274, %v1307
      %v3277 = vsub.f32 %v3267, %v3275
      %v3278 = vsub.f32 %v3268, %v3276
      %v3279 = vmul.f32 %v3277, %v3277
      %v3280 = vmul.f32 %v3278, %v3278
      %v3281 = vsel %vm574, %v3279, 0.0
      %3282 = vadd.xlane.f32.xlu0 %v3281
      %v3283 = vpop.xlane.xlu0 %3282
      %v3284 = vsel %vm574, %v3280, 0.0
      %3285 = vadd.xlane.f32.xlu0 %v3284
      %v3286 = vpop.xlane.xlu0 %3285
      %v3287 = vmul.f32 %v3283, %v1307
      %v3288 = vmul.f32 %v3286, %v1307
      %v3289 = vadd.f32 %v3287, 1e-05
      %v3290 = vadd.f32 %v3288, 1e-05
      %v3291 = vrsqrt.pop %v3289
      %v3292 = vmul.f32 %v3291, %v3289
      %v3293 = vmul.f32 %v3292, %v3291
      %v3294 = vmul.f32 0.5, %v3293
      %v3295 = vsub.f32 1.5, %v3294
      %v3296 = vmul.f32 %v3291, %v3295
      %vm3297 = vweird.f32 %v3289
      %vm3298 = vweird.f32 %v3291
      %vm3299 = vmor %vm3297, %vm3298
      %v3300 = vsel %vm3299, %v3291, %v3296
      %v3301 = vrsqrt.pop %v3290
      %v3302 = vmul.f32 %v3301, %v3290
      %v3303 = vmul.f32 %v3302, %v3301
      %v3304 = vmul.f32 0.5, %v3303
      %v3305 = vsub.f32 1.5, %v3304
      %v3306 = vmul.f32 %v3301, %v3305
      %vm3307 = vweird.f32 %v3290
      %vm3308 = vweird.f32 %v3301
      %vm3309 = vmor %vm3307, %vm3308
      %v3310 = vsel %vm3309, %v3301, %v3306
      %v3311 = vmul.f32 %v3277, %v3300
      %v3312 = vmul.f32 %v3278, %v3310
      %v3313 = vperm.slane %v553, 3
      %v3314 = vmul.f32 %v3311, %v3313
      %v3315 = vmul.f32 %v3312, %v3313
      %v3316 = vperm.slane %v553, 4
      %v3317 = vadd.f32 %v3314, %v3316
      %v3318 = vadd.f32 %v3315, %v3316
      %3319 = vst.msk [vmem:[#allocation2] sm:$0xff] %vm574, %v3317
      %3320 = vst.msk [vmem:[#allocation2 + $0x8] sm:$0xff] %vm574, %v3318
      %p3321 = scmp.eq.s32.totalorder %s23, 5
      // Predicated region
      $region73: #{transformer_forward.3} parent=67 // pred_check
        %p3322 = pneg %p3321
      $region74: #{transformer_forward.3} parent=67 // pred_check_branch
        %3324 = sbr.rel (%p3322) target = $region76
      $region75: #{transformer_forward.3} parent=67 // pred_region
        %v3325 = vld [vmem:[%s2] sm:$0x1]
        %v3326 = vld [vmem:[%s2 + $0x1] sm:$0x1]
        %v3327 = vsel %vm574, %v3317, 0.0
        %3328 = vadd.xlane.f32.xlu0 %v3327
        %v3329 = vpop.xlane.xlu0 %3328
        %v3330 = vsel %vm574, %v3318, 0.0
        %3331 = vadd.xlane.f32.xlu0 %v3330
        %v3332 = vpop.xlane.xlu0 %3331
        %v3333 = vmul.f32 %v3329, %v1307
        %v3334 = vmul.f32 %v3332, %v1307
        %v3335 = vsub.f32 %v3317, %v3333
        %v3336 = vsub.f32 %v3318, %v3334
        %v3337 = vmul.f32 %v3335, %v3335
        %v3338 = vmul.f32 %v3336, %v3336
        %v3339 = vsel %vm574, %v3337, 0.0
        %3340 = vadd.xlane.f32.xlu0 %v3339
        %v3341 = vpop.xlane.xlu0 %3340
        %v3342 = vsel %vm574, %v3338, 0.0
        %3343 = vadd.xlane.f32.xlu0 %v3342
        %v3344 = vpop.xlane.xlu0 %3343
        %v3345 = vmul.f32 %v3341, %v1307
        %v3346 = vmul.f32 %v3344, %v1307
        %v3347 = vadd.f32 %v3345, 1e-05
        %v3348 = vadd.f32 %v3346, 1e-05
        %v3349 = vrsqrt.pop %v3347
        %v3350 = vmul.f32 %v3349, %v3347
        %v3351 = vmul.f32 %v3350, %v3349
        %v3352 = vmul.f32 0.5, %v3351
        %v3353 = vsub.f32 1.5, %v3352
        %v3354 = vmul.f32 %v3349, %v3353
        %vm3355 = vweird.f32 %v3347
        %vm3356 = vweird.f32 %v3349
        %vm3357 = vmor %vm3355, %vm3356
        %v3358 = vsel %vm3357, %v3349, %v3354
        %v3359 = vrsqrt.pop %v3348
        %v3360 = vmul.f32 %v3359, %v3348
        %v3361 = vmul.f32 %v3360, %v3359
        %v3362 = vmul.f32 0.5, %v3361
        %v3363 = vsub.f32 1.5, %v3362
        %v3364 = vmul.f32 %v3359, %v3363
        %vm3365 = vweird.f32 %v3348
        %vm3366 = vweird.f32 %v3359
        %vm3367 = vmor %vm3365, %vm3366
        %v3368 = vsel %vm3367, %v3359, %v3364
        %v3369 = vmul.f32 %v3335, %v3358
        %v3370 = vmul.f32 %v3336, %v3368
        %v3371 = vperm.slane %v3325, 0
        %v3372 = vmul.f32 %v3369, %v3371
        %v3373 = vmul.f32 %v3370, %v3371
        %v3374 = vperm.slane %v3326, 0
        %v3375 = vadd.f32 %v3372, %v3374
        %v3376 = vadd.f32 %v3373, %v3374
        %v3377 = vld [vmem:[%s3] sm:$0xff]
        %v3378 = vld [vmem:[%s3 + $0x8] sm:$0xff]
        %v3379 = vld [vmem:[%s3 + $0x10] sm:$0xff]
        %v3380 = vld [vmem:[%s3 + $0x18] sm:$0xff]
        %v3381 = vld [vmem:[%s2 + $0x2] sm:$0x1]
        %v3382 = vperm.slane %v3381, 0
        %v3384 = vsel %vm574, %v3375, 0
        %v3387 = vsel %vm574, %v3376, 0
        %3389 = vmatpush.msra.mxu0 0.0
        %3390 = vmatpush.msra.mxu0 0.0
        %3391 = vmatpush.msra.mxu0 0.0
        %3392 = vmatpush.msra.mxu0 0.0
        %3393 = vmatpush.msra.mxu0 0.0
        %3394 = vmatpush.msra.mxu0 0.0
        %3395 = vmatpush.msra.mxu0 0.0
        %3396 = vmatpush.msra.mxu0 0.0
        %3397 = vmatpush.msra.mxu0 0.0
        %3398 = vmatpush.msra.mxu0 0.0
        %3399 = vmatpush.msra.mxu0 0.0
        %3400 = vmatpush.msra.mxu0 0.0
        %3401 = vmatpush.msra.mxu0 %v3380
        %3402 = vmatpush.msra.mxu0 %v3379
        %3403 = vmatpush.msra.mxu0 %v3378
        %3404 = vmatpush.msra.mxu0 %v3377
        %3405 = vmatmul.f32.gmra.mxu0 %v3384
        %v3406 = vpop.f32.mrf.mxu0
        %v3407 = vadd.f32 %v3382, %v3406
        %3408 = vmatmul.f32.gmra.mxu0 %v3387
        %v3409 = vpop.f32.mrf.mxu0
        %v3410 = vadd.f32 %v3382, %v3409
        %3411 = vdwg.mxu0
        %vm3412 = vcmask 31744
        %3413 = vst.msk [vmem:[%s12] sm:$0xff] %vm3412, %v3407
        %3414 = vst.msk [vmem:[%s12 + $0x8] sm:$0xff] %vm3412, %v3410
      $region76: #{transformer_forward.3} parent=67 // pred_fallthru
        _
      // Predicated region
      $region77: #{transformer_forward.3} parent=67 // pred_check
        %p3415 = pneg %p328
      $region78: #{transformer_forward.3} parent=67 // pred_check_branch
        %3417 = sbr.rel (%p3415) target = $region80
      $region79: #{transformer_forward.3} parent=67 // pred_region
        _
      $region80: #{transformer_forward.3} parent=67 // pred_fallthru
        _
      // Predicated region
      $region81: #{transformer_forward.3} parent=67 // pred_check
        %p3418 = pneg %p328
      $region82: #{transformer_forward.3} parent=67 // pred_check_branch
        %3420 = sbr.rel (%p3418) target = $region84
      $region83: #{transformer_forward.3} parent=67 // pred_region
        _
      $region84: #{transformer_forward.3} parent=67 // pred_fallthru
        _
    $region68: #{transformer_forward.3} parent=5 // pred_fallthru
      _
    %p3421 = scmp.le.s32.totalorder 2, %s18
    // Predicated region
    $region85: #{transformer_forward.3} parent=5 // pred_check
      %p3422 = pneg %p3421
    $region86: #{transformer_forward.3} parent=5 // pred_check_branch
      %3424 = sbr.rel (%p3422) target = $region88
    $region87: #{transformer_forward.3} parent=5 // pred_region
      %s3425 = ssub.s32 %s18, 2
    $region88: #{transformer_forward.3} parent=5 // pred_fallthru
      _
  $region6: #{transformer_forward.3} parent=0 // loop_footer
    %s22 = sadd.s32 1, %s18
  $region7: #{transformer_forward.3} parent=0 // loop_footer_branch
    %17 = sbr.rel target = $region3
  $region8: #{transformer_forward.3} parent=0 // loop_exit
    _

</llo_original>
